<compile_context>
chip_gen: v7x
topology: tpu7x:2x2x1
jax: 0.10.0
libtpu: 0.0.40
codegen_flags: <defaults>
</compile_context>

<pallas_src>
import math
import functools

import numpy as np
import jax
import jax.numpy as jnp
from jax.experimental import pallas as pl
from jax.experimental.pallas import tpu as pltpu

# ----------------------------- configuration --------------------------------
B = 2              # batch
T = 8              # in_steps
OUT_STEPS = 3
E = 8              # num_nodes (edges)
INPUT_DIM = 3
OUTPUT_DIM = 3
STEPS_PER_DAY = 480
KERNEL_SIZE = 3    # odd, so decomposition preserves length

IN_EMB = 16
TOD_EMB = 16
DOW_EMB = 16
SPATIAL_EMB = 0
ADP_EMB = 16
D_MODEL = IN_EMB + TOD_EMB + DOW_EMB + SPATIAL_EMB + ADP_EMB   # 64

FF_DIM = 128
NUM_HEADS = 4
D_HEAD = D_MODEL // NUM_HEADS   # 16
NUM_LAYERS = 2

N_ROWS = B * E * T              # 128 activation rows, ordered (b, e, t)
QKV_W = 3 * D_MODEL             # 192
OUT_RAW = OUT_STEPS * OUTPUT_DIM            # 9
OUT_PAD = 128                   # lane-dense padded output width
NEG_INF = -1e9


# ----------------------------- parameter init -------------------------------
def init_linear(key, in_dim, out_dim):
    """PyTorch nn.Linear-style uniform init (deterministic)."""
    k1, k2 = jax.random.split(key)
    bound = 1.0 / math.sqrt(in_dim)
    w = jax.random.uniform(k1, (out_dim, in_dim), jnp.float32, -bound, bound)
    b = jax.random.uniform(k2, (out_dim,), jnp.float32, -bound, bound)
    return w, b


def xavier_uniform(key, shape):
    if len(shape) > 2:
        rf = int(np.prod(shape[2:]))
        fan_in, fan_out = shape[1] * rf, shape[0] * rf
    else:
        fan_in, fan_out = shape[1], shape[0]
    bound = math.sqrt(6.0 / (fan_in + fan_out))
    return jax.random.uniform(key, shape, jnp.float32, -bound, bound)


def moving_avg_matrix(t_len, k):
    """(T,T) matrix A s.t. (x @ A) == replicate-padded AvgPool1d(k, stride=1)."""
    p = (k - 1) // 2
    A = np.zeros((t_len, t_len), dtype=np.float32)
    for t in range(t_len):
        for j in range(k):
            s = min(max(t + j - p, 0), t_len - 1)
            A[s, t] += 1.0 / k
    return jnp.asarray(A)


def make_hop_masks(edge_spd, num_heads):
    """(H,E,E) float masks: mask_0 == 0, mask_h = (spd == h)."""
    masks = [np.zeros_like(edge_spd, dtype=np.float32)]
    for h in range(1, num_heads):
        masks.append((edge_spd == h).astype(np.float32))
    return jnp.asarray(np.stack(masks, axis=0))


def init_params(key):
    keys = iter(jax.random.split(key, 128))
    p = {}

    # embeddings / input proj
    p["in_w"], p["in_b"] = init_linear(next(keys), INPUT_DIM, IN_EMB)
    p["tod_table"] = jax.random.normal(next(keys), (STEPS_PER_DAY, TOD_EMB), jnp.float32)
    p["dow_table"] = jax.random.normal(next(keys), (7, DOW_EMB), jnp.float32)
    p["adp_emb"] = xavier_uniform(next(keys), (T, E, ADP_EMB))

    # DLinear temporal layers (individual=False -> one Linear(T,T) per branch)
    p["dlinear"] = []
    for _ in range(NUM_LAYERS):
        ws, bs = init_linear(next(keys), T, T)
        wt, bt = init_linear(next(keys), T, T)
        p["dlinear"].append(dict(ws=ws, bs=bs, wt=wt, bt=bt))

    # Hop-biased spatial attention layers
    p["attn"] = []
    for _ in range(NUM_LAYERS):
        lp = {}
        lp["wq"], lp["bq"] = init_linear(next(keys), D_MODEL, D_MODEL)
        lp["wk"], lp["bk"] = init_linear(next(keys), D_MODEL, D_MODEL)
        lp["wv"], lp["bv"] = init_linear(next(keys), D_MODEL, D_MODEL)
        lp["wo"], lp["bo"] = init_linear(next(keys), D_MODEL, D_MODEL)
        lp["gamma"] = jnp.ones((NUM_HEADS,), jnp.float32)
        lp["ln1_g"] = jnp.ones((D_MODEL,), jnp.float32)
        lp["ln1_b"] = jnp.zeros((D_MODEL,), jnp.float32)
        lp["ln2_g"] = jnp.ones((D_MODEL,), jnp.float32)
        lp["ln2_b"] = jnp.zeros((D_MODEL,), jnp.float32)
        lp["w1"], lp["b1"] = init_linear(next(keys), D_MODEL, FF_DIM)
        lp["w2"], lp["b2"] = init_linear(next(keys), FF_DIM, D_MODEL)
        p["attn"].append(lp)

    # mixed output projection
    p["out_w"], p["out_b"] = init_linear(next(keys), T * D_MODEL, OUT_RAW)
    return p


# ----------------------------- fused Pallas kernel --------------------------
def fused_forward_kernel(x_ref, dlm_ref, dlb_ref, wqkv_ref, wo_ref, w1_ref,
                         w2_ref, vecs_ref, mask_ref, ow_ref, ob_ref, o_ref):
    """Whole forward in one invocation, everything VMEM-resident.

    x_ref   : (N_ROWS, D)        activations, row order (b, e, t)
    dlm_ref : (N_ROWS, N_ROWS)   bf16 kron(I_{B*E}, Wc_comb^T), both DLinear layers folded
    dlb_ref : (N_ROWS, 1)        f32 folded DLinear bias
    wqkv_ref: (L, D, 3D)         bf16 fused Q|K|V weights (Q pre-scaled by 1/sqrt(dh))
    wo_ref  : (L, D, D)          bf16
    w1_ref  : (L, D, FF)         bf16
    w2_ref  : (L, FF, D)         bf16
    vecs_ref: (L, 8, 3D)         f32 packed biases / LayerNorm params
                                 rows: 0=bqkv 1=bo 2=ln1_g 3=ln1_b 4=b1 5=b2 6=ln2_g 7=ln2_b
    mask_ref: (L, H, N, N)       f32 additive attention mask
                                 (gamma_h*hop_h on same (b,t) blocks, -1e9 elsewhere)
    ow_ref  : (T*D, OUT_PAD)     bf16 mixed output projection (feature order t*D+d)
    ob_ref  : (1, OUT_PAD)       f32
    o_ref   : (B*E, OUT_PAD)     f32
    """
    f32 = jnp.float32
    bf16 = jnp.bfloat16

    # ---- temporal DLinear stack (both layers composed): X <- M @ X + b ----
    x = (jnp.dot(dlm_ref[...], x_ref[...].astype(bf16),
                 preferred_element_type=f32) + dlb_ref[...])            # (N, D)

    # per-head lane masks over the model dim (built once from an iota)
    lane = jax.lax.broadcasted_iota(jnp.int32, (1, D_MODEL), 1)
    head_masks = [
        jnp.logical_and(lane >= h * D_HEAD, lane < (h + 1) * D_HEAD).astype(f32)
        for h in range(NUM_HEADS)
    ]

    def layernorm(z, g, b):
        mu = jnp.mean(z, axis=-1, keepdims=True)
        var = jnp.mean(z * z, axis=-1, keepdims=True) - mu * mu
        return (z - mu) * jax.lax.rsqrt(var + 1e-5) * g + b

    # ---- hop-biased spatial attention stack ----
    for l in range(NUM_LAYERS):
        vec = vecs_ref[l]                                               # (8, 3D) f32

        # fused Q|K|V projection (Q already scaled by 1/sqrt(d_head))
        qkv = (jnp.dot(x.astype(bf16), wqkv_ref[l],
                       preferred_element_type=f32) + vec[0:1, :])       # (N, 3D)
        q = qkv[:, :D_MODEL]
        k = qkv[:, D_MODEL:2 * D_MODEL]
        v = qkv[:, 2 * D_MODEL:]
        kt = jnp.transpose(k).astype(bf16)                              # (D, N)

        ctx = jnp.zeros((N_ROWS, D_MODEL), f32)
        for h in range(NUM_HEADS):                 # static unroll, 4 heads
            qm = (q * head_masks[h]).astype(bf16)                       # head-h cols only
            s = (jnp.dot(qm, kt, preferred_element_type=f32)
                 + mask_ref[l, h])                                      # (N, N)
            s = s - jnp.max(s, axis=-1, keepdims=True)
            e = jnp.exp(s)
            p = e * pl.reciprocal(jnp.sum(e, axis=-1, keepdims=True),
                                  approx=True)
            vm = (v * head_masks[h]).astype(bf16)
            ctx = ctx + jnp.dot(p.astype(bf16), vm,
                                preferred_element_type=f32)

        attn = (jnp.dot(ctx.astype(bf16), wo_ref[l],
                        preferred_element_type=f32) + vec[1:2, :D_MODEL])
        y = layernorm(x + attn, vec[2:3, :D_MODEL], vec[3:4, :D_MODEL])
        hid = jnp.maximum(
            jnp.dot(y.astype(bf16), w1_ref[l], preferred_element_type=f32)
            + vec[4:5, :FF_DIM], 0.0)
        ff = (jnp.dot(hid.astype(bf16), w2_ref[l],
                      preferred_element_type=f32) + vec[5:6, :D_MODEL])
        x = layernorm(y + ff, vec[6:7, :D_MODEL], vec[7:8, :D_MODEL])

    # ---- mixed output projection: gather the T time rows of each (b,e) into
    #      lanes (feature index t*D+d), then ONE (16,512)@(512,128) matmul ----
    x3 = x.reshape(B * E, T, D_MODEL)                                   # free reshape
    xo = jnp.concatenate([x3[:, t, :] for t in range(T)], axis=-1)      # (B*E, T*D)
    o_ref[...] = (jnp.dot(xo.astype(bf16), ow_ref[...],
                          preferred_element_type=f32) + ob_ref[...])


def fused_forward(x_rows, operands):
    (dlm, dlb, wqkv, wo, w1, w2, vecs, masks, ow, ob) = operands
    return pl.pallas_call(
        fused_forward_kernel,
        out_shape=jax.ShapeDtypeStruct((B * E, OUT_PAD), jnp.float32),
    )(x_rows, dlm, dlb, wqkv, wo, w1, w2, vecs, masks, ow, ob)


# ----------------------------- operand packing -------------------------------
def build_attn_masks(params, hop_masks):
    """(L, H, N, N) additive masks for rows ordered (b, e, t)."""
    r = np.arange(N_ROWS)
    b_idx = r // (E * T)
    e_idx = (r // T) % E
    t_idx = r % T
    same_bt = (b_idx[:, None] == b_idx[None, :]) & (t_idx[:, None] == t_idx[None, :])
    same_bt = jnp.asarray(same_bt)
    hop_rc = hop_masks[:, e_idx[:, None], e_idx[None, :]]               # (H, N, N)
    masks = []
    for lp in params["attn"]:
        bias = lp["gamma"][:, None, None] * hop_rc
        masks.append(jnp.where(same_bt[None], bias, NEG_INF))
    return jnp.stack(masks)                                             # (L, H, N, N)


def prepare_operands(params, avg_mat, hop_masks):
    eyeT = jnp.eye(T, dtype=jnp.float32)

    # ---- DLinear: compose ALL layers into one affine map (row-vector conv.) ----
    wc_comb = eyeT
    b_comb = jnp.zeros((T,), jnp.float32)
    for lp in params["dlinear"]:
        wc_l = (eyeT - avg_mat) @ lp["ws"].T + avg_mat @ lp["wt"].T     # (T,T)
        b_l = lp["bs"] + lp["bt"]
        wc_comb = wc_comb @ wc_l
        b_comb = b_comb @ wc_l + b_l
    dlm = jnp.kron(jnp.eye(B * E, dtype=jnp.float32),
                   wc_comb.T).astype(jnp.bfloat16)                      # (N, N)
    dlb = jnp.tile(b_comb, B * E)[:, None]                              # (N, 1) f32

    # ---- attention layers: fused QKV, packed bias/LN vectors ----
    scale = 1.0 / math.sqrt(D_HEAD)
    wqkv, wo, w1, w2, vecs = [], [], [], [], []
    for lp in params["attn"]:
        wqkv.append(jnp.concatenate(
            [lp["wq"].T * scale, lp["wk"].T, lp["wv"].T], axis=1))      # (D, 3D)
        wo.append(lp["wo"].T)
        w1.append(lp["w1"].T)
        w2.append(lp["w2"].T)
        v = jnp.zeros((8, QKV_W), jnp.float32)
        v = v.at[0, :].set(jnp.concatenate([lp["bq"] * scale, lp["bk"], lp["bv"]]))
        v = v.at[1, :D_MODEL].set(lp["bo"])
        v = v.at[2, :D_MODEL].set(lp["ln1_g"])
        v = v.at[3, :D_MODEL].set(lp["ln1_b"])
        v = v.at[4, :FF_DIM].set(lp["b1"])
        v = v.at[5, :D_MODEL].set(lp["b2"])
        v = v.at[6, :D_MODEL].set(lp["ln2_g"])
        v = v.at[7, :D_MODEL].set(lp["ln2_b"])
        vecs.append(v)
    wqkv = jnp.stack(wqkv).astype(jnp.bfloat16)
    wo = jnp.stack(wo).astype(jnp.bfloat16)
    w1 = jnp.stack(w1).astype(jnp.bfloat16)
    w2 = jnp.stack(w2).astype(jnp.bfloat16)
    vecs = jnp.stack(vecs)

    masks = build_attn_masks(params, hop_masks)                         # (L,H,N,N) f32

    # mixed output projection: feature index = t*D + d, padded to 128 lanes
    ow = jnp.zeros((T * D_MODEL, OUT_PAD), jnp.float32)
    ow = ow.at[:, :OUT_RAW].set(params["out_w"].T).astype(jnp.bfloat16)
    ob = jnp.zeros((1, OUT_PAD), jnp.float32).at[0, :OUT_RAW].set(params["out_b"])

    return (dlm, dlb, wqkv, wo, w1, w2, vecs, masks, ow, ob)


# ----------------------------- full forward ---------------------------------
def stlinear_hopbiased_forward(params, x, avg_mat, hop_masks):
    """
    x: (B, T, E, 5) float32 — [:3] traffic features, [3] tod index, [4] dow index.
    returns: (B, OUT_STEPS, E, OUTPUT_DIM)
    """
    b = x.shape[0]
    assert b == B
    x_in = x[..., :INPUT_DIM]
    tod = x[..., 3] / STEPS_PER_DAY                       # replicate original round-trip
    tod_idx = (tod * STEPS_PER_DAY).astype(jnp.int32)
    dow_idx = x[..., 4].astype(jnp.int32)

    # feature embedding (glue: tiny matmul + gathers + broadcast + concat)
    x_feat = jnp.dot(x_in, params["in_w"].T) + params["in_b"]           # (B,T,E,IN_EMB)
    tod_emb = params["tod_table"][tod_idx]
    dow_emb = params["dow_table"][dow_idx]
    adp_emb = jnp.broadcast_to(params["adp_emb"], (b, T, E, ADP_EMB))
    x_cat = jnp.concatenate([x_feat, tod_emb, dow_emb, adp_emb], axis=-1)

    # rows ordered (b, e, t) so the kernel's output gather is a plain reshape
    x_rows = jnp.transpose(x_cat, (0, 2, 1, 3)).reshape(N_ROWS, D_MODEL)

    operands = prepare_operands(params, avg_mat, hop_masks)
    out_pad = fused_forward(x_rows, operands)                           # (B*E, 128)

    out = out_pad[:, :OUT_RAW].reshape(b, E, OUT_STEPS, OUTPUT_DIM)
    return jnp.transpose(out, (0, 2, 1, 3))


# ----------------------------- main ------------------------------------------
if __name__ == "__main__":
    key = jax.random.PRNGKey(0)
    pkey, dkey = jax.random.split(key)
    params = init_params(pkey)

    # synthetic edge shortest-path-distance matrix (deterministic)
    idx = np.arange(E)
    edge_spd = np.abs(idx[:, None] - idx[None, :]).astype(np.int64)
    hop_masks = make_hop_masks(edge_spd, NUM_HEADS)      # (H, E, E)
    avg_mat = moving_avg_matrix(T, KERNEL_SIZE)          # (T, T)

    k1, k2, k3 = jax.random.split(dkey, 3)
    feat = jax.random.normal(k1, (B, T, E, INPUT_DIM), jnp.float32)
    tod_ch = jax.random.randint(k2, (B, T, E, 1), 0, STEPS_PER_DAY).astype(jnp.float32)
    dow_ch = jax.random.randint(k3, (B, T, E, 1), 0, 7).astype(jnp.float32)
    x = jnp.concatenate([feat, tod_ch, dow_ch], axis=-1)  # (B, T, E, 5)

    fwd = jax.jit(functools.partial(stlinear_hopbiased_forward,
                                    avg_mat=avg_mat, hop_masks=hop_masks))
    out = fwd(params, x)
    out = jax.block_until_ready(out)
    assert out.shape == (B, OUT_STEPS, E, OUTPUT_DIM), out.shape
    assert jnp.all(jnp.isfinite(out))
    print("KERNEL_OK")
</pallas_src>

<mosaic_0001>
module attributes {stable_mosaic.version = 11 : i64} {
  func.func @fused_forward_kernel(%arg0: memref<128x64xf32, #tpu.memory_space<vmem>>, %arg1: memref<128x128xbf16, #tpu.memory_space<vmem>>, %arg2: memref<128x1xf32, #tpu.memory_space<vmem>>, %arg3: memref<2x64x192xbf16, #tpu.memory_space<vmem>>, %arg4: memref<2x64x64xbf16, #tpu.memory_space<vmem>>, %arg5: memref<2x64x128xbf16, #tpu.memory_space<vmem>>, %arg6: memref<2x128x64xbf16, #tpu.memory_space<vmem>>, %arg7: memref<2x8x192xf32, #tpu.memory_space<vmem>>, %arg8: memref<2x4x128x128xf32, #tpu.memory_space<vmem>>, %arg9: memref<512x128xbf16, #tpu.memory_space<vmem>>, %arg10: memref<1x128xf32, #tpu.memory_space<vmem>>, %arg11: memref<16x128xf32, #tpu.memory_space<vmem>>) attributes {dimension_semantics = [], scalar_prefetch = 0 : i64, scratch_operands = 0 : i64, tpu.core_type = #tpu.core_type<tc>} {
    %c0 = arith.constant 0 : index
    %c0_0 = arith.constant 0 : index
    %0 = vector.load %arg1[%c0, %c0_0] : memref<128x128xbf16, #tpu.memory_space<vmem>>, vector<128x128xbf16>
    %c0_1 = arith.constant 0 : index
    %c0_2 = arith.constant 0 : index
    %1 = vector.load %arg0[%c0_1, %c0_2] : memref<128x64xf32, #tpu.memory_space<vmem>>, vector<128x64xf32>
    %2 = arith.truncf %1 : vector<128x64xf32> to vector<128x64xbf16>
    %cst = arith.constant dense<0.000000e+00> : vector<128x64xf32>
    %3 = tpu.matmul %0, %2, %cst {dimension_numbers = #tpu.dot_dimension_numbers<[1], [0], [0], [1], [0, 0, 1, 1], [], []>} : vector<128x128xbf16>, vector<128x64xbf16>, vector<128x64xf32> -> vector<128x64xf32>
    %c0_3 = arith.constant 0 : index
    %c0_4 = arith.constant 0 : index
    %4 = vector.load %arg2[%c0_3, %c0_4] : memref<128x1xf32, #tpu.memory_space<vmem>>, vector<128x1xf32>
    %5 = vector.broadcast %4 : vector<128x1xf32> to vector<128x64xf32>
    %6 = arith.addf %3, %5 : vector<128x64xf32>
    %7 = tpu.iota {dimensions = array<i32: 1>} : vector<1x64xi32>
    %c0_i32 = arith.constant 0 : i32
    %8 = vector.broadcast %c0_i32 : i32 to vector<1x64xi32>
    %9 = arith.cmpi sge, %7, %8 : vector<1x64xi32>
    %c16_i32 = arith.constant 16 : i32
    %10 = vector.broadcast %c16_i32 : i32 to vector<1x64xi32>
    %11 = arith.cmpi slt, %7, %10 : vector<1x64xi32>
    %12 = arith.andi %9, %11 : vector<1x64xi1>
    %13 = arith.extui %12 : vector<1x64xi1> to vector<1x64xi32>
    %14 = arith.sitofp %13 : vector<1x64xi32> to vector<1x64xf32>
    %c16_i32_5 = arith.constant 16 : i32
    %15 = vector.broadcast %c16_i32_5 : i32 to vector<1x64xi32>
    %16 = arith.cmpi sge, %7, %15 : vector<1x64xi32>
    %c32_i32 = arith.constant 32 : i32
    %17 = vector.broadcast %c32_i32 : i32 to vector<1x64xi32>
    %18 = arith.cmpi slt, %7, %17 : vector<1x64xi32>
    %19 = arith.andi %16, %18 : vector<1x64xi1>
    %20 = arith.extui %19 : vector<1x64xi1> to vector<1x64xi32>
    %21 = arith.sitofp %20 : vector<1x64xi32> to vector<1x64xf32>
    %c32_i32_6 = arith.constant 32 : i32
    %22 = vector.broadcast %c32_i32_6 : i32 to vector<1x64xi32>
    %23 = arith.cmpi sge, %7, %22 : vector<1x64xi32>
    %c48_i32 = arith.constant 48 : i32
    %24 = vector.broadcast %c48_i32 : i32 to vector<1x64xi32>
    %25 = arith.cmpi slt, %7, %24 : vector<1x64xi32>
    %26 = arith.andi %23, %25 : vector<1x64xi1>
    %27 = arith.extui %26 : vector<1x64xi1> to vector<1x64xi32>
    %28 = arith.sitofp %27 : vector<1x64xi32> to vector<1x64xf32>
    %c48_i32_7 = arith.constant 48 : i32
    %29 = vector.broadcast %c48_i32_7 : i32 to vector<1x64xi32>
    %30 = arith.cmpi sge, %7, %29 : vector<1x64xi32>
    %c64_i32 = arith.constant 64 : i32
    %31 = vector.broadcast %c64_i32 : i32 to vector<1x64xi32>
    %32 = arith.cmpi slt, %7, %31 : vector<1x64xi32>
    %33 = arith.andi %30, %32 : vector<1x64xi1>
    %34 = arith.extui %33 : vector<1x64xi1> to vector<1x64xi32>
    %35 = arith.sitofp %34 : vector<1x64xi32> to vector<1x64xf32>
    %c0_8 = arith.constant 0 : index
    %c0_9 = arith.constant 0 : index
    %c0_10 = arith.constant 0 : index
    %36 = vector.load %arg7[%c0_8, %c0_9, %c0_10] : memref<2x8x192xf32, #tpu.memory_space<vmem>>, vector<1x8x192xf32>
    %37 = vector.shape_cast %36 : vector<1x8x192xf32> to vector<8x192xf32>
    %38 = arith.truncf %6 : vector<128x64xf32> to vector<128x64xbf16>
    %c0_11 = arith.constant 0 : index
    %c0_12 = arith.constant 0 : index
    %c0_13 = arith.constant 0 : index
    %39 = vector.load %arg3[%c0_11, %c0_12, %c0_13] : memref<2x64x192xbf16, #tpu.memory_space<vmem>>, vector<1x64x192xbf16>
    %40 = vector.shape_cast %39 : vector<1x64x192xbf16> to vector<64x192xbf16>
    %cst_14 = arith.constant dense<0.000000e+00> : vector<128x192xf32>
    %41 = tpu.matmul %38, %40, %cst_14 {dimension_numbers = #tpu.dot_dimension_numbers<[1], [0], [0], [1], [0, 0, 1, 1], [], []>} : vector<128x64xbf16>, vector<64x192xbf16>, vector<128x192xf32> -> vector<128x192xf32>
    %42 = vector.extract_strided_slice %37 {offsets = [0, 0], sizes = [1, 192], strides = [1, 1]} : vector<8x192xf32> to vector<1x192xf32>
    %43 = vector.broadcast %42 : vector<1x192xf32> to vector<128x192xf32>
    %44 = arith.addf %41, %43 : vector<128x192xf32>
    %45 = vector.extract_strided_slice %44 {offsets = [0, 0], sizes = [128, 64], strides = [1, 1]} : vector<128x192xf32> to vector<128x64xf32>
    %46 = vector.extract_strided_slice %44 {offsets = [0, 64], sizes = [128, 64], strides = [1, 1]} : vector<128x192xf32> to vector<128x64xf32>
    %47 = vector.extract_strided_slice %44 {offsets = [0, 128], sizes = [128, 64], strides = [1, 1]} : vector<128x192xf32> to vector<128x64xf32>
    %48 = tpu.transpose %46, [1, 0] : vector<128x64xf32> -> vector<64x128xf32>
    %49 = arith.truncf %48 : vector<64x128xf32> to vector<64x128xbf16>
    %cst_15 = arith.constant 0.000000e+00 : f32
    %50 = vector.broadcast %cst_15 : f32 to vector<128x64xf32>
    %51 = vector.broadcast %14 : vector<1x64xf32> to vector<128x64xf32>
    %52 = arith.mulf %45, %51 : vector<128x64xf32>
    %53 = arith.truncf %52 : vector<128x64xf32> to vector<128x64xbf16>
    %cst_16 = arith.constant dense<0.000000e+00> : vector<128x128xf32>
    %54 = tpu.matmul %53, %49, %cst_16 {dimension_numbers = #tpu.dot_dimension_numbers<[1], [0], [0], [1], [0, 0, 1, 1], [], []>} : vector<128x64xbf16>, vector<64x128xbf16>, vector<128x128xf32> -> vector<128x128xf32>
    %c0_17 = arith.constant 0 : index
    %c0_18 = arith.constant 0 : index
    %c0_19 = arith.constant 0 : index
    %c0_20 = arith.constant 0 : index
    %55 = vector.load %arg8[%c0_17, %c0_18, %c0_19, %c0_20] : memref<2x4x128x128xf32, #tpu.memory_space<vmem>>, vector<1x1x128x128xf32>
    %56 = vector.shape_cast %55 : vector<1x1x128x128xf32> to vector<128x128xf32>
    %57 = arith.addf %54, %56 : vector<128x128xf32>
    %cst_21 = arith.constant dense<0xFF800000> : vector<128xf32>
    %58 = vector.multi_reduction <maximumf>, %57, %cst_21 [1] : vector<128x128xf32> to vector<128xf32>
    %59 = vector.shape_cast %58 : vector<128xf32> to vector<128x1xf32>
    %60 = vector.broadcast %59 : vector<128x1xf32> to vector<128x128xf32>
    %61 = arith.subf %57, %60 : vector<128x128xf32>
    %62 = math.exp %61 : vector<128x128xf32>
    %cst_22 = arith.constant dense<0.000000e+00> : vector<128xf32>
    %63 = vector.multi_reduction <add>, %62, %cst_22 [1] : vector<128x128xf32> to vector<128xf32>
    %64 = vector.shape_cast %63 : vector<128xf32> to vector<128x1xf32>
    %65 = tpu.reciprocal %64 {approx = true} : vector<128x1xf32> -> vector<128x1xf32>
    %66 = vector.broadcast %65 : vector<128x1xf32> to vector<128x128xf32>
    %67 = arith.mulf %62, %66 : vector<128x128xf32>
    %68 = vector.broadcast %14 : vector<1x64xf32> to vector<128x64xf32>
    %69 = arith.mulf %47, %68 : vector<128x64xf32>
    %70 = arith.truncf %69 : vector<128x64xf32> to vector<128x64xbf16>
    %71 = arith.truncf %67 : vector<128x128xf32> to vector<128x128xbf16>
    %cst_23 = arith.constant dense<0.000000e+00> : vector<128x64xf32>
    %72 = tpu.matmul %71, %70, %cst_23 {dimension_numbers = #tpu.dot_dimension_numbers<[1], [0], [0], [1], [0, 0, 1, 1], [], []>} : vector<128x128xbf16>, vector<128x64xbf16>, vector<128x64xf32> -> vector<128x64xf32>
    %73 = arith.addf %50, %72 : vector<128x64xf32>
    %74 = vector.broadcast %21 : vector<1x64xf32> to vector<128x64xf32>
    %75 = arith.mulf %45, %74 : vector<128x64xf32>
    %76 = arith.truncf %75 : vector<128x64xf32> to vector<128x64xbf16>
    %cst_24 = arith.constant dense<0.000000e+00> : vector<128x128xf32>
    %77 = tpu.matmul %76, %49, %cst_24 {dimension_numbers = #tpu.dot_dimension_numbers<[1], [0], [0], [1], [0, 0, 1, 1], [], []>} : vector<128x64xbf16>, vector<64x128xbf16>, vector<128x128xf32> -> vector<128x128xf32>
    %c0_25 = arith.constant 0 : index
    %c1 = arith.constant 1 : index
    %c0_26 = arith.constant 0 : index
    %c0_27 = arith.constant 0 : index
    %78 = vector.load %arg8[%c0_25, %c1, %c0_26, %c0_27] : memref<2x4x128x128xf32, #tpu.memory_space<vmem>>, vector<1x1x128x128xf32>
    %79 = vector.shape_cast %78 : vector<1x1x128x128xf32> to vector<128x128xf32>
    %80 = arith.addf %77, %79 : vector<128x128xf32>
    %cst_28 = arith.constant dense<0xFF800000> : vector<128xf32>
    %81 = vector.multi_reduction <maximumf>, %80, %cst_28 [1] : vector<128x128xf32> to vector<128xf32>
    %82 = vector.shape_cast %81 : vector<128xf32> to vector<128x1xf32>
    %83 = vector.broadcast %82 : vector<128x1xf32> to vector<128x128xf32>
    %84 = arith.subf %80, %83 : vector<128x128xf32>
    %85 = math.exp %84 : vector<128x128xf32>
    %cst_29 = arith.constant dense<0.000000e+00> : vector<128xf32>
    %86 = vector.multi_reduction <add>, %85, %cst_29 [1] : vector<128x128xf32> to vector<128xf32>
    %87 = vector.shape_cast %86 : vector<128xf32> to vector<128x1xf32>
    %88 = tpu.reciprocal %87 {approx = true} : vector<128x1xf32> -> vector<128x1xf32>
    %89 = vector.broadcast %88 : vector<128x1xf32> to vector<128x128xf32>
    %90 = arith.mulf %85, %89 : vector<128x128xf32>
    %91 = vector.broadcast %21 : vector<1x64xf32> to vector<128x64xf32>
    %92 = arith.mulf %47, %91 : vector<128x64xf32>
    %93 = arith.truncf %92 : vector<128x64xf32> to vector<128x64xbf16>
    %94 = arith.truncf %90 : vector<128x128xf32> to vector<128x128xbf16>
    %cst_30 = arith.constant dense<0.000000e+00> : vector<128x64xf32>
    %95 = tpu.matmul %94, %93, %cst_30 {dimension_numbers = #tpu.dot_dimension_numbers<[1], [0], [0], [1], [0, 0, 1, 1], [], []>} : vector<128x128xbf16>, vector<128x64xbf16>, vector<128x64xf32> -> vector<128x64xf32>
    %96 = arith.addf %73, %95 : vector<128x64xf32>
    %97 = vector.broadcast %28 : vector<1x64xf32> to vector<128x64xf32>
    %98 = arith.mulf %45, %97 : vector<128x64xf32>
    %99 = arith.truncf %98 : vector<128x64xf32> to vector<128x64xbf16>
    %cst_31 = arith.constant dense<0.000000e+00> : vector<128x128xf32>
    %100 = tpu.matmul %99, %49, %cst_31 {dimension_numbers = #tpu.dot_dimension_numbers<[1], [0], [0], [1], [0, 0, 1, 1], [], []>} : vector<128x64xbf16>, vector<64x128xbf16>, vector<128x128xf32> -> vector<128x128xf32>
    %c0_32 = arith.constant 0 : index
    %c2 = arith.constant 2 : index
    %c0_33 = arith.constant 0 : index
    %c0_34 = arith.constant 0 : index
    %101 = vector.load %arg8[%c0_32, %c2, %c0_33, %c0_34] : memref<2x4x128x128xf32, #tpu.memory_space<vmem>>, vector<1x1x128x128xf32>
    %102 = vector.shape_cast %101 : vector<1x1x128x128xf32> to vector<128x128xf32>
    %103 = arith.addf %100, %102 : vector<128x128xf32>
    %cst_35 = arith.constant dense<0xFF800000> : vector<128xf32>
    %104 = vector.multi_reduction <maximumf>, %103, %cst_35 [1] : vector<128x128xf32> to vector<128xf32>
    %105 = vector.shape_cast %104 : vector<128xf32> to vector<128x1xf32>
    %106 = vector.broadcast %105 : vector<128x1xf32> to vector<128x128xf32>
    %107 = arith.subf %103, %106 : vector<128x128xf32>
    %108 = math.exp %107 : vector<128x128xf32>
    %cst_36 = arith.constant dense<0.000000e+00> : vector<128xf32>
    %109 = vector.multi_reduction <add>, %108, %cst_36 [1] : vector<128x128xf32> to vector<128xf32>
    %110 = vector.shape_cast %109 : vector<128xf32> to vector<128x1xf32>
    %111 = tpu.reciprocal %110 {approx = true} : vector<128x1xf32> -> vector<128x1xf32>
    %112 = vector.broadcast %111 : vector<128x1xf32> to vector<128x128xf32>
    %113 = arith.mulf %108, %112 : vector<128x128xf32>
    %114 = vector.broadcast %28 : vector<1x64xf32> to vector<128x64xf32>
    %115 = arith.mulf %47, %114 : vector<128x64xf32>
    %116 = arith.truncf %115 : vector<128x64xf32> to vector<128x64xbf16>
    %117 = arith.truncf %113 : vector<128x128xf32> to vector<128x128xbf16>
    %cst_37 = arith.constant dense<0.000000e+00> : vector<128x64xf32>
    %118 = tpu.matmul %117, %116, %cst_37 {dimension_numbers = #tpu.dot_dimension_numbers<[1], [0], [0], [1], [0, 0, 1, 1], [], []>} : vector<128x128xbf16>, vector<128x64xbf16>, vector<128x64xf32> -> vector<128x64xf32>
    %119 = arith.addf %96, %118 : vector<128x64xf32>
    %120 = vector.broadcast %35 : vector<1x64xf32> to vector<128x64xf32>
    %121 = arith.mulf %45, %120 : vector<128x64xf32>
    %122 = arith.truncf %121 : vector<128x64xf32> to vector<128x64xbf16>
    %cst_38 = arith.constant dense<0.000000e+00> : vector<128x128xf32>
    %123 = tpu.matmul %122, %49, %cst_38 {dimension_numbers = #tpu.dot_dimension_numbers<[1], [0], [0], [1], [0, 0, 1, 1], [], []>} : vector<128x64xbf16>, vector<64x128xbf16>, vector<128x128xf32> -> vector<128x128xf32>
    %c0_39 = arith.constant 0 : index
    %c3 = arith.constant 3 : index
    %c0_40 = arith.constant 0 : index
    %c0_41 = arith.constant 0 : index
    %124 = vector.load %arg8[%c0_39, %c3, %c0_40, %c0_41] : memref<2x4x128x128xf32, #tpu.memory_space<vmem>>, vector<1x1x128x128xf32>
    %125 = vector.shape_cast %124 : vector<1x1x128x128xf32> to vector<128x128xf32>
    %126 = arith.addf %123, %125 : vector<128x128xf32>
    %cst_42 = arith.constant dense<0xFF800000> : vector<128xf32>
    %127 = vector.multi_reduction <maximumf>, %126, %cst_42 [1] : vector<128x128xf32> to vector<128xf32>
    %128 = vector.shape_cast %127 : vector<128xf32> to vector<128x1xf32>
    %129 = vector.broadcast %128 : vector<128x1xf32> to vector<128x128xf32>
    %130 = arith.subf %126, %129 : vector<128x128xf32>
    %131 = math.exp %130 : vector<128x128xf32>
    %cst_43 = arith.constant dense<0.000000e+00> : vector<128xf32>
    %132 = vector.multi_reduction <add>, %131, %cst_43 [1] : vector<128x128xf32> to vector<128xf32>
    %133 = vector.shape_cast %132 : vector<128xf32> to vector<128x1xf32>
    %134 = tpu.reciprocal %133 {approx = true} : vector<128x1xf32> -> vector<128x1xf32>
    %135 = vector.broadcast %134 : vector<128x1xf32> to vector<128x128xf32>
    %136 = arith.mulf %131, %135 : vector<128x128xf32>
    %137 = vector.broadcast %35 : vector<1x64xf32> to vector<128x64xf32>
    %138 = arith.mulf %47, %137 : vector<128x64xf32>
    %139 = arith.truncf %138 : vector<128x64xf32> to vector<128x64xbf16>
    %140 = arith.truncf %136 : vector<128x128xf32> to vector<128x128xbf16>
    %cst_44 = arith.constant dense<0.000000e+00> : vector<128x64xf32>
    %141 = tpu.matmul %140, %139, %cst_44 {dimension_numbers = #tpu.dot_dimension_numbers<[1], [0], [0], [1], [0, 0, 1, 1], [], []>} : vector<128x128xbf16>, vector<128x64xbf16>, vector<128x64xf32> -> vector<128x64xf32>
    %142 = arith.addf %119, %141 : vector<128x64xf32>
    %143 = arith.truncf %142 : vector<128x64xf32> to vector<128x64xbf16>
    %c0_45 = arith.constant 0 : index
    %c0_46 = arith.constant 0 : index
    %c0_47 = arith.constant 0 : index
    %144 = vector.load %arg4[%c0_45, %c0_46, %c0_47] : memref<2x64x64xbf16, #tpu.memory_space<vmem>>, vector<1x64x64xbf16>
    %145 = vector.shape_cast %144 : vector<1x64x64xbf16> to vector<64x64xbf16>
    %cst_48 = arith.constant dense<0.000000e+00> : vector<128x64xf32>
    %146 = tpu.matmul %143, %145, %cst_48 {dimension_numbers = #tpu.dot_dimension_numbers<[1], [0], [0], [1], [0, 0, 1, 1], [], []>} : vector<128x64xbf16>, vector<64x64xbf16>, vector<128x64xf32> -> vector<128x64xf32>
    %147 = vector.extract_strided_slice %37 {offsets = [1, 0], sizes = [1, 64], strides = [1, 1]} : vector<8x192xf32> to vector<1x64xf32>
    %148 = vector.broadcast %147 : vector<1x64xf32> to vector<128x64xf32>
    %149 = arith.addf %146, %148 : vector<128x64xf32>
    %150 = arith.addf %6, %149 : vector<128x64xf32>
    %151 = vector.extract_strided_slice %37 {offsets = [2, 0], sizes = [1, 64], strides = [1, 1]} : vector<8x192xf32> to vector<1x64xf32>
    %152 = vector.extract_strided_slice %37 {offsets = [3, 0], sizes = [1, 64], strides = [1, 1]} : vector<8x192xf32> to vector<1x64xf32>
    %cst_49 = arith.constant dense<0.000000e+00> : vector<128xf32>
    %153 = vector.multi_reduction <add>, %150, %cst_49 [1] : vector<128x64xf32> to vector<128xf32>
    %154 = vector.shape_cast %153 : vector<128xf32> to vector<128x1xf32>
    %cst_50 = arith.constant 6.400000e+01 : f32
    %155 = vector.broadcast %cst_50 : f32 to vector<128x1xf32>
    %156 = arith.divf %154, %155 : vector<128x1xf32>
    %157 = arith.mulf %150, %150 : vector<128x64xf32>
    %cst_51 = arith.constant dense<0.000000e+00> : vector<128xf32>
    %158 = vector.multi_reduction <add>, %157, %cst_51 [1] : vector<128x64xf32> to vector<128xf32>
    %159 = vector.shape_cast %158 : vector<128xf32> to vector<128x1xf32>
    %cst_52 = arith.constant 6.400000e+01 : f32
    %160 = vector.broadcast %cst_52 : f32 to vector<128x1xf32>
    %161 = arith.divf %159, %160 : vector<128x1xf32>
    %162 = arith.mulf %156, %156 : vector<128x1xf32>
    %163 = arith.subf %161, %162 : vector<128x1xf32>
    %164 = vector.broadcast %156 : vector<128x1xf32> to vector<128x64xf32>
    %165 = arith.subf %150, %164 : vector<128x64xf32>
    %cst_53 = arith.constant 9.99999974E-6 : f32
    %166 = vector.broadcast %cst_53 : f32 to vector<128x1xf32>
    %167 = arith.addf %163, %166 : vector<128x1xf32>
    %168 = math.rsqrt %167 : vector<128x1xf32>
    %169 = vector.broadcast %168 : vector<128x1xf32> to vector<128x64xf32>
    %170 = arith.mulf %165, %169 : vector<128x64xf32>
    %171 = vector.broadcast %151 : vector<1x64xf32> to vector<128x64xf32>
    %172 = arith.mulf %170, %171 : vector<128x64xf32>
    %173 = vector.broadcast %152 : vector<1x64xf32> to vector<128x64xf32>
    %174 = arith.addf %172, %173 : vector<128x64xf32>
    %175 = arith.truncf %174 : vector<128x64xf32> to vector<128x64xbf16>
    %c0_54 = arith.constant 0 : index
    %c0_55 = arith.constant 0 : index
    %c0_56 = arith.constant 0 : index
    %176 = vector.load %arg5[%c0_54, %c0_55, %c0_56] : memref<2x64x128xbf16, #tpu.memory_space<vmem>>, vector<1x64x128xbf16>
    %177 = vector.shape_cast %176 : vector<1x64x128xbf16> to vector<64x128xbf16>
    %cst_57 = arith.constant dense<0.000000e+00> : vector<128x128xf32>
    %178 = tpu.matmul %175, %177, %cst_57 {dimension_numbers = #tpu.dot_dimension_numbers<[1], [0], [0], [1], [0, 0, 1, 1], [], []>} : vector<128x64xbf16>, vector<64x128xbf16>, vector<128x128xf32> -> vector<128x128xf32>
    %179 = vector.extract_strided_slice %37 {offsets = [4, 0], sizes = [1, 128], strides = [1, 1]} : vector<8x192xf32> to vector<1x128xf32>
    %180 = vector.broadcast %179 : vector<1x128xf32> to vector<128x128xf32>
    %181 = arith.addf %178, %180 : vector<128x128xf32>
    %cst_58 = arith.constant 0.000000e+00 : f32
    %182 = vector.broadcast %cst_58 : f32 to vector<128x128xf32>
    %183 = arith.maximumf %181, %182 : vector<128x128xf32>
    %184 = arith.truncf %183 : vector<128x128xf32> to vector<128x128xbf16>
    %c0_59 = arith.constant 0 : index
    %c0_60 = arith.constant 0 : index
    %c0_61 = arith.constant 0 : index
    %185 = vector.load %arg6[%c0_59, %c0_60, %c0_61] : memref<2x128x64xbf16, #tpu.memory_space<vmem>>, vector<1x128x64xbf16>
    %186 = vector.shape_cast %185 : vector<1x128x64xbf16> to vector<128x64xbf16>
    %cst_62 = arith.constant dense<0.000000e+00> : vector<128x64xf32>
    %187 = tpu.matmul %184, %186, %cst_62 {dimension_numbers = #tpu.dot_dimension_numbers<[1], [0], [0], [1], [0, 0, 1, 1], [], []>} : vector<128x128xbf16>, vector<128x64xbf16>, vector<128x64xf32> -> vector<128x64xf32>
    %188 = vector.extract_strided_slice %37 {offsets = [5, 0], sizes = [1, 64], strides = [1, 1]} : vector<8x192xf32> to vector<1x64xf32>
    %189 = vector.broadcast %188 : vector<1x64xf32> to vector<128x64xf32>
    %190 = arith.addf %187, %189 : vector<128x64xf32>
    %191 = arith.addf %174, %190 : vector<128x64xf32>
    %192 = vector.extract_strided_slice %37 {offsets = [6, 0], sizes = [1, 64], strides = [1, 1]} : vector<8x192xf32> to vector<1x64xf32>
    %193 = vector.extract_strided_slice %37 {offsets = [7, 0], sizes = [1, 64], strides = [1, 1]} : vector<8x192xf32> to vector<1x64xf32>
    %cst_63 = arith.constant dense<0.000000e+00> : vector<128xf32>
    %194 = vector.multi_reduction <add>, %191, %cst_63 [1] : vector<128x64xf32> to vector<128xf32>
    %195 = vector.shape_cast %194 : vector<128xf32> to vector<128x1xf32>
    %cst_64 = arith.constant 6.400000e+01 : f32
    %196 = vector.broadcast %cst_64 : f32 to vector<128x1xf32>
    %197 = arith.divf %195, %196 : vector<128x1xf32>
    %198 = arith.mulf %191, %191 : vector<128x64xf32>
    %cst_65 = arith.constant dense<0.000000e+00> : vector<128xf32>
    %199 = vector.multi_reduction <add>, %198, %cst_65 [1] : vector<128x64xf32> to vector<128xf32>
    %200 = vector.shape_cast %199 : vector<128xf32> to vector<128x1xf32>
    %cst_66 = arith.constant 6.400000e+01 : f32
    %201 = vector.broadcast %cst_66 : f32 to vector<128x1xf32>
    %202 = arith.divf %200, %201 : vector<128x1xf32>
    %203 = arith.mulf %197, %197 : vector<128x1xf32>
    %204 = arith.subf %202, %203 : vector<128x1xf32>
    %205 = vector.broadcast %197 : vector<128x1xf32> to vector<128x64xf32>
    %206 = arith.subf %191, %205 : vector<128x64xf32>
    %cst_67 = arith.constant 9.99999974E-6 : f32
    %207 = vector.broadcast %cst_67 : f32 to vector<128x1xf32>
    %208 = arith.addf %204, %207 : vector<128x1xf32>
    %209 = math.rsqrt %208 : vector<128x1xf32>
    %210 = vector.broadcast %209 : vector<128x1xf32> to vector<128x64xf32>
    %211 = arith.mulf %206, %210 : vector<128x64xf32>
    %212 = vector.broadcast %192 : vector<1x64xf32> to vector<128x64xf32>
    %213 = arith.mulf %211, %212 : vector<128x64xf32>
    %214 = vector.broadcast %193 : vector<1x64xf32> to vector<128x64xf32>
    %215 = arith.addf %213, %214 : vector<128x64xf32>
    %c1_68 = arith.constant 1 : index
    %c0_69 = arith.constant 0 : index
    %c0_70 = arith.constant 0 : index
    %216 = vector.load %arg7[%c1_68, %c0_69, %c0_70] : memref<2x8x192xf32, #tpu.memory_space<vmem>>, vector<1x8x192xf32>
    %217 = vector.shape_cast %216 : vector<1x8x192xf32> to vector<8x192xf32>
    %218 = arith.truncf %215 : vector<128x64xf32> to vector<128x64xbf16>
    %c1_71 = arith.constant 1 : index
    %c0_72 = arith.constant 0 : index
    %c0_73 = arith.constant 0 : index
    %219 = vector.load %arg3[%c1_71, %c0_72, %c0_73] : memref<2x64x192xbf16, #tpu.memory_space<vmem>>, vector<1x64x192xbf16>
    %220 = vector.shape_cast %219 : vector<1x64x192xbf16> to vector<64x192xbf16>
    %cst_74 = arith.constant dense<0.000000e+00> : vector<128x192xf32>
    %221 = tpu.matmul %218, %220, %cst_74 {dimension_numbers = #tpu.dot_dimension_numbers<[1], [0], [0], [1], [0, 0, 1, 1], [], []>} : vector<128x64xbf16>, vector<64x192xbf16>, vector<128x192xf32> -> vector<128x192xf32>
    %222 = vector.extract_strided_slice %217 {offsets = [0, 0], sizes = [1, 192], strides = [1, 1]} : vector<8x192xf32> to vector<1x192xf32>
    %223 = vector.broadcast %222 : vector<1x192xf32> to vector<128x192xf32>
    %224 = arith.addf %221, %223 : vector<128x192xf32>
    %225 = vector.extract_strided_slice %224 {offsets = [0, 0], sizes = [128, 64], strides = [1, 1]} : vector<128x192xf32> to vector<128x64xf32>
    %226 = vector.extract_strided_slice %224 {offsets = [0, 64], sizes = [128, 64], strides = [1, 1]} : vector<128x192xf32> to vector<128x64xf32>
    %227 = vector.extract_strided_slice %224 {offsets = [0, 128], sizes = [128, 64], strides = [1, 1]} : vector<128x192xf32> to vector<128x64xf32>
    %228 = tpu.transpose %226, [1, 0] : vector<128x64xf32> -> vector<64x128xf32>
    %229 = arith.truncf %228 : vector<64x128xf32> to vector<64x128xbf16>
    %cst_75 = arith.constant 0.000000e+00 : f32
    %230 = vector.broadcast %cst_75 : f32 to vector<128x64xf32>
    %231 = vector.broadcast %14 : vector<1x64xf32> to vector<128x64xf32>
    %232 = arith.mulf %225, %231 : vector<128x64xf32>
    %233 = arith.truncf %232 : vector<128x64xf32> to vector<128x64xbf16>
    %cst_76 = arith.constant dense<0.000000e+00> : vector<128x128xf32>
    %234 = tpu.matmul %233, %229, %cst_76 {dimension_numbers = #tpu.dot_dimension_numbers<[1], [0], [0], [1], [0, 0, 1, 1], [], []>} : vector<128x64xbf16>, vector<64x128xbf16>, vector<128x128xf32> -> vector<128x128xf32>
    %c1_77 = arith.constant 1 : index
    %c0_78 = arith.constant 0 : index
    %c0_79 = arith.constant 0 : index
    %c0_80 = arith.constant 0 : index
    %235 = vector.load %arg8[%c1_77, %c0_78, %c0_79, %c0_80] : memref<2x4x128x128xf32, #tpu.memory_space<vmem>>, vector<1x1x128x128xf32>
    %236 = vector.shape_cast %235 : vector<1x1x128x128xf32> to vector<128x128xf32>
    %237 = arith.addf %234, %236 : vector<128x128xf32>
    %cst_81 = arith.constant dense<0xFF800000> : vector<128xf32>
    %238 = vector.multi_reduction <maximumf>, %237, %cst_81 [1] : vector<128x128xf32> to vector<128xf32>
    %239 = vector.shape_cast %238 : vector<128xf32> to vector<128x1xf32>
    %240 = vector.broadcast %239 : vector<128x1xf32> to vector<128x128xf32>
    %241 = arith.subf %237, %240 : vector<128x128xf32>
    %242 = math.exp %241 : vector<128x128xf32>
    %cst_82 = arith.constant dense<0.000000e+00> : vector<128xf32>
    %243 = vector.multi_reduction <add>, %242, %cst_82 [1] : vector<128x128xf32> to vector<128xf32>
    %244 = vector.shape_cast %243 : vector<128xf32> to vector<128x1xf32>
    %245 = tpu.reciprocal %244 {approx = true} : vector<128x1xf32> -> vector<128x1xf32>
    %246 = vector.broadcast %245 : vector<128x1xf32> to vector<128x128xf32>
    %247 = arith.mulf %242, %246 : vector<128x128xf32>
    %248 = vector.broadcast %14 : vector<1x64xf32> to vector<128x64xf32>
    %249 = arith.mulf %227, %248 : vector<128x64xf32>
    %250 = arith.truncf %249 : vector<128x64xf32> to vector<128x64xbf16>
    %251 = arith.truncf %247 : vector<128x128xf32> to vector<128x128xbf16>
    %cst_83 = arith.constant dense<0.000000e+00> : vector<128x64xf32>
    %252 = tpu.matmul %251, %250, %cst_83 {dimension_numbers = #tpu.dot_dimension_numbers<[1], [0], [0], [1], [0, 0, 1, 1], [], []>} : vector<128x128xbf16>, vector<128x64xbf16>, vector<128x64xf32> -> vector<128x64xf32>
    %253 = arith.addf %230, %252 : vector<128x64xf32>
    %254 = vector.broadcast %21 : vector<1x64xf32> to vector<128x64xf32>
    %255 = arith.mulf %225, %254 : vector<128x64xf32>
    %256 = arith.truncf %255 : vector<128x64xf32> to vector<128x64xbf16>
    %cst_84 = arith.constant dense<0.000000e+00> : vector<128x128xf32>
    %257 = tpu.matmul %256, %229, %cst_84 {dimension_numbers = #tpu.dot_dimension_numbers<[1], [0], [0], [1], [0, 0, 1, 1], [], []>} : vector<128x64xbf16>, vector<64x128xbf16>, vector<128x128xf32> -> vector<128x128xf32>
    %c1_85 = arith.constant 1 : index
    %c1_86 = arith.constant 1 : index
    %c0_87 = arith.constant 0 : index
    %c0_88 = arith.constant 0 : index
    %258 = vector.load %arg8[%c1_85, %c1_86, %c0_87, %c0_88] : memref<2x4x128x128xf32, #tpu.memory_space<vmem>>, vector<1x1x128x128xf32>
    %259 = vector.shape_cast %258 : vector<1x1x128x128xf32> to vector<128x128xf32>
    %260 = arith.addf %257, %259 : vector<128x128xf32>
    %cst_89 = arith.constant dense<0xFF800000> : vector<128xf32>
    %261 = vector.multi_reduction <maximumf>, %260, %cst_89 [1] : vector<128x128xf32> to vector<128xf32>
    %262 = vector.shape_cast %261 : vector<128xf32> to vector<128x1xf32>
    %263 = vector.broadcast %262 : vector<128x1xf32> to vector<128x128xf32>
    %264 = arith.subf %260, %263 : vector<128x128xf32>
    %265 = math.exp %264 : vector<128x128xf32>
    %cst_90 = arith.constant dense<0.000000e+00> : vector<128xf32>
    %266 = vector.multi_reduction <add>, %265, %cst_90 [1] : vector<128x128xf32> to vector<128xf32>
    %267 = vector.shape_cast %266 : vector<128xf32> to vector<128x1xf32>
    %268 = tpu.reciprocal %267 {approx = true} : vector<128x1xf32> -> vector<128x1xf32>
    %269 = vector.broadcast %268 : vector<128x1xf32> to vector<128x128xf32>
    %270 = arith.mulf %265, %269 : vector<128x128xf32>
    %271 = vector.broadcast %21 : vector<1x64xf32> to vector<128x64xf32>
    %272 = arith.mulf %227, %271 : vector<128x64xf32>
    %273 = arith.truncf %272 : vector<128x64xf32> to vector<128x64xbf16>
    %274 = arith.truncf %270 : vector<128x128xf32> to vector<128x128xbf16>
    %cst_91 = arith.constant dense<0.000000e+00> : vector<128x64xf32>
    %275 = tpu.matmul %274, %273, %cst_91 {dimension_numbers = #tpu.dot_dimension_numbers<[1], [0], [0], [1], [0, 0, 1, 1], [], []>} : vector<128x128xbf16>, vector<128x64xbf16>, vector<128x64xf32> -> vector<128x64xf32>
    %276 = arith.addf %253, %275 : vector<128x64xf32>
    %277 = vector.broadcast %28 : vector<1x64xf32> to vector<128x64xf32>
    %278 = arith.mulf %225, %277 : vector<128x64xf32>
    %279 = arith.truncf %278 : vector<128x64xf32> to vector<128x64xbf16>
    %cst_92 = arith.constant dense<0.000000e+00> : vector<128x128xf32>
    %280 = tpu.matmul %279, %229, %cst_92 {dimension_numbers = #tpu.dot_dimension_numbers<[1], [0], [0], [1], [0, 0, 1, 1], [], []>} : vector<128x64xbf16>, vector<64x128xbf16>, vector<128x128xf32> -> vector<128x128xf32>
    %c1_93 = arith.constant 1 : index
    %c2_94 = arith.constant 2 : index
    %c0_95 = arith.constant 0 : index
    %c0_96 = arith.constant 0 : index
    %281 = vector.load %arg8[%c1_93, %c2_94, %c0_95, %c0_96] : memref<2x4x128x128xf32, #tpu.memory_space<vmem>>, vector<1x1x128x128xf32>
    %282 = vector.shape_cast %281 : vector<1x1x128x128xf32> to vector<128x128xf32>
    %283 = arith.addf %280, %282 : vector<128x128xf32>
    %cst_97 = arith.constant dense<0xFF800000> : vector<128xf32>
    %284 = vector.multi_reduction <maximumf>, %283, %cst_97 [1] : vector<128x128xf32> to vector<128xf32>
    %285 = vector.shape_cast %284 : vector<128xf32> to vector<128x1xf32>
    %286 = vector.broadcast %285 : vector<128x1xf32> to vector<128x128xf32>
    %287 = arith.subf %283, %286 : vector<128x128xf32>
    %288 = math.exp %287 : vector<128x128xf32>
    %cst_98 = arith.constant dense<0.000000e+00> : vector<128xf32>
    %289 = vector.multi_reduction <add>, %288, %cst_98 [1] : vector<128x128xf32> to vector<128xf32>
    %290 = vector.shape_cast %289 : vector<128xf32> to vector<128x1xf32>
    %291 = tpu.reciprocal %290 {approx = true} : vector<128x1xf32> -> vector<128x1xf32>
    %292 = vector.broadcast %291 : vector<128x1xf32> to vector<128x128xf32>
    %293 = arith.mulf %288, %292 : vector<128x128xf32>
    %294 = vector.broadcast %28 : vector<1x64xf32> to vector<128x64xf32>
    %295 = arith.mulf %227, %294 : vector<128x64xf32>
    %296 = arith.truncf %295 : vector<128x64xf32> to vector<128x64xbf16>
    %297 = arith.truncf %293 : vector<128x128xf32> to vector<128x128xbf16>
    %cst_99 = arith.constant dense<0.000000e+00> : vector<128x64xf32>
    %298 = tpu.matmul %297, %296, %cst_99 {dimension_numbers = #tpu.dot_dimension_numbers<[1], [0], [0], [1], [0, 0, 1, 1], [], []>} : vector<128x128xbf16>, vector<128x64xbf16>, vector<128x64xf32> -> vector<128x64xf32>
    %299 = arith.addf %276, %298 : vector<128x64xf32>
    %300 = vector.broadcast %35 : vector<1x64xf32> to vector<128x64xf32>
    %301 = arith.mulf %225, %300 : vector<128x64xf32>
    %302 = arith.truncf %301 : vector<128x64xf32> to vector<128x64xbf16>
    %cst_100 = arith.constant dense<0.000000e+00> : vector<128x128xf32>
    %303 = tpu.matmul %302, %229, %cst_100 {dimension_numbers = #tpu.dot_dimension_numbers<[1], [0], [0], [1], [0, 0, 1, 1], [], []>} : vector<128x64xbf16>, vector<64x128xbf16>, vector<128x128xf32> -> vector<128x128xf32>
    %c1_101 = arith.constant 1 : index
    %c3_102 = arith.constant 3 : index
    %c0_103 = arith.constant 0 : index
    %c0_104 = arith.constant 0 : index
    %304 = vector.load %arg8[%c1_101, %c3_102, %c0_103, %c0_104] : memref<2x4x128x128xf32, #tpu.memory_space<vmem>>, vector<1x1x128x128xf32>
    %305 = vector.shape_cast %304 : vector<1x1x128x128xf32> to vector<128x128xf32>
    %306 = arith.addf %303, %305 : vector<128x128xf32>
    %cst_105 = arith.constant dense<0xFF800000> : vector<128xf32>
    %307 = vector.multi_reduction <maximumf>, %306, %cst_105 [1] : vector<128x128xf32> to vector<128xf32>
    %308 = vector.shape_cast %307 : vector<128xf32> to vector<128x1xf32>
    %309 = vector.broadcast %308 : vector<128x1xf32> to vector<128x128xf32>
    %310 = arith.subf %306, %309 : vector<128x128xf32>
    %311 = math.exp %310 : vector<128x128xf32>
    %cst_106 = arith.constant dense<0.000000e+00> : vector<128xf32>
    %312 = vector.multi_reduction <add>, %311, %cst_106 [1] : vector<128x128xf32> to vector<128xf32>
    %313 = vector.shape_cast %312 : vector<128xf32> to vector<128x1xf32>
    %314 = tpu.reciprocal %313 {approx = true} : vector<128x1xf32> -> vector<128x1xf32>
    %315 = vector.broadcast %314 : vector<128x1xf32> to vector<128x128xf32>
    %316 = arith.mulf %311, %315 : vector<128x128xf32>
    %317 = vector.broadcast %35 : vector<1x64xf32> to vector<128x64xf32>
    %318 = arith.mulf %227, %317 : vector<128x64xf32>
    %319 = arith.truncf %318 : vector<128x64xf32> to vector<128x64xbf16>
    %320 = arith.truncf %316 : vector<128x128xf32> to vector<128x128xbf16>
    %cst_107 = arith.constant dense<0.000000e+00> : vector<128x64xf32>
    %321 = tpu.matmul %320, %319, %cst_107 {dimension_numbers = #tpu.dot_dimension_numbers<[1], [0], [0], [1], [0, 0, 1, 1], [], []>} : vector<128x128xbf16>, vector<128x64xbf16>, vector<128x64xf32> -> vector<128x64xf32>
    %322 = arith.addf %299, %321 : vector<128x64xf32>
    %323 = arith.truncf %322 : vector<128x64xf32> to vector<128x64xbf16>
    %c1_108 = arith.constant 1 : index
    %c0_109 = arith.constant 0 : index
    %c0_110 = arith.constant 0 : index
    %324 = vector.load %arg4[%c1_108, %c0_109, %c0_110] : memref<2x64x64xbf16, #tpu.memory_space<vmem>>, vector<1x64x64xbf16>
    %325 = vector.shape_cast %324 : vector<1x64x64xbf16> to vector<64x64xbf16>
    %cst_111 = arith.constant dense<0.000000e+00> : vector<128x64xf32>
    %326 = tpu.matmul %323, %325, %cst_111 {dimension_numbers = #tpu.dot_dimension_numbers<[1], [0], [0], [1], [0, 0, 1, 1], [], []>} : vector<128x64xbf16>, vector<64x64xbf16>, vector<128x64xf32> -> vector<128x64xf32>
    %327 = vector.extract_strided_slice %217 {offsets = [1, 0], sizes = [1, 64], strides = [1, 1]} : vector<8x192xf32> to vector<1x64xf32>
    %328 = vector.broadcast %327 : vector<1x64xf32> to vector<128x64xf32>
    %329 = arith.addf %326, %328 : vector<128x64xf32>
    %330 = arith.addf %215, %329 : vector<128x64xf32>
    %331 = vector.extract_strided_slice %217 {offsets = [2, 0], sizes = [1, 64], strides = [1, 1]} : vector<8x192xf32> to vector<1x64xf32>
    %332 = vector.extract_strided_slice %217 {offsets = [3, 0], sizes = [1, 64], strides = [1, 1]} : vector<8x192xf32> to vector<1x64xf32>
    %cst_112 = arith.constant dense<0.000000e+00> : vector<128xf32>
    %333 = vector.multi_reduction <add>, %330, %cst_112 [1] : vector<128x64xf32> to vector<128xf32>
    %334 = vector.shape_cast %333 : vector<128xf32> to vector<128x1xf32>
    %cst_113 = arith.constant 6.400000e+01 : f32
    %335 = vector.broadcast %cst_113 : f32 to vector<128x1xf32>
    %336 = arith.divf %334, %335 : vector<128x1xf32>
    %337 = arith.mulf %330, %330 : vector<128x64xf32>
    %cst_114 = arith.constant dense<0.000000e+00> : vector<128xf32>
    %338 = vector.multi_reduction <add>, %337, %cst_114 [1] : vector<128x64xf32> to vector<128xf32>
    %339 = vector.shape_cast %338 : vector<128xf32> to vector<128x1xf32>
    %cst_115 = arith.constant 6.400000e+01 : f32
    %340 = vector.broadcast %cst_115 : f32 to vector<128x1xf32>
    %341 = arith.divf %339, %340 : vector<128x1xf32>
    %342 = arith.mulf %336, %336 : vector<128x1xf32>
    %343 = arith.subf %341, %342 : vector<128x1xf32>
    %344 = vector.broadcast %336 : vector<128x1xf32> to vector<128x64xf32>
    %345 = arith.subf %330, %344 : vector<128x64xf32>
    %cst_116 = arith.constant 9.99999974E-6 : f32
    %346 = vector.broadcast %cst_116 : f32 to vector<128x1xf32>
    %347 = arith.addf %343, %346 : vector<128x1xf32>
    %348 = math.rsqrt %347 : vector<128x1xf32>
    %349 = vector.broadcast %348 : vector<128x1xf32> to vector<128x64xf32>
    %350 = arith.mulf %345, %349 : vector<128x64xf32>
    %351 = vector.broadcast %331 : vector<1x64xf32> to vector<128x64xf32>
    %352 = arith.mulf %350, %351 : vector<128x64xf32>
    %353 = vector.broadcast %332 : vector<1x64xf32> to vector<128x64xf32>
    %354 = arith.addf %352, %353 : vector<128x64xf32>
    %355 = arith.truncf %354 : vector<128x64xf32> to vector<128x64xbf16>
    %c1_117 = arith.constant 1 : index
    %c0_118 = arith.constant 0 : index
    %c0_119 = arith.constant 0 : index
    %356 = vector.load %arg5[%c1_117, %c0_118, %c0_119] : memref<2x64x128xbf16, #tpu.memory_space<vmem>>, vector<1x64x128xbf16>
    %357 = vector.shape_cast %356 : vector<1x64x128xbf16> to vector<64x128xbf16>
    %cst_120 = arith.constant dense<0.000000e+00> : vector<128x128xf32>
    %358 = tpu.matmul %355, %357, %cst_120 {dimension_numbers = #tpu.dot_dimension_numbers<[1], [0], [0], [1], [0, 0, 1, 1], [], []>} : vector<128x64xbf16>, vector<64x128xbf16>, vector<128x128xf32> -> vector<128x128xf32>
    %359 = vector.extract_strided_slice %217 {offsets = [4, 0], sizes = [1, 128], strides = [1, 1]} : vector<8x192xf32> to vector<1x128xf32>
    %360 = vector.broadcast %359 : vector<1x128xf32> to vector<128x128xf32>
    %361 = arith.addf %358, %360 : vector<128x128xf32>
    %cst_121 = arith.constant 0.000000e+00 : f32
    %362 = vector.broadcast %cst_121 : f32 to vector<128x128xf32>
    %363 = arith.maximumf %361, %362 : vector<128x128xf32>
    %364 = arith.truncf %363 : vector<128x128xf32> to vector<128x128xbf16>
    %c1_122 = arith.constant 1 : index
    %c0_123 = arith.constant 0 : index
    %c0_124 = arith.constant 0 : index
    %365 = vector.load %arg6[%c1_122, %c0_123, %c0_124] : memref<2x128x64xbf16, #tpu.memory_space<vmem>>, vector<1x128x64xbf16>
    %366 = vector.shape_cast %365 : vector<1x128x64xbf16> to vector<128x64xbf16>
    %cst_125 = arith.constant dense<0.000000e+00> : vector<128x64xf32>
    %367 = tpu.matmul %364, %366, %cst_125 {dimension_numbers = #tpu.dot_dimension_numbers<[1], [0], [0], [1], [0, 0, 1, 1], [], []>} : vector<128x128xbf16>, vector<128x64xbf16>, vector<128x64xf32> -> vector<128x64xf32>
    %368 = vector.extract_strided_slice %217 {offsets = [5, 0], sizes = [1, 64], strides = [1, 1]} : vector<8x192xf32> to vector<1x64xf32>
    %369 = vector.broadcast %368 : vector<1x64xf32> to vector<128x64xf32>
    %370 = arith.addf %367, %369 : vector<128x64xf32>
    %371 = arith.addf %354, %370 : vector<128x64xf32>
    %372 = vector.extract_strided_slice %217 {offsets = [6, 0], sizes = [1, 64], strides = [1, 1]} : vector<8x192xf32> to vector<1x64xf32>
    %373 = vector.extract_strided_slice %217 {offsets = [7, 0], sizes = [1, 64], strides = [1, 1]} : vector<8x192xf32> to vector<1x64xf32>
    %cst_126 = arith.constant dense<0.000000e+00> : vector<128xf32>
    %374 = vector.multi_reduction <add>, %371, %cst_126 [1] : vector<128x64xf32> to vector<128xf32>
    %375 = vector.shape_cast %374 : vector<128xf32> to vector<128x1xf32>
    %cst_127 = arith.constant 6.400000e+01 : f32
    %376 = vector.broadcast %cst_127 : f32 to vector<128x1xf32>
    %377 = arith.divf %375, %376 : vector<128x1xf32>
    %378 = arith.mulf %371, %371 : vector<128x64xf32>
    %cst_128 = arith.constant dense<0.000000e+00> : vector<128xf32>
    %379 = vector.multi_reduction <add>, %378, %cst_128 [1] : vector<128x64xf32> to vector<128xf32>
    %380 = vector.shape_cast %379 : vector<128xf32> to vector<128x1xf32>
    %cst_129 = arith.constant 6.400000e+01 : f32
    %381 = vector.broadcast %cst_129 : f32 to vector<128x1xf32>
    %382 = arith.divf %380, %381 : vector<128x1xf32>
    %383 = arith.mulf %377, %377 : vector<128x1xf32>
    %384 = arith.subf %382, %383 : vector<128x1xf32>
    %385 = vector.broadcast %377 : vector<128x1xf32> to vector<128x64xf32>
    %386 = arith.subf %371, %385 : vector<128x64xf32>
    %cst_130 = arith.constant 9.99999974E-6 : f32
    %387 = vector.broadcast %cst_130 : f32 to vector<128x1xf32>
    %388 = arith.addf %384, %387 : vector<128x1xf32>
    %389 = math.rsqrt %388 : vector<128x1xf32>
    %390 = vector.broadcast %389 : vector<128x1xf32> to vector<128x64xf32>
    %391 = arith.mulf %386, %390 : vector<128x64xf32>
    %392 = vector.broadcast %372 : vector<1x64xf32> to vector<128x64xf32>
    %393 = arith.mulf %391, %392 : vector<128x64xf32>
    %394 = vector.broadcast %373 : vector<1x64xf32> to vector<128x64xf32>
    %395 = arith.addf %393, %394 : vector<128x64xf32>
    %396 = vector.shape_cast %395 : vector<128x64xf32> to vector<16x8x64xf32>
    %397 = vector.extract_strided_slice %396 {offsets = [0, 0, 0], sizes = [16, 1, 64], strides = [1, 1, 1]} : vector<16x8x64xf32> to vector<16x1x64xf32>
    %398 = vector.shape_cast %397 : vector<16x1x64xf32> to vector<16x64xf32>
    %399 = vector.extract_strided_slice %396 {offsets = [0, 1, 0], sizes = [16, 1, 64], strides = [1, 1, 1]} : vector<16x8x64xf32> to vector<16x1x64xf32>
    %400 = vector.shape_cast %399 : vector<16x1x64xf32> to vector<16x64xf32>
    %401 = vector.extract_strided_slice %396 {offsets = [0, 2, 0], sizes = [16, 1, 64], strides = [1, 1, 1]} : vector<16x8x64xf32> to vector<16x1x64xf32>
    %402 = vector.shape_cast %401 : vector<16x1x64xf32> to vector<16x64xf32>
    %403 = vector.extract_strided_slice %396 {offsets = [0, 3, 0], sizes = [16, 1, 64], strides = [1, 1, 1]} : vector<16x8x64xf32> to vector<16x1x64xf32>
    %404 = vector.shape_cast %403 : vector<16x1x64xf32> to vector<16x64xf32>
    %405 = vector.extract_strided_slice %396 {offsets = [0, 4, 0], sizes = [16, 1, 64], strides = [1, 1, 1]} : vector<16x8x64xf32> to vector<16x1x64xf32>
    %406 = vector.shape_cast %405 : vector<16x1x64xf32> to vector<16x64xf32>
    %407 = vector.extract_strided_slice %396 {offsets = [0, 5, 0], sizes = [16, 1, 64], strides = [1, 1, 1]} : vector<16x8x64xf32> to vector<16x1x64xf32>
    %408 = vector.shape_cast %407 : vector<16x1x64xf32> to vector<16x64xf32>
    %409 = vector.extract_strided_slice %396 {offsets = [0, 6, 0], sizes = [16, 1, 64], strides = [1, 1, 1]} : vector<16x8x64xf32> to vector<16x1x64xf32>
    %410 = vector.shape_cast %409 : vector<16x1x64xf32> to vector<16x64xf32>
    %411 = vector.extract_strided_slice %396 {offsets = [0, 7, 0], sizes = [16, 1, 64], strides = [1, 1, 1]} : vector<16x8x64xf32> to vector<16x1x64xf32>
    %412 = vector.shape_cast %411 : vector<16x1x64xf32> to vector<16x64xf32>
    %413 = tpu.concatenate %398, %400, %402, %404, %406, %408, %410, %412 in 1 : vector<16x64xf32>, vector<16x64xf32>, vector<16x64xf32>, vector<16x64xf32>, vector<16x64xf32>, vector<16x64xf32>, vector<16x64xf32>, vector<16x64xf32> -> vector<16x512xf32>
    %414 = arith.truncf %413 : vector<16x512xf32> to vector<16x512xbf16>
    %c0_131 = arith.constant 0 : index
    %c0_132 = arith.constant 0 : index
    %415 = vector.load %arg9[%c0_131, %c0_132] : memref<512x128xbf16, #tpu.memory_space<vmem>>, vector<512x128xbf16>
    %cst_133 = arith.constant dense<0.000000e+00> : vector<16x128xf32>
    %416 = tpu.matmul %414, %415, %cst_133 {dimension_numbers = #tpu.dot_dimension_numbers<[1], [0], [0], [1], [0, 0, 1, 1], [], []>} : vector<16x512xbf16>, vector<512x128xbf16>, vector<16x128xf32> -> vector<16x128xf32>
    %c0_134 = arith.constant 0 : index
    %c0_135 = arith.constant 0 : index
    %417 = vector.load %arg10[%c0_134, %c0_135] : memref<1x128xf32, #tpu.memory_space<vmem>>, vector<1x128xf32>
    %418 = vector.broadcast %417 : vector<1x128xf32> to vector<16x128xf32>
    %419 = arith.addf %416, %418 : vector<16x128xf32>
    %c0_136 = arith.constant 0 : index
    %c0_137 = arith.constant 0 : index
    %420 = vector.load %arg11[%c0_136, %c0_137] : memref<16x128xf32, #tpu.memory_space<vmem>>, vector<16x128xf32>
    tpu.vector_store %arg11[%c0_136, %c0_137], %419 {strides = array<i32>} : memref<16x128xf32, #tpu.memory_space<vmem>>, vector<16x128xf32>,
    return
  }
}

</mosaic_0001>

<llo_original>
// kernel: tile.8
$region0: #{tile.8}
  #allocation0 [shape = 's32[1]{0}', space=sflag, size = 0x4, scoped, tag = 'scoped memory for tile.8']
  %s0 = inlined_call_operand.vmem [shape: f32[8], index: 0, kind: input, shape index: {}]
  %s1 = inlined_call_operand.vmem [shape: f32[16,8], index: 1, kind: output, shape index: {}]
  // Predicated region
  $region2: #{tile.8} parent=0 // pred_check
    _
  $region3: #{tile.8} parent=0 // pred_check_branch
    %3 = sbr.rel (0) target = $region5
  $region4: #{tile.8} parent=0 // pred_region
    _
  $region5: #{tile.8} parent=0 // pred_fallthru
    _
  %v4 = vld [vmem:[%s0] ss:$0 sm:$0xff]
  %5 = vst [vmem:[%s1] sm:$0xff] %v4
  %s6 = scalar_lea.vmem %s1, 8
  %7 = vst [vmem:[%s6] sm:$0xff] %v4

// kernel: tile.0
$region0: #{tile.0}
  %s0 = inlined_call_operand.vmem [shape: f32[16,8], index: 0, kind: input, shape index: {}]
  %s1 = inlined_call_operand.vmem [shape: f32[128,1], index: 1, kind: output, shape index: {}]
  %v2 = vld [vmem:[%s0] sm:$0xff]
  %vm3 = vcmask 7168
  %4 = vst.msk [vmem:[%s1] ss:$8 sm:$0xf] %vm3, %v2
  %5 = vst.msk [vmem:[%s1] ss:$8 sm:$0xf0] %vm3, %v2
  %s6 = scalar_lea.vmem %s0, 8
  %v7 = vld [vmem:[%s6] sm:$0xff]
  %vm8 = vcmask 7168
  %s9 = scalar_lea.vmem %s1, 64
  %10 = vst.msk [vmem:[%s9] ss:$8 sm:$0xf] %vm8, %v7
  %s11 = scalar_lea.vmem %s1, 64
  %12 = vst.msk [vmem:[%s11] ss:$8 sm:$0xf0] %vm8, %v7
  %v13 = vld [vmem:[%s0] sm:$0xff]
  %14 = vrot.lane.b32.xlu0 %v13, 127
  %v15 = vpop.permute.xlu0 %14
  %vm16 = vcmask 7168
  %s17 = scalar_lea.vmem %s1, 1
  %18 = vst.msk [vmem:[%s17] ss:$8 sm:$0xf] %vm16, %v15
  %s19 = scalar_lea.vmem %s1, 1
  %20 = vst.msk [vmem:[%s19] ss:$8 sm:$0xf0] %vm16, %v15
  %s21 = scalar_lea.vmem %s0, 8
  %v22 = vld [vmem:[%s21] sm:$0xff]
  %23 = vrot.lane.b32.xlu0 %v22, 127
  %v24 = vpop.permute.xlu0 %23
  %vm25 = vcmask 7168
  %s26 = scalar_lea.vmem %s1, 65
  %27 = vst.msk [vmem:[%s26] ss:$8 sm:$0xf] %vm25, %v24
  %s28 = scalar_lea.vmem %s1, 65
  %29 = vst.msk [vmem:[%s28] ss:$8 sm:$0xf0] %vm25, %v24
  %v30 = vld [vmem:[%s0] sm:$0xff]
  %31 = vrot.lane.b32.xlu0 %v30, 126
  %v32 = vpop.permute.xlu0 %31
  %vm33 = vcmask 7168
  %s34 = scalar_lea.vmem %s1, 2
  %35 = vst.msk [vmem:[%s34] ss:$8 sm:$0xf] %vm33, %v32
  %s36 = scalar_lea.vmem %s1, 2
  %37 = vst.msk [vmem:[%s36] ss:$8 sm:$0xf0] %vm33, %v32
  %s38 = scalar_lea.vmem %s0, 8
  %v39 = vld [vmem:[%s38] sm:$0xff]
  %40 = vrot.lane.b32.xlu0 %v39, 126
  %v41 = vpop.permute.xlu0 %40
  %vm42 = vcmask 7168
  %s43 = scalar_lea.vmem %s1, 66
  %44 = vst.msk [vmem:[%s43] ss:$8 sm:$0xf] %vm42, %v41
  %s45 = scalar_lea.vmem %s1, 66
  %46 = vst.msk [vmem:[%s45] ss:$8 sm:$0xf0] %vm42, %v41
  %v47 = vld [vmem:[%s0] sm:$0xff]
  %48 = vrot.lane.b32.xlu0 %v47, 125
  %v49 = vpop.permute.xlu0 %48
  %vm50 = vcmask 7168
  %s51 = scalar_lea.vmem %s1, 3
  %52 = vst.msk [vmem:[%s51] ss:$8 sm:$0xf] %vm50, %v49
  %s53 = scalar_lea.vmem %s1, 3
  %54 = vst.msk [vmem:[%s53] ss:$8 sm:$0xf0] %vm50, %v49
  %s55 = scalar_lea.vmem %s0, 8
  %v56 = vld [vmem:[%s55] sm:$0xff]
  %57 = vrot.lane.b32.xlu0 %v56, 125
  %v58 = vpop.permute.xlu0 %57
  %vm59 = vcmask 7168
  %s60 = scalar_lea.vmem %s1, 67
  %61 = vst.msk [vmem:[%s60] ss:$8 sm:$0xf] %vm59, %v58
  %s62 = scalar_lea.vmem %s1, 67
  %63 = vst.msk [vmem:[%s62] ss:$8 sm:$0xf0] %vm59, %v58
  %v64 = vld [vmem:[%s0] sm:$0xff]
  %65 = vrot.lane.b32.xlu0 %v64, 124
  %v66 = vpop.permute.xlu0 %65
  %vm67 = vcmask 7168
  %s68 = scalar_lea.vmem %s1, 4
  %69 = vst.msk [vmem:[%s68] ss:$8 sm:$0xf] %vm67, %v66
  %s70 = scalar_lea.vmem %s1, 4
  %71 = vst.msk [vmem:[%s70] ss:$8 sm:$0xf0] %vm67, %v66
  %s72 = scalar_lea.vmem %s0, 8
  %v73 = vld [vmem:[%s72] sm:$0xff]
  %74 = vrot.lane.b32.xlu0 %v73, 124
  %v75 = vpop.permute.xlu0 %74
  %vm76 = vcmask 7168
  %s77 = scalar_lea.vmem %s1, 68
  %78 = vst.msk [vmem:[%s77] ss:$8 sm:$0xf] %vm76, %v75
  %s79 = scalar_lea.vmem %s1, 68
  %80 = vst.msk [vmem:[%s79] ss:$8 sm:$0xf0] %vm76, %v75
  %v81 = vld [vmem:[%s0] sm:$0xff]
  %82 = vrot.lane.b32.xlu0 %v81, 123
  %v83 = vpop.permute.xlu0 %82
  %vm84 = vcmask 7168
  %s85 = scalar_lea.vmem %s1, 5
  %86 = vst.msk [vmem:[%s85] ss:$8 sm:$0xf] %vm84, %v83
  %s87 = scalar_lea.vmem %s1, 5
  %88 = vst.msk [vmem:[%s87] ss:$8 sm:$0xf0] %vm84, %v83
  %s89 = scalar_lea.vmem %s0, 8
  %v90 = vld [vmem:[%s89] sm:$0xff]
  %91 = vrot.lane.b32.xlu0 %v90, 123
  %v92 = vpop.permute.xlu0 %91
  %vm93 = vcmask 7168
  %s94 = scalar_lea.vmem %s1, 69
  %95 = vst.msk [vmem:[%s94] ss:$8 sm:$0xf] %vm93, %v92
  %s96 = scalar_lea.vmem %s1, 69
  %97 = vst.msk [vmem:[%s96] ss:$8 sm:$0xf0] %vm93, %v92
  %v98 = vld [vmem:[%s0] sm:$0xff]
  %99 = vrot.lane.b32.xlu0 %v98, 122
  %v100 = vpop.permute.xlu0 %99
  %vm101 = vcmask 7168
  %s102 = scalar_lea.vmem %s1, 6
  %103 = vst.msk [vmem:[%s102] ss:$8 sm:$0xf] %vm101, %v100
  %s104 = scalar_lea.vmem %s1, 6
  %105 = vst.msk [vmem:[%s104] ss:$8 sm:$0xf0] %vm101, %v100
  %s106 = scalar_lea.vmem %s0, 8
  %v107 = vld [vmem:[%s106] sm:$0xff]
  %108 = vrot.lane.b32.xlu0 %v107, 122
  %v109 = vpop.permute.xlu0 %108
  %vm110 = vcmask 7168
  %s111 = scalar_lea.vmem %s1, 70
  %112 = vst.msk [vmem:[%s111] ss:$8 sm:$0xf] %vm110, %v109
  %s113 = scalar_lea.vmem %s1, 70
  %114 = vst.msk [vmem:[%s113] ss:$8 sm:$0xf0] %vm110, %v109
  %v115 = vld [vmem:[%s0] sm:$0xff]
  %116 = vrot.lane.b32.xlu0 %v115, 121
  %v117 = vpop.permute.xlu0 %116
  %vm118 = vcmask 7168
  %s119 = scalar_lea.vmem %s1, 7
  %120 = vst.msk [vmem:[%s119] ss:$8 sm:$0xf] %vm118, %v117
  %s121 = scalar_lea.vmem %s1, 7
  %122 = vst.msk [vmem:[%s121] ss:$8 sm:$0xf0] %vm118, %v117
  %s123 = scalar_lea.vmem %s0, 8
  %v124 = vld [vmem:[%s123] sm:$0xff]
  %125 = vrot.lane.b32.xlu0 %v124, 121
  %v126 = vpop.permute.xlu0 %125
  %vm127 = vcmask 7168
  %s128 = scalar_lea.vmem %s1, 71
  %129 = vst.msk [vmem:[%s128] ss:$8 sm:$0xf] %vm127, %v126
  %s130 = scalar_lea.vmem %s1, 71
  %131 = vst.msk [vmem:[%s130] ss:$8 sm:$0xf0] %vm127, %v126

// kernel: stlinear_hopbiased_forward.1
$region0: #{stlinear_hopbiased_forward.1}
  #allocation0 [shape = 'u32[]', space=smem, size = 0x4, offset = 0x4, fixed_abs, tag = 'smem constant byte address 0x4 - core index']
  #allocation1 [shape = 'u32[144,128]{1,0:T(1,128)}', space=vmem, size = 0x12000, scoped, tag = 'internal scratch']
  %s0 = inlined_call_operand.vmem [shape: f32[128,64], index: 0, kind: input, shape index: {}]
  %s1 = inlined_call_operand.vmem [shape: bf16[128,128], index: 1, kind: input, shape index: {}]
  %s2 = inlined_call_operand.vmem [shape: f32[128,1], index: 2, kind: input, shape index: {}]
  %s3 = inlined_call_operand.vmem [shape: bf16[2,64,192], index: 3, kind: input, shape index: {}]
  %s4 = inlined_call_operand.vmem [shape: bf16[2,64,64], index: 4, kind: input, shape index: {}]
  %s5 = inlined_call_operand.vmem [shape: bf16[2,64,128], index: 5, kind: input, shape index: {}]
  %s6 = inlined_call_operand.vmem [shape: bf16[2,128,64], index: 6, kind: input, shape index: {}]
  %s7 = inlined_call_operand.vmem [shape: f32[2,8,192], index: 7, kind: input, shape index: {}]
  %s8 = inlined_call_operand.vmem [shape: f32[2,4,128,128], index: 8, kind: input, shape index: {}]
  %s9 = inlined_call_operand.vmem [shape: bf16[512,128], index: 9, kind: input, shape index: {}]
  %s10 = inlined_call_operand.vmem [shape: f32[1,128], index: 10, kind: input, shape index: {}]
  %s11 = inlined_call_operand.vmem [shape: f32[16,128], index: 11, kind: output, shape index: {}]
  %s12 = sld [smem:[#allocation0]]
  $region54: #{stlinear_hopbiased_forward.1} parent=0
    _
  %s14 = ssub.s32 1, %s12
  %s15 = scalar_select 0, %s14, %s12
  // Predicated region
  $region2: #{stlinear_hopbiased_forward.1} parent=0 // pred_check
    _
  $region3: #{stlinear_hopbiased_forward.1} parent=0 // pred_check_branch
    %17 = sbr.rel (0) target = $region5
  $region4: #{stlinear_hopbiased_forward.1} parent=0 // pred_region
    _
  $region5: #{stlinear_hopbiased_forward.1} parent=0 // pred_fallthru
    _
  // Predicated region
  $region6: #{stlinear_hopbiased_forward.1} parent=0 // pred_check
    _
  $region7: #{stlinear_hopbiased_forward.1} parent=0 // pred_check_branch
    %19 = sbr.rel (0) target = $region9
  $region8: #{stlinear_hopbiased_forward.1} parent=0 // pred_region
    _
  $region9: #{stlinear_hopbiased_forward.1} parent=0 // pred_fallthru
    _
  // Predicated region
  $region10: #{stlinear_hopbiased_forward.1} parent=0 // pred_check
    _
  $region11: #{stlinear_hopbiased_forward.1} parent=0 // pred_check_branch
    %21 = sbr.rel (0) target = $region13
  $region12: #{stlinear_hopbiased_forward.1} parent=0 // pred_region
    _
  $region13: #{stlinear_hopbiased_forward.1} parent=0 // pred_fallthru
    _
  // Predicated region
  $region14: #{stlinear_hopbiased_forward.1} parent=0 // pred_check
    _
  $region15: #{stlinear_hopbiased_forward.1} parent=0 // pred_check_branch
    %23 = sbr.rel (0) target = $region17
  $region16: #{stlinear_hopbiased_forward.1} parent=0 // pred_region
    _
  $region17: #{stlinear_hopbiased_forward.1} parent=0 // pred_fallthru
    _
  // Predicated region
  $region18: #{stlinear_hopbiased_forward.1} parent=0 // pred_check
    _
  $region19: #{stlinear_hopbiased_forward.1} parent=0 // pred_check_branch
    %25 = sbr.rel (0) target = $region21
  $region20: #{stlinear_hopbiased_forward.1} parent=0 // pred_region
    _
  $region21: #{stlinear_hopbiased_forward.1} parent=0 // pred_fallthru
    _
  // Predicated region
  $region22: #{stlinear_hopbiased_forward.1} parent=0 // pred_check
    _
  $region23: #{stlinear_hopbiased_forward.1} parent=0 // pred_check_branch
    %27 = sbr.rel (0) target = $region25
  $region24: #{stlinear_hopbiased_forward.1} parent=0 // pred_region
    _
  $region25: #{stlinear_hopbiased_forward.1} parent=0 // pred_fallthru
    _
  // Predicated region
  $region26: #{stlinear_hopbiased_forward.1} parent=0 // pred_check
    _
  $region27: #{stlinear_hopbiased_forward.1} parent=0 // pred_check_branch
    %29 = sbr.rel (0) target = $region29
  $region28: #{stlinear_hopbiased_forward.1} parent=0 // pred_region
    _
  $region29: #{stlinear_hopbiased_forward.1} parent=0 // pred_fallthru
    _
  // Predicated region
  $region30: #{stlinear_hopbiased_forward.1} parent=0 // pred_check
    _
  $region31: #{stlinear_hopbiased_forward.1} parent=0 // pred_check_branch
    %31 = sbr.rel (0) target = $region33
  $region32: #{stlinear_hopbiased_forward.1} parent=0 // pred_region
    _
  $region33: #{stlinear_hopbiased_forward.1} parent=0 // pred_fallthru
    _
  // Predicated region
  $region34: #{stlinear_hopbiased_forward.1} parent=0 // pred_check
    _
  $region35: #{stlinear_hopbiased_forward.1} parent=0 // pred_check_branch
    %33 = sbr.rel (0) target = $region37
  $region36: #{stlinear_hopbiased_forward.1} parent=0 // pred_region
    _
  $region37: #{stlinear_hopbiased_forward.1} parent=0 // pred_fallthru
    _
  // Predicated region
  $region38: #{stlinear_hopbiased_forward.1} parent=0 // pred_check
    _
  $region39: #{stlinear_hopbiased_forward.1} parent=0 // pred_check_branch
    %35 = sbr.rel (0) target = $region41
  $region40: #{stlinear_hopbiased_forward.1} parent=0 // pred_region
    _
  $region41: #{stlinear_hopbiased_forward.1} parent=0 // pred_fallthru
    _
  // Predicated region
  $region42: #{stlinear_hopbiased_forward.1} parent=0 // pred_check
    _
  $region43: #{stlinear_hopbiased_forward.1} parent=0 // pred_check_branch
    %37 = sbr.rel (0) target = $region45
  $region44: #{stlinear_hopbiased_forward.1} parent=0 // pred_region
    _
  $region45: #{stlinear_hopbiased_forward.1} parent=0 // pred_fallthru
    _
  %v39 = vld [vmem:[%s1] sm:$0xf]
  %v40 = vld [vmem:[%s1 + $0x4] sm:$0xf]
  %v41 = vld [vmem:[%s1 + $0x8] sm:$0xf]
  %v42 = vld [vmem:[%s1 + $0xc] sm:$0xf]
  %v43 = vld [vmem:[%s1 + $0x10] sm:$0xf]
  %v44 = vld [vmem:[%s1 + $0x14] sm:$0xf]
  %v45 = vld [vmem:[%s1 + $0x18] sm:$0xf]
  %v46 = vld [vmem:[%s1 + $0x1c] sm:$0xf]
  %v47 = vld [vmem:[%s1 + $0x20] sm:$0xf]
  %v48 = vld [vmem:[%s1 + $0x24] sm:$0xf]
  %v49 = vld [vmem:[%s1 + $0x28] sm:$0xf]
  %v50 = vld [vmem:[%s1 + $0x2c] sm:$0xf]
  %v51 = vld [vmem:[%s1 + $0x30] sm:$0xf]
  %v52 = vld [vmem:[%s1 + $0x34] sm:$0xf]
  %v53 = vld [vmem:[%s1 + $0x38] sm:$0xf]
  %v54 = vld [vmem:[%s1 + $0x3c] sm:$0xf]
  %v55 = vld [vmem:[%s0] sm:$0xff]
  %v56 = vld [vmem:[%s0 + $0x8] sm:$0xff]
  %v57 = vld [vmem:[%s0 + $0x10] sm:$0xff]
  %v58 = vld [vmem:[%s0 + $0x18] sm:$0xff]
  %v59 = vld [vmem:[%s0 + $0x20] sm:$0xff]
  %v60 = vld [vmem:[%s0 + $0x28] sm:$0xff]
  %v61 = vld [vmem:[%s0 + $0x30] sm:$0xff]
  %v62 = vld [vmem:[%s0 + $0x38] sm:$0xff]
  %v63 = vld [vmem:[%s0 + $0x40] sm:$0xff]
  %v64 = vld [vmem:[%s0 + $0x48] sm:$0xff]
  %v65 = vld [vmem:[%s0 + $0x50] sm:$0xff]
  %v66 = vld [vmem:[%s0 + $0x58] sm:$0xff]
  %v67 = vld [vmem:[%s0 + $0x60] sm:$0xff]
  %v68 = vld [vmem:[%s0 + $0x68] sm:$0xff]
  %v69 = vld [vmem:[%s0 + $0x70] sm:$0xff]
  %v70 = vld [vmem:[%s0 + $0x78] sm:$0xff]
  %v71 = vpack.c.bf16 %v56, %v55
  %v72 = vpack.c.bf16 %v58, %v57
  %v73 = vpack.c.bf16 %v60, %v59
  %v74 = vpack.c.bf16 %v62, %v61
  %v75 = vpack.c.bf16 %v64, %v63
  %v76 = vpack.c.bf16 %v66, %v65
  %v77 = vpack.c.bf16 %v68, %v67
  %v78 = vpack.c.bf16 %v70, %v69
  %v79 = vld [vmem:[%s2] sm:$0xff]
  %v80 = vld [vmem:[%s2 + $0x8] sm:$0xff]
  %v81 = vld [vmem:[%s2 + $0x10] sm:$0xff]
  %v82 = vld [vmem:[%s2 + $0x18] sm:$0xff]
  %v83 = vld [vmem:[%s2 + $0x20] sm:$0xff]
  %v84 = vld [vmem:[%s2 + $0x28] sm:$0xff]
  %v85 = vld [vmem:[%s2 + $0x30] sm:$0xff]
  %v86 = vld [vmem:[%s2 + $0x38] sm:$0xff]
  %v87 = vld [vmem:[%s2 + $0x40] sm:$0xff]
  %v88 = vld [vmem:[%s2 + $0x48] sm:$0xff]
  %v89 = vld [vmem:[%s2 + $0x50] sm:$0xff]
  %v90 = vld [vmem:[%s2 + $0x58] sm:$0xff]
  %v91 = vld [vmem:[%s2 + $0x60] sm:$0xff]
  %v92 = vld [vmem:[%s2 + $0x68] sm:$0xff]
  %v93 = vld [vmem:[%s2 + $0x70] sm:$0xff]
  %v94 = vld [vmem:[%s2 + $0x78] sm:$0xff]
  %96 = vset.pattern.permute.xlu0 0
  %97 = vperm.xlu0 %96, %v79
  %v98 = vpop.permute.xlu0 %97
  %101 = vset.pattern.permute.xlu0 0
  %102 = vperm.xlu0 %101, %v80
  %v103 = vpop.permute.xlu0 %102
  %106 = vset.pattern.permute.xlu0 0
  %107 = vperm.xlu0 %106, %v81
  %v108 = vpop.permute.xlu0 %107
  %111 = vset.pattern.permute.xlu0 0
  %112 = vperm.xlu0 %111, %v82
  %v113 = vpop.permute.xlu0 %112
  %116 = vset.pattern.permute.xlu0 0
  %117 = vperm.xlu0 %116, %v83
  %v118 = vpop.permute.xlu0 %117
  %121 = vset.pattern.permute.xlu0 0
  %122 = vperm.xlu0 %121, %v84
  %v123 = vpop.permute.xlu0 %122
  %126 = vset.pattern.permute.xlu0 0
  %127 = vperm.xlu0 %126, %v85
  %v128 = vpop.permute.xlu0 %127
  %131 = vset.pattern.permute.xlu0 0
  %132 = vperm.xlu0 %131, %v86
  %v133 = vpop.permute.xlu0 %132
  %136 = vset.pattern.permute.xlu0 0
  %137 = vperm.xlu0 %136, %v87
  %v138 = vpop.permute.xlu0 %137
  %141 = vset.pattern.permute.xlu0 0
  %142 = vperm.xlu0 %141, %v88
  %v143 = vpop.permute.xlu0 %142
  %146 = vset.pattern.permute.xlu0 0
  %147 = vperm.xlu0 %146, %v89
  %v148 = vpop.permute.xlu0 %147
  %151 = vset.pattern.permute.xlu0 0
  %152 = vperm.xlu0 %151, %v90
  %v153 = vpop.permute.xlu0 %152
  %156 = vset.pattern.permute.xlu0 0
  %157 = vperm.xlu0 %156, %v91
  %v158 = vpop.permute.xlu0 %157
  %161 = vset.pattern.permute.xlu0 0
  %162 = vperm.xlu0 %161, %v92
  %v163 = vpop.permute.xlu0 %162
  %166 = vset.pattern.permute.xlu0 0
  %167 = vperm.xlu0 %166, %v93
  %v168 = vpop.permute.xlu0 %167
  %171 = vset.pattern.permute.xlu0 0
  %172 = vperm.xlu0 %171, %v94
  %v173 = vpop.permute.xlu0 %172
  %v191 = vunpack.c.l.b16 %v39
  %v192 = vunpack.c.l.b16 %v40
  %v193 = vunpack.c.l.b16 %v41
  %v194 = vunpack.c.l.b16 %v42
  %v195 = vunpack.c.l.b16 %v43
  %v196 = vunpack.c.l.b16 %v44
  %v197 = vunpack.c.l.b16 %v45
  %v198 = vunpack.c.l.b16 %v46
  %v199 = vunpack.c.l.b16 %v47
  %v200 = vunpack.c.l.b16 %v48
  %v201 = vunpack.c.l.b16 %v49
  %v202 = vunpack.c.l.b16 %v50
  %v203 = vunpack.c.l.b16 %v51
  %v204 = vunpack.c.l.b16 %v52
  %v205 = vunpack.c.l.b16 %v53
  %v206 = vunpack.c.l.b16 %v54
  %v207 = vpack.c.b16 %v192, %v191
  %v208 = vpack.c.b16 %v194, %v193
  %v209 = vpack.c.b16 %v196, %v195
  %v210 = vpack.c.b16 %v198, %v197
  %v211 = vpack.c.b16 %v200, %v199
  %v212 = vpack.c.b16 %v202, %v201
  %v213 = vpack.c.b16 %v204, %v203
  %v214 = vpack.c.b16 %v206, %v205
  %223 = vmatprep.subr.bf16.mxu0 0
  %224 = vmatpush1.bf16.msra.mxu0 %v71
  %225 = vmatprep.subr.bf16.mxu0 0
  %226 = vmatpush1.bf16.msra.mxu0 %v72
  %227 = vmatprep.subr.bf16.mxu0 0
  %228 = vmatpush1.bf16.msra.mxu0 %v73
  %229 = vmatprep.subr.bf16.mxu0 0
  %230 = vmatpush1.bf16.msra.mxu0 %v74
  %231 = vmatprep.subr.bf16.mxu0 0
  %232 = vmatpush1.bf16.msra.mxu0 %v75
  %233 = vmatprep.subr.bf16.mxu0 0
  %234 = vmatpush1.bf16.msra.mxu0 %v76
  %235 = vmatprep.subr.bf16.mxu0 0
  %236 = vmatpush1.bf16.msra.mxu0 %v77
  %237 = vmatprep.subr.bf16.mxu0 0
  %238 = vmatpush1.bf16.msra.mxu0 %v78
  %239 = vmatprep.subr.bf16.mxu0 0
  %240 = vmatpush1.bf16.msra.mxu0 0
  %241 = vmatprep.subr.bf16.mxu0 0
  %242 = vmatpush1.bf16.msra.mxu0 0
  %243 = vmatprep.subr.bf16.mxu0 0
  %244 = vmatpush1.bf16.msra.mxu0 0
  %245 = vmatprep.subr.bf16.mxu0 0
  %246 = vmatpush1.bf16.msra.mxu0 0
  %247 = vmatprep.subr.bf16.mxu0 0
  %248 = vmatpush1.bf16.msra.mxu0 0
  %249 = vmatprep.subr.bf16.mxu0 0
  %250 = vmatpush1.bf16.msra.mxu0 0
  %251 = vmatprep.subr.bf16.mxu0 0
  %252 = vmatpush1.bf16.msra.mxu0 0
  %253 = vmatprep.subr.bf16.mxu0 0
  %254 = vmatpush1.bf16.msra.mxu0 0
  %255 = vmatprep.mubr.bf16.mxu0 0
  %256 = vmatmul.mubr.bf16.gmra.mrb[0].mxu0 %v207
  %v257 = vpop.f32.mrb[0].mxu0
  %v258 = vadd.f32 %v98, %v257
  %v259 = vpop.f32.mrb[0].mxu0
  %v260 = vpop.f32.mrb[0].mxu0
  %v261 = vadd.f32 %v103, %v260
  %v262 = vpop.f32.mrb[0].mxu0
  %263 = vmatprep.mubr.bf16.mxu0 0
  %264 = vmatmul.mubr.bf16.gmra.mrb[0].mxu0 %v208
  %v265 = vpop.f32.mrb[0].mxu0
  %v266 = vadd.f32 %v108, %v265
  %v267 = vpop.f32.mrb[0].mxu0
  %v268 = vpop.f32.mrb[0].mxu0
  %v269 = vadd.f32 %v113, %v268
  %v270 = vpop.f32.mrb[0].mxu0
  %271 = vmatprep.mubr.bf16.mxu0 0
  %272 = vmatmul.mubr.bf16.gmra.mrb[0].mxu0 %v209
  %v273 = vpop.f32.mrb[0].mxu0
  %v274 = vadd.f32 %v118, %v273
  %v275 = vpop.f32.mrb[0].mxu0
  %v276 = vpop.f32.mrb[0].mxu0
  %v277 = vadd.f32 %v123, %v276
  %v278 = vpop.f32.mrb[0].mxu0
  %279 = vmatprep.mubr.bf16.mxu0 0
  %280 = vmatmul.mubr.bf16.gmra.mrb[0].mxu0 %v210
  %v281 = vpop.f32.mrb[0].mxu0
  %v282 = vadd.f32 %v128, %v281
  %v283 = vpop.f32.mrb[0].mxu0
  %v284 = vpop.f32.mrb[0].mxu0
  %v285 = vadd.f32 %v133, %v284
  %v286 = vpop.f32.mrb[0].mxu0
  %287 = vmatprep.mubr.bf16.mxu0 0
  %288 = vmatmul.mubr.bf16.gmra.mrb[0].mxu0 %v211
  %v289 = vpop.f32.mrb[0].mxu0
  %v290 = vadd.f32 %v138, %v289
  %v291 = vpop.f32.mrb[0].mxu0
  %v292 = vpop.f32.mrb[0].mxu0
  %v293 = vadd.f32 %v143, %v292
  %v294 = vpop.f32.mrb[0].mxu0
  %295 = vmatprep.mubr.bf16.mxu0 0
  %296 = vmatmul.mubr.bf16.gmra.mrb[0].mxu0 %v212
  %v297 = vpop.f32.mrb[0].mxu0
  %v298 = vadd.f32 %v148, %v297
  %v299 = vpop.f32.mrb[0].mxu0
  %v300 = vpop.f32.mrb[0].mxu0
  %v301 = vadd.f32 %v153, %v300
  %v302 = vpop.f32.mrb[0].mxu0
  %303 = vmatprep.mubr.bf16.mxu0 0
  %304 = vmatmul.mubr.bf16.gmra.mrb[0].mxu0 %v213
  %v305 = vpop.f32.mrb[0].mxu0
  %v306 = vadd.f32 %v158, %v305
  %v307 = vpop.f32.mrb[0].mxu0
  %v308 = vpop.f32.mrb[0].mxu0
  %v309 = vadd.f32 %v163, %v308
  %v310 = vpop.f32.mrb[0].mxu0
  %311 = vmatprep.mubr.bf16.mxu0 0
  %312 = vmatmul.mubr.bf16.gmra.mrb[0].mxu0 %v214
  %v313 = vpop.f32.mrb[0].mxu0
  %v314 = vadd.f32 %v168, %v313
  %v315 = vpop.f32.mrb[0].mxu0
  %v316 = vpop.f32.mrb[0].mxu0
  %v317 = vadd.f32 %v173, %v316
  %v318 = vpop.f32.mrb[0].mxu0
  %319 = vdwg.mxu0
  %v320 = vlaneseq
  %v321 = vand.u32 %v320, 127
  %vm322 = vcmp.ge.s32.totalorder %v321, 0
  %vm323 = vcmp.lt.s32.totalorder %v321, 16
  %vm324 = vmand %vm322, %vm323
  %v325 = vsel %vm324, 1, 0
  %v326 = vcvt.s32.f32 %v325
  %vm327 = vcmp.ge.s32.totalorder %v321, 16
  %vm328 = vcmp.lt.s32.totalorder %v321, 32
  %vm329 = vmand %vm327, %vm328
  %v330 = vsel %vm329, 1, 0
  %v331 = vcvt.s32.f32 %v330
  %vm332 = vcmp.ge.s32.totalorder %v321, 32
  %vm333 = vcmp.lt.s32.totalorder %v321, 48
  %vm334 = vmand %vm332, %vm333
  %v335 = vsel %vm334, 1, 0
  %v336 = vcvt.s32.f32 %v335
  %vm337 = vcmp.ge.s32.totalorder %v321, 48
  %vm338 = vcmp.lt.s32.totalorder %v321, 64
  %vm339 = vmand %vm337, %vm338
  %v340 = vsel %vm339, 1, 0
  %v341 = vcvt.s32.f32 %v340
  %v342 = vld [vmem:[%s7] sm:$0xff]
  %v343 = vld [vmem:[%s7 + $0x8] sm:$0xff]
  %v344 = vpack.c.bf16 %v261, %v258
  %v345 = vpack.c.bf16 %v269, %v266
  %v346 = vpack.c.bf16 %v277, %v274
  %v347 = vpack.c.bf16 %v285, %v282
  %v348 = vpack.c.bf16 %v293, %v290
  %v349 = vpack.c.bf16 %v301, %v298
  %v350 = vpack.c.bf16 %v309, %v306
  %v351 = vpack.c.bf16 %v317, %v314
  %v352 = vld [vmem:[%s3] sm:$0xff]
  %v353 = vld [vmem:[%s3 + $0x8] sm:$0xff]
  %v354 = vld [vmem:[%s3 + $0x10] sm:$0xff]
  %v355 = vld [vmem:[%s3 + $0x18] sm:$0xff]
  %v356 = vld [vmem:[%s3 + $0x20] sm:$0xff]
  %v357 = vld [vmem:[%s3 + $0x28] sm:$0xff]
  %v358 = vld [vmem:[%s3 + $0x30] sm:$0xff]
  %v359 = vld [vmem:[%s3 + $0x38] sm:$0xff]
  %v360 = vlaneseq
  %v361 = vshrl.u32 %v360, 7
  %v362 = vsub.s32 0, %v361
  %v363 = vrot.slane %v342, %v362
  %v364 = vlaneseq
  %v365 = vshrl.u32 %v364, 7
  %v366 = vsub.s32 0, %v365
  %v367 = vrot.slane %v343, %v366
  %v376 = vunpack.c.l.b16 %v352
  %v377 = vunpack.c.h.b16 %v352
  %v378 = vunpack.c.l.b16 %v353
  %v379 = vunpack.c.h.b16 %v353
  %v380 = vunpack.c.l.b16 %v354
  %v381 = vunpack.c.h.b16 %v354
  %v382 = vunpack.c.l.b16 %v355
  %v383 = vunpack.c.h.b16 %v355
  %v384 = vunpack.c.l.b16 %v356
  %v385 = vunpack.c.h.b16 %v356
  %v386 = vunpack.c.l.b16 %v357
  %v387 = vunpack.c.h.b16 %v357
  %v388 = vunpack.c.l.b16 %v358
  %v389 = vunpack.c.h.b16 %v358
  %v390 = vunpack.c.l.b16 %v359
  %v391 = vunpack.c.h.b16 %v359
  %v392 = vpack.c.b16 %v378, %v376
  %v393 = vpack.c.b16 %v379, %v377
  %v394 = vpack.c.b16 %v382, %v380
  %v395 = vpack.c.b16 %v383, %v381
  %v396 = vpack.c.b16 %v386, %v384
  %v397 = vpack.c.b16 %v387, %v385
  %v398 = vpack.c.b16 %v390, %v388
  %v399 = vpack.c.b16 %v391, %v389
  %vm408 = vcmask 523264
  %v410 = vsel %vm408, %v344, 0
  %v413 = vsel %vm408, %v345, 0
  %v416 = vsel %vm408, %v346, 0
  %v419 = vsel %vm408, %v347, 0
  %v422 = vsel %vm408, %v348, 0
  %v425 = vsel %vm408, %v349, 0
  %v428 = vsel %vm408, %v350, 0
  %v431 = vsel %vm408, %v351, 0
  %433 = vmatprep.subr.bf16.mxu0 %v393
  %434 = vmatpush1.bf16.msra.mxu0 %v392
  %435 = vmatprep.subr.bf16.mxu0 %v395
  %436 = vmatpush1.bf16.msra.mxu0 %v394
  %437 = vmatprep.subr.bf16.mxu0 %v397
  %438 = vmatpush1.bf16.msra.mxu0 %v396
  %439 = vmatprep.subr.bf16.mxu0 %v399
  %440 = vmatpush1.bf16.msra.mxu0 %v398
  %441 = vmatprep.subr.bf16.mxu0 0
  %442 = vmatpush1.bf16.msra.mxu0 0
  %443 = vmatprep.subr.bf16.mxu0 0
  %444 = vmatpush1.bf16.msra.mxu0 0
  %445 = vmatprep.subr.bf16.mxu0 0
  %446 = vmatpush1.bf16.msra.mxu0 0
  %447 = vmatprep.subr.bf16.mxu0 0
  %448 = vmatpush1.bf16.msra.mxu0 0
  %449 = vmatprep.subr.bf16.mxu0 0
  %450 = vmatpush1.bf16.msra.mxu0 0
  %451 = vmatprep.subr.bf16.mxu0 0
  %452 = vmatpush1.bf16.msra.mxu0 0
  %453 = vmatprep.subr.bf16.mxu0 0
  %454 = vmatpush1.bf16.msra.mxu0 0
  %455 = vmatprep.subr.bf16.mxu0 0
  %456 = vmatpush1.bf16.msra.mxu0 0
  %457 = vmatprep.subr.bf16.mxu0 0
  %458 = vmatpush1.bf16.msra.mxu0 0
  %459 = vmatprep.subr.bf16.mxu0 0
  %460 = vmatpush1.bf16.msra.mxu0 0
  %461 = vmatprep.subr.bf16.mxu0 0
  %462 = vmatpush1.bf16.msra.mxu0 0
  %463 = vmatprep.subr.bf16.mxu0 0
  %464 = vmatpush1.bf16.msra.mxu0 0
  %465 = vmatprep.mubr.bf16.mxu0 0
  %466 = vmatmul.mubr.bf16.gmra.mrb[0].mxu0 %v410
  %v467 = vpop.f32.mrb[0].mxu0
  %v468 = vadd.f32 %v363, %v467
  %v469 = vpop.f32.mrb[0].mxu0
  %v470 = vadd.f32 %v367, %v469
  %v471 = vpop.f32.mrb[0].mxu0
  %v472 = vadd.f32 %v363, %v471
  %v473 = vpop.f32.mrb[0].mxu0
  %v474 = vadd.f32 %v367, %v473
  %475 = vmatprep.mubr.bf16.mxu0 0
  %476 = vmatmul.mubr.bf16.gmra.mrb[0].mxu0 %v413
  %v477 = vpop.f32.mrb[0].mxu0
  %v478 = vadd.f32 %v363, %v477
  %v479 = vpop.f32.mrb[0].mxu0
  %v480 = vadd.f32 %v367, %v479
  %v481 = vpop.f32.mrb[0].mxu0
  %v482 = vadd.f32 %v363, %v481
  %v483 = vpop.f32.mrb[0].mxu0
  %v484 = vadd.f32 %v367, %v483
  %485 = vmatprep.mubr.bf16.mxu0 0
  %486 = vmatmul.mubr.bf16.gmra.mrb[0].mxu0 %v416
  %v487 = vpop.f32.mrb[0].mxu0
  %v488 = vadd.f32 %v363, %v487
  %v489 = vpop.f32.mrb[0].mxu0
  %v490 = vadd.f32 %v367, %v489
  %v491 = vpop.f32.mrb[0].mxu0
  %v492 = vadd.f32 %v363, %v491
  %v493 = vpop.f32.mrb[0].mxu0
  %v494 = vadd.f32 %v367, %v493
  %495 = vmatprep.mubr.bf16.mxu0 0
  %496 = vmatmul.mubr.bf16.gmra.mrb[0].mxu0 %v419
  %v497 = vpop.f32.mrb[0].mxu0
  %v498 = vadd.f32 %v363, %v497
  %v499 = vpop.f32.mrb[0].mxu0
  %v500 = vadd.f32 %v367, %v499
  %v501 = vpop.f32.mrb[0].mxu0
  %v502 = vadd.f32 %v363, %v501
  %v503 = vpop.f32.mrb[0].mxu0
  %v504 = vadd.f32 %v367, %v503
  %505 = vmatprep.mubr.bf16.mxu0 0
  %506 = vmatmul.mubr.bf16.gmra.mrb[0].mxu0 %v422
  %v507 = vpop.f32.mrb[0].mxu0
  %v508 = vadd.f32 %v363, %v507
  %v509 = vpop.f32.mrb[0].mxu0
  %v510 = vadd.f32 %v367, %v509
  %v511 = vpop.f32.mrb[0].mxu0
  %v512 = vadd.f32 %v363, %v511
  %v513 = vpop.f32.mrb[0].mxu0
  %v514 = vadd.f32 %v367, %v513
  %515 = vmatprep.mubr.bf16.mxu0 0
  %516 = vmatmul.mubr.bf16.gmra.mrb[0].mxu0 %v425
  %v517 = vpop.f32.mrb[0].mxu0
  %v518 = vadd.f32 %v363, %v517
  %v519 = vpop.f32.mrb[0].mxu0
  %v520 = vadd.f32 %v367, %v519
  %v521 = vpop.f32.mrb[0].mxu0
  %v522 = vadd.f32 %v363, %v521
  %v523 = vpop.f32.mrb[0].mxu0
  %v524 = vadd.f32 %v367, %v523
  %525 = vmatprep.mubr.bf16.mxu0 0
  %526 = vmatmul.mubr.bf16.gmra.mrb[0].mxu0 %v428
  %v527 = vpop.f32.mrb[0].mxu0
  %v528 = vadd.f32 %v363, %v527
  %v529 = vpop.f32.mrb[0].mxu0
  %v530 = vadd.f32 %v367, %v529
  %v531 = vpop.f32.mrb[0].mxu0
  %v532 = vadd.f32 %v363, %v531
  %v533 = vpop.f32.mrb[0].mxu0
  %v534 = vadd.f32 %v367, %v533
  %535 = vmatprep.mubr.bf16.mxu0 0
  %536 = vmatmul.mubr.bf16.gmra.mrb[0].mxu0 %v431
  %v537 = vpop.f32.mrb[0].mxu0
  %v538 = vadd.f32 %v363, %v537
  %v539 = vpop.f32.mrb[0].mxu0
  %v540 = vadd.f32 %v367, %v539
  %v541 = vpop.f32.mrb[0].mxu0
  %v542 = vadd.f32 %v363, %v541
  %v543 = vpop.f32.mrb[0].mxu0
  %v544 = vadd.f32 %v367, %v543
  %545 = vdwg.mxu0
  %562 = vrot.lane.b32.xlu0 %v468, 64
  %v563 = vpop.permute.xlu0 %562
  %564 = vrot.lane.b32.xlu0 %v472, 64
  %v565 = vpop.permute.xlu0 %564
  %566 = vrot.lane.b32.xlu0 %v478, 64
  %v567 = vpop.permute.xlu0 %566
  %568 = vrot.lane.b32.xlu0 %v482, 64
  %v569 = vpop.permute.xlu0 %568
  %570 = vrot.lane.b32.xlu0 %v488, 64
  %v571 = vpop.permute.xlu0 %570
  %572 = vrot.lane.b32.xlu0 %v492, 64
  %v573 = vpop.permute.xlu0 %572
  %574 = vrot.lane.b32.xlu0 %v498, 64
  %v575 = vpop.permute.xlu0 %574
  %576 = vrot.lane.b32.xlu0 %v502, 64
  %v577 = vpop.permute.xlu0 %576
  %578 = vrot.lane.b32.xlu0 %v508, 64
  %v579 = vpop.permute.xlu0 %578
  %580 = vrot.lane.b32.xlu0 %v512, 64
  %v581 = vpop.permute.xlu0 %580
  %582 = vrot.lane.b32.xlu0 %v518, 64
  %v583 = vpop.permute.xlu0 %582
  %584 = vrot.lane.b32.xlu0 %v522, 64
  %v585 = vpop.permute.xlu0 %584
  %586 = vrot.lane.b32.xlu0 %v528, 64
  %v587 = vpop.permute.xlu0 %586
  %588 = vrot.lane.b32.xlu0 %v532, 64
  %v589 = vpop.permute.xlu0 %588
  %590 = vrot.lane.b32.xlu0 %v538, 64
  %v591 = vpop.permute.xlu0 %590
  %592 = vrot.lane.b32.xlu0 %v542, 64
  %v593 = vpop.permute.xlu0 %592
  %610 = vxpose.xlu0.b32.start [1/16] %v563, 128
  %611 = vxpose.xlu0.b32.cont [2/16] %v565, 128
  %612 = vxpose.xlu0.b32.cont [3/16] %v567, 128
  %613 = vxpose.xlu0.b32.cont [4/16] %v569, 128
  %614 = vxpose.xlu0.b32.cont [5/16] %v571, 128
  %615 = vxpose.xlu0.b32.cont [6/16] %v573, 128
  %616 = vxpose.xlu0.b32.cont [7/16] %v575, 128
  %617 = vxpose.xlu0.b32.cont [8/16] %v577, 128
  %618 = vxpose.xlu0.b32.cont [9/16] %v579, 128
  %619 = vxpose.xlu0.b32.cont [10/16] %v581, 128
  %620 = vxpose.xlu0.b32.cont [11/16] %v583, 128
  %621 = vxpose.xlu0.b32.cont [12/16] %v585, 128
  %622 = vxpose.xlu0.b32.cont [13/16] %v587, 128
  %623 = vxpose.xlu0.b32.cont [14/16] %v589, 128
  %624 = vxpose.xlu0.b32.cont [15/16] %v591, 128
  %625 = vxpose.xlu0.b32.end [16/16] %v593, 128
  %v626 = vpop.trf.xlu0
  %v627 = vpop.trf.xlu0
  %v628 = vpop.trf.xlu0
  %v629 = vpop.trf.xlu0
  %v630 = vpop.trf.xlu0
  %v631 = vpop.trf.xlu0
  %v632 = vpop.trf.xlu0
  %v633 = vpop.trf.xlu0
  %v634 = vpop.trf.xlu0
  %v635 = vpop.trf.xlu0
  %v636 = vpop.trf.xlu0
  %v637 = vpop.trf.xlu0
  %v638 = vpop.trf.xlu0
  %v639 = vpop.trf.xlu0
  %v640 = vpop.trf.xlu0
  %v641 = vpop.trf.xlu0
  %v642 = vpack.c.bf16 %v627, %v626
  %v643 = vpack.c.bf16 %v629, %v628
  %v644 = vpack.c.bf16 %v631, %v630
  %v645 = vpack.c.bf16 %v633, %v632
  %v646 = vmul.f32 %v468, %v326
  %v647 = vmul.f32 %v472, %v326
  %v648 = vmul.f32 %v478, %v326
  %v649 = vmul.f32 %v482, %v326
  %v650 = vmul.f32 %v488, %v326
  %v651 = vmul.f32 %v492, %v326
  %v652 = vmul.f32 %v498, %v326
  %v653 = vmul.f32 %v502, %v326
  %v654 = vmul.f32 %v508, %v326
  %v655 = vmul.f32 %v512, %v326
  %v656 = vmul.f32 %v518, %v326
  %v657 = vmul.f32 %v522, %v326
  %v658 = vmul.f32 %v528, %v326
  %v659 = vmul.f32 %v532, %v326
  %v660 = vmul.f32 %v538, %v326
  %v661 = vmul.f32 %v542, %v326
  %v662 = vpack.c.bf16 %v647, %v646
  %v663 = vpack.c.bf16 %v649, %v648
  %v664 = vpack.c.bf16 %v651, %v650
  %v665 = vpack.c.bf16 %v653, %v652
  %v666 = vpack.c.bf16 %v655, %v654
  %v667 = vpack.c.bf16 %v657, %v656
  %v668 = vpack.c.bf16 %v659, %v658
  %v669 = vpack.c.bf16 %v661, %v660
  %v670 = vld [vmem:[%s8] sm:$0xff]
  %v671 = vld [vmem:[%s8 + $0x8] sm:$0xff]
  %v672 = vld [vmem:[%s8 + $0x10] sm:$0xff]
  %v673 = vld [vmem:[%s8 + $0x18] sm:$0xff]
  %v674 = vld [vmem:[%s8 + $0x20] sm:$0xff]
  %v675 = vld [vmem:[%s8 + $0x28] sm:$0xff]
  %v676 = vld [vmem:[%s8 + $0x30] sm:$0xff]
  %v677 = vld [vmem:[%s8 + $0x38] sm:$0xff]
  %v678 = vld [vmem:[%s8 + $0x40] sm:$0xff]
  %v679 = vld [vmem:[%s8 + $0x48] sm:$0xff]
  %v680 = vld [vmem:[%s8 + $0x50] sm:$0xff]
  %v681 = vld [vmem:[%s8 + $0x58] sm:$0xff]
  %v682 = vld [vmem:[%s8 + $0x60] sm:$0xff]
  %v683 = vld [vmem:[%s8 + $0x68] sm:$0xff]
  %v684 = vld [vmem:[%s8 + $0x70] sm:$0xff]
  %v685 = vld [vmem:[%s8 + $0x78] sm:$0xff]
  %v687 = vsel %vm408, %v662, 0
  %v690 = vsel %vm408, %v663, 0
  %v693 = vsel %vm408, %v664, 0
  %v696 = vsel %vm408, %v665, 0
  %v699 = vsel %vm408, %v666, 0
  %v702 = vsel %vm408, %v667, 0
  %v705 = vsel %vm408, %v668, 0
  %v708 = vsel %vm408, %v669, 0
  %710 = vmatprep.subr.bf16.mxu0 0
  %711 = vmatpush1.bf16.msra.mxu0 %v642
  %712 = vmatprep.subr.bf16.mxu0 0
  %713 = vmatpush1.bf16.msra.mxu0 %v643
  %714 = vmatprep.subr.bf16.mxu0 0
  %715 = vmatpush1.bf16.msra.mxu0 %v644
  %716 = vmatprep.subr.bf16.mxu0 0
  %717 = vmatpush1.bf16.msra.mxu0 %v645
  %718 = vmatprep.subr.bf16.mxu0 0
  %719 = vmatpush1.bf16.msra.mxu0 0
  %720 = vmatprep.subr.bf16.mxu0 0
  %721 = vmatpush1.bf16.msra.mxu0 0
  %722 = vmatprep.subr.bf16.mxu0 0
  %723 = vmatpush1.bf16.msra.mxu0 0
  %724 = vmatprep.subr.bf16.mxu0 0
  %725 = vmatpush1.bf16.msra.mxu0 0
  %726 = vmatprep.subr.bf16.mxu0 0
  %727 = vmatpush1.bf16.msra.mxu0 0
  %728 = vmatprep.subr.bf16.mxu0 0
  %729 = vmatpush1.bf16.msra.mxu0 0
  %730 = vmatprep.subr.bf16.mxu0 0
  %731 = vmatpush1.bf16.msra.mxu0 0
  %732 = vmatprep.subr.bf16.mxu0 0
  %733 = vmatpush1.bf16.msra.mxu0 0
  %734 = vmatprep.subr.bf16.mxu0 0
  %735 = vmatpush1.bf16.msra.mxu0 0
  %736 = vmatprep.subr.bf16.mxu0 0
  %737 = vmatpush1.bf16.msra.mxu0 0
  %738 = vmatprep.subr.bf16.mxu0 0
  %739 = vmatpush1.bf16.msra.mxu0 0
  %740 = vmatprep.subr.bf16.mxu0 0
  %741 = vmatpush1.bf16.msra.mxu0 0
  %742 = vmatprep.mubr.bf16.mxu0 0
  %743 = vmatmul.mubr.bf16.gmra.mrb[0].mxu0 %v687
  %v744 = vpop.f32.mrb[0].mxu0
  %v745 = vadd.f32 %v670, %v744
  %v746 = vpop.f32.mrb[0].mxu0
  %v747 = vpop.f32.mrb[0].mxu0
  %v748 = vadd.f32 %v671, %v747
  %v749 = vpop.f32.mrb[0].mxu0
  %750 = vmatprep.mubr.bf16.mxu0 0
  %751 = vmatmul.mubr.bf16.gmra.mrb[0].mxu0 %v690
  %v752 = vpop.f32.mrb[0].mxu0
  %v753 = vadd.f32 %v672, %v752
  %v754 = vpop.f32.mrb[0].mxu0
  %v755 = vpop.f32.mrb[0].mxu0
  %v756 = vadd.f32 %v673, %v755
  %v757 = vpop.f32.mrb[0].mxu0
  %758 = vmatprep.mubr.bf16.mxu0 0
  %759 = vmatmul.mubr.bf16.gmra.mrb[0].mxu0 %v693
  %v760 = vpop.f32.mrb[0].mxu0
  %v761 = vadd.f32 %v674, %v760
  %v762 = vpop.f32.mrb[0].mxu0
  %v763 = vpop.f32.mrb[0].mxu0
  %v764 = vadd.f32 %v675, %v763
  %v765 = vpop.f32.mrb[0].mxu0
  %766 = vmatprep.mubr.bf16.mxu0 0
  %767 = vmatmul.mubr.bf16.gmra.mrb[0].mxu0 %v696
  %v768 = vpop.f32.mrb[0].mxu0
  %v769 = vadd.f32 %v676, %v768
  %v770 = vpop.f32.mrb[0].mxu0
  %v771 = vpop.f32.mrb[0].mxu0
  %v772 = vadd.f32 %v677, %v771
  %v773 = vpop.f32.mrb[0].mxu0
  %774 = vmatprep.mubr.bf16.mxu0 0
  %775 = vmatmul.mubr.bf16.gmra.mrb[0].mxu0 %v699
  %v776 = vpop.f32.mrb[0].mxu0
  %v777 = vadd.f32 %v678, %v776
  %v778 = vpop.f32.mrb[0].mxu0
  %v779 = vpop.f32.mrb[0].mxu0
  %v780 = vadd.f32 %v679, %v779
  %v781 = vpop.f32.mrb[0].mxu0
  %782 = vmatprep.mubr.bf16.mxu0 0
  %783 = vmatmul.mubr.bf16.gmra.mrb[0].mxu0 %v702
  %v784 = vpop.f32.mrb[0].mxu0
  %v785 = vadd.f32 %v680, %v784
  %v786 = vpop.f32.mrb[0].mxu0
  %v787 = vpop.f32.mrb[0].mxu0
  %v788 = vadd.f32 %v681, %v787
  %v789 = vpop.f32.mrb[0].mxu0
  %790 = vmatprep.mubr.bf16.mxu0 0
  %791 = vmatmul.mubr.bf16.gmra.mrb[0].mxu0 %v705
  %v792 = vpop.f32.mrb[0].mxu0
  %v793 = vadd.f32 %v682, %v792
  %v794 = vpop.f32.mrb[0].mxu0
  %v795 = vpop.f32.mrb[0].mxu0
  %v796 = vadd.f32 %v683, %v795
  %v797 = vpop.f32.mrb[0].mxu0
  %798 = vmatprep.mubr.bf16.mxu0 0
  %799 = vmatmul.mubr.bf16.gmra.mrb[0].mxu0 %v708
  %v800 = vpop.f32.mrb[0].mxu0
  %v801 = vadd.f32 %v684, %v800
  %v802 = vpop.f32.mrb[0].mxu0
  %v803 = vpop.f32.mrb[0].mxu0
  %v804 = vadd.f32 %v685, %v803
  %v805 = vpop.f32.mrb[0].mxu0
  %806 = vdwg.mxu0
  %807 = vmax.xlane.f32.xlu0 %v745
  %v808 = vpop.xlane.xlu0 %807
  %809 = vmax.xlane.f32.xlu0 %v748
  %v810 = vpop.xlane.xlu0 %809
  %811 = vmax.xlane.f32.xlu0 %v753
  %v812 = vpop.xlane.xlu0 %811
  %813 = vmax.xlane.f32.xlu0 %v756
  %v814 = vpop.xlane.xlu0 %813
  %815 = vmax.xlane.f32.xlu0 %v761
  %v816 = vpop.xlane.xlu0 %815
  %817 = vmax.xlane.f32.xlu0 %v764
  %v818 = vpop.xlane.xlu0 %817
  %819 = vmax.xlane.f32.xlu0 %v769
  %v820 = vpop.xlane.xlu0 %819
  %821 = vmax.xlane.f32.xlu0 %v772
  %v822 = vpop.xlane.xlu0 %821
  %823 = vmax.xlane.f32.xlu0 %v777
  %v824 = vpop.xlane.xlu0 %823
  %825 = vmax.xlane.f32.xlu0 %v780
  %v826 = vpop.xlane.xlu0 %825
  %827 = vmax.xlane.f32.xlu0 %v785
  %v828 = vpop.xlane.xlu0 %827
  %829 = vmax.xlane.f32.xlu0 %v788
  %v830 = vpop.xlane.xlu0 %829
  %831 = vmax.xlane.f32.xlu0 %v793
  %v832 = vpop.xlane.xlu0 %831
  %833 = vmax.xlane.f32.xlu0 %v796
  %v834 = vpop.xlane.xlu0 %833
  %835 = vmax.xlane.f32.xlu0 %v801
  %v836 = vpop.xlane.xlu0 %835
  %837 = vmax.xlane.f32.xlu0 %v804
  %v838 = vpop.xlane.xlu0 %837
  %v839 = vsub.f32 %v745, %v808
  %v840 = vsub.f32 %v748, %v810
  %v841 = vsub.f32 %v753, %v812
  %v842 = vsub.f32 %v756, %v814
  %v843 = vsub.f32 %v761, %v816
  %v844 = vsub.f32 %v764, %v818
  %v845 = vsub.f32 %v769, %v820
  %v846 = vsub.f32 %v772, %v822
  %v847 = vsub.f32 %v777, %v824
  %v848 = vsub.f32 %v780, %v826
  %v849 = vsub.f32 %v785, %v828
  %v850 = vsub.f32 %v788, %v830
  %v851 = vsub.f32 %v793, %v832
  %v852 = vsub.f32 %v796, %v834
  %v853 = vsub.f32 %v801, %v836
  %v854 = vsub.f32 %v804, %v838
  %v855 = vmul.f32 %v839, 1.442695
  %v856 = vpow.pop %v855
  %v857 = vmul.f32 %v840, 1.442695
  %v858 = vpow.pop %v857
  %v859 = vmul.f32 %v841, 1.442695
  %v860 = vpow.pop %v859
  %v861 = vmul.f32 %v842, 1.442695
  %v862 = vpow.pop %v861
  %v863 = vmul.f32 %v843, 1.442695
  %v864 = vpow.pop %v863
  %v865 = vmul.f32 %v844, 1.442695
  %v866 = vpow.pop %v865
  %v867 = vmul.f32 %v845, 1.442695
  %v868 = vpow.pop %v867
  %v869 = vmul.f32 %v846, 1.442695
  %v870 = vpow.pop %v869
  %v871 = vmul.f32 %v847, 1.442695
  %v872 = vpow.pop %v871
  %v873 = vmul.f32 %v848, 1.442695
  %v874 = vpow.pop %v873
  %v875 = vmul.f32 %v849, 1.442695
  %v876 = vpow.pop %v875
  %v877 = vmul.f32 %v850, 1.442695
  %v878 = vpow.pop %v877
  %v879 = vmul.f32 %v851, 1.442695
  %v880 = vpow.pop %v879
  %v881 = vmul.f32 %v852, 1.442695
  %v882 = vpow.pop %v881
  %v883 = vmul.f32 %v853, 1.442695
  %v884 = vpow.pop %v883
  %v885 = vmul.f32 %v854, 1.442695
  %v886 = vpow.pop %v885
  %887 = vadd.xlane.f32.xlu0 %v856
  %v888 = vpop.xlane.xlu0 %887
  %889 = vadd.xlane.f32.xlu0 %v858
  %v890 = vpop.xlane.xlu0 %889
  %891 = vadd.xlane.f32.xlu0 %v860
  %v892 = vpop.xlane.xlu0 %891
  %893 = vadd.xlane.f32.xlu0 %v862
  %v894 = vpop.xlane.xlu0 %893
  %895 = vadd.xlane.f32.xlu0 %v864
  %v896 = vpop.xlane.xlu0 %895
  %897 = vadd.xlane.f32.xlu0 %v866
  %v898 = vpop.xlane.xlu0 %897
  %899 = vadd.xlane.f32.xlu0 %v868
  %v900 = vpop.xlane.xlu0 %899
  %901 = vadd.xlane.f32.xlu0 %v870
  %v902 = vpop.xlane.xlu0 %901
  %903 = vadd.xlane.f32.xlu0 %v872
  %v904 = vpop.xlane.xlu0 %903
  %905 = vadd.xlane.f32.xlu0 %v874
  %v906 = vpop.xlane.xlu0 %905
  %907 = vadd.xlane.f32.xlu0 %v876
  %v908 = vpop.xlane.xlu0 %907
  %909 = vadd.xlane.f32.xlu0 %v878
  %v910 = vpop.xlane.xlu0 %909
  %911 = vadd.xlane.f32.xlu0 %v880
  %v912 = vpop.xlane.xlu0 %911
  %913 = vadd.xlane.f32.xlu0 %v882
  %v914 = vpop.xlane.xlu0 %913
  %915 = vadd.xlane.f32.xlu0 %v884
  %v916 = vpop.xlane.xlu0 %915
  %917 = vadd.xlane.f32.xlu0 %v886
  %v918 = vpop.xlane.xlu0 %917
  %v919 = vrcp.pop %v888
  %v920 = vrcp.pop %v890
  %v921 = vrcp.pop %v892
  %v922 = vrcp.pop %v894
  %v923 = vrcp.pop %v896
  %v924 = vrcp.pop %v898
  %v925 = vrcp.pop %v900
  %v926 = vrcp.pop %v902
  %v927 = vrcp.pop %v904
  %v928 = vrcp.pop %v906
  %v929 = vrcp.pop %v908
  %v930 = vrcp.pop %v910
  %v931 = vrcp.pop %v912
  %v932 = vrcp.pop %v914
  %v933 = vrcp.pop %v916
  %v934 = vrcp.pop %v918
  %v935 = vmul.f32 %v856, %v919
  %v936 = vmul.f32 %v858, %v920
  %v937 = vmul.f32 %v860, %v921
  %v938 = vmul.f32 %v862, %v922
  %v939 = vmul.f32 %v864, %v923
  %v940 = vmul.f32 %v866, %v924
  %v941 = vmul.f32 %v868, %v925
  %v942 = vmul.f32 %v870, %v926
  %v943 = vmul.f32 %v872, %v927
  %v944 = vmul.f32 %v874, %v928
  %v945 = vmul.f32 %v876, %v929
  %v946 = vmul.f32 %v878, %v930
  %v947 = vmul.f32 %v880, %v931
  %v948 = vmul.f32 %v882, %v932
  %v949 = vmul.f32 %v884, %v933
  %v950 = vmul.f32 %v886, %v934
  %v951 = vmul.f32 %v470, %v326
  %v952 = vmul.f32 %v474, %v326
  %v953 = vmul.f32 %v480, %v326
  %v954 = vmul.f32 %v484, %v326
  %v955 = vmul.f32 %v490, %v326
  %v956 = vmul.f32 %v494, %v326
  %v957 = vmul.f32 %v500, %v326
  %v958 = vmul.f32 %v504, %v326
  %v959 = vmul.f32 %v510, %v326
  %v960 = vmul.f32 %v514, %v326
  %v961 = vmul.f32 %v520, %v326
  %v962 = vmul.f32 %v524, %v326
  %v963 = vmul.f32 %v530, %v326
  %v964 = vmul.f32 %v534, %v326
  %v965 = vmul.f32 %v540, %v326
  %v966 = vmul.f32 %v544, %v326
  %v967 = vpack.c.bf16 %v952, %v951
  %v968 = vpack.c.bf16 %v954, %v953
  %v969 = vpack.c.bf16 %v956, %v955
  %v970 = vpack.c.bf16 %v958, %v957
  %v971 = vpack.c.bf16 %v960, %v959
  %v972 = vpack.c.bf16 %v962, %v961
  %v973 = vpack.c.bf16 %v964, %v963
  %v974 = vpack.c.bf16 %v966, %v965
  %v975 = vpack.c.bf16 %v936, %v935
  %v976 = vpack.c.bf16 %v938, %v937
  %v977 = vpack.c.bf16 %v940, %v939
  %v978 = vpack.c.bf16 %v942, %v941
  %v979 = vpack.c.bf16 %v944, %v943
  %v980 = vpack.c.bf16 %v946, %v945
  %v981 = vpack.c.bf16 %v948, %v947
  %v982 = vpack.c.bf16 %v950, %v949
  %v983 = vmul.f32 %v468, %v331
  %v984 = vmul.f32 %v472, %v331
  %v985 = vmul.f32 %v478, %v331
  %v986 = vmul.f32 %v482, %v331
  %v987 = vmul.f32 %v488, %v331
  %v988 = vmul.f32 %v492, %v331
  %v989 = vmul.f32 %v498, %v331
  %v990 = vmul.f32 %v502, %v331
  %v991 = vmul.f32 %v508, %v331
  %v992 = vmul.f32 %v512, %v331
  %v993 = vmul.f32 %v518, %v331
  %v994 = vmul.f32 %v522, %v331
  %v995 = vmul.f32 %v528, %v331
  %v996 = vmul.f32 %v532, %v331
  %v997 = vmul.f32 %v538, %v331
  %v998 = vmul.f32 %v542, %v331
  %v999 = vpack.c.bf16 %v984, %v983
  %v1000 = vpack.c.bf16 %v986, %v985
  %v1001 = vpack.c.bf16 %v988, %v987
  %v1002 = vpack.c.bf16 %v990, %v989
  %v1003 = vpack.c.bf16 %v992, %v991
  %v1004 = vpack.c.bf16 %v994, %v993
  %v1005 = vpack.c.bf16 %v996, %v995
  %v1006 = vpack.c.bf16 %v998, %v997
  %s1007 = scalar_lea.vmem %s8, 128
  %v1008 = vld [vmem:[%s1007] sm:$0xff]
  %v1009 = vld [vmem:[%s1007 + $0x8] sm:$0xff]
  %v1010 = vld [vmem:[%s1007 + $0x10] sm:$0xff]
  %v1011 = vld [vmem:[%s1007 + $0x18] sm:$0xff]
  %v1012 = vld [vmem:[%s1007 + $0x20] sm:$0xff]
  %v1013 = vld [vmem:[%s1007 + $0x28] sm:$0xff]
  %v1014 = vld [vmem:[%s1007 + $0x30] sm:$0xff]
  %v1015 = vld [vmem:[%s1007 + $0x38] sm:$0xff]
  %v1016 = vld [vmem:[%s1007 + $0x40] sm:$0xff]
  %v1017 = vld [vmem:[%s1007 + $0x48] sm:$0xff]
  %v1018 = vld [vmem:[%s1007 + $0x50] sm:$0xff]
  %v1019 = vld [vmem:[%s1007 + $0x58] sm:$0xff]
  %v1020 = vld [vmem:[%s1007 + $0x60] sm:$0xff]
  %v1021 = vld [vmem:[%s1007 + $0x68] sm:$0xff]
  %v1022 = vld [vmem:[%s1007 + $0x70] sm:$0xff]
  %v1023 = vld [vmem:[%s1007 + $0x78] sm:$0xff]
  %v1025 = vsel %vm408, %v999, 0
  %v1028 = vsel %vm408, %v1000, 0
  %v1031 = vsel %vm408, %v1001, 0
  %v1034 = vsel %vm408, %v1002, 0
  %v1037 = vsel %vm408, %v1003, 0
  %v1040 = vsel %vm408, %v1004, 0
  %v1043 = vsel %vm408, %v1005, 0
  %v1046 = vsel %vm408, %v1006, 0
  %1048 = vmatprep.subr.bf16.mxu0 0
  %1049 = vmatpush1.bf16.msra.mxu0 %v642
  %1050 = vmatprep.subr.bf16.mxu0 0
  %1051 = vmatpush1.bf16.msra.mxu0 %v643
  %1052 = vmatprep.subr.bf16.mxu0 0
  %1053 = vmatpush1.bf16.msra.mxu0 %v644
  %1054 = vmatprep.subr.bf16.mxu0 0
  %1055 = vmatpush1.bf16.msra.mxu0 %v645
  %1056 = vmatprep.subr.bf16.mxu0 0
  %1057 = vmatpush1.bf16.msra.mxu0 0
  %1058 = vmatprep.subr.bf16.mxu0 0
  %1059 = vmatpush1.bf16.msra.mxu0 0
  %1060 = vmatprep.subr.bf16.mxu0 0
  %1061 = vmatpush1.bf16.msra.mxu0 0
  %1062 = vmatprep.subr.bf16.mxu0 0
  %1063 = vmatpush1.bf16.msra.mxu0 0
  %1064 = vmatprep.subr.bf16.mxu0 0
  %1065 = vmatpush1.bf16.msra.mxu0 0
  %1066 = vmatprep.subr.bf16.mxu0 0
  %1067 = vmatpush1.bf16.msra.mxu0 0
  %1068 = vmatprep.subr.bf16.mxu0 0
  %1069 = vmatpush1.bf16.msra.mxu0 0
  %1070 = vmatprep.subr.bf16.mxu0 0
  %1071 = vmatpush1.bf16.msra.mxu0 0
  %1072 = vmatprep.subr.bf16.mxu0 0
  %1073 = vmatpush1.bf16.msra.mxu0 0
  %1074 = vmatprep.subr.bf16.mxu0 0
  %1075 = vmatpush1.bf16.msra.mxu0 0
  %1076 = vmatprep.subr.bf16.mxu0 0
  %1077 = vmatpush1.bf16.msra.mxu0 0
  %1078 = vmatprep.subr.bf16.mxu0 0
  %1079 = vmatpush1.bf16.msra.mxu0 0
  %1080 = vmatprep.mubr.bf16.mxu0 0
  %1081 = vmatmul.mubr.bf16.gmra.mrb[0].mxu0 %v1025
  %v1082 = vpop.f32.mrb[0].mxu0
  %v1083 = vadd.f32 %v1008, %v1082
  %v1084 = vpop.f32.mrb[0].mxu0
  %v1085 = vpop.f32.mrb[0].mxu0
  %v1086 = vadd.f32 %v1009, %v1085
  %v1087 = vpop.f32.mrb[0].mxu0
  %1088 = vmatprep.mubr.bf16.mxu0 0
  %1089 = vmatmul.mubr.bf16.gmra.mrb[0].mxu0 %v1028
  %v1090 = vpop.f32.mrb[0].mxu0
  %v1091 = vadd.f32 %v1010, %v1090
  %v1092 = vpop.f32.mrb[0].mxu0
  %v1093 = vpop.f32.mrb[0].mxu0
  %v1094 = vadd.f32 %v1011, %v1093
  %v1095 = vpop.f32.mrb[0].mxu0
  %1096 = vmatprep.mubr.bf16.mxu0 0
  %1097 = vmatmul.mubr.bf16.gmra.mrb[0].mxu0 %v1031
  %v1098 = vpop.f32.mrb[0].mxu0
  %v1099 = vadd.f32 %v1012, %v1098
  %v1100 = vpop.f32.mrb[0].mxu0
  %v1101 = vpop.f32.mrb[0].mxu0
  %v1102 = vadd.f32 %v1013, %v1101
  %v1103 = vpop.f32.mrb[0].mxu0
  %1104 = vmatprep.mubr.bf16.mxu0 0
  %1105 = vmatmul.mubr.bf16.gmra.mrb[0].mxu0 %v1034
  %v1106 = vpop.f32.mrb[0].mxu0
  %v1107 = vadd.f32 %v1014, %v1106
  %v1108 = vpop.f32.mrb[0].mxu0
  %v1109 = vpop.f32.mrb[0].mxu0
  %v1110 = vadd.f32 %v1015, %v1109
  %v1111 = vpop.f32.mrb[0].mxu0
  %1112 = vmatprep.mubr.bf16.mxu0 0
  %1113 = vmatmul.mubr.bf16.gmra.mrb[0].mxu0 %v1037
  %v1114 = vpop.f32.mrb[0].mxu0
  %v1115 = vadd.f32 %v1016, %v1114
  %v1116 = vpop.f32.mrb[0].mxu0
  %v1117 = vpop.f32.mrb[0].mxu0
  %v1118 = vadd.f32 %v1017, %v1117
  %v1119 = vpop.f32.mrb[0].mxu0
  %1120 = vmatprep.mubr.bf16.mxu0 0
  %1121 = vmatmul.mubr.bf16.gmra.mrb[0].mxu0 %v1040
  %v1122 = vpop.f32.mrb[0].mxu0
  %v1123 = vadd.f32 %v1018, %v1122
  %v1124 = vpop.f32.mrb[0].mxu0
  %v1125 = vpop.f32.mrb[0].mxu0
  %v1126 = vadd.f32 %v1019, %v1125
  %v1127 = vpop.f32.mrb[0].mxu0
  %1128 = vmatprep.mubr.bf16.mxu0 0
  %1129 = vmatmul.mubr.bf16.gmra.mrb[0].mxu0 %v1043
  %v1130 = vpop.f32.mrb[0].mxu0
  %v1131 = vadd.f32 %v1020, %v1130
  %v1132 = vpop.f32.mrb[0].mxu0
  %v1133 = vpop.f32.mrb[0].mxu0
  %v1134 = vadd.f32 %v1021, %v1133
  %v1135 = vpop.f32.mrb[0].mxu0
  %1136 = vmatprep.mubr.bf16.mxu0 0
  %1137 = vmatmul.mubr.bf16.gmra.mrb[0].mxu0 %v1046
  %v1138 = vpop.f32.mrb[0].mxu0
  %v1139 = vadd.f32 %v1022, %v1138
  %v1140 = vpop.f32.mrb[0].mxu0
  %v1141 = vpop.f32.mrb[0].mxu0
  %v1142 = vadd.f32 %v1023, %v1141
  %v1143 = vpop.f32.mrb[0].mxu0
  %1144 = vdwg.mxu0
  %1145 = vmax.xlane.f32.xlu0 %v1083
  %v1146 = vpop.xlane.xlu0 %1145
  %1147 = vmax.xlane.f32.xlu0 %v1086
  %v1148 = vpop.xlane.xlu0 %1147
  %1149 = vmax.xlane.f32.xlu0 %v1091
  %v1150 = vpop.xlane.xlu0 %1149
  %1151 = vmax.xlane.f32.xlu0 %v1094
  %v1152 = vpop.xlane.xlu0 %1151
  %1153 = vmax.xlane.f32.xlu0 %v1099
  %v1154 = vpop.xlane.xlu0 %1153
  %1155 = vmax.xlane.f32.xlu0 %v1102
  %v1156 = vpop.xlane.xlu0 %1155
  %1157 = vmax.xlane.f32.xlu0 %v1107
  %v1158 = vpop.xlane.xlu0 %1157
  %1159 = vmax.xlane.f32.xlu0 %v1110
  %v1160 = vpop.xlane.xlu0 %1159
  %1161 = vmax.xlane.f32.xlu0 %v1115
  %v1162 = vpop.xlane.xlu0 %1161
  %1163 = vmax.xlane.f32.xlu0 %v1118
  %v1164 = vpop.xlane.xlu0 %1163
  %1165 = vmax.xlane.f32.xlu0 %v1123
  %v1166 = vpop.xlane.xlu0 %1165
  %1167 = vmax.xlane.f32.xlu0 %v1126
  %v1168 = vpop.xlane.xlu0 %1167
  %1169 = vmax.xlane.f32.xlu0 %v1131
  %v1170 = vpop.xlane.xlu0 %1169
  %1171 = vmax.xlane.f32.xlu0 %v1134
  %v1172 = vpop.xlane.xlu0 %1171
  %1173 = vmax.xlane.f32.xlu0 %v1139
  %v1174 = vpop.xlane.xlu0 %1173
  %1175 = vmax.xlane.f32.xlu0 %v1142
  %v1176 = vpop.xlane.xlu0 %1175
  %v1177 = vsub.f32 %v1083, %v1146
  %v1178 = vsub.f32 %v1086, %v1148
  %v1179 = vsub.f32 %v1091, %v1150
  %v1180 = vsub.f32 %v1094, %v1152
  %v1181 = vsub.f32 %v1099, %v1154
  %v1182 = vsub.f32 %v1102, %v1156
  %v1183 = vsub.f32 %v1107, %v1158
  %v1184 = vsub.f32 %v1110, %v1160
  %v1185 = vsub.f32 %v1115, %v1162
  %v1186 = vsub.f32 %v1118, %v1164
  %v1187 = vsub.f32 %v1123, %v1166
  %v1188 = vsub.f32 %v1126, %v1168
  %v1189 = vsub.f32 %v1131, %v1170
  %v1190 = vsub.f32 %v1134, %v1172
  %v1191 = vsub.f32 %v1139, %v1174
  %v1192 = vsub.f32 %v1142, %v1176
  %v1193 = vmul.f32 %v1177, 1.442695
  %v1194 = vpow.pop %v1193
  %v1195 = vmul.f32 %v1178, 1.442695
  %v1196 = vpow.pop %v1195
  %v1197 = vmul.f32 %v1179, 1.442695
  %v1198 = vpow.pop %v1197
  %v1199 = vmul.f32 %v1180, 1.442695
  %v1200 = vpow.pop %v1199
  %v1201 = vmul.f32 %v1181, 1.442695
  %v1202 = vpow.pop %v1201
  %v1203 = vmul.f32 %v1182, 1.442695
  %v1204 = vpow.pop %v1203
  %v1205 = vmul.f32 %v1183, 1.442695
  %v1206 = vpow.pop %v1205
  %v1207 = vmul.f32 %v1184, 1.442695
  %v1208 = vpow.pop %v1207
  %v1209 = vmul.f32 %v1185, 1.442695
  %v1210 = vpow.pop %v1209
  %v1211 = vmul.f32 %v1186, 1.442695
  %v1212 = vpow.pop %v1211
  %v1213 = vmul.f32 %v1187, 1.442695
  %v1214 = vpow.pop %v1213
  %v1215 = vmul.f32 %v1188, 1.442695
  %v1216 = vpow.pop %v1215
  %v1217 = vmul.f32 %v1189, 1.442695
  %v1218 = vpow.pop %v1217
  %v1219 = vmul.f32 %v1190, 1.442695
  %v1220 = vpow.pop %v1219
  %v1221 = vmul.f32 %v1191, 1.442695
  %v1222 = vpow.pop %v1221
  %v1223 = vmul.f32 %v1192, 1.442695
  %v1224 = vpow.pop %v1223
  %1225 = vadd.xlane.f32.xlu0 %v1194
  %v1226 = vpop.xlane.xlu0 %1225
  %1227 = vadd.xlane.f32.xlu0 %v1196
  %v1228 = vpop.xlane.xlu0 %1227
  %1229 = vadd.xlane.f32.xlu0 %v1198
  %v1230 = vpop.xlane.xlu0 %1229
  %1231 = vadd.xlane.f32.xlu0 %v1200
  %v1232 = vpop.xlane.xlu0 %1231
  %1233 = vadd.xlane.f32.xlu0 %v1202
  %v1234 = vpop.xlane.xlu0 %1233
  %1235 = vadd.xlane.f32.xlu0 %v1204
  %v1236 = vpop.xlane.xlu0 %1235
  %1237 = vadd.xlane.f32.xlu0 %v1206
  %v1238 = vpop.xlane.xlu0 %1237
  %1239 = vadd.xlane.f32.xlu0 %v1208
  %v1240 = vpop.xlane.xlu0 %1239
  %1241 = vadd.xlane.f32.xlu0 %v1210
  %v1242 = vpop.xlane.xlu0 %1241
  %1243 = vadd.xlane.f32.xlu0 %v1212
  %v1244 = vpop.xlane.xlu0 %1243
  %1245 = vadd.xlane.f32.xlu0 %v1214
  %v1246 = vpop.xlane.xlu0 %1245
  %1247 = vadd.xlane.f32.xlu0 %v1216
  %v1248 = vpop.xlane.xlu0 %1247
  %1249 = vadd.xlane.f32.xlu0 %v1218
  %v1250 = vpop.xlane.xlu0 %1249
  %1251 = vadd.xlane.f32.xlu0 %v1220
  %v1252 = vpop.xlane.xlu0 %1251
  %1253 = vadd.xlane.f32.xlu0 %v1222
  %v1254 = vpop.xlane.xlu0 %1253
  %1255 = vadd.xlane.f32.xlu0 %v1224
  %v1256 = vpop.xlane.xlu0 %1255
  %v1257 = vrcp.pop %v1226
  %v1258 = vrcp.pop %v1228
  %v1259 = vrcp.pop %v1230
  %v1260 = vrcp.pop %v1232
  %v1261 = vrcp.pop %v1234
  %v1262 = vrcp.pop %v1236
  %v1263 = vrcp.pop %v1238
  %v1264 = vrcp.pop %v1240
  %v1265 = vrcp.pop %v1242
  %v1266 = vrcp.pop %v1244
  %v1267 = vrcp.pop %v1246
  %v1268 = vrcp.pop %v1248
  %v1269 = vrcp.pop %v1250
  %v1270 = vrcp.pop %v1252
  %v1271 = vrcp.pop %v1254
  %v1272 = vrcp.pop %v1256
  %v1273 = vmul.f32 %v1194, %v1257
  %v1274 = vmul.f32 %v1196, %v1258
  %v1275 = vmul.f32 %v1198, %v1259
  %v1276 = vmul.f32 %v1200, %v1260
  %v1277 = vmul.f32 %v1202, %v1261
  %v1278 = vmul.f32 %v1204, %v1262
  %v1279 = vmul.f32 %v1206, %v1263
  %v1280 = vmul.f32 %v1208, %v1264
  %v1281 = vmul.f32 %v1210, %v1265
  %v1282 = vmul.f32 %v1212, %v1266
  %v1283 = vmul.f32 %v1214, %v1267
  %v1284 = vmul.f32 %v1216, %v1268
  %v1285 = vmul.f32 %v1218, %v1269
  %v1286 = vmul.f32 %v1220, %v1270
  %v1287 = vmul.f32 %v1222, %v1271
  %v1288 = vmul.f32 %v1224, %v1272
  %v1289 = vmul.f32 %v470, %v331
  %v1290 = vmul.f32 %v474, %v331
  %v1291 = vmul.f32 %v480, %v331
  %v1292 = vmul.f32 %v484, %v331
  %v1293 = vmul.f32 %v490, %v331
  %v1294 = vmul.f32 %v494, %v331
  %v1295 = vmul.f32 %v500, %v331
  %v1296 = vmul.f32 %v504, %v331
  %v1297 = vmul.f32 %v510, %v331
  %v1298 = vmul.f32 %v514, %v331
  %v1299 = vmul.f32 %v520, %v331
  %v1300 = vmul.f32 %v524, %v331
  %v1301 = vmul.f32 %v530, %v331
  %v1302 = vmul.f32 %v534, %v331
  %v1303 = vmul.f32 %v540, %v331
  %v1304 = vmul.f32 %v544, %v331
  %v1305 = vpack.c.bf16 %v1290, %v1289
  %v1306 = vpack.c.bf16 %v1292, %v1291
  %v1307 = vpack.c.bf16 %v1294, %v1293
  %v1308 = vpack.c.bf16 %v1296, %v1295
  %v1309 = vpack.c.bf16 %v1298, %v1297
  %v1310 = vpack.c.bf16 %v1300, %v1299
  %v1311 = vpack.c.bf16 %v1302, %v1301
  %v1312 = vpack.c.bf16 %v1304, %v1303
  %v1313 = vpack.c.bf16 %v1274, %v1273
  %v1314 = vpack.c.bf16 %v1276, %v1275
  %v1315 = vpack.c.bf16 %v1278, %v1277
  %v1316 = vpack.c.bf16 %v1280, %v1279
  %v1317 = vpack.c.bf16 %v1282, %v1281
  %v1318 = vpack.c.bf16 %v1284, %v1283
  %v1319 = vpack.c.bf16 %v1286, %v1285
  %v1320 = vpack.c.bf16 %v1288, %v1287
  %1321 = vmatprep.subr.bf16.mxu0 0
  %1322 = vmatpush1.bf16.msra.mxu0 %v1305
  %1323 = vmatprep.subr.bf16.mxu0 0
  %1324 = vmatpush1.bf16.msra.mxu0 %v1306
  %1325 = vmatprep.subr.bf16.mxu0 0
  %1326 = vmatpush1.bf16.msra.mxu0 %v1307
  %1327 = vmatprep.subr.bf16.mxu0 0
  %1328 = vmatpush1.bf16.msra.mxu0 %v1308
  %1329 = vmatprep.subr.bf16.mxu0 0
  %1330 = vmatpush1.bf16.msra.mxu0 %v1309
  %1331 = vmatprep.subr.bf16.mxu0 0
  %1332 = vmatpush1.bf16.msra.mxu0 %v1310
  %1333 = vmatprep.subr.bf16.mxu0 0
  %1334 = vmatpush1.bf16.msra.mxu0 %v1311
  %1335 = vmatprep.subr.bf16.mxu0 0
  %1336 = vmatpush1.bf16.msra.mxu0 %v1312
  %1337 = vmatprep.subr.bf16.mxu0 0
  %1338 = vmatpush1.bf16.msra.mxu0 0
  %1339 = vmatprep.subr.bf16.mxu0 0
  %1340 = vmatpush1.bf16.msra.mxu0 0
  %1341 = vmatprep.subr.bf16.mxu0 0
  %1342 = vmatpush1.bf16.msra.mxu0 0
  %1343 = vmatprep.subr.bf16.mxu0 0
  %1344 = vmatpush1.bf16.msra.mxu0 0
  %1345 = vmatprep.subr.bf16.mxu0 0
  %1346 = vmatpush1.bf16.msra.mxu0 0
  %1347 = vmatprep.subr.bf16.mxu0 0
  %1348 = vmatpush1.bf16.msra.mxu0 0
  %1349 = vmatprep.subr.bf16.mxu0 0
  %1350 = vmatpush1.bf16.msra.mxu0 0
  %1351 = vmatprep.subr.bf16.mxu0 0
  %1352 = vmatpush1.bf16.msra.mxu0 0
  %1353 = vmatprep.mubr.bf16.mxu0 0
  %1354 = vmatmul.mubr.bf16.gmra.mrb[0].mxu0 %v1313
  %v1355 = vpop.f32.mrb[0].mxu0
  %v1356 = vadd.f32 0.0, %v1355
  %v1357 = vpop.f32.mrb[0].mxu0
  %v1358 = vpop.f32.mrb[0].mxu0
  %v1359 = vadd.f32 0.0, %v1358
  %v1360 = vpop.f32.mrb[0].mxu0
  %1361 = vmatprep.mubr.bf16.mxu0 0
  %1362 = vmatmul.mubr.bf16.gmra.mrb[0].mxu0 %v1314
  %v1363 = vpop.f32.mrb[0].mxu0
  %v1364 = vadd.f32 0.0, %v1363
  %v1365 = vpop.f32.mrb[0].mxu0
  %v1366 = vpop.f32.mrb[0].mxu0
  %v1367 = vadd.f32 0.0, %v1366
  %v1368 = vpop.f32.mrb[0].mxu0
  %1369 = vmatprep.mubr.bf16.mxu0 0
  %1370 = vmatmul.mubr.bf16.gmra.mrb[0].mxu0 %v1315
  %v1371 = vpop.f32.mrb[0].mxu0
  %v1372 = vadd.f32 0.0, %v1371
  %v1373 = vpop.f32.mrb[0].mxu0
  %v1374 = vpop.f32.mrb[0].mxu0
  %v1375 = vadd.f32 0.0, %v1374
  %v1376 = vpop.f32.mrb[0].mxu0
  %1377 = vmatprep.mubr.bf16.mxu0 0
  %1378 = vmatmul.mubr.bf16.gmra.mrb[0].mxu0 %v1316
  %v1379 = vpop.f32.mrb[0].mxu0
  %v1380 = vadd.f32 0.0, %v1379
  %v1381 = vpop.f32.mrb[0].mxu0
  %v1382 = vpop.f32.mrb[0].mxu0
  %v1383 = vadd.f32 0.0, %v1382
  %v1384 = vpop.f32.mrb[0].mxu0
  %1385 = vmatprep.mubr.bf16.mxu0 0
  %1386 = vmatmul.mubr.bf16.gmra.mrb[0].mxu0 %v1317
  %v1387 = vpop.f32.mrb[0].mxu0
  %v1388 = vadd.f32 0.0, %v1387
  %v1389 = vpop.f32.mrb[0].mxu0
  %v1390 = vpop.f32.mrb[0].mxu0
  %v1391 = vadd.f32 0.0, %v1390
  %v1392 = vpop.f32.mrb[0].mxu0
  %1393 = vmatprep.mubr.bf16.mxu0 0
  %1394 = vmatmul.mubr.bf16.gmra.mrb[0].mxu0 %v1318
  %v1395 = vpop.f32.mrb[0].mxu0
  %v1396 = vadd.f32 0.0, %v1395
  %v1397 = vpop.f32.mrb[0].mxu0
  %v1398 = vpop.f32.mrb[0].mxu0
  %v1399 = vadd.f32 0.0, %v1398
  %v1400 = vpop.f32.mrb[0].mxu0
  %1401 = vmatprep.mubr.bf16.mxu0 0
  %1402 = vmatmul.mubr.bf16.gmra.mrb[0].mxu0 %v1319
  %v1403 = vpop.f32.mrb[0].mxu0
  %v1404 = vadd.f32 0.0, %v1403
  %v1405 = vpop.f32.mrb[0].mxu0
  %v1406 = vpop.f32.mrb[0].mxu0
  %v1407 = vadd.f32 0.0, %v1406
  %v1408 = vpop.f32.mrb[0].mxu0
  %1409 = vmatprep.mubr.bf16.mxu0 0
  %1410 = vmatmul.mubr.bf16.gmra.mrb[0].mxu0 %v1320
  %v1411 = vpop.f32.mrb[0].mxu0
  %v1412 = vadd.f32 0.0, %v1411
  %v1413 = vpop.f32.mrb[0].mxu0
  %v1414 = vpop.f32.mrb[0].mxu0
  %v1415 = vadd.f32 0.0, %v1414
  %v1416 = vpop.f32.mrb[0].mxu0
  %1417 = vdwg.mxu0
  %1418 = vmatprep.subr.bf16.mxu0 0
  %1419 = vmatpush1.bf16.msra.mxu0 %v967
  %1420 = vmatprep.subr.bf16.mxu0 0
  %1421 = vmatpush1.bf16.msra.mxu0 %v968
  %1422 = vmatprep.subr.bf16.mxu0 0
  %1423 = vmatpush1.bf16.msra.mxu0 %v969
  %1424 = vmatprep.subr.bf16.mxu0 0
  %1425 = vmatpush1.bf16.msra.mxu0 %v970
  %1426 = vmatprep.subr.bf16.mxu0 0
  %1427 = vmatpush1.bf16.msra.mxu0 %v971
  %1428 = vmatprep.subr.bf16.mxu0 0
  %1429 = vmatpush1.bf16.msra.mxu0 %v972
  %1430 = vmatprep.subr.bf16.mxu0 0
  %1431 = vmatpush1.bf16.msra.mxu0 %v973
  %1432 = vmatprep.subr.bf16.mxu0 0
  %1433 = vmatpush1.bf16.msra.mxu0 %v974
  %1434 = vmatprep.subr.bf16.mxu0 0
  %1435 = vmatpush1.bf16.msra.mxu0 0
  %1436 = vmatprep.subr.bf16.mxu0 0
  %1437 = vmatpush1.bf16.msra.mxu0 0
  %1438 = vmatprep.subr.bf16.mxu0 0
  %1439 = vmatpush1.bf16.msra.mxu0 0
  %1440 = vmatprep.subr.bf16.mxu0 0
  %1441 = vmatpush1.bf16.msra.mxu0 0
  %1442 = vmatprep.subr.bf16.mxu0 0
  %1443 = vmatpush1.bf16.msra.mxu0 0
  %1444 = vmatprep.subr.bf16.mxu0 0
  %1445 = vmatpush1.bf16.msra.mxu0 0
  %1446 = vmatprep.subr.bf16.mxu0 0
  %1447 = vmatpush1.bf16.msra.mxu0 0
  %1448 = vmatprep.subr.bf16.mxu0 0
  %1449 = vmatpush1.bf16.msra.mxu0 0
  %1450 = vmatprep.mubr.bf16.mxu0 0
  %1451 = vmatmul.mubr.bf16.gmra.mrb[0].mxu0 %v975
  %v1452 = vpop.f32.mrb[0].mxu0
  %v1453 = vadd.f32 %v1356, %v1452
  %v1454 = vpop.f32.mrb[0].mxu0
  %v1455 = vpop.f32.mrb[0].mxu0
  %v1456 = vadd.f32 %v1359, %v1455
  %v1457 = vpop.f32.mrb[0].mxu0
  %1458 = vmatprep.mubr.bf16.mxu0 0
  %1459 = vmatmul.mubr.bf16.gmra.mrb[0].mxu0 %v976
  %v1460 = vpop.f32.mrb[0].mxu0
  %v1461 = vadd.f32 %v1364, %v1460
  %v1462 = vpop.f32.mrb[0].mxu0
  %v1463 = vpop.f32.mrb[0].mxu0
  %v1464 = vadd.f32 %v1367, %v1463
  %v1465 = vpop.f32.mrb[0].mxu0
  %1466 = vmatprep.mubr.bf16.mxu0 0
  %1467 = vmatmul.mubr.bf16.gmra.mrb[0].mxu0 %v977
  %v1468 = vpop.f32.mrb[0].mxu0
  %v1469 = vadd.f32 %v1372, %v1468
  %v1470 = vpop.f32.mrb[0].mxu0
  %v1471 = vpop.f32.mrb[0].mxu0
  %v1472 = vadd.f32 %v1375, %v1471
  %v1473 = vpop.f32.mrb[0].mxu0
  %1474 = vmatprep.mubr.bf16.mxu0 0
  %1475 = vmatmul.mubr.bf16.gmra.mrb[0].mxu0 %v978
  %v1476 = vpop.f32.mrb[0].mxu0
  %v1477 = vadd.f32 %v1380, %v1476
  %v1478 = vpop.f32.mrb[0].mxu0
  %v1479 = vpop.f32.mrb[0].mxu0
  %v1480 = vadd.f32 %v1383, %v1479
  %v1481 = vpop.f32.mrb[0].mxu0
  %1482 = vmatprep.mubr.bf16.mxu0 0
  %1483 = vmatmul.mubr.bf16.gmra.mrb[0].mxu0 %v979
  %v1484 = vpop.f32.mrb[0].mxu0
  %v1485 = vadd.f32 %v1388, %v1484
  %v1486 = vpop.f32.mrb[0].mxu0
  %v1487 = vpop.f32.mrb[0].mxu0
  %v1488 = vadd.f32 %v1391, %v1487
  %v1489 = vpop.f32.mrb[0].mxu0
  %1490 = vmatprep.mubr.bf16.mxu0 0
  %1491 = vmatmul.mubr.bf16.gmra.mrb[0].mxu0 %v980
  %v1492 = vpop.f32.mrb[0].mxu0
  %v1493 = vadd.f32 %v1396, %v1492
  %v1494 = vpop.f32.mrb[0].mxu0
  %v1495 = vpop.f32.mrb[0].mxu0
  %v1496 = vadd.f32 %v1399, %v1495
  %v1497 = vpop.f32.mrb[0].mxu0
  %1498 = vmatprep.mubr.bf16.mxu0 0
  %1499 = vmatmul.mubr.bf16.gmra.mrb[0].mxu0 %v981
  %v1500 = vpop.f32.mrb[0].mxu0
  %v1501 = vadd.f32 %v1404, %v1500
  %v1502 = vpop.f32.mrb[0].mxu0
  %v1503 = vpop.f32.mrb[0].mxu0
  %v1504 = vadd.f32 %v1407, %v1503
  %v1505 = vpop.f32.mrb[0].mxu0
  %1506 = vmatprep.mubr.bf16.mxu0 0
  %1507 = vmatmul.mubr.bf16.gmra.mrb[0].mxu0 %v982
  %v1508 = vpop.f32.mrb[0].mxu0
  %v1509 = vadd.f32 %v1412, %v1508
  %v1510 = vpop.f32.mrb[0].mxu0
  %v1511 = vpop.f32.mrb[0].mxu0
  %v1512 = vadd.f32 %v1415, %v1511
  %v1513 = vpop.f32.mrb[0].mxu0
  %1514 = vdwg.mxu0
  %v1515 = vmul.f32 %v468, %v336
  %v1516 = vmul.f32 %v472, %v336
  %v1517 = vmul.f32 %v478, %v336
  %v1518 = vmul.f32 %v482, %v336
  %v1519 = vmul.f32 %v488, %v336
  %v1520 = vmul.f32 %v492, %v336
  %v1521 = vmul.f32 %v498, %v336
  %v1522 = vmul.f32 %v502, %v336
  %v1523 = vmul.f32 %v508, %v336
  %v1524 = vmul.f32 %v512, %v336
  %v1525 = vmul.f32 %v518, %v336
  %v1526 = vmul.f32 %v522, %v336
  %v1527 = vmul.f32 %v528, %v336
  %v1528 = vmul.f32 %v532, %v336
  %v1529 = vmul.f32 %v538, %v336
  %v1530 = vmul.f32 %v542, %v336
  %v1531 = vpack.c.bf16 %v1516, %v1515
  %v1532 = vpack.c.bf16 %v1518, %v1517
  %v1533 = vpack.c.bf16 %v1520, %v1519
  %v1534 = vpack.c.bf16 %v1522, %v1521
  %v1535 = vpack.c.bf16 %v1524, %v1523
  %v1536 = vpack.c.bf16 %v1526, %v1525
  %v1537 = vpack.c.bf16 %v1528, %v1527
  %v1538 = vpack.c.bf16 %v1530, %v1529
  %s1539 = scalar_lea.vmem %s8, 256
  %v1540 = vld [vmem:[%s1539] sm:$0xff]
  %v1541 = vld [vmem:[%s1539 + $0x8] sm:$0xff]
  %v1542 = vld [vmem:[%s1539 + $0x10] sm:$0xff]
  %v1543 = vld [vmem:[%s1539 + $0x18] sm:$0xff]
  %v1544 = vld [vmem:[%s1539 + $0x20] sm:$0xff]
  %v1545 = vld [vmem:[%s1539 + $0x28] sm:$0xff]
  %v1546 = vld [vmem:[%s1539 + $0x30] sm:$0xff]
  %v1547 = vld [vmem:[%s1539 + $0x38] sm:$0xff]
  %v1548 = vld [vmem:[%s1539 + $0x40] sm:$0xff]
  %v1549 = vld [vmem:[%s1539 + $0x48] sm:$0xff]
  %v1550 = vld [vmem:[%s1539 + $0x50] sm:$0xff]
  %v1551 = vld [vmem:[%s1539 + $0x58] sm:$0xff]
  %v1552 = vld [vmem:[%s1539 + $0x60] sm:$0xff]
  %v1553 = vld [vmem:[%s1539 + $0x68] sm:$0xff]
  %v1554 = vld [vmem:[%s1539 + $0x70] sm:$0xff]
  %v1555 = vld [vmem:[%s1539 + $0x78] sm:$0xff]
  %v1557 = vsel %vm408, %v1531, 0
  %v1560 = vsel %vm408, %v1532, 0
  %v1563 = vsel %vm408, %v1533, 0
  %v1566 = vsel %vm408, %v1534, 0
  %v1569 = vsel %vm408, %v1535, 0
  %v1572 = vsel %vm408, %v1536, 0
  %v1575 = vsel %vm408, %v1537, 0
  %v1578 = vsel %vm408, %v1538, 0
  %1580 = vmatprep.subr.bf16.mxu0 0
  %1581 = vmatpush1.bf16.msra.mxu0 %v642
  %1582 = vmatprep.subr.bf16.mxu0 0
  %1583 = vmatpush1.bf16.msra.mxu0 %v643
  %1584 = vmatprep.subr.bf16.mxu0 0
  %1585 = vmatpush1.bf16.msra.mxu0 %v644
  %1586 = vmatprep.subr.bf16.mxu0 0
  %1587 = vmatpush1.bf16.msra.mxu0 %v645
  %1588 = vmatprep.subr.bf16.mxu0 0
  %1589 = vmatpush1.bf16.msra.mxu0 0
  %1590 = vmatprep.subr.bf16.mxu0 0
  %1591 = vmatpush1.bf16.msra.mxu0 0
  %1592 = vmatprep.subr.bf16.mxu0 0
  %1593 = vmatpush1.bf16.msra.mxu0 0
  %1594 = vmatprep.subr.bf16.mxu0 0
  %1595 = vmatpush1.bf16.msra.mxu0 0
  %1596 = vmatprep.subr.bf16.mxu0 0
  %1597 = vmatpush1.bf16.msra.mxu0 0
  %1598 = vmatprep.subr.bf16.mxu0 0
  %1599 = vmatpush1.bf16.msra.mxu0 0
  %1600 = vmatprep.subr.bf16.mxu0 0
  %1601 = vmatpush1.bf16.msra.mxu0 0
  %1602 = vmatprep.subr.bf16.mxu0 0
  %1603 = vmatpush1.bf16.msra.mxu0 0
  %1604 = vmatprep.subr.bf16.mxu0 0
  %1605 = vmatpush1.bf16.msra.mxu0 0
  %1606 = vmatprep.subr.bf16.mxu0 0
  %1607 = vmatpush1.bf16.msra.mxu0 0
  %1608 = vmatprep.subr.bf16.mxu0 0
  %1609 = vmatpush1.bf16.msra.mxu0 0
  %1610 = vmatprep.subr.bf16.mxu0 0
  %1611 = vmatpush1.bf16.msra.mxu0 0
  %1612 = vmatprep.mubr.bf16.mxu0 0
  %1613 = vmatmul.mubr.bf16.gmra.mrb[0].mxu0 %v1557
  %v1614 = vpop.f32.mrb[0].mxu0
  %v1615 = vadd.f32 %v1540, %v1614
  %v1616 = vpop.f32.mrb[0].mxu0
  %v1617 = vpop.f32.mrb[0].mxu0
  %v1618 = vadd.f32 %v1541, %v1617
  %v1619 = vpop.f32.mrb[0].mxu0
  %1620 = vmatprep.mubr.bf16.mxu0 0
  %1621 = vmatmul.mubr.bf16.gmra.mrb[0].mxu0 %v1560
  %v1622 = vpop.f32.mrb[0].mxu0
  %v1623 = vadd.f32 %v1542, %v1622
  %v1624 = vpop.f32.mrb[0].mxu0
  %v1625 = vpop.f32.mrb[0].mxu0
  %v1626 = vadd.f32 %v1543, %v1625
  %v1627 = vpop.f32.mrb[0].mxu0
  %1628 = vmatprep.mubr.bf16.mxu0 0
  %1629 = vmatmul.mubr.bf16.gmra.mrb[0].mxu0 %v1563
  %v1630 = vpop.f32.mrb[0].mxu0
  %v1631 = vadd.f32 %v1544, %v1630
  %v1632 = vpop.f32.mrb[0].mxu0
  %v1633 = vpop.f32.mrb[0].mxu0
  %v1634 = vadd.f32 %v1545, %v1633
  %v1635 = vpop.f32.mrb[0].mxu0
  %1636 = vmatprep.mubr.bf16.mxu0 0
  %1637 = vmatmul.mubr.bf16.gmra.mrb[0].mxu0 %v1566
  %v1638 = vpop.f32.mrb[0].mxu0
  %v1639 = vadd.f32 %v1546, %v1638
  %v1640 = vpop.f32.mrb[0].mxu0
  %v1641 = vpop.f32.mrb[0].mxu0
  %v1642 = vadd.f32 %v1547, %v1641
  %v1643 = vpop.f32.mrb[0].mxu0
  %1644 = vmatprep.mubr.bf16.mxu0 0
  %1645 = vmatmul.mubr.bf16.gmra.mrb[0].mxu0 %v1569
  %v1646 = vpop.f32.mrb[0].mxu0
  %v1647 = vadd.f32 %v1548, %v1646
  %v1648 = vpop.f32.mrb[0].mxu0
  %v1649 = vpop.f32.mrb[0].mxu0
  %v1650 = vadd.f32 %v1549, %v1649
  %v1651 = vpop.f32.mrb[0].mxu0
  %1652 = vmatprep.mubr.bf16.mxu0 0
  %1653 = vmatmul.mubr.bf16.gmra.mrb[0].mxu0 %v1572
  %v1654 = vpop.f32.mrb[0].mxu0
  %v1655 = vadd.f32 %v1550, %v1654
  %v1656 = vpop.f32.mrb[0].mxu0
  %v1657 = vpop.f32.mrb[0].mxu0
  %v1658 = vadd.f32 %v1551, %v1657
  %v1659 = vpop.f32.mrb[0].mxu0
  %1660 = vmatprep.mubr.bf16.mxu0 0
  %1661 = vmatmul.mubr.bf16.gmra.mrb[0].mxu0 %v1575
  %v1662 = vpop.f32.mrb[0].mxu0
  %v1663 = vadd.f32 %v1552, %v1662
  %v1664 = vpop.f32.mrb[0].mxu0
  %v1665 = vpop.f32.mrb[0].mxu0
  %v1666 = vadd.f32 %v1553, %v1665
  %v1667 = vpop.f32.mrb[0].mxu0
  %1668 = vmatprep.mubr.bf16.mxu0 0
  %1669 = vmatmul.mubr.bf16.gmra.mrb[0].mxu0 %v1578
  %v1670 = vpop.f32.mrb[0].mxu0
  %v1671 = vadd.f32 %v1554, %v1670
  %v1672 = vpop.f32.mrb[0].mxu0
  %v1673 = vpop.f32.mrb[0].mxu0
  %v1674 = vadd.f32 %v1555, %v1673
  %v1675 = vpop.f32.mrb[0].mxu0
  %1676 = vdwg.mxu0
  %1677 = vmax.xlane.f32.xlu0 %v1615
  %v1678 = vpop.xlane.xlu0 %1677
  %1679 = vmax.xlane.f32.xlu0 %v1618
  %v1680 = vpop.xlane.xlu0 %1679
  %1681 = vmax.xlane.f32.xlu0 %v1623
  %v1682 = vpop.xlane.xlu0 %1681
  %1683 = vmax.xlane.f32.xlu0 %v1626
  %v1684 = vpop.xlane.xlu0 %1683
  %1685 = vmax.xlane.f32.xlu0 %v1631
  %v1686 = vpop.xlane.xlu0 %1685
  %1687 = vmax.xlane.f32.xlu0 %v1634
  %v1688 = vpop.xlane.xlu0 %1687
  %1689 = vmax.xlane.f32.xlu0 %v1639
  %v1690 = vpop.xlane.xlu0 %1689
  %1691 = vmax.xlane.f32.xlu0 %v1642
  %v1692 = vpop.xlane.xlu0 %1691
  %1693 = vmax.xlane.f32.xlu0 %v1647
  %v1694 = vpop.xlane.xlu0 %1693
  %1695 = vmax.xlane.f32.xlu0 %v1650
  %v1696 = vpop.xlane.xlu0 %1695
  %1697 = vmax.xlane.f32.xlu0 %v1655
  %v1698 = vpop.xlane.xlu0 %1697
  %1699 = vmax.xlane.f32.xlu0 %v1658
  %v1700 = vpop.xlane.xlu0 %1699
  %1701 = vmax.xlane.f32.xlu0 %v1663
  %v1702 = vpop.xlane.xlu0 %1701
  %1703 = vmax.xlane.f32.xlu0 %v1666
  %v1704 = vpop.xlane.xlu0 %1703
  %1705 = vmax.xlane.f32.xlu0 %v1671
  %v1706 = vpop.xlane.xlu0 %1705
  %1707 = vmax.xlane.f32.xlu0 %v1674
  %v1708 = vpop.xlane.xlu0 %1707
  %v1709 = vsub.f32 %v1615, %v1678
  %v1710 = vsub.f32 %v1618, %v1680
  %v1711 = vsub.f32 %v1623, %v1682
  %v1712 = vsub.f32 %v1626, %v1684
  %v1713 = vsub.f32 %v1631, %v1686
  %v1714 = vsub.f32 %v1634, %v1688
  %v1715 = vsub.f32 %v1639, %v1690
  %v1716 = vsub.f32 %v1642, %v1692
  %v1717 = vsub.f32 %v1647, %v1694
  %v1718 = vsub.f32 %v1650, %v1696
  %v1719 = vsub.f32 %v1655, %v1698
  %v1720 = vsub.f32 %v1658, %v1700
  %v1721 = vsub.f32 %v1663, %v1702
  %v1722 = vsub.f32 %v1666, %v1704
  %v1723 = vsub.f32 %v1671, %v1706
  %v1724 = vsub.f32 %v1674, %v1708
  %v1725 = vmul.f32 %v1709, 1.442695
  %v1726 = vpow.pop %v1725
  %v1727 = vmul.f32 %v1710, 1.442695
  %v1728 = vpow.pop %v1727
  %v1729 = vmul.f32 %v1711, 1.442695
  %v1730 = vpow.pop %v1729
  %v1731 = vmul.f32 %v1712, 1.442695
  %v1732 = vpow.pop %v1731
  %v1733 = vmul.f32 %v1713, 1.442695
  %v1734 = vpow.pop %v1733
  %v1735 = vmul.f32 %v1714, 1.442695
  %v1736 = vpow.pop %v1735
  %v1737 = vmul.f32 %v1715, 1.442695
  %v1738 = vpow.pop %v1737
  %v1739 = vmul.f32 %v1716, 1.442695
  %v1740 = vpow.pop %v1739
  %v1741 = vmul.f32 %v1717, 1.442695
  %v1742 = vpow.pop %v1741
  %v1743 = vmul.f32 %v1718, 1.442695
  %v1744 = vpow.pop %v1743
  %v1745 = vmul.f32 %v1719, 1.442695
  %v1746 = vpow.pop %v1745
  %v1747 = vmul.f32 %v1720, 1.442695
  %v1748 = vpow.pop %v1747
  %v1749 = vmul.f32 %v1721, 1.442695
  %v1750 = vpow.pop %v1749
  %v1751 = vmul.f32 %v1722, 1.442695
  %v1752 = vpow.pop %v1751
  %v1753 = vmul.f32 %v1723, 1.442695
  %v1754 = vpow.pop %v1753
  %v1755 = vmul.f32 %v1724, 1.442695
  %v1756 = vpow.pop %v1755
  %1757 = vadd.xlane.f32.xlu0 %v1726
  %v1758 = vpop.xlane.xlu0 %1757
  %1759 = vadd.xlane.f32.xlu0 %v1728
  %v1760 = vpop.xlane.xlu0 %1759
  %1761 = vadd.xlane.f32.xlu0 %v1730
  %v1762 = vpop.xlane.xlu0 %1761
  %1763 = vadd.xlane.f32.xlu0 %v1732
  %v1764 = vpop.xlane.xlu0 %1763
  %1765 = vadd.xlane.f32.xlu0 %v1734
  %v1766 = vpop.xlane.xlu0 %1765
  %1767 = vadd.xlane.f32.xlu0 %v1736
  %v1768 = vpop.xlane.xlu0 %1767
  %1769 = vadd.xlane.f32.xlu0 %v1738
  %v1770 = vpop.xlane.xlu0 %1769
  %1771 = vadd.xlane.f32.xlu0 %v1740
  %v1772 = vpop.xlane.xlu0 %1771
  %1773 = vadd.xlane.f32.xlu0 %v1742
  %v1774 = vpop.xlane.xlu0 %1773
  %1775 = vadd.xlane.f32.xlu0 %v1744
  %v1776 = vpop.xlane.xlu0 %1775
  %1777 = vadd.xlane.f32.xlu0 %v1746
  %v1778 = vpop.xlane.xlu0 %1777
  %1779 = vadd.xlane.f32.xlu0 %v1748
  %v1780 = vpop.xlane.xlu0 %1779
  %1781 = vadd.xlane.f32.xlu0 %v1750
  %v1782 = vpop.xlane.xlu0 %1781
  %1783 = vadd.xlane.f32.xlu0 %v1752
  %v1784 = vpop.xlane.xlu0 %1783
  %1785 = vadd.xlane.f32.xlu0 %v1754
  %v1786 = vpop.xlane.xlu0 %1785
  %1787 = vadd.xlane.f32.xlu0 %v1756
  %v1788 = vpop.xlane.xlu0 %1787
  %v1789 = vrcp.pop %v1758
  %v1790 = vrcp.pop %v1760
  %v1791 = vrcp.pop %v1762
  %v1792 = vrcp.pop %v1764
  %v1793 = vrcp.pop %v1766
  %v1794 = vrcp.pop %v1768
  %v1795 = vrcp.pop %v1770
  %v1796 = vrcp.pop %v1772
  %v1797 = vrcp.pop %v1774
  %v1798 = vrcp.pop %v1776
  %v1799 = vrcp.pop %v1778
  %v1800 = vrcp.pop %v1780
  %v1801 = vrcp.pop %v1782
  %v1802 = vrcp.pop %v1784
  %v1803 = vrcp.pop %v1786
  %v1804 = vrcp.pop %v1788
  %v1805 = vmul.f32 %v1726, %v1789
  %v1806 = vmul.f32 %v1728, %v1790
  %v1807 = vmul.f32 %v1730, %v1791
  %v1808 = vmul.f32 %v1732, %v1792
  %v1809 = vmul.f32 %v1734, %v1793
  %v1810 = vmul.f32 %v1736, %v1794
  %v1811 = vmul.f32 %v1738, %v1795
  %v1812 = vmul.f32 %v1740, %v1796
  %v1813 = vmul.f32 %v1742, %v1797
  %v1814 = vmul.f32 %v1744, %v1798
  %v1815 = vmul.f32 %v1746, %v1799
  %v1816 = vmul.f32 %v1748, %v1800
  %v1817 = vmul.f32 %v1750, %v1801
  %v1818 = vmul.f32 %v1752, %v1802
  %v1819 = vmul.f32 %v1754, %v1803
  %v1820 = vmul.f32 %v1756, %v1804
  %v1821 = vmul.f32 %v470, %v336
  %v1822 = vmul.f32 %v474, %v336
  %v1823 = vmul.f32 %v480, %v336
  %v1824 = vmul.f32 %v484, %v336
  %v1825 = vmul.f32 %v490, %v336
  %v1826 = vmul.f32 %v494, %v336
  %v1827 = vmul.f32 %v500, %v336
  %v1828 = vmul.f32 %v504, %v336
  %v1829 = vmul.f32 %v510, %v336
  %v1830 = vmul.f32 %v514, %v336
  %v1831 = vmul.f32 %v520, %v336
  %v1832 = vmul.f32 %v524, %v336
  %v1833 = vmul.f32 %v530, %v336
  %v1834 = vmul.f32 %v534, %v336
  %v1835 = vmul.f32 %v540, %v336
  %v1836 = vmul.f32 %v544, %v336
  %v1837 = vpack.c.bf16 %v1822, %v1821
  %v1838 = vpack.c.bf16 %v1824, %v1823
  %v1839 = vpack.c.bf16 %v1826, %v1825
  %v1840 = vpack.c.bf16 %v1828, %v1827
  %v1841 = vpack.c.bf16 %v1830, %v1829
  %v1842 = vpack.c.bf16 %v1832, %v1831
  %v1843 = vpack.c.bf16 %v1834, %v1833
  %v1844 = vpack.c.bf16 %v1836, %v1835
  %v1845 = vpack.c.bf16 %v1806, %v1805
  %v1846 = vpack.c.bf16 %v1808, %v1807
  %v1847 = vpack.c.bf16 %v1810, %v1809
  %v1848 = vpack.c.bf16 %v1812, %v1811
  %v1849 = vpack.c.bf16 %v1814, %v1813
  %v1850 = vpack.c.bf16 %v1816, %v1815
  %v1851 = vpack.c.bf16 %v1818, %v1817
  %v1852 = vpack.c.bf16 %v1820, %v1819
  %1853 = vmatprep.subr.bf16.mxu0 0
  %1854 = vmatpush1.bf16.msra.mxu0 %v1837
  %1855 = vmatprep.subr.bf16.mxu0 0
  %1856 = vmatpush1.bf16.msra.mxu0 %v1838
  %1857 = vmatprep.subr.bf16.mxu0 0
  %1858 = vmatpush1.bf16.msra.mxu0 %v1839
  %1859 = vmatprep.subr.bf16.mxu0 0
  %1860 = vmatpush1.bf16.msra.mxu0 %v1840
  %1861 = vmatprep.subr.bf16.mxu0 0
  %1862 = vmatpush1.bf16.msra.mxu0 %v1841
  %1863 = vmatprep.subr.bf16.mxu0 0
  %1864 = vmatpush1.bf16.msra.mxu0 %v1842
  %1865 = vmatprep.subr.bf16.mxu0 0
  %1866 = vmatpush1.bf16.msra.mxu0 %v1843
  %1867 = vmatprep.subr.bf16.mxu0 0
  %1868 = vmatpush1.bf16.msra.mxu0 %v1844
  %1869 = vmatprep.subr.bf16.mxu0 0
  %1870 = vmatpush1.bf16.msra.mxu0 0
  %1871 = vmatprep.subr.bf16.mxu0 0
  %1872 = vmatpush1.bf16.msra.mxu0 0
  %1873 = vmatprep.subr.bf16.mxu0 0
  %1874 = vmatpush1.bf16.msra.mxu0 0
  %1875 = vmatprep.subr.bf16.mxu0 0
  %1876 = vmatpush1.bf16.msra.mxu0 0
  %1877 = vmatprep.subr.bf16.mxu0 0
  %1878 = vmatpush1.bf16.msra.mxu0 0
  %1879 = vmatprep.subr.bf16.mxu0 0
  %1880 = vmatpush1.bf16.msra.mxu0 0
  %1881 = vmatprep.subr.bf16.mxu0 0
  %1882 = vmatpush1.bf16.msra.mxu0 0
  %1883 = vmatprep.subr.bf16.mxu0 0
  %1884 = vmatpush1.bf16.msra.mxu0 0
  %1885 = vmatprep.mubr.bf16.mxu0 0
  %1886 = vmatmul.mubr.bf16.gmra.mrb[0].mxu0 %v1845
  %v1887 = vpop.f32.mrb[0].mxu0
  %v1888 = vadd.f32 0.0, %v1887
  %v1889 = vpop.f32.mrb[0].mxu0
  %v1890 = vpop.f32.mrb[0].mxu0
  %v1891 = vadd.f32 0.0, %v1890
  %v1892 = vpop.f32.mrb[0].mxu0
  %1893 = vmatprep.mubr.bf16.mxu0 0
  %1894 = vmatmul.mubr.bf16.gmra.mrb[0].mxu0 %v1846
  %v1895 = vpop.f32.mrb[0].mxu0
  %v1896 = vadd.f32 0.0, %v1895
  %v1897 = vpop.f32.mrb[0].mxu0
  %v1898 = vpop.f32.mrb[0].mxu0
  %v1899 = vadd.f32 0.0, %v1898
  %v1900 = vpop.f32.mrb[0].mxu0
  %1901 = vmatprep.mubr.bf16.mxu0 0
  %1902 = vmatmul.mubr.bf16.gmra.mrb[0].mxu0 %v1847
  %v1903 = vpop.f32.mrb[0].mxu0
  %v1904 = vadd.f32 0.0, %v1903
  %v1905 = vpop.f32.mrb[0].mxu0
  %v1906 = vpop.f32.mrb[0].mxu0
  %v1907 = vadd.f32 0.0, %v1906
  %v1908 = vpop.f32.mrb[0].mxu0
  %1909 = vmatprep.mubr.bf16.mxu0 0
  %1910 = vmatmul.mubr.bf16.gmra.mrb[0].mxu0 %v1848
  %v1911 = vpop.f32.mrb[0].mxu0
  %v1912 = vadd.f32 0.0, %v1911
  %v1913 = vpop.f32.mrb[0].mxu0
  %v1914 = vpop.f32.mrb[0].mxu0
  %v1915 = vadd.f32 0.0, %v1914
  %v1916 = vpop.f32.mrb[0].mxu0
  %1917 = vmatprep.mubr.bf16.mxu0 0
  %1918 = vmatmul.mubr.bf16.gmra.mrb[0].mxu0 %v1849
  %v1919 = vpop.f32.mrb[0].mxu0
  %v1920 = vadd.f32 0.0, %v1919
  %v1921 = vpop.f32.mrb[0].mxu0
  %v1922 = vpop.f32.mrb[0].mxu0
  %v1923 = vadd.f32 0.0, %v1922
  %v1924 = vpop.f32.mrb[0].mxu0
  %1925 = vmatprep.mubr.bf16.mxu0 0
  %1926 = vmatmul.mubr.bf16.gmra.mrb[0].mxu0 %v1850
  %v1927 = vpop.f32.mrb[0].mxu0
  %v1928 = vadd.f32 0.0, %v1927
  %v1929 = vpop.f32.mrb[0].mxu0
  %v1930 = vpop.f32.mrb[0].mxu0
  %v1931 = vadd.f32 0.0, %v1930
  %v1932 = vpop.f32.mrb[0].mxu0
  %1933 = vmatprep.mubr.bf16.mxu0 0
  %1934 = vmatmul.mubr.bf16.gmra.mrb[0].mxu0 %v1851
  %v1935 = vpop.f32.mrb[0].mxu0
  %v1936 = vadd.f32 0.0, %v1935
  %v1937 = vpop.f32.mrb[0].mxu0
  %v1938 = vpop.f32.mrb[0].mxu0
  %v1939 = vadd.f32 0.0, %v1938
  %v1940 = vpop.f32.mrb[0].mxu0
  %1941 = vmatprep.mubr.bf16.mxu0 0
  %1942 = vmatmul.mubr.bf16.gmra.mrb[0].mxu0 %v1852
  %v1943 = vpop.f32.mrb[0].mxu0
  %v1944 = vadd.f32 0.0, %v1943
  %v1945 = vpop.f32.mrb[0].mxu0
  %v1946 = vpop.f32.mrb[0].mxu0
  %v1947 = vadd.f32 0.0, %v1946
  %v1948 = vpop.f32.mrb[0].mxu0
  %1949 = vdwg.mxu0
  %v1950 = vadd.f32 %v1453, %v1888
  %v1951 = vadd.f32 %v1456, %v1891
  %v1952 = vadd.f32 %v1461, %v1896
  %v1953 = vadd.f32 %v1464, %v1899
  %v1954 = vadd.f32 %v1469, %v1904
  %v1955 = vadd.f32 %v1472, %v1907
  %v1956 = vadd.f32 %v1477, %v1912
  %v1957 = vadd.f32 %v1480, %v1915
  %v1958 = vadd.f32 %v1485, %v1920
  %v1959 = vadd.f32 %v1488, %v1923
  %v1960 = vadd.f32 %v1493, %v1928
  %v1961 = vadd.f32 %v1496, %v1931
  %v1962 = vadd.f32 %v1501, %v1936
  %v1963 = vadd.f32 %v1504, %v1939
  %v1964 = vadd.f32 %v1509, %v1944
  %v1965 = vadd.f32 %v1512, %v1947
  %v1966 = vmul.f32 %v468, %v341
  %v1967 = vmul.f32 %v472, %v341
  %v1968 = vmul.f32 %v478, %v341
  %v1969 = vmul.f32 %v482, %v341
  %v1970 = vmul.f32 %v488, %v341
  %v1971 = vmul.f32 %v492, %v341
  %v1972 = vmul.f32 %v498, %v341
  %v1973 = vmul.f32 %v502, %v341
  %v1974 = vmul.f32 %v508, %v341
  %v1975 = vmul.f32 %v512, %v341
  %v1976 = vmul.f32 %v518, %v341
  %v1977 = vmul.f32 %v522, %v341
  %v1978 = vmul.f32 %v528, %v341
  %v1979 = vmul.f32 %v532, %v341
  %v1980 = vmul.f32 %v538, %v341
  %v1981 = vmul.f32 %v542, %v341
  %v1982 = vpack.c.bf16 %v1967, %v1966
  %v1983 = vpack.c.bf16 %v1969, %v1968
  %v1984 = vpack.c.bf16 %v1971, %v1970
  %v1985 = vpack.c.bf16 %v1973, %v1972
  %v1986 = vpack.c.bf16 %v1975, %v1974
  %v1987 = vpack.c.bf16 %v1977, %v1976
  %v1988 = vpack.c.bf16 %v1979, %v1978
  %v1989 = vpack.c.bf16 %v1981, %v1980
  %s1990 = scalar_lea.vmem %s8, 384
  %v1991 = vld [vmem:[%s1990] sm:$0xff]
  %v1992 = vld [vmem:[%s1990 + $0x8] sm:$0xff]
  %v1993 = vld [vmem:[%s1990 + $0x10] sm:$0xff]
  %v1994 = vld [vmem:[%s1990 + $0x18] sm:$0xff]
  %v1995 = vld [vmem:[%s1990 + $0x20] sm:$0xff]
  %v1996 = vld [vmem:[%s1990 + $0x28] sm:$0xff]
  %v1997 = vld [vmem:[%s1990 + $0x30] sm:$0xff]
  %v1998 = vld [vmem:[%s1990 + $0x38] sm:$0xff]
  %v1999 = vld [vmem:[%s1990 + $0x40] sm:$0xff]
  %v2000 = vld [vmem:[%s1990 + $0x48] sm:$0xff]
  %v2001 = vld [vmem:[%s1990 + $0x50] sm:$0xff]
  %v2002 = vld [vmem:[%s1990 + $0x58] sm:$0xff]
  %v2003 = vld [vmem:[%s1990 + $0x60] sm:$0xff]
  %v2004 = vld [vmem:[%s1990 + $0x68] sm:$0xff]
  %v2005 = vld [vmem:[%s1990 + $0x70] sm:$0xff]
  %v2006 = vld [vmem:[%s1990 + $0x78] sm:$0xff]
  %v2008 = vsel %vm408, %v1982, 0
  %v2011 = vsel %vm408, %v1983, 0
  %v2014 = vsel %vm408, %v1984, 0
  %v2017 = vsel %vm408, %v1985, 0
  %v2020 = vsel %vm408, %v1986, 0
  %v2023 = vsel %vm408, %v1987, 0
  %v2026 = vsel %vm408, %v1988, 0
  %v2029 = vsel %vm408, %v1989, 0
  %2031 = vmatprep.subr.bf16.mxu0 0
  %2032 = vmatpush1.bf16.msra.mxu0 %v642
  %2033 = vmatprep.subr.bf16.mxu0 0
  %2034 = vmatpush1.bf16.msra.mxu0 %v643
  %2035 = vmatprep.subr.bf16.mxu0 0
  %2036 = vmatpush1.bf16.msra.mxu0 %v644
  %2037 = vmatprep.subr.bf16.mxu0 0
  %2038 = vmatpush1.bf16.msra.mxu0 %v645
  %2039 = vmatprep.subr.bf16.mxu0 0
  %2040 = vmatpush1.bf16.msra.mxu0 0
  %2041 = vmatprep.subr.bf16.mxu0 0
  %2042 = vmatpush1.bf16.msra.mxu0 0
  %2043 = vmatprep.subr.bf16.mxu0 0
  %2044 = vmatpush1.bf16.msra.mxu0 0
  %2045 = vmatprep.subr.bf16.mxu0 0
  %2046 = vmatpush1.bf16.msra.mxu0 0
  %2047 = vmatprep.subr.bf16.mxu0 0
  %2048 = vmatpush1.bf16.msra.mxu0 0
  %2049 = vmatprep.subr.bf16.mxu0 0
  %2050 = vmatpush1.bf16.msra.mxu0 0
  %2051 = vmatprep.subr.bf16.mxu0 0
  %2052 = vmatpush1.bf16.msra.mxu0 0
  %2053 = vmatprep.subr.bf16.mxu0 0
  %2054 = vmatpush1.bf16.msra.mxu0 0
  %2055 = vmatprep.subr.bf16.mxu0 0
  %2056 = vmatpush1.bf16.msra.mxu0 0
  %2057 = vmatprep.subr.bf16.mxu0 0
  %2058 = vmatpush1.bf16.msra.mxu0 0
  %2059 = vmatprep.subr.bf16.mxu0 0
  %2060 = vmatpush1.bf16.msra.mxu0 0
  %2061 = vmatprep.subr.bf16.mxu0 0
  %2062 = vmatpush1.bf16.msra.mxu0 0
  %2063 = vmatprep.mubr.bf16.mxu0 0
  %2064 = vmatmul.mubr.bf16.gmra.mrb[0].mxu0 %v2008
  %v2065 = vpop.f32.mrb[0].mxu0
  %v2066 = vadd.f32 %v1991, %v2065
  %v2067 = vpop.f32.mrb[0].mxu0
  %v2068 = vpop.f32.mrb[0].mxu0
  %v2069 = vadd.f32 %v1992, %v2068
  %v2070 = vpop.f32.mrb[0].mxu0
  %2071 = vmatprep.mubr.bf16.mxu0 0
  %2072 = vmatmul.mubr.bf16.gmra.mrb[0].mxu0 %v2011
  %v2073 = vpop.f32.mrb[0].mxu0
  %v2074 = vadd.f32 %v1993, %v2073
  %v2075 = vpop.f32.mrb[0].mxu0
  %v2076 = vpop.f32.mrb[0].mxu0
  %v2077 = vadd.f32 %v1994, %v2076
  %v2078 = vpop.f32.mrb[0].mxu0
  %2079 = vmatprep.mubr.bf16.mxu0 0
  %2080 = vmatmul.mubr.bf16.gmra.mrb[0].mxu0 %v2014
  %v2081 = vpop.f32.mrb[0].mxu0
  %v2082 = vadd.f32 %v1995, %v2081
  %v2083 = vpop.f32.mrb[0].mxu0
  %v2084 = vpop.f32.mrb[0].mxu0
  %v2085 = vadd.f32 %v1996, %v2084
  %v2086 = vpop.f32.mrb[0].mxu0
  %2087 = vmatprep.mubr.bf16.mxu0 0
  %2088 = vmatmul.mubr.bf16.gmra.mrb[0].mxu0 %v2017
  %v2089 = vpop.f32.mrb[0].mxu0
  %v2090 = vadd.f32 %v1997, %v2089
  %v2091 = vpop.f32.mrb[0].mxu0
  %v2092 = vpop.f32.mrb[0].mxu0
  %v2093 = vadd.f32 %v1998, %v2092
  %v2094 = vpop.f32.mrb[0].mxu0
  %2095 = vmatprep.mubr.bf16.mxu0 0
  %2096 = vmatmul.mubr.bf16.gmra.mrb[0].mxu0 %v2020
  %v2097 = vpop.f32.mrb[0].mxu0
  %v2098 = vadd.f32 %v1999, %v2097
  %v2099 = vpop.f32.mrb[0].mxu0
  %v2100 = vpop.f32.mrb[0].mxu0
  %v2101 = vadd.f32 %v2000, %v2100
  %v2102 = vpop.f32.mrb[0].mxu0
  %2103 = vmatprep.mubr.bf16.mxu0 0
  %2104 = vmatmul.mubr.bf16.gmra.mrb[0].mxu0 %v2023
  %v2105 = vpop.f32.mrb[0].mxu0
  %v2106 = vadd.f32 %v2001, %v2105
  %v2107 = vpop.f32.mrb[0].mxu0
  %v2108 = vpop.f32.mrb[0].mxu0
  %v2109 = vadd.f32 %v2002, %v2108
  %v2110 = vpop.f32.mrb[0].mxu0
  %2111 = vmatprep.mubr.bf16.mxu0 0
  %2112 = vmatmul.mubr.bf16.gmra.mrb[0].mxu0 %v2026
  %v2113 = vpop.f32.mrb[0].mxu0
  %v2114 = vadd.f32 %v2003, %v2113
  %v2115 = vpop.f32.mrb[0].mxu0
  %v2116 = vpop.f32.mrb[0].mxu0
  %v2117 = vadd.f32 %v2004, %v2116
  %v2118 = vpop.f32.mrb[0].mxu0
  %2119 = vmatprep.mubr.bf16.mxu0 0
  %2120 = vmatmul.mubr.bf16.gmra.mrb[0].mxu0 %v2029
  %v2121 = vpop.f32.mrb[0].mxu0
  %v2122 = vadd.f32 %v2005, %v2121
  %v2123 = vpop.f32.mrb[0].mxu0
  %v2124 = vpop.f32.mrb[0].mxu0
  %v2125 = vadd.f32 %v2006, %v2124
  %v2126 = vpop.f32.mrb[0].mxu0
  %2127 = vdwg.mxu0
  %2128 = vmax.xlane.f32.xlu0 %v2066
  %v2129 = vpop.xlane.xlu0 %2128
  %2130 = vmax.xlane.f32.xlu0 %v2069
  %v2131 = vpop.xlane.xlu0 %2130
  %2132 = vmax.xlane.f32.xlu0 %v2074
  %v2133 = vpop.xlane.xlu0 %2132
  %2134 = vmax.xlane.f32.xlu0 %v2077
  %v2135 = vpop.xlane.xlu0 %2134
  %2136 = vmax.xlane.f32.xlu0 %v2082
  %v2137 = vpop.xlane.xlu0 %2136
  %2138 = vmax.xlane.f32.xlu0 %v2085
  %v2139 = vpop.xlane.xlu0 %2138
  %2140 = vmax.xlane.f32.xlu0 %v2090
  %v2141 = vpop.xlane.xlu0 %2140
  %2142 = vmax.xlane.f32.xlu0 %v2093
  %v2143 = vpop.xlane.xlu0 %2142
  %2144 = vmax.xlane.f32.xlu0 %v2098
  %v2145 = vpop.xlane.xlu0 %2144
  %2146 = vmax.xlane.f32.xlu0 %v2101
  %v2147 = vpop.xlane.xlu0 %2146
  %2148 = vmax.xlane.f32.xlu0 %v2106
  %v2149 = vpop.xlane.xlu0 %2148
  %2150 = vmax.xlane.f32.xlu0 %v2109
  %v2151 = vpop.xlane.xlu0 %2150
  %2152 = vmax.xlane.f32.xlu0 %v2114
  %v2153 = vpop.xlane.xlu0 %2152
  %2154 = vmax.xlane.f32.xlu0 %v2117
  %v2155 = vpop.xlane.xlu0 %2154
  %2156 = vmax.xlane.f32.xlu0 %v2122
  %v2157 = vpop.xlane.xlu0 %2156
  %2158 = vmax.xlane.f32.xlu0 %v2125
  %v2159 = vpop.xlane.xlu0 %2158
  %v2160 = vsub.f32 %v2066, %v2129
  %v2161 = vsub.f32 %v2069, %v2131
  %v2162 = vsub.f32 %v2074, %v2133
  %v2163 = vsub.f32 %v2077, %v2135
  %v2164 = vsub.f32 %v2082, %v2137
  %v2165 = vsub.f32 %v2085, %v2139
  %v2166 = vsub.f32 %v2090, %v2141
  %v2167 = vsub.f32 %v2093, %v2143
  %v2168 = vsub.f32 %v2098, %v2145
  %v2169 = vsub.f32 %v2101, %v2147
  %v2170 = vsub.f32 %v2106, %v2149
  %v2171 = vsub.f32 %v2109, %v2151
  %v2172 = vsub.f32 %v2114, %v2153
  %v2173 = vsub.f32 %v2117, %v2155
  %v2174 = vsub.f32 %v2122, %v2157
  %v2175 = vsub.f32 %v2125, %v2159
  %v2176 = vmul.f32 %v2160, 1.442695
  %v2177 = vpow.pop %v2176
  %v2178 = vmul.f32 %v2161, 1.442695
  %v2179 = vpow.pop %v2178
  %v2180 = vmul.f32 %v2162, 1.442695
  %v2181 = vpow.pop %v2180
  %v2182 = vmul.f32 %v2163, 1.442695
  %v2183 = vpow.pop %v2182
  %v2184 = vmul.f32 %v2164, 1.442695
  %v2185 = vpow.pop %v2184
  %v2186 = vmul.f32 %v2165, 1.442695
  %v2187 = vpow.pop %v2186
  %v2188 = vmul.f32 %v2166, 1.442695
  %v2189 = vpow.pop %v2188
  %v2190 = vmul.f32 %v2167, 1.442695
  %v2191 = vpow.pop %v2190
  %v2192 = vmul.f32 %v2168, 1.442695
  %v2193 = vpow.pop %v2192
  %v2194 = vmul.f32 %v2169, 1.442695
  %v2195 = vpow.pop %v2194
  %v2196 = vmul.f32 %v2170, 1.442695
  %v2197 = vpow.pop %v2196
  %v2198 = vmul.f32 %v2171, 1.442695
  %v2199 = vpow.pop %v2198
  %v2200 = vmul.f32 %v2172, 1.442695
  %v2201 = vpow.pop %v2200
  %v2202 = vmul.f32 %v2173, 1.442695
  %v2203 = vpow.pop %v2202
  %v2204 = vmul.f32 %v2174, 1.442695
  %v2205 = vpow.pop %v2204
  %v2206 = vmul.f32 %v2175, 1.442695
  %v2207 = vpow.pop %v2206
  %2208 = vadd.xlane.f32.xlu0 %v2177
  %v2209 = vpop.xlane.xlu0 %2208
  %2210 = vadd.xlane.f32.xlu0 %v2179
  %v2211 = vpop.xlane.xlu0 %2210
  %2212 = vadd.xlane.f32.xlu0 %v2181
  %v2213 = vpop.xlane.xlu0 %2212
  %2214 = vadd.xlane.f32.xlu0 %v2183
  %v2215 = vpop.xlane.xlu0 %2214
  %2216 = vadd.xlane.f32.xlu0 %v2185
  %v2217 = vpop.xlane.xlu0 %2216
  %2218 = vadd.xlane.f32.xlu0 %v2187
  %v2219 = vpop.xlane.xlu0 %2218
  %2220 = vadd.xlane.f32.xlu0 %v2189
  %v2221 = vpop.xlane.xlu0 %2220
  %2222 = vadd.xlane.f32.xlu0 %v2191
  %v2223 = vpop.xlane.xlu0 %2222
  %2224 = vadd.xlane.f32.xlu0 %v2193
  %v2225 = vpop.xlane.xlu0 %2224
  %2226 = vadd.xlane.f32.xlu0 %v2195
  %v2227 = vpop.xlane.xlu0 %2226
  %2228 = vadd.xlane.f32.xlu0 %v2197
  %v2229 = vpop.xlane.xlu0 %2228
  %2230 = vadd.xlane.f32.xlu0 %v2199
  %v2231 = vpop.xlane.xlu0 %2230
  %2232 = vadd.xlane.f32.xlu0 %v2201
  %v2233 = vpop.xlane.xlu0 %2232
  %2234 = vadd.xlane.f32.xlu0 %v2203
  %v2235 = vpop.xlane.xlu0 %2234
  %2236 = vadd.xlane.f32.xlu0 %v2205
  %v2237 = vpop.xlane.xlu0 %2236
  %2238 = vadd.xlane.f32.xlu0 %v2207
  %v2239 = vpop.xlane.xlu0 %2238
  %v2240 = vrcp.pop %v2209
  %v2241 = vrcp.pop %v2211
  %v2242 = vrcp.pop %v2213
  %v2243 = vrcp.pop %v2215
  %v2244 = vrcp.pop %v2217
  %v2245 = vrcp.pop %v2219
  %v2246 = vrcp.pop %v2221
  %v2247 = vrcp.pop %v2223
  %v2248 = vrcp.pop %v2225
  %v2249 = vrcp.pop %v2227
  %v2250 = vrcp.pop %v2229
  %v2251 = vrcp.pop %v2231
  %v2252 = vrcp.pop %v2233
  %v2253 = vrcp.pop %v2235
  %v2254 = vrcp.pop %v2237
  %v2255 = vrcp.pop %v2239
  %v2256 = vmul.f32 %v2177, %v2240
  %v2257 = vmul.f32 %v2179, %v2241
  %v2258 = vmul.f32 %v2181, %v2242
  %v2259 = vmul.f32 %v2183, %v2243
  %v2260 = vmul.f32 %v2185, %v2244
  %v2261 = vmul.f32 %v2187, %v2245
  %v2262 = vmul.f32 %v2189, %v2246
  %v2263 = vmul.f32 %v2191, %v2247
  %v2264 = vmul.f32 %v2193, %v2248
  %v2265 = vmul.f32 %v2195, %v2249
  %v2266 = vmul.f32 %v2197, %v2250
  %v2267 = vmul.f32 %v2199, %v2251
  %v2268 = vmul.f32 %v2201, %v2252
  %v2269 = vmul.f32 %v2203, %v2253
  %v2270 = vmul.f32 %v2205, %v2254
  %v2271 = vmul.f32 %v2207, %v2255
  %v2272 = vmul.f32 %v470, %v341
  %v2273 = vmul.f32 %v474, %v341
  %v2274 = vmul.f32 %v480, %v341
  %v2275 = vmul.f32 %v484, %v341
  %v2276 = vmul.f32 %v490, %v341
  %v2277 = vmul.f32 %v494, %v341
  %v2278 = vmul.f32 %v500, %v341
  %v2279 = vmul.f32 %v504, %v341
  %v2280 = vmul.f32 %v510, %v341
  %v2281 = vmul.f32 %v514, %v341
  %v2282 = vmul.f32 %v520, %v341
  %v2283 = vmul.f32 %v524, %v341
  %v2284 = vmul.f32 %v530, %v341
  %v2285 = vmul.f32 %v534, %v341
  %v2286 = vmul.f32 %v540, %v341
  %v2287 = vmul.f32 %v544, %v341
  %v2288 = vpack.c.bf16 %v2273, %v2272
  %v2289 = vpack.c.bf16 %v2275, %v2274
  %v2290 = vpack.c.bf16 %v2277, %v2276
  %v2291 = vpack.c.bf16 %v2279, %v2278
  %v2292 = vpack.c.bf16 %v2281, %v2280
  %v2293 = vpack.c.bf16 %v2283, %v2282
  %v2294 = vpack.c.bf16 %v2285, %v2284
  %v2295 = vpack.c.bf16 %v2287, %v2286
  %v2296 = vpack.c.bf16 %v2257, %v2256
  %v2297 = vpack.c.bf16 %v2259, %v2258
  %v2298 = vpack.c.bf16 %v2261, %v2260
  %v2299 = vpack.c.bf16 %v2263, %v2262
  %v2300 = vpack.c.bf16 %v2265, %v2264
  %v2301 = vpack.c.bf16 %v2267, %v2266
  %v2302 = vpack.c.bf16 %v2269, %v2268
  %v2303 = vpack.c.bf16 %v2271, %v2270
  %2304 = vmatprep.subr.bf16.mxu0 0
  %2305 = vmatpush1.bf16.msra.mxu0 %v2288
  %2306 = vmatprep.subr.bf16.mxu0 0
  %2307 = vmatpush1.bf16.msra.mxu0 %v2289
  %2308 = vmatprep.subr.bf16.mxu0 0
  %2309 = vmatpush1.bf16.msra.mxu0 %v2290
  %2310 = vmatprep.subr.bf16.mxu0 0
  %2311 = vmatpush1.bf16.msra.mxu0 %v2291
  %2312 = vmatprep.subr.bf16.mxu0 0
  %2313 = vmatpush1.bf16.msra.mxu0 %v2292
  %2314 = vmatprep.subr.bf16.mxu0 0
  %2315 = vmatpush1.bf16.msra.mxu0 %v2293
  %2316 = vmatprep.subr.bf16.mxu0 0
  %2317 = vmatpush1.bf16.msra.mxu0 %v2294
  %2318 = vmatprep.subr.bf16.mxu0 0
  %2319 = vmatpush1.bf16.msra.mxu0 %v2295
  %2320 = vmatprep.subr.bf16.mxu0 0
  %2321 = vmatpush1.bf16.msra.mxu0 0
  %2322 = vmatprep.subr.bf16.mxu0 0
  %2323 = vmatpush1.bf16.msra.mxu0 0
  %2324 = vmatprep.subr.bf16.mxu0 0
  %2325 = vmatpush1.bf16.msra.mxu0 0
  %2326 = vmatprep.subr.bf16.mxu0 0
  %2327 = vmatpush1.bf16.msra.mxu0 0
  %2328 = vmatprep.subr.bf16.mxu0 0
  %2329 = vmatpush1.bf16.msra.mxu0 0
  %2330 = vmatprep.subr.bf16.mxu0 0
  %2331 = vmatpush1.bf16.msra.mxu0 0
  %2332 = vmatprep.subr.bf16.mxu0 0
  %2333 = vmatpush1.bf16.msra.mxu0 0
  %2334 = vmatprep.subr.bf16.mxu0 0
  %2335 = vmatpush1.bf16.msra.mxu0 0
  %2336 = vmatprep.mubr.bf16.mxu0 0
  %2337 = vmatmul.mubr.bf16.gmra.mrb[0].mxu0 %v2296
  %v2338 = vpop.f32.mrb[0].mxu0
  %v2339 = vadd.f32 0.0, %v2338
  %v2340 = vpop.f32.mrb[0].mxu0
  %v2341 = vpop.f32.mrb[0].mxu0
  %v2342 = vadd.f32 0.0, %v2341
  %v2343 = vpop.f32.mrb[0].mxu0
  %2344 = vmatprep.mubr.bf16.mxu0 0
  %2345 = vmatmul.mubr.bf16.gmra.mrb[0].mxu0 %v2297
  %v2346 = vpop.f32.mrb[0].mxu0
  %v2347 = vadd.f32 0.0, %v2346
  %v2348 = vpop.f32.mrb[0].mxu0
  %v2349 = vpop.f32.mrb[0].mxu0
  %v2350 = vadd.f32 0.0, %v2349
  %v2351 = vpop.f32.mrb[0].mxu0
  %2352 = vmatprep.mubr.bf16.mxu0 0
  %2353 = vmatmul.mubr.bf16.gmra.mrb[0].mxu0 %v2298
  %v2354 = vpop.f32.mrb[0].mxu0
  %v2355 = vadd.f32 0.0, %v2354
  %v2356 = vpop.f32.mrb[0].mxu0
  %v2357 = vpop.f32.mrb[0].mxu0
  %v2358 = vadd.f32 0.0, %v2357
  %v2359 = vpop.f32.mrb[0].mxu0
  %2360 = vmatprep.mubr.bf16.mxu0 0
  %2361 = vmatmul.mubr.bf16.gmra.mrb[0].mxu0 %v2299
  %v2362 = vpop.f32.mrb[0].mxu0
  %v2363 = vadd.f32 0.0, %v2362
  %v2364 = vpop.f32.mrb[0].mxu0
  %v2365 = vpop.f32.mrb[0].mxu0
  %v2366 = vadd.f32 0.0, %v2365
  %v2367 = vpop.f32.mrb[0].mxu0
  %2368 = vmatprep.mubr.bf16.mxu0 0
  %2369 = vmatmul.mubr.bf16.gmra.mrb[0].mxu0 %v2300
  %v2370 = vpop.f32.mrb[0].mxu0
  %v2371 = vadd.f32 0.0, %v2370
  %v2372 = vpop.f32.mrb[0].mxu0
  %v2373 = vpop.f32.mrb[0].mxu0
  %v2374 = vadd.f32 0.0, %v2373
  %v2375 = vpop.f32.mrb[0].mxu0
  %2376 = vmatprep.mubr.bf16.mxu0 0
  %2377 = vmatmul.mubr.bf16.gmra.mrb[0].mxu0 %v2301
  %v2378 = vpop.f32.mrb[0].mxu0
  %v2379 = vadd.f32 0.0, %v2378
  %v2380 = vpop.f32.mrb[0].mxu0
  %v2381 = vpop.f32.mrb[0].mxu0
  %v2382 = vadd.f32 0.0, %v2381
  %v2383 = vpop.f32.mrb[0].mxu0
  %2384 = vmatprep.mubr.bf16.mxu0 0
  %2385 = vmatmul.mubr.bf16.gmra.mrb[0].mxu0 %v2302
  %v2386 = vpop.f32.mrb[0].mxu0
  %v2387 = vadd.f32 0.0, %v2386
  %v2388 = vpop.f32.mrb[0].mxu0
  %v2389 = vpop.f32.mrb[0].mxu0
  %v2390 = vadd.f32 0.0, %v2389
  %v2391 = vpop.f32.mrb[0].mxu0
  %2392 = vmatprep.mubr.bf16.mxu0 0
  %2393 = vmatmul.mubr.bf16.gmra.mrb[0].mxu0 %v2303
  %v2394 = vpop.f32.mrb[0].mxu0
  %v2395 = vadd.f32 0.0, %v2394
  %v2396 = vpop.f32.mrb[0].mxu0
  %v2397 = vpop.f32.mrb[0].mxu0
  %v2398 = vadd.f32 0.0, %v2397
  %v2399 = vpop.f32.mrb[0].mxu0
  %2400 = vdwg.mxu0
  %v2401 = vadd.f32 %v1950, %v2339
  %v2402 = vadd.f32 %v1951, %v2342
  %v2403 = vadd.f32 %v1952, %v2347
  %v2404 = vadd.f32 %v1953, %v2350
  %v2405 = vadd.f32 %v1954, %v2355
  %v2406 = vadd.f32 %v1955, %v2358
  %v2407 = vadd.f32 %v1956, %v2363
  %v2408 = vadd.f32 %v1957, %v2366
  %v2409 = vadd.f32 %v1958, %v2371
  %v2410 = vadd.f32 %v1959, %v2374
  %v2411 = vadd.f32 %v1960, %v2379
  %v2412 = vadd.f32 %v1961, %v2382
  %v2413 = vadd.f32 %v1962, %v2387
  %v2414 = vadd.f32 %v1963, %v2390
  %v2415 = vadd.f32 %v1964, %v2395
  %v2416 = vadd.f32 %v1965, %v2398
  %v2417 = vpack.c.bf16 %v2402, %v2401
  %v2418 = vpack.c.bf16 %v2404, %v2403
  %v2419 = vpack.c.bf16 %v2406, %v2405
  %v2420 = vpack.c.bf16 %v2408, %v2407
  %v2421 = vpack.c.bf16 %v2410, %v2409
  %v2422 = vpack.c.bf16 %v2412, %v2411
  %v2423 = vpack.c.bf16 %v2414, %v2413
  %v2424 = vpack.c.bf16 %v2416, %v2415
  %v2425 = vld [vmem:[%s4] sm:$0xf]
  %v2426 = vld [vmem:[%s4 + $0x4] sm:$0xf]
  %v2427 = vld [vmem:[%s4 + $0x8] sm:$0xf]
  %v2428 = vld [vmem:[%s4 + $0xc] sm:$0xf]
  %v2429 = vld [vmem:[%s4 + $0x10] sm:$0xf]
  %v2430 = vld [vmem:[%s4 + $0x14] sm:$0xf]
  %v2431 = vld [vmem:[%s4 + $0x18] sm:$0xf]
  %v2432 = vld [vmem:[%s4 + $0x1c] sm:$0xf]
  %v2433 = vlaneseq
  %v2434 = vshrl.u32 %v2433, 7
  %v2435 = vsub.s32 1, %v2434
  %v2436 = vrot.slane %v342, %v2435
  %v2445 = vunpack.c.l.b16 %v2425
  %v2446 = vunpack.c.l.b16 %v2426
  %v2447 = vunpack.c.l.b16 %v2427
  %v2448 = vunpack.c.l.b16 %v2428
  %v2449 = vunpack.c.l.b16 %v2429
  %v2450 = vunpack.c.l.b16 %v2430
  %v2451 = vunpack.c.l.b16 %v2431
  %v2452 = vunpack.c.l.b16 %v2432
  %v2453 = vpack.c.b16 %v2446, %v2445
  %v2454 = vpack.c.b16 %v2448, %v2447
  %v2455 = vpack.c.b16 %v2450, %v2449
  %v2456 = vpack.c.b16 %v2452, %v2451
  %v2462 = vsel %vm408, %v2417, 0
  %v2465 = vsel %vm408, %v2418, 0
  %v2468 = vsel %vm408, %v2419, 0
  %v2471 = vsel %vm408, %v2420, 0
  %v2474 = vsel %vm408, %v2421, 0
  %v2477 = vsel %vm408, %v2422, 0
  %v2480 = vsel %vm408, %v2423, 0
  %v2483 = vsel %vm408, %v2424, 0
  %2485 = vmatprep.subr.bf16.mxu0 0
  %2486 = vmatpush1.bf16.msra.mxu0 %v2453
  %2487 = vmatprep.subr.bf16.mxu0 0
  %2488 = vmatpush1.bf16.msra.mxu0 %v2454
  %2489 = vmatprep.subr.bf16.mxu0 0
  %2490 = vmatpush1.bf16.msra.mxu0 %v2455
  %2491 = vmatprep.subr.bf16.mxu0 0
  %2492 = vmatpush1.bf16.msra.mxu0 %v2456
  %2493 = vmatprep.subr.bf16.mxu0 0
  %2494 = vmatpush1.bf16.msra.mxu0 0
  %2495 = vmatprep.subr.bf16.mxu0 0
  %2496 = vmatpush1.bf16.msra.mxu0 0
  %2497 = vmatprep.subr.bf16.mxu0 0
  %2498 = vmatpush1.bf16.msra.mxu0 0
  %2499 = vmatprep.subr.bf16.mxu0 0
  %2500 = vmatpush1.bf16.msra.mxu0 0
  %2501 = vmatprep.subr.bf16.mxu0 0
  %2502 = vmatpush1.bf16.msra.mxu0 0
  %2503 = vmatprep.subr.bf16.mxu0 0
  %2504 = vmatpush1.bf16.msra.mxu0 0
  %2505 = vmatprep.subr.bf16.mxu0 0
  %2506 = vmatpush1.bf16.msra.mxu0 0
  %2507 = vmatprep.subr.bf16.mxu0 0
  %2508 = vmatpush1.bf16.msra.mxu0 0
  %2509 = vmatprep.subr.bf16.mxu0 0
  %2510 = vmatpush1.bf16.msra.mxu0 0
  %2511 = vmatprep.subr.bf16.mxu0 0
  %2512 = vmatpush1.bf16.msra.mxu0 0
  %2513 = vmatprep.subr.bf16.mxu0 0
  %2514 = vmatpush1.bf16.msra.mxu0 0
  %2515 = vmatprep.subr.bf16.mxu0 0
  %2516 = vmatpush1.bf16.msra.mxu0 0
  %2517 = vmatprep.mubr.bf16.mxu0 0
  %2518 = vmatmul.mubr.bf16.gmra.mrb[0].mxu0 %v2462
  %v2519 = vpop.f32.mrb[0].mxu0
  %v2520 = vadd.f32 %v2436, %v2519
  %v2521 = vpop.f32.mrb[0].mxu0
  %v2522 = vpop.f32.mrb[0].mxu0
  %v2523 = vadd.f32 %v2436, %v2522
  %v2524 = vpop.f32.mrb[0].mxu0
  %2525 = vmatprep.mubr.bf16.mxu0 0
  %2526 = vmatmul.mubr.bf16.gmra.mrb[0].mxu0 %v2465
  %v2527 = vpop.f32.mrb[0].mxu0
  %v2528 = vadd.f32 %v2436, %v2527
  %v2529 = vpop.f32.mrb[0].mxu0
  %v2530 = vpop.f32.mrb[0].mxu0
  %v2531 = vadd.f32 %v2436, %v2530
  %v2532 = vpop.f32.mrb[0].mxu0
  %2533 = vmatprep.mubr.bf16.mxu0 0
  %2534 = vmatmul.mubr.bf16.gmra.mrb[0].mxu0 %v2468
  %v2535 = vpop.f32.mrb[0].mxu0
  %v2536 = vadd.f32 %v2436, %v2535
  %v2537 = vpop.f32.mrb[0].mxu0
  %v2538 = vpop.f32.mrb[0].mxu0
  %v2539 = vadd.f32 %v2436, %v2538
  %v2540 = vpop.f32.mrb[0].mxu0
  %2541 = vmatprep.mubr.bf16.mxu0 0
  %2542 = vmatmul.mubr.bf16.gmra.mrb[0].mxu0 %v2471
  %v2543 = vpop.f32.mrb[0].mxu0
  %v2544 = vadd.f32 %v2436, %v2543
  %v2545 = vpop.f32.mrb[0].mxu0
  %v2546 = vpop.f32.mrb[0].mxu0
  %v2547 = vadd.f32 %v2436, %v2546
  %v2548 = vpop.f32.mrb[0].mxu0
  %2549 = vmatprep.mubr.bf16.mxu0 0
  %2550 = vmatmul.mubr.bf16.gmra.mrb[0].mxu0 %v2474
  %v2551 = vpop.f32.mrb[0].mxu0
  %v2552 = vadd.f32 %v2436, %v2551
  %v2553 = vpop.f32.mrb[0].mxu0
  %v2554 = vpop.f32.mrb[0].mxu0
  %v2555 = vadd.f32 %v2436, %v2554
  %v2556 = vpop.f32.mrb[0].mxu0
  %2557 = vmatprep.mubr.bf16.mxu0 0
  %2558 = vmatmul.mubr.bf16.gmra.mrb[0].mxu0 %v2477
  %v2559 = vpop.f32.mrb[0].mxu0
  %v2560 = vadd.f32 %v2436, %v2559
  %v2561 = vpop.f32.mrb[0].mxu0
  %v2562 = vpop.f32.mrb[0].mxu0
  %v2563 = vadd.f32 %v2436, %v2562
  %v2564 = vpop.f32.mrb[0].mxu0
  %2565 = vmatprep.mubr.bf16.mxu0 0
  %2566 = vmatmul.mubr.bf16.gmra.mrb[0].mxu0 %v2480
  %v2567 = vpop.f32.mrb[0].mxu0
  %v2568 = vadd.f32 %v2436, %v2567
  %v2569 = vpop.f32.mrb[0].mxu0
  %v2570 = vpop.f32.mrb[0].mxu0
  %v2571 = vadd.f32 %v2436, %v2570
  %v2572 = vpop.f32.mrb[0].mxu0
  %2573 = vmatprep.mubr.bf16.mxu0 0
  %2574 = vmatmul.mubr.bf16.gmra.mrb[0].mxu0 %v2483
  %v2575 = vpop.f32.mrb[0].mxu0
  %v2576 = vadd.f32 %v2436, %v2575
  %v2577 = vpop.f32.mrb[0].mxu0
  %v2578 = vpop.f32.mrb[0].mxu0
  %v2579 = vadd.f32 %v2436, %v2578
  %v2580 = vpop.f32.mrb[0].mxu0
  %2581 = vdwg.mxu0
  %v2582 = vadd.f32 %v258, %v2520
  %v2583 = vadd.f32 %v261, %v2523
  %v2584 = vadd.f32 %v266, %v2528
  %v2585 = vadd.f32 %v269, %v2531
  %v2586 = vadd.f32 %v274, %v2536
  %v2587 = vadd.f32 %v277, %v2539
  %v2588 = vadd.f32 %v282, %v2544
  %v2589 = vadd.f32 %v285, %v2547
  %v2590 = vadd.f32 %v290, %v2552
  %v2591 = vadd.f32 %v293, %v2555
  %v2592 = vadd.f32 %v298, %v2560
  %v2593 = vadd.f32 %v301, %v2563
  %v2594 = vadd.f32 %v306, %v2568
  %v2595 = vadd.f32 %v309, %v2571
  %v2596 = vadd.f32 %v314, %v2576
  %v2597 = vadd.f32 %v317, %v2579
  %v2598 = vsel %vm408, %v2582, 0.0
  %2599 = vadd.xlane.f32.xlu0 %v2598
  %v2600 = vpop.xlane.xlu0 %2599
  %v2601 = vsel %vm408, %v2583, 0.0
  %2602 = vadd.xlane.f32.xlu0 %v2601
  %v2603 = vpop.xlane.xlu0 %2602
  %v2604 = vsel %vm408, %v2584, 0.0
  %2605 = vadd.xlane.f32.xlu0 %v2604
  %v2606 = vpop.xlane.xlu0 %2605
  %v2607 = vsel %vm408, %v2585, 0.0
  %2608 = vadd.xlane.f32.xlu0 %v2607
  %v2609 = vpop.xlane.xlu0 %2608
  %v2610 = vsel %vm408, %v2586, 0.0
  %2611 = vadd.xlane.f32.xlu0 %v2610
  %v2612 = vpop.xlane.xlu0 %2611
  %v2613 = vsel %vm408, %v2587, 0.0
  %2614 = vadd.xlane.f32.xlu0 %v2613
  %v2615 = vpop.xlane.xlu0 %2614
  %v2616 = vsel %vm408, %v2588, 0.0
  %2617 = vadd.xlane.f32.xlu0 %v2616
  %v2618 = vpop.xlane.xlu0 %2617
  %v2619 = vsel %vm408, %v2589, 0.0
  %2620 = vadd.xlane.f32.xlu0 %v2619
  %v2621 = vpop.xlane.xlu0 %2620
  %v2622 = vsel %vm408, %v2590, 0.0
  %2623 = vadd.xlane.f32.xlu0 %v2622
  %v2624 = vpop.xlane.xlu0 %2623
  %v2625 = vsel %vm408, %v2591, 0.0
  %2626 = vadd.xlane.f32.xlu0 %v2625
  %v2627 = vpop.xlane.xlu0 %2626
  %v2628 = vsel %vm408, %v2592, 0.0
  %2629 = vadd.xlane.f32.xlu0 %v2628
  %v2630 = vpop.xlane.xlu0 %2629
  %v2631 = vsel %vm408, %v2593, 0.0
  %2632 = vadd.xlane.f32.xlu0 %v2631
  %v2633 = vpop.xlane.xlu0 %2632
  %v2634 = vsel %vm408, %v2594, 0.0
  %2635 = vadd.xlane.f32.xlu0 %v2634
  %v2636 = vpop.xlane.xlu0 %2635
  %v2637 = vsel %vm408, %v2595, 0.0
  %2638 = vadd.xlane.f32.xlu0 %v2637
  %v2639 = vpop.xlane.xlu0 %2638
  %v2640 = vsel %vm408, %v2596, 0.0
  %2641 = vadd.xlane.f32.xlu0 %v2640
  %v2642 = vpop.xlane.xlu0 %2641
  %v2643 = vsel %vm408, %v2597, 0.0
  %2644 = vadd.xlane.f32.xlu0 %v2643
  %v2645 = vpop.xlane.xlu0 %2644
  %v2646 = vrcp.pop 64.0
  %v2647 = vmul.f32 %v2600, %v2646
  %v2648 = vmul.f32 %v2603, %v2646
  %v2649 = vmul.f32 %v2606, %v2646
  %v2650 = vmul.f32 %v2609, %v2646
  %v2651 = vmul.f32 %v2612, %v2646
  %v2652 = vmul.f32 %v2615, %v2646
  %v2653 = vmul.f32 %v2618, %v2646
  %v2654 = vmul.f32 %v2621, %v2646
  %v2655 = vmul.f32 %v2624, %v2646
  %v2656 = vmul.f32 %v2627, %v2646
  %v2657 = vmul.f32 %v2630, %v2646
  %v2658 = vmul.f32 %v2633, %v2646
  %v2659 = vmul.f32 %v2636, %v2646
  %v2660 = vmul.f32 %v2639, %v2646
  %v2661 = vmul.f32 %v2642, %v2646
  %v2662 = vmul.f32 %v2645, %v2646
  %v2663 = vmul.f32 %v2582, %v2582
  %v2664 = vmul.f32 %v2583, %v2583
  %v2665 = vmul.f32 %v2584, %v2584
  %v2666 = vmul.f32 %v2585, %v2585
  %v2667 = vmul.f32 %v2586, %v2586
  %v2668 = vmul.f32 %v2587, %v2587
  %v2669 = vmul.f32 %v2588, %v2588
  %v2670 = vmul.f32 %v2589, %v2589
  %v2671 = vmul.f32 %v2590, %v2590
  %v2672 = vmul.f32 %v2591, %v2591
  %v2673 = vmul.f32 %v2592, %v2592
  %v2674 = vmul.f32 %v2593, %v2593
  %v2675 = vmul.f32 %v2594, %v2594
  %v2676 = vmul.f32 %v2595, %v2595
  %v2677 = vmul.f32 %v2596, %v2596
  %v2678 = vmul.f32 %v2597, %v2597
  %v2679 = vsel %vm408, %v2663, 0.0
  %2680 = vadd.xlane.f32.xlu0 %v2679
  %v2681 = vpop.xlane.xlu0 %2680
  %v2682 = vsel %vm408, %v2664, 0.0
  %2683 = vadd.xlane.f32.xlu0 %v2682
  %v2684 = vpop.xlane.xlu0 %2683
  %v2685 = vsel %vm408, %v2665, 0.0
  %2686 = vadd.xlane.f32.xlu0 %v2685
  %v2687 = vpop.xlane.xlu0 %2686
  %v2688 = vsel %vm408, %v2666, 0.0
  %2689 = vadd.xlane.f32.xlu0 %v2688
  %v2690 = vpop.xlane.xlu0 %2689
  %v2691 = vsel %vm408, %v2667, 0.0
  %2692 = vadd.xlane.f32.xlu0 %v2691
  %v2693 = vpop.xlane.xlu0 %2692
  %v2694 = vsel %vm408, %v2668, 0.0
  %2695 = vadd.xlane.f32.xlu0 %v2694
  %v2696 = vpop.xlane.xlu0 %2695
  %v2697 = vsel %vm408, %v2669, 0.0
  %2698 = vadd.xlane.f32.xlu0 %v2697
  %v2699 = vpop.xlane.xlu0 %2698
  %v2700 = vsel %vm408, %v2670, 0.0
  %2701 = vadd.xlane.f32.xlu0 %v2700
  %v2702 = vpop.xlane.xlu0 %2701
  %v2703 = vsel %vm408, %v2671, 0.0
  %2704 = vadd.xlane.f32.xlu0 %v2703
  %v2705 = vpop.xlane.xlu0 %2704
  %v2706 = vsel %vm408, %v2672, 0.0
  %2707 = vadd.xlane.f32.xlu0 %v2706
  %v2708 = vpop.xlane.xlu0 %2707
  %v2709 = vsel %vm408, %v2673, 0.0
  %2710 = vadd.xlane.f32.xlu0 %v2709
  %v2711 = vpop.xlane.xlu0 %2710
  %v2712 = vsel %vm408, %v2674, 0.0
  %2713 = vadd.xlane.f32.xlu0 %v2712
  %v2714 = vpop.xlane.xlu0 %2713
  %v2715 = vsel %vm408, %v2675, 0.0
  %2716 = vadd.xlane.f32.xlu0 %v2715
  %v2717 = vpop.xlane.xlu0 %2716
  %v2718 = vsel %vm408, %v2676, 0.0
  %2719 = vadd.xlane.f32.xlu0 %v2718
  %v2720 = vpop.xlane.xlu0 %2719
  %v2721 = vsel %vm408, %v2677, 0.0
  %2722 = vadd.xlane.f32.xlu0 %v2721
  %v2723 = vpop.xlane.xlu0 %2722
  %v2724 = vsel %vm408, %v2678, 0.0
  %2725 = vadd.xlane.f32.xlu0 %v2724
  %v2726 = vpop.xlane.xlu0 %2725
  %v2727 = vmul.f32 %v2681, %v2646
  %v2728 = vmul.f32 %v2684, %v2646
  %v2729 = vmul.f32 %v2687, %v2646
  %v2730 = vmul.f32 %v2690, %v2646
  %v2731 = vmul.f32 %v2693, %v2646
  %v2732 = vmul.f32 %v2696, %v2646
  %v2733 = vmul.f32 %v2699, %v2646
  %v2734 = vmul.f32 %v2702, %v2646
  %v2735 = vmul.f32 %v2705, %v2646
  %v2736 = vmul.f32 %v2708, %v2646
  %v2737 = vmul.f32 %v2711, %v2646
  %v2738 = vmul.f32 %v2714, %v2646
  %v2739 = vmul.f32 %v2717, %v2646
  %v2740 = vmul.f32 %v2720, %v2646
  %v2741 = vmul.f32 %v2723, %v2646
  %v2742 = vmul.f32 %v2726, %v2646
  %v2743 = vmul.f32 %v2647, %v2647
  %v2744 = vmul.f32 %v2648, %v2648
  %v2745 = vmul.f32 %v2649, %v2649
  %v2746 = vmul.f32 %v2650, %v2650
  %v2747 = vmul.f32 %v2651, %v2651
  %v2748 = vmul.f32 %v2652, %v2652
  %v2749 = vmul.f32 %v2653, %v2653
  %v2750 = vmul.f32 %v2654, %v2654
  %v2751 = vmul.f32 %v2655, %v2655
  %v2752 = vmul.f32 %v2656, %v2656
  %v2753 = vmul.f32 %v2657, %v2657
  %v2754 = vmul.f32 %v2658, %v2658
  %v2755 = vmul.f32 %v2659, %v2659
  %v2756 = vmul.f32 %v2660, %v2660
  %v2757 = vmul.f32 %v2661, %v2661
  %v2758 = vmul.f32 %v2662, %v2662
  %v2759 = vsub.f32 %v2727, %v2743
  %v2760 = vsub.f32 %v2728, %v2744
  %v2761 = vsub.f32 %v2729, %v2745
  %v2762 = vsub.f32 %v2730, %v2746
  %v2763 = vsub.f32 %v2731, %v2747
  %v2764 = vsub.f32 %v2732, %v2748
  %v2765 = vsub.f32 %v2733, %v2749
  %v2766 = vsub.f32 %v2734, %v2750
  %v2767 = vsub.f32 %v2735, %v2751
  %v2768 = vsub.f32 %v2736, %v2752
  %v2769 = vsub.f32 %v2737, %v2753
  %v2770 = vsub.f32 %v2738, %v2754
  %v2771 = vsub.f32 %v2739, %v2755
  %v2772 = vsub.f32 %v2740, %v2756
  %v2773 = vsub.f32 %v2741, %v2757
  %v2774 = vsub.f32 %v2742, %v2758
  %v2775 = vsub.f32 %v2582, %v2647
  %v2776 = vsub.f32 %v2583, %v2648
  %v2777 = vsub.f32 %v2584, %v2649
  %v2778 = vsub.f32 %v2585, %v2650
  %v2779 = vsub.f32 %v2586, %v2651
  %v2780 = vsub.f32 %v2587, %v2652
  %v2781 = vsub.f32 %v2588, %v2653
  %v2782 = vsub.f32 %v2589, %v2654
  %v2783 = vsub.f32 %v2590, %v2655
  %v2784 = vsub.f32 %v2591, %v2656
  %v2785 = vsub.f32 %v2592, %v2657
  %v2786 = vsub.f32 %v2593, %v2658
  %v2787 = vsub.f32 %v2594, %v2659
  %v2788 = vsub.f32 %v2595, %v2660
  %v2789 = vsub.f32 %v2596, %v2661
  %v2790 = vsub.f32 %v2597, %v2662
  %v2791 = vadd.f32 %v2759, 1e-05
  %v2792 = vadd.f32 %v2760, 1e-05
  %v2793 = vadd.f32 %v2761, 1e-05
  %v2794 = vadd.f32 %v2762, 1e-05
  %v2795 = vadd.f32 %v2763, 1e-05
  %v2796 = vadd.f32 %v2764, 1e-05
  %v2797 = vadd.f32 %v2765, 1e-05
  %v2798 = vadd.f32 %v2766, 1e-05
  %v2799 = vadd.f32 %v2767, 1e-05
  %v2800 = vadd.f32 %v2768, 1e-05
  %v2801 = vadd.f32 %v2769, 1e-05
  %v2802 = vadd.f32 %v2770, 1e-05
  %v2803 = vadd.f32 %v2771, 1e-05
  %v2804 = vadd.f32 %v2772, 1e-05
  %v2805 = vadd.f32 %v2773, 1e-05
  %v2806 = vadd.f32 %v2774, 1e-05
  %v2807 = vrsqrt.pop %v2791
  %v2808 = vrsqrt.pop %v2792
  %v2809 = vrsqrt.pop %v2793
  %v2810 = vrsqrt.pop %v2794
  %v2811 = vrsqrt.pop %v2795
  %v2812 = vrsqrt.pop %v2796
  %v2813 = vrsqrt.pop %v2797
  %v2814 = vrsqrt.pop %v2798
  %v2815 = vrsqrt.pop %v2799
  %v2816 = vrsqrt.pop %v2800
  %v2817 = vrsqrt.pop %v2801
  %v2818 = vrsqrt.pop %v2802
  %v2819 = vrsqrt.pop %v2803
  %v2820 = vrsqrt.pop %v2804
  %v2821 = vrsqrt.pop %v2805
  %v2822 = vrsqrt.pop %v2806
  %v2823 = vmul.f32 %v2775, %v2807
  %v2824 = vmul.f32 %v2776, %v2808
  %v2825 = vmul.f32 %v2777, %v2809
  %v2826 = vmul.f32 %v2778, %v2810
  %v2827 = vmul.f32 %v2779, %v2811
  %v2828 = vmul.f32 %v2780, %v2812
  %v2829 = vmul.f32 %v2781, %v2813
  %v2830 = vmul.f32 %v2782, %v2814
  %v2831 = vmul.f32 %v2783, %v2815
  %v2832 = vmul.f32 %v2784, %v2816
  %v2833 = vmul.f32 %v2785, %v2817
  %v2834 = vmul.f32 %v2786, %v2818
  %v2835 = vmul.f32 %v2787, %v2819
  %v2836 = vmul.f32 %v2788, %v2820
  %v2837 = vmul.f32 %v2789, %v2821
  %v2838 = vmul.f32 %v2790, %v2822
  %v2839 = vlaneseq
  %v2840 = vshrl.u32 %v2839, 7
  %v2841 = vsub.s32 2, %v2840
  %v2842 = vrot.slane %v342, %v2841
  %v2843 = vmul.f32 %v2823, %v2842
  %v2844 = vmul.f32 %v2824, %v2842
  %v2845 = vmul.f32 %v2825, %v2842
  %v2846 = vmul.f32 %v2826, %v2842
  %v2847 = vmul.f32 %v2827, %v2842
  %v2848 = vmul.f32 %v2828, %v2842
  %v2849 = vmul.f32 %v2829, %v2842
  %v2850 = vmul.f32 %v2830, %v2842
  %v2851 = vmul.f32 %v2831, %v2842
  %v2852 = vmul.f32 %v2832, %v2842
  %v2853 = vmul.f32 %v2833, %v2842
  %v2854 = vmul.f32 %v2834, %v2842
  %v2855 = vmul.f32 %v2835, %v2842
  %v2856 = vmul.f32 %v2836, %v2842
  %v2857 = vmul.f32 %v2837, %v2842
  %v2858 = vmul.f32 %v2838, %v2842
  %v2859 = vlaneseq
  %v2860 = vshrl.u32 %v2859, 7
  %v2861 = vsub.s32 3, %v2860
  %v2862 = vrot.slane %v342, %v2861
  %v2863 = vadd.f32 %v2843, %v2862
  %v2864 = vadd.f32 %v2844, %v2862
  %v2865 = vadd.f32 %v2845, %v2862
  %v2866 = vadd.f32 %v2846, %v2862
  %v2867 = vadd.f32 %v2847, %v2862
  %v2868 = vadd.f32 %v2848, %v2862
  %v2869 = vadd.f32 %v2849, %v2862
  %v2870 = vadd.f32 %v2850, %v2862
  %v2871 = vadd.f32 %v2851, %v2862
  %v2872 = vadd.f32 %v2852, %v2862
  %v2873 = vadd.f32 %v2853, %v2862
  %v2874 = vadd.f32 %v2854, %v2862
  %v2875 = vadd.f32 %v2855, %v2862
  %v2876 = vadd.f32 %v2856, %v2862
  %v2877 = vadd.f32 %v2857, %v2862
  %v2878 = vadd.f32 %v2858, %v2862
  %v2879 = vpack.c.bf16 %v2864, %v2863
  %v2880 = vpack.c.bf16 %v2866, %v2865
  %v2881 = vpack.c.bf16 %v2868, %v2867
  %v2882 = vpack.c.bf16 %v2870, %v2869
  %v2883 = vpack.c.bf16 %v2872, %v2871
  %v2884 = vpack.c.bf16 %v2874, %v2873
  %v2885 = vpack.c.bf16 %v2876, %v2875
  %v2886 = vpack.c.bf16 %v2878, %v2877
  %v2887 = vld [vmem:[%s5] sm:$0xf]
  %v2888 = vld [vmem:[%s5 + $0x4] sm:$0xf]
  %v2889 = vld [vmem:[%s5 + $0x8] sm:$0xf]
  %v2890 = vld [vmem:[%s5 + $0xc] sm:$0xf]
  %v2891 = vld [vmem:[%s5 + $0x10] sm:$0xf]
  %v2892 = vld [vmem:[%s5 + $0x14] sm:$0xf]
  %v2893 = vld [vmem:[%s5 + $0x18] sm:$0xf]
  %v2894 = vld [vmem:[%s5 + $0x1c] sm:$0xf]
  %v2895 = vlaneseq
  %v2896 = vshrl.u32 %v2895, 7
  %v2897 = vsub.s32 4, %v2896
  %v2898 = vrot.slane %v342, %v2897
  %v2907 = vunpack.c.l.b16 %v2887
  %v2908 = vunpack.c.l.b16 %v2888
  %v2909 = vunpack.c.l.b16 %v2889
  %v2910 = vunpack.c.l.b16 %v2890
  %v2911 = vunpack.c.l.b16 %v2891
  %v2912 = vunpack.c.l.b16 %v2892
  %v2913 = vunpack.c.l.b16 %v2893
  %v2914 = vunpack.c.l.b16 %v2894
  %v2915 = vpack.c.b16 %v2908, %v2907
  %v2916 = vpack.c.b16 %v2910, %v2909
  %v2917 = vpack.c.b16 %v2912, %v2911
  %v2918 = vpack.c.b16 %v2914, %v2913
  %v2924 = vsel %vm408, %v2879, 0
  %v2927 = vsel %vm408, %v2880, 0
  %v2930 = vsel %vm408, %v2881, 0
  %v2933 = vsel %vm408, %v2882, 0
  %v2936 = vsel %vm408, %v2883, 0
  %v2939 = vsel %vm408, %v2884, 0
  %v2942 = vsel %vm408, %v2885, 0
  %v2945 = vsel %vm408, %v2886, 0
  %2947 = vmatprep.subr.bf16.mxu0 0
  %2948 = vmatpush1.bf16.msra.mxu0 %v2915
  %2949 = vmatprep.subr.bf16.mxu0 0
  %2950 = vmatpush1.bf16.msra.mxu0 %v2916
  %2951 = vmatprep.subr.bf16.mxu0 0
  %2952 = vmatpush1.bf16.msra.mxu0 %v2917
  %2953 = vmatprep.subr.bf16.mxu0 0
  %2954 = vmatpush1.bf16.msra.mxu0 %v2918
  %2955 = vmatprep.subr.bf16.mxu0 0
  %2956 = vmatpush1.bf16.msra.mxu0 0
  %2957 = vmatprep.subr.bf16.mxu0 0
  %2958 = vmatpush1.bf16.msra.mxu0 0
  %2959 = vmatprep.subr.bf16.mxu0 0
  %2960 = vmatpush1.bf16.msra.mxu0 0
  %2961 = vmatprep.subr.bf16.mxu0 0
  %2962 = vmatpush1.bf16.msra.mxu0 0
  %2963 = vmatprep.subr.bf16.mxu0 0
  %2964 = vmatpush1.bf16.msra.mxu0 0
  %2965 = vmatprep.subr.bf16.mxu0 0
  %2966 = vmatpush1.bf16.msra.mxu0 0
  %2967 = vmatprep.subr.bf16.mxu0 0
  %2968 = vmatpush1.bf16.msra.mxu0 0
  %2969 = vmatprep.subr.bf16.mxu0 0
  %2970 = vmatpush1.bf16.msra.mxu0 0
  %2971 = vmatprep.subr.bf16.mxu0 0
  %2972 = vmatpush1.bf16.msra.mxu0 0
  %2973 = vmatprep.subr.bf16.mxu0 0
  %2974 = vmatpush1.bf16.msra.mxu0 0
  %2975 = vmatprep.subr.bf16.mxu0 0
  %2976 = vmatpush1.bf16.msra.mxu0 0
  %2977 = vmatprep.subr.bf16.mxu0 0
  %2978 = vmatpush1.bf16.msra.mxu0 0
  %2979 = vmatprep.mubr.bf16.mxu0 0
  %2980 = vmatmul.mubr.bf16.gmra.mrb[0].mxu0 %v2924
  %v2981 = vpop.f32.mrb[0].mxu0
  %v2982 = vadd.f32 %v2898, %v2981
  %v2983 = vpop.f32.mrb[0].mxu0
  %v2984 = vpop.f32.mrb[0].mxu0
  %v2985 = vadd.f32 %v2898, %v2984
  %v2986 = vpop.f32.mrb[0].mxu0
  %2987 = vmatprep.mubr.bf16.mxu0 0
  %2988 = vmatmul.mubr.bf16.gmra.mrb[0].mxu0 %v2927
  %v2989 = vpop.f32.mrb[0].mxu0
  %v2990 = vadd.f32 %v2898, %v2989
  %v2991 = vpop.f32.mrb[0].mxu0
  %v2992 = vpop.f32.mrb[0].mxu0
  %v2993 = vadd.f32 %v2898, %v2992
  %v2994 = vpop.f32.mrb[0].mxu0
  %2995 = vmatprep.mubr.bf16.mxu0 0
  %2996 = vmatmul.mubr.bf16.gmra.mrb[0].mxu0 %v2930
  %v2997 = vpop.f32.mrb[0].mxu0
  %v2998 = vadd.f32 %v2898, %v2997
  %v2999 = vpop.f32.mrb[0].mxu0
  %v3000 = vpop.f32.mrb[0].mxu0
  %v3001 = vadd.f32 %v2898, %v3000
  %v3002 = vpop.f32.mrb[0].mxu0
  %3003 = vmatprep.mubr.bf16.mxu0 0
  %3004 = vmatmul.mubr.bf16.gmra.mrb[0].mxu0 %v2933
  %v3005 = vpop.f32.mrb[0].mxu0
  %v3006 = vadd.f32 %v2898, %v3005
  %v3007 = vpop.f32.mrb[0].mxu0
  %v3008 = vpop.f32.mrb[0].mxu0
  %v3009 = vadd.f32 %v2898, %v3008
  %v3010 = vpop.f32.mrb[0].mxu0
  %3011 = vmatprep.mubr.bf16.mxu0 0
  %3012 = vmatmul.mubr.bf16.gmra.mrb[0].mxu0 %v2936
  %v3013 = vpop.f32.mrb[0].mxu0
  %v3014 = vadd.f32 %v2898, %v3013
  %v3015 = vpop.f32.mrb[0].mxu0
  %v3016 = vpop.f32.mrb[0].mxu0
  %v3017 = vadd.f32 %v2898, %v3016
  %v3018 = vpop.f32.mrb[0].mxu0
  %3019 = vmatprep.mubr.bf16.mxu0 0
  %3020 = vmatmul.mubr.bf16.gmra.mrb[0].mxu0 %v2939
  %v3021 = vpop.f32.mrb[0].mxu0
  %v3022 = vadd.f32 %v2898, %v3021
  %v3023 = vpop.f32.mrb[0].mxu0
  %v3024 = vpop.f32.mrb[0].mxu0
  %v3025 = vadd.f32 %v2898, %v3024
  %v3026 = vpop.f32.mrb[0].mxu0
  %3027 = vmatprep.mubr.bf16.mxu0 0
  %3028 = vmatmul.mubr.bf16.gmra.mrb[0].mxu0 %v2942
  %v3029 = vpop.f32.mrb[0].mxu0
  %v3030 = vadd.f32 %v2898, %v3029
  %v3031 = vpop.f32.mrb[0].mxu0
  %v3032 = vpop.f32.mrb[0].mxu0
  %v3033 = vadd.f32 %v2898, %v3032
  %v3034 = vpop.f32.mrb[0].mxu0
  %3035 = vmatprep.mubr.bf16.mxu0 0
  %3036 = vmatmul.mubr.bf16.gmra.mrb[0].mxu0 %v2945
  %v3037 = vpop.f32.mrb[0].mxu0
  %v3038 = vadd.f32 %v2898, %v3037
  %v3039 = vpop.f32.mrb[0].mxu0
  %v3040 = vpop.f32.mrb[0].mxu0
  %v3041 = vadd.f32 %v2898, %v3040
  %v3042 = vpop.f32.mrb[0].mxu0
  %3043 = vdwg.mxu0
  %v3044 = vmax.f32 %v2982, 0.0
  %v3045 = vmax.f32 %v2985, 0.0
  %v3046 = vmax.f32 %v2990, 0.0
  %v3047 = vmax.f32 %v2993, 0.0
  %v3048 = vmax.f32 %v2998, 0.0
  %v3049 = vmax.f32 %v3001, 0.0
  %v3050 = vmax.f32 %v3006, 0.0
  %v3051 = vmax.f32 %v3009, 0.0
  %v3052 = vmax.f32 %v3014, 0.0
  %v3053 = vmax.f32 %v3017, 0.0
  %v3054 = vmax.f32 %v3022, 0.0
  %v3055 = vmax.f32 %v3025, 0.0
  %v3056 = vmax.f32 %v3030, 0.0
  %v3057 = vmax.f32 %v3033, 0.0
  %v3058 = vmax.f32 %v3038, 0.0
  %v3059 = vmax.f32 %v3041, 0.0
  %v3060 = vpack.c.bf16 %v3045, %v3044
  %v3061 = vpack.c.bf16 %v3047, %v3046
  %v3062 = vpack.c.bf16 %v3049, %v3048
  %v3063 = vpack.c.bf16 %v3051, %v3050
  %v3064 = vpack.c.bf16 %v3053, %v3052
  %v3065 = vpack.c.bf16 %v3055, %v3054
  %v3066 = vpack.c.bf16 %v3057, %v3056
  %v3067 = vpack.c.bf16 %v3059, %v3058
  %v3068 = vld [vmem:[%s6] sm:$0xf]
  %v3069 = vld [vmem:[%s6 + $0x4] sm:$0xf]
  %v3070 = vld [vmem:[%s6 + $0x8] sm:$0xf]
  %v3071 = vld [vmem:[%s6 + $0xc] sm:$0xf]
  %v3072 = vld [vmem:[%s6 + $0x10] sm:$0xf]
  %v3073 = vld [vmem:[%s6 + $0x14] sm:$0xf]
  %v3074 = vld [vmem:[%s6 + $0x18] sm:$0xf]
  %v3075 = vld [vmem:[%s6 + $0x1c] sm:$0xf]
  %v3076 = vld [vmem:[%s6 + $0x20] sm:$0xf]
  %v3077 = vld [vmem:[%s6 + $0x24] sm:$0xf]
  %v3078 = vld [vmem:[%s6 + $0x28] sm:$0xf]
  %v3079 = vld [vmem:[%s6 + $0x2c] sm:$0xf]
  %v3080 = vld [vmem:[%s6 + $0x30] sm:$0xf]
  %v3081 = vld [vmem:[%s6 + $0x34] sm:$0xf]
  %v3082 = vld [vmem:[%s6 + $0x38] sm:$0xf]
  %v3083 = vld [vmem:[%s6 + $0x3c] sm:$0xf]
  %v3084 = vlaneseq
  %v3085 = vshrl.u32 %v3084, 7
  %v3086 = vsub.s32 5, %v3085
  %v3087 = vrot.slane %v342, %v3086
  %v3104 = vunpack.c.l.b16 %v3068
  %v3105 = vunpack.c.l.b16 %v3069
  %v3106 = vunpack.c.l.b16 %v3070
  %v3107 = vunpack.c.l.b16 %v3071
  %v3108 = vunpack.c.l.b16 %v3072
  %v3109 = vunpack.c.l.b16 %v3073
  %v3110 = vunpack.c.l.b16 %v3074
  %v3111 = vunpack.c.l.b16 %v3075
  %v3112 = vunpack.c.l.b16 %v3076
  %v3113 = vunpack.c.l.b16 %v3077
  %v3114 = vunpack.c.l.b16 %v3078
  %v3115 = vunpack.c.l.b16 %v3079
  %v3116 = vunpack.c.l.b16 %v3080
  %v3117 = vunpack.c.l.b16 %v3081
  %v3118 = vunpack.c.l.b16 %v3082
  %v3119 = vunpack.c.l.b16 %v3083
  %v3120 = vpack.c.b16 %v3105, %v3104
  %v3121 = vpack.c.b16 %v3107, %v3106
  %v3122 = vpack.c.b16 %v3109, %v3108
  %v3123 = vpack.c.b16 %v3111, %v3110
  %v3124 = vpack.c.b16 %v3113, %v3112
  %v3125 = vpack.c.b16 %v3115, %v3114
  %v3126 = vpack.c.b16 %v3117, %v3116
  %v3127 = vpack.c.b16 %v3119, %v3118
  %3136 = vmatprep.subr.bf16.mxu0 0
  %3137 = vmatpush1.bf16.msra.mxu0 %v3120
  %3138 = vmatprep.subr.bf16.mxu0 0
  %3139 = vmatpush1.bf16.msra.mxu0 %v3121
  %3140 = vmatprep.subr.bf16.mxu0 0
  %3141 = vmatpush1.bf16.msra.mxu0 %v3122
  %3142 = vmatprep.subr.bf16.mxu0 0
  %3143 = vmatpush1.bf16.msra.mxu0 %v3123
  %3144 = vmatprep.subr.bf16.mxu0 0
  %3145 = vmatpush1.bf16.msra.mxu0 %v3124
  %3146 = vmatprep.subr.bf16.mxu0 0
  %3147 = vmatpush1.bf16.msra.mxu0 %v3125
  %3148 = vmatprep.subr.bf16.mxu0 0
  %3149 = vmatpush1.bf16.msra.mxu0 %v3126
  %3150 = vmatprep.subr.bf16.mxu0 0
  %3151 = vmatpush1.bf16.msra.mxu0 %v3127
  %3152 = vmatprep.subr.bf16.mxu0 0
  %3153 = vmatpush1.bf16.msra.mxu0 0
  %3154 = vmatprep.subr.bf16.mxu0 0
  %3155 = vmatpush1.bf16.msra.mxu0 0
  %3156 = vmatprep.subr.bf16.mxu0 0
  %3157 = vmatpush1.bf16.msra.mxu0 0
  %3158 = vmatprep.subr.bf16.mxu0 0
  %3159 = vmatpush1.bf16.msra.mxu0 0
  %3160 = vmatprep.subr.bf16.mxu0 0
  %3161 = vmatpush1.bf16.msra.mxu0 0
  %3162 = vmatprep.subr.bf16.mxu0 0
  %3163 = vmatpush1.bf16.msra.mxu0 0
  %3164 = vmatprep.subr.bf16.mxu0 0
  %3165 = vmatpush1.bf16.msra.mxu0 0
  %3166 = vmatprep.subr.bf16.mxu0 0
  %3167 = vmatpush1.bf16.msra.mxu0 0
  %3168 = vmatprep.mubr.bf16.mxu0 0
  %3169 = vmatmul.mubr.bf16.gmra.mrb[0].mxu0 %v3060
  %v3170 = vpop.f32.mrb[0].mxu0
  %v3171 = vadd.f32 %v3087, %v3170
  %v3172 = vpop.f32.mrb[0].mxu0
  %v3173 = vpop.f32.mrb[0].mxu0
  %v3174 = vadd.f32 %v3087, %v3173
  %v3175 = vpop.f32.mrb[0].mxu0
  %3176 = vmatprep.mubr.bf16.mxu0 0
  %3177 = vmatmul.mubr.bf16.gmra.mrb[0].mxu0 %v3061
  %v3178 = vpop.f32.mrb[0].mxu0
  %v3179 = vadd.f32 %v3087, %v3178
  %v3180 = vpop.f32.mrb[0].mxu0
  %v3181 = vpop.f32.mrb[0].mxu0
  %v3182 = vadd.f32 %v3087, %v3181
  %v3183 = vpop.f32.mrb[0].mxu0
  %3184 = vmatprep.mubr.bf16.mxu0 0
  %3185 = vmatmul.mubr.bf16.gmra.mrb[0].mxu0 %v3062
  %v3186 = vpop.f32.mrb[0].mxu0
  %v3187 = vadd.f32 %v3087, %v3186
  %v3188 = vpop.f32.mrb[0].mxu0
  %v3189 = vpop.f32.mrb[0].mxu0
  %v3190 = vadd.f32 %v3087, %v3189
  %v3191 = vpop.f32.mrb[0].mxu0
  %3192 = vmatprep.mubr.bf16.mxu0 0
  %3193 = vmatmul.mubr.bf16.gmra.mrb[0].mxu0 %v3063
  %v3194 = vpop.f32.mrb[0].mxu0
  %v3195 = vadd.f32 %v3087, %v3194
  %v3196 = vpop.f32.mrb[0].mxu0
  %v3197 = vpop.f32.mrb[0].mxu0
  %v3198 = vadd.f32 %v3087, %v3197
  %v3199 = vpop.f32.mrb[0].mxu0
  %3200 = vmatprep.mubr.bf16.mxu0 0
  %3201 = vmatmul.mubr.bf16.gmra.mrb[0].mxu0 %v3064
  %v3202 = vpop.f32.mrb[0].mxu0
  %v3203 = vadd.f32 %v3087, %v3202
  %v3204 = vpop.f32.mrb[0].mxu0
  %v3205 = vpop.f32.mrb[0].mxu0
  %v3206 = vadd.f32 %v3087, %v3205
  %v3207 = vpop.f32.mrb[0].mxu0
  %3208 = vmatprep.mubr.bf16.mxu0 0
  %3209 = vmatmul.mubr.bf16.gmra.mrb[0].mxu0 %v3065
  %v3210 = vpop.f32.mrb[0].mxu0
  %v3211 = vadd.f32 %v3087, %v3210
  %v3212 = vpop.f32.mrb[0].mxu0
  %v3213 = vpop.f32.mrb[0].mxu0
  %v3214 = vadd.f32 %v3087, %v3213
  %v3215 = vpop.f32.mrb[0].mxu0
  %3216 = vmatprep.mubr.bf16.mxu0 0
  %3217 = vmatmul.mubr.bf16.gmra.mrb[0].mxu0 %v3066
  %v3218 = vpop.f32.mrb[0].mxu0
  %v3219 = vadd.f32 %v3087, %v3218
  %v3220 = vpop.f32.mrb[0].mxu0
  %v3221 = vpop.f32.mrb[0].mxu0
  %v3222 = vadd.f32 %v3087, %v3221
  %v3223 = vpop.f32.mrb[0].mxu0
  %3224 = vmatprep.mubr.bf16.mxu0 0
  %3225 = vmatmul.mubr.bf16.gmra.mrb[0].mxu0 %v3067
  %v3226 = vpop.f32.mrb[0].mxu0
  %v3227 = vadd.f32 %v3087, %v3226
  %v3228 = vpop.f32.mrb[0].mxu0
  %v3229 = vpop.f32.mrb[0].mxu0
  %v3230 = vadd.f32 %v3087, %v3229
  %v3231 = vpop.f32.mrb[0].mxu0
  %3232 = vdwg.mxu0
  %v3233 = vadd.f32 %v2863, %v3171
  %v3234 = vadd.f32 %v2864, %v3174
  %v3235 = vadd.f32 %v2865, %v3179
  %v3236 = vadd.f32 %v2866, %v3182
  %v3237 = vadd.f32 %v2867, %v3187
  %v3238 = vadd.f32 %v2868, %v3190
  %v3239 = vadd.f32 %v2869, %v3195
  %v3240 = vadd.f32 %v2870, %v3198
  %v3241 = vadd.f32 %v2871, %v3203
  %v3242 = vadd.f32 %v2872, %v3206
  %v3243 = vadd.f32 %v2873, %v3211
  %v3244 = vadd.f32 %v2874, %v3214
  %v3245 = vadd.f32 %v2875, %v3219
  %v3246 = vadd.f32 %v2876, %v3222
  %v3247 = vadd.f32 %v2877, %v3227
  %v3248 = vadd.f32 %v2878, %v3230
  %v3249 = vsel %vm408, %v3233, 0.0
  %3250 = vadd.xlane.f32.xlu0 %v3249
  %v3251 = vpop.xlane.xlu0 %3250
  %v3252 = vsel %vm408, %v3234, 0.0
  %3253 = vadd.xlane.f32.xlu0 %v3252
  %v3254 = vpop.xlane.xlu0 %3253
  %v3255 = vsel %vm408, %v3235, 0.0
  %3256 = vadd.xlane.f32.xlu0 %v3255
  %v3257 = vpop.xlane.xlu0 %3256
  %v3258 = vsel %vm408, %v3236, 0.0
  %3259 = vadd.xlane.f32.xlu0 %v3258
  %v3260 = vpop.xlane.xlu0 %3259
  %v3261 = vsel %vm408, %v3237, 0.0
  %3262 = vadd.xlane.f32.xlu0 %v3261
  %v3263 = vpop.xlane.xlu0 %3262
  %v3264 = vsel %vm408, %v3238, 0.0
  %3265 = vadd.xlane.f32.xlu0 %v3264
  %v3266 = vpop.xlane.xlu0 %3265
  %v3267 = vsel %vm408, %v3239, 0.0
  %3268 = vadd.xlane.f32.xlu0 %v3267
  %v3269 = vpop.xlane.xlu0 %3268
  %v3270 = vsel %vm408, %v3240, 0.0
  %3271 = vadd.xlane.f32.xlu0 %v3270
  %v3272 = vpop.xlane.xlu0 %3271
  %v3273 = vsel %vm408, %v3241, 0.0
  %3274 = vadd.xlane.f32.xlu0 %v3273
  %v3275 = vpop.xlane.xlu0 %3274
  %v3276 = vsel %vm408, %v3242, 0.0
  %3277 = vadd.xlane.f32.xlu0 %v3276
  %v3278 = vpop.xlane.xlu0 %3277
  %v3279 = vsel %vm408, %v3243, 0.0
  %3280 = vadd.xlane.f32.xlu0 %v3279
  %v3281 = vpop.xlane.xlu0 %3280
  %v3282 = vsel %vm408, %v3244, 0.0
  %3283 = vadd.xlane.f32.xlu0 %v3282
  %v3284 = vpop.xlane.xlu0 %3283
  %v3285 = vsel %vm408, %v3245, 0.0
  %3286 = vadd.xlane.f32.xlu0 %v3285
  %v3287 = vpop.xlane.xlu0 %3286
  %v3288 = vsel %vm408, %v3246, 0.0
  %3289 = vadd.xlane.f32.xlu0 %v3288
  %v3290 = vpop.xlane.xlu0 %3289
  %v3291 = vsel %vm408, %v3247, 0.0
  %3292 = vadd.xlane.f32.xlu0 %v3291
  %v3293 = vpop.xlane.xlu0 %3292
  %v3294 = vsel %vm408, %v3248, 0.0
  %3295 = vadd.xlane.f32.xlu0 %v3294
  %v3296 = vpop.xlane.xlu0 %3295
  %v3297 = vmul.f32 %v3251, %v2646
  %v3298 = vmul.f32 %v3254, %v2646
  %v3299 = vmul.f32 %v3257, %v2646
  %v3300 = vmul.f32 %v3260, %v2646
  %v3301 = vmul.f32 %v3263, %v2646
  %v3302 = vmul.f32 %v3266, %v2646
  %v3303 = vmul.f32 %v3269, %v2646
  %v3304 = vmul.f32 %v3272, %v2646
  %v3305 = vmul.f32 %v3275, %v2646
  %v3306 = vmul.f32 %v3278, %v2646
  %v3307 = vmul.f32 %v3281, %v2646
  %v3308 = vmul.f32 %v3284, %v2646
  %v3309 = vmul.f32 %v3287, %v2646
  %v3310 = vmul.f32 %v3290, %v2646
  %v3311 = vmul.f32 %v3293, %v2646
  %v3312 = vmul.f32 %v3296, %v2646
  %v3313 = vmul.f32 %v3233, %v3233
  %v3314 = vmul.f32 %v3234, %v3234
  %v3315 = vmul.f32 %v3235, %v3235
  %v3316 = vmul.f32 %v3236, %v3236
  %v3317 = vmul.f32 %v3237, %v3237
  %v3318 = vmul.f32 %v3238, %v3238
  %v3319 = vmul.f32 %v3239, %v3239
  %v3320 = vmul.f32 %v3240, %v3240
  %v3321 = vmul.f32 %v3241, %v3241
  %v3322 = vmul.f32 %v3242, %v3242
  %v3323 = vmul.f32 %v3243, %v3243
  %v3324 = vmul.f32 %v3244, %v3244
  %v3325 = vmul.f32 %v3245, %v3245
  %v3326 = vmul.f32 %v3246, %v3246
  %v3327 = vmul.f32 %v3247, %v3247
  %v3328 = vmul.f32 %v3248, %v3248
  %v3329 = vsel %vm408, %v3313, 0.0
  %3330 = vadd.xlane.f32.xlu0 %v3329
  %v3331 = vpop.xlane.xlu0 %3330
  %v3332 = vsel %vm408, %v3314, 0.0
  %3333 = vadd.xlane.f32.xlu0 %v3332
  %v3334 = vpop.xlane.xlu0 %3333
  %v3335 = vsel %vm408, %v3315, 0.0
  %3336 = vadd.xlane.f32.xlu0 %v3335
  %v3337 = vpop.xlane.xlu0 %3336
  %v3338 = vsel %vm408, %v3316, 0.0
  %3339 = vadd.xlane.f32.xlu0 %v3338
  %v3340 = vpop.xlane.xlu0 %3339
  %v3341 = vsel %vm408, %v3317, 0.0
  %3342 = vadd.xlane.f32.xlu0 %v3341
  %v3343 = vpop.xlane.xlu0 %3342
  %v3344 = vsel %vm408, %v3318, 0.0
  %3345 = vadd.xlane.f32.xlu0 %v3344
  %v3346 = vpop.xlane.xlu0 %3345
  %v3347 = vsel %vm408, %v3319, 0.0
  %3348 = vadd.xlane.f32.xlu0 %v3347
  %v3349 = vpop.xlane.xlu0 %3348
  %v3350 = vsel %vm408, %v3320, 0.0
  %3351 = vadd.xlane.f32.xlu0 %v3350
  %v3352 = vpop.xlane.xlu0 %3351
  %v3353 = vsel %vm408, %v3321, 0.0
  %3354 = vadd.xlane.f32.xlu0 %v3353
  %v3355 = vpop.xlane.xlu0 %3354
  %v3356 = vsel %vm408, %v3322, 0.0
  %3357 = vadd.xlane.f32.xlu0 %v3356
  %v3358 = vpop.xlane.xlu0 %3357
  %v3359 = vsel %vm408, %v3323, 0.0
  %3360 = vadd.xlane.f32.xlu0 %v3359
  %v3361 = vpop.xlane.xlu0 %3360
  %v3362 = vsel %vm408, %v3324, 0.0
  %3363 = vadd.xlane.f32.xlu0 %v3362
  %v3364 = vpop.xlane.xlu0 %3363
  %v3365 = vsel %vm408, %v3325, 0.0
  %3366 = vadd.xlane.f32.xlu0 %v3365
  %v3367 = vpop.xlane.xlu0 %3366
  %v3368 = vsel %vm408, %v3326, 0.0
  %3369 = vadd.xlane.f32.xlu0 %v3368
  %v3370 = vpop.xlane.xlu0 %3369
  %v3371 = vsel %vm408, %v3327, 0.0
  %3372 = vadd.xlane.f32.xlu0 %v3371
  %v3373 = vpop.xlane.xlu0 %3372
  %v3374 = vsel %vm408, %v3328, 0.0
  %3375 = vadd.xlane.f32.xlu0 %v3374
  %v3376 = vpop.xlane.xlu0 %3375
  %v3377 = vmul.f32 %v3331, %v2646
  %v3378 = vmul.f32 %v3334, %v2646
  %v3379 = vmul.f32 %v3337, %v2646
  %v3380 = vmul.f32 %v3340, %v2646
  %v3381 = vmul.f32 %v3343, %v2646
  %v3382 = vmul.f32 %v3346, %v2646
  %v3383 = vmul.f32 %v3349, %v2646
  %v3384 = vmul.f32 %v3352, %v2646
  %v3385 = vmul.f32 %v3355, %v2646
  %v3386 = vmul.f32 %v3358, %v2646
  %v3387 = vmul.f32 %v3361, %v2646
  %v3388 = vmul.f32 %v3364, %v2646
  %v3389 = vmul.f32 %v3367, %v2646
  %v3390 = vmul.f32 %v3370, %v2646
  %v3391 = vmul.f32 %v3373, %v2646
  %v3392 = vmul.f32 %v3376, %v2646
  %v3393 = vmul.f32 %v3297, %v3297
  %v3394 = vmul.f32 %v3298, %v3298
  %v3395 = vmul.f32 %v3299, %v3299
  %v3396 = vmul.f32 %v3300, %v3300
  %v3397 = vmul.f32 %v3301, %v3301
  %v3398 = vmul.f32 %v3302, %v3302
  %v3399 = vmul.f32 %v3303, %v3303
  %v3400 = vmul.f32 %v3304, %v3304
  %v3401 = vmul.f32 %v3305, %v3305
  %v3402 = vmul.f32 %v3306, %v3306
  %v3403 = vmul.f32 %v3307, %v3307
  %v3404 = vmul.f32 %v3308, %v3308
  %v3405 = vmul.f32 %v3309, %v3309
  %v3406 = vmul.f32 %v3310, %v3310
  %v3407 = vmul.f32 %v3311, %v3311
  %v3408 = vmul.f32 %v3312, %v3312
  %v3409 = vsub.f32 %v3377, %v3393
  %v3410 = vsub.f32 %v3378, %v3394
  %v3411 = vsub.f32 %v3379, %v3395
  %v3412 = vsub.f32 %v3380, %v3396
  %v3413 = vsub.f32 %v3381, %v3397
  %v3414 = vsub.f32 %v3382, %v3398
  %v3415 = vsub.f32 %v3383, %v3399
  %v3416 = vsub.f32 %v3384, %v3400
  %v3417 = vsub.f32 %v3385, %v3401
  %v3418 = vsub.f32 %v3386, %v3402
  %v3419 = vsub.f32 %v3387, %v3403
  %v3420 = vsub.f32 %v3388, %v3404
  %v3421 = vsub.f32 %v3389, %v3405
  %v3422 = vsub.f32 %v3390, %v3406
  %v3423 = vsub.f32 %v3391, %v3407
  %v3424 = vsub.f32 %v3392, %v3408
  %v3425 = vsub.f32 %v3233, %v3297
  %v3426 = vsub.f32 %v3234, %v3298
  %v3427 = vsub.f32 %v3235, %v3299
  %v3428 = vsub.f32 %v3236, %v3300
  %v3429 = vsub.f32 %v3237, %v3301
  %v3430 = vsub.f32 %v3238, %v3302
  %v3431 = vsub.f32 %v3239, %v3303
  %v3432 = vsub.f32 %v3240, %v3304
  %v3433 = vsub.f32 %v3241, %v3305
  %v3434 = vsub.f32 %v3242, %v3306
  %v3435 = vsub.f32 %v3243, %v3307
  %v3436 = vsub.f32 %v3244, %v3308
  %v3437 = vsub.f32 %v3245, %v3309
  %v3438 = vsub.f32 %v3246, %v3310
  %v3439 = vsub.f32 %v3247, %v3311
  %v3440 = vsub.f32 %v3248, %v3312
  %v3441 = vadd.f32 %v3409, 1e-05
  %v3442 = vadd.f32 %v3410, 1e-05
  %v3443 = vadd.f32 %v3411, 1e-05
  %v3444 = vadd.f32 %v3412, 1e-05
  %v3445 = vadd.f32 %v3413, 1e-05
  %v3446 = vadd.f32 %v3414, 1e-05
  %v3447 = vadd.f32 %v3415, 1e-05
  %v3448 = vadd.f32 %v3416, 1e-05
  %v3449 = vadd.f32 %v3417, 1e-05
  %v3450 = vadd.f32 %v3418, 1e-05
  %v3451 = vadd.f32 %v3419, 1e-05
  %v3452 = vadd.f32 %v3420, 1e-05
  %v3453 = vadd.f32 %v3421, 1e-05
  %v3454 = vadd.f32 %v3422, 1e-05
  %v3455 = vadd.f32 %v3423, 1e-05
  %v3456 = vadd.f32 %v3424, 1e-05
  %v3457 = vrsqrt.pop %v3441
  %v3458 = vrsqrt.pop %v3442
  %v3459 = vrsqrt.pop %v3443
  %v3460 = vrsqrt.pop %v3444
  %v3461 = vrsqrt.pop %v3445
  %v3462 = vrsqrt.pop %v3446
  %v3463 = vrsqrt.pop %v3447
  %v3464 = vrsqrt.pop %v3448
  %v3465 = vrsqrt.pop %v3449
  %v3466 = vrsqrt.pop %v3450
  %v3467 = vrsqrt.pop %v3451
  %v3468 = vrsqrt.pop %v3452
  %v3469 = vrsqrt.pop %v3453
  %v3470 = vrsqrt.pop %v3454
  %v3471 = vrsqrt.pop %v3455
  %v3472 = vrsqrt.pop %v3456
  %v3473 = vmul.f32 %v3425, %v3457
  %v3474 = vmul.f32 %v3426, %v3458
  %v3475 = vmul.f32 %v3427, %v3459
  %v3476 = vmul.f32 %v3428, %v3460
  %v3477 = vmul.f32 %v3429, %v3461
  %v3478 = vmul.f32 %v3430, %v3462
  %v3479 = vmul.f32 %v3431, %v3463
  %v3480 = vmul.f32 %v3432, %v3464
  %v3481 = vmul.f32 %v3433, %v3465
  %v3482 = vmul.f32 %v3434, %v3466
  %v3483 = vmul.f32 %v3435, %v3467
  %v3484 = vmul.f32 %v3436, %v3468
  %v3485 = vmul.f32 %v3437, %v3469
  %v3486 = vmul.f32 %v3438, %v3470
  %v3487 = vmul.f32 %v3439, %v3471
  %v3488 = vmul.f32 %v3440, %v3472
  %v3489 = vlaneseq
  %v3490 = vshrl.u32 %v3489, 7
  %v3491 = vsub.s32 6, %v3490
  %v3492 = vrot.slane %v342, %v3491
  %v3493 = vmul.f32 %v3473, %v3492
  %v3494 = vmul.f32 %v3474, %v3492
  %v3495 = vmul.f32 %v3475, %v3492
  %v3496 = vmul.f32 %v3476, %v3492
  %v3497 = vmul.f32 %v3477, %v3492
  %v3498 = vmul.f32 %v3478, %v3492
  %v3499 = vmul.f32 %v3479, %v3492
  %v3500 = vmul.f32 %v3480, %v3492
  %v3501 = vmul.f32 %v3481, %v3492
  %v3502 = vmul.f32 %v3482, %v3492
  %v3503 = vmul.f32 %v3483, %v3492
  %v3504 = vmul.f32 %v3484, %v3492
  %v3505 = vmul.f32 %v3485, %v3492
  %v3506 = vmul.f32 %v3486, %v3492
  %v3507 = vmul.f32 %v3487, %v3492
  %v3508 = vmul.f32 %v3488, %v3492
  %v3509 = vlaneseq
  %v3510 = vshrl.u32 %v3509, 7
  %v3511 = vsub.s32 7, %v3510
  %v3512 = vrot.slane %v342, %v3511
  %v3513 = vadd.f32 %v3493, %v3512
  %v3514 = vadd.f32 %v3494, %v3512
  %v3515 = vadd.f32 %v3495, %v3512
  %v3516 = vadd.f32 %v3496, %v3512
  %v3517 = vadd.f32 %v3497, %v3512
  %v3518 = vadd.f32 %v3498, %v3512
  %v3519 = vadd.f32 %v3499, %v3512
  %v3520 = vadd.f32 %v3500, %v3512
  %v3521 = vadd.f32 %v3501, %v3512
  %v3522 = vadd.f32 %v3502, %v3512
  %v3523 = vadd.f32 %v3503, %v3512
  %v3524 = vadd.f32 %v3504, %v3512
  %v3525 = vadd.f32 %v3505, %v3512
  %v3526 = vadd.f32 %v3506, %v3512
  %v3527 = vadd.f32 %v3507, %v3512
  %v3528 = vadd.f32 %v3508, %v3512
  %s3529 = scalar_lea.vmem %s7, 16
  %v3530 = vld [vmem:[%s3529] sm:$0xff]
  %v3531 = vld [vmem:[%s3529 + $0x8] sm:$0xff]
  %v3532 = vpack.c.bf16 %v3514, %v3513
  %v3533 = vpack.c.bf16 %v3516, %v3515
  %v3534 = vpack.c.bf16 %v3518, %v3517
  %v3535 = vpack.c.bf16 %v3520, %v3519
  %v3536 = vpack.c.bf16 %v3522, %v3521
  %v3537 = vpack.c.bf16 %v3524, %v3523
  %v3538 = vpack.c.bf16 %v3526, %v3525
  %v3539 = vpack.c.bf16 %v3528, %v3527
  %s3540 = scalar_lea.vmem %s3, 64
  %v3541 = vld [vmem:[%s3540] sm:$0xff]
  %v3542 = vld [vmem:[%s3540 + $0x8] sm:$0xff]
  %v3543 = vld [vmem:[%s3540 + $0x10] sm:$0xff]
  %v3544 = vld [vmem:[%s3540 + $0x18] sm:$0xff]
  %v3545 = vld [vmem:[%s3540 + $0x20] sm:$0xff]
  %v3546 = vld [vmem:[%s3540 + $0x28] sm:$0xff]
  %v3547 = vld [vmem:[%s3540 + $0x30] sm:$0xff]
  %v3548 = vld [vmem:[%s3540 + $0x38] sm:$0xff]
  %v3549 = vlaneseq
  %v3550 = vshrl.u32 %v3549, 7
  %v3551 = vsub.s32 0, %v3550
  %v3552 = vrot.slane %v3530, %v3551
  %v3553 = vlaneseq
  %v3554 = vshrl.u32 %v3553, 7
  %v3555 = vsub.s32 0, %v3554
  %v3556 = vrot.slane %v3531, %v3555
  %v3565 = vunpack.c.l.b16 %v3541
  %v3566 = vunpack.c.h.b16 %v3541
  %v3567 = vunpack.c.l.b16 %v3542
  %v3568 = vunpack.c.h.b16 %v3542
  %v3569 = vunpack.c.l.b16 %v3543
  %v3570 = vunpack.c.h.b16 %v3543
  %v3571 = vunpack.c.l.b16 %v3544
  %v3572 = vunpack.c.h.b16 %v3544
  %v3573 = vunpack.c.l.b16 %v3545
  %v3574 = vunpack.c.h.b16 %v3545
  %v3575 = vunpack.c.l.b16 %v3546
  %v3576 = vunpack.c.h.b16 %v3546
  %v3577 = vunpack.c.l.b16 %v3547
  %v3578 = vunpack.c.h.b16 %v3547
  %v3579 = vunpack.c.l.b16 %v3548
  %v3580 = vunpack.c.h.b16 %v3548
  %v3581 = vpack.c.b16 %v3567, %v3565
  %v3582 = vpack.c.b16 %v3568, %v3566
  %v3583 = vpack.c.b16 %v3571, %v3569
  %v3584 = vpack.c.b16 %v3572, %v3570
  %v3585 = vpack.c.b16 %v3575, %v3573
  %v3586 = vpack.c.b16 %v3576, %v3574
  %v3587 = vpack.c.b16 %v3579, %v3577
  %v3588 = vpack.c.b16 %v3580, %v3578
  %v3598 = vsel %vm408, %v3532, 0
  %v3601 = vsel %vm408, %v3533, 0
  %v3604 = vsel %vm408, %v3534, 0
  %v3607 = vsel %vm408, %v3535, 0
  %v3610 = vsel %vm408, %v3536, 0
  %v3613 = vsel %vm408, %v3537, 0
  %v3616 = vsel %vm408, %v3538, 0
  %v3619 = vsel %vm408, %v3539, 0
  %3621 = vmatprep.subr.bf16.mxu0 %v3582
  %3622 = vmatpush1.bf16.msra.mxu0 %v3581
  %3623 = vmatprep.subr.bf16.mxu0 %v3584
  %3624 = vmatpush1.bf16.msra.mxu0 %v3583
  %3625 = vmatprep.subr.bf16.mxu0 %v3586
  %3626 = vmatpush1.bf16.msra.mxu0 %v3585
  %3627 = vmatprep.subr.bf16.mxu0 %v3588
  %3628 = vmatpush1.bf16.msra.mxu0 %v3587
  %3629 = vmatprep.subr.bf16.mxu0 0
  %3630 = vmatpush1.bf16.msra.mxu0 0
  %3631 = vmatprep.subr.bf16.mxu0 0
  %3632 = vmatpush1.bf16.msra.mxu0 0
  %3633 = vmatprep.subr.bf16.mxu0 0
  %3634 = vmatpush1.bf16.msra.mxu0 0
  %3635 = vmatprep.subr.bf16.mxu0 0
  %3636 = vmatpush1.bf16.msra.mxu0 0
  %3637 = vmatprep.subr.bf16.mxu0 0
  %3638 = vmatpush1.bf16.msra.mxu0 0
  %3639 = vmatprep.subr.bf16.mxu0 0
  %3640 = vmatpush1.bf16.msra.mxu0 0
  %3641 = vmatprep.subr.bf16.mxu0 0
  %3642 = vmatpush1.bf16.msra.mxu0 0
  %3643 = vmatprep.subr.bf16.mxu0 0
  %3644 = vmatpush1.bf16.msra.mxu0 0
  %3645 = vmatprep.subr.bf16.mxu0 0
  %3646 = vmatpush1.bf16.msra.mxu0 0
  %3647 = vmatprep.subr.bf16.mxu0 0
  %3648 = vmatpush1.bf16.msra.mxu0 0
  %3649 = vmatprep.subr.bf16.mxu0 0
  %3650 = vmatpush1.bf16.msra.mxu0 0
  %3651 = vmatprep.subr.bf16.mxu0 0
  %3652 = vmatpush1.bf16.msra.mxu0 0
  %3653 = vmatprep.mubr.bf16.mxu0 0
  %3654 = vmatmul.mubr.bf16.gmra.mrb[0].mxu0 %v3598
  %v3655 = vpop.f32.mrb[0].mxu0
  %v3656 = vadd.f32 %v3552, %v3655
  %v3657 = vpop.f32.mrb[0].mxu0
  %v3658 = vadd.f32 %v3556, %v3657
  %v3659 = vpop.f32.mrb[0].mxu0
  %v3660 = vadd.f32 %v3552, %v3659
  %v3661 = vpop.f32.mrb[0].mxu0
  %v3662 = vadd.f32 %v3556, %v3661
  %3663 = vmatprep.mubr.bf16.mxu0 0
  %3664 = vmatmul.mubr.bf16.gmra.mrb[0].mxu0 %v3601
  %v3665 = vpop.f32.mrb[0].mxu0
  %v3666 = vadd.f32 %v3552, %v3665
  %v3667 = vpop.f32.mrb[0].mxu0
  %v3668 = vadd.f32 %v3556, %v3667
  %v3669 = vpop.f32.mrb[0].mxu0
  %v3670 = vadd.f32 %v3552, %v3669
  %v3671 = vpop.f32.mrb[0].mxu0
  %v3672 = vadd.f32 %v3556, %v3671
  %3673 = vmatprep.mubr.bf16.mxu0 0
  %3674 = vmatmul.mubr.bf16.gmra.mrb[0].mxu0 %v3604
  %v3675 = vpop.f32.mrb[0].mxu0
  %v3676 = vadd.f32 %v3552, %v3675
  %v3677 = vpop.f32.mrb[0].mxu0
  %v3678 = vadd.f32 %v3556, %v3677
  %v3679 = vpop.f32.mrb[0].mxu0
  %v3680 = vadd.f32 %v3552, %v3679
  %v3681 = vpop.f32.mrb[0].mxu0
  %v3682 = vadd.f32 %v3556, %v3681
  %3683 = vmatprep.mubr.bf16.mxu0 0
  %3684 = vmatmul.mubr.bf16.gmra.mrb[0].mxu0 %v3607
  %v3685 = vpop.f32.mrb[0].mxu0
  %v3686 = vadd.f32 %v3552, %v3685
  %v3687 = vpop.f32.mrb[0].mxu0
  %v3688 = vadd.f32 %v3556, %v3687
  %v3689 = vpop.f32.mrb[0].mxu0
  %v3690 = vadd.f32 %v3552, %v3689
  %v3691 = vpop.f32.mrb[0].mxu0
  %v3692 = vadd.f32 %v3556, %v3691
  %3693 = vmatprep.mubr.bf16.mxu0 0
  %3694 = vmatmul.mubr.bf16.gmra.mrb[0].mxu0 %v3610
  %v3695 = vpop.f32.mrb[0].mxu0
  %v3696 = vadd.f32 %v3552, %v3695
  %v3697 = vpop.f32.mrb[0].mxu0
  %v3698 = vadd.f32 %v3556, %v3697
  %v3699 = vpop.f32.mrb[0].mxu0
  %v3700 = vadd.f32 %v3552, %v3699
  %v3701 = vpop.f32.mrb[0].mxu0
  %v3702 = vadd.f32 %v3556, %v3701
  %3703 = vmatprep.mubr.bf16.mxu0 0
  %3704 = vmatmul.mubr.bf16.gmra.mrb[0].mxu0 %v3613
  %v3705 = vpop.f32.mrb[0].mxu0
  %v3706 = vadd.f32 %v3552, %v3705
  %v3707 = vpop.f32.mrb[0].mxu0
  %v3708 = vadd.f32 %v3556, %v3707
  %v3709 = vpop.f32.mrb[0].mxu0
  %v3710 = vadd.f32 %v3552, %v3709
  %v3711 = vpop.f32.mrb[0].mxu0
  %v3712 = vadd.f32 %v3556, %v3711
  %3713 = vmatprep.mubr.bf16.mxu0 0
  %3714 = vmatmul.mubr.bf16.gmra.mrb[0].mxu0 %v3616
  %v3715 = vpop.f32.mrb[0].mxu0
  %v3716 = vadd.f32 %v3552, %v3715
  %v3717 = vpop.f32.mrb[0].mxu0
  %v3718 = vadd.f32 %v3556, %v3717
  %v3719 = vpop.f32.mrb[0].mxu0
  %v3720 = vadd.f32 %v3552, %v3719
  %v3721 = vpop.f32.mrb[0].mxu0
  %v3722 = vadd.f32 %v3556, %v3721
  %3723 = vmatprep.mubr.bf16.mxu0 0
  %3724 = vmatmul.mubr.bf16.gmra.mrb[0].mxu0 %v3619
  %v3725 = vpop.f32.mrb[0].mxu0
  %v3726 = vadd.f32 %v3552, %v3725
  %v3727 = vpop.f32.mrb[0].mxu0
  %v3728 = vadd.f32 %v3556, %v3727
  %v3729 = vpop.f32.mrb[0].mxu0
  %v3730 = vadd.f32 %v3552, %v3729
  %v3731 = vpop.f32.mrb[0].mxu0
  %v3732 = vadd.f32 %v3556, %v3731
  %3733 = vdwg.mxu0
  %3750 = vrot.lane.b32.xlu0 %v3656, 64
  %v3751 = vpop.permute.xlu0 %3750
  %3752 = vrot.lane.b32.xlu0 %v3660, 64
  %v3753 = vpop.permute.xlu0 %3752
  %3754 = vrot.lane.b32.xlu0 %v3666, 64
  %v3755 = vpop.permute.xlu0 %3754
  %3756 = vrot.lane.b32.xlu0 %v3670, 64
  %v3757 = vpop.permute.xlu0 %3756
  %3758 = vrot.lane.b32.xlu0 %v3676, 64
  %v3759 = vpop.permute.xlu0 %3758
  %3760 = vrot.lane.b32.xlu0 %v3680, 64
  %v3761 = vpop.permute.xlu0 %3760
  %3762 = vrot.lane.b32.xlu0 %v3686, 64
  %v3763 = vpop.permute.xlu0 %3762
  %3764 = vrot.lane.b32.xlu0 %v3690, 64
  %v3765 = vpop.permute.xlu0 %3764
  %3766 = vrot.lane.b32.xlu0 %v3696, 64
  %v3767 = vpop.permute.xlu0 %3766
  %3768 = vrot.lane.b32.xlu0 %v3700, 64
  %v3769 = vpop.permute.xlu0 %3768
  %3770 = vrot.lane.b32.xlu0 %v3706, 64
  %v3771 = vpop.permute.xlu0 %3770
  %3772 = vrot.lane.b32.xlu0 %v3710, 64
  %v3773 = vpop.permute.xlu0 %3772
  %3774 = vrot.lane.b32.xlu0 %v3716, 64
  %v3775 = vpop.permute.xlu0 %3774
  %3776 = vrot.lane.b32.xlu0 %v3720, 64
  %v3777 = vpop.permute.xlu0 %3776
  %3778 = vrot.lane.b32.xlu0 %v3726, 64
  %v3779 = vpop.permute.xlu0 %3778
  %3780 = vrot.lane.b32.xlu0 %v3730, 64
  %v3781 = vpop.permute.xlu0 %3780
  %3798 = vxpose.xlu0.b32.start [1/16] %v3751, 128
  %3799 = vxpose.xlu0.b32.cont [2/16] %v3753, 128
  %3800 = vxpose.xlu0.b32.cont [3/16] %v3755, 128
  %3801 = vxpose.xlu0.b32.cont [4/16] %v3757, 128
  %3802 = vxpose.xlu0.b32.cont [5/16] %v3759, 128
  %3803 = vxpose.xlu0.b32.cont [6/16] %v3761, 128
  %3804 = vxpose.xlu0.b32.cont [7/16] %v3763, 128
  %3805 = vxpose.xlu0.b32.cont [8/16] %v3765, 128
  %3806 = vxpose.xlu0.b32.cont [9/16] %v3767, 128
  %3807 = vxpose.xlu0.b32.cont [10/16] %v3769, 128
  %3808 = vxpose.xlu0.b32.cont [11/16] %v3771, 128
  %3809 = vxpose.xlu0.b32.cont [12/16] %v3773, 128
  %3810 = vxpose.xlu0.b32.cont [13/16] %v3775, 128
  %3811 = vxpose.xlu0.b32.cont [14/16] %v3777, 128
  %3812 = vxpose.xlu0.b32.cont [15/16] %v3779, 128
  %3813 = vxpose.xlu0.b32.end [16/16] %v3781, 128
  %v3814 = vpop.trf.xlu0
  %v3815 = vpop.trf.xlu0
  %v3816 = vpop.trf.xlu0
  %v3817 = vpop.trf.xlu0
  %v3818 = vpop.trf.xlu0
  %v3819 = vpop.trf.xlu0
  %v3820 = vpop.trf.xlu0
  %v3821 = vpop.trf.xlu0
  %v3822 = vpop.trf.xlu0
  %v3823 = vpop.trf.xlu0
  %v3824 = vpop.trf.xlu0
  %v3825 = vpop.trf.xlu0
  %v3826 = vpop.trf.xlu0
  %v3827 = vpop.trf.xlu0
  %v3828 = vpop.trf.xlu0
  %v3829 = vpop.trf.xlu0
  %v3830 = vpack.c.bf16 %v3815, %v3814
  %v3831 = vpack.c.bf16 %v3817, %v3816
  %v3832 = vpack.c.bf16 %v3819, %v3818
  %v3833 = vpack.c.bf16 %v3821, %v3820
  %v3834 = vmul.f32 %v3656, %v326
  %v3835 = vmul.f32 %v3660, %v326
  %v3836 = vmul.f32 %v3666, %v326
  %v3837 = vmul.f32 %v3670, %v326
  %v3838 = vmul.f32 %v3676, %v326
  %v3839 = vmul.f32 %v3680, %v326
  %v3840 = vmul.f32 %v3686, %v326
  %v3841 = vmul.f32 %v3690, %v326
  %v3842 = vmul.f32 %v3696, %v326
  %v3843 = vmul.f32 %v3700, %v326
  %v3844 = vmul.f32 %v3706, %v326
  %v3845 = vmul.f32 %v3710, %v326
  %v3846 = vmul.f32 %v3716, %v326
  %v3847 = vmul.f32 %v3720, %v326
  %v3848 = vmul.f32 %v3726, %v326
  %v3849 = vmul.f32 %v3730, %v326
  %v3850 = vpack.c.bf16 %v3835, %v3834
  %v3851 = vpack.c.bf16 %v3837, %v3836
  %v3852 = vpack.c.bf16 %v3839, %v3838
  %v3853 = vpack.c.bf16 %v3841, %v3840
  %v3854 = vpack.c.bf16 %v3843, %v3842
  %v3855 = vpack.c.bf16 %v3845, %v3844
  %v3856 = vpack.c.bf16 %v3847, %v3846
  %v3857 = vpack.c.bf16 %v3849, %v3848
  %s3858 = scalar_lea.vmem %s8, 512
  %v3859 = vld [vmem:[%s3858] sm:$0xff]
  %v3860 = vld [vmem:[%s3858 + $0x8] sm:$0xff]
  %v3861 = vld [vmem:[%s3858 + $0x10] sm:$0xff]
  %v3862 = vld [vmem:[%s3858 + $0x18] sm:$0xff]
  %v3863 = vld [vmem:[%s3858 + $0x20] sm:$0xff]
  %v3864 = vld [vmem:[%s3858 + $0x28] sm:$0xff]
  %v3865 = vld [vmem:[%s3858 + $0x30] sm:$0xff]
  %v3866 = vld [vmem:[%s3858 + $0x38] sm:$0xff]
  %v3867 = vld [vmem:[%s3858 + $0x40] sm:$0xff]
  %v3868 = vld [vmem:[%s3858 + $0x48] sm:$0xff]
  %v3869 = vld [vmem:[%s3858 + $0x50] sm:$0xff]
  %v3870 = vld [vmem:[%s3858 + $0x58] sm:$0xff]
  %v3871 = vld [vmem:[%s3858 + $0x60] sm:$0xff]
  %v3872 = vld [vmem:[%s3858 + $0x68] sm:$0xff]
  %v3873 = vld [vmem:[%s3858 + $0x70] sm:$0xff]
  %v3874 = vld [vmem:[%s3858 + $0x78] sm:$0xff]
  %v3876 = vsel %vm408, %v3850, 0
  %v3879 = vsel %vm408, %v3851, 0
  %v3882 = vsel %vm408, %v3852, 0
  %v3885 = vsel %vm408, %v3853, 0
  %v3888 = vsel %vm408, %v3854, 0
  %v3891 = vsel %vm408, %v3855, 0
  %v3894 = vsel %vm408, %v3856, 0
  %v3897 = vsel %vm408, %v3857, 0
  %3899 = vmatprep.subr.bf16.mxu0 0
  %3900 = vmatpush1.bf16.msra.mxu0 %v3830
  %3901 = vmatprep.subr.bf16.mxu0 0
  %3902 = vmatpush1.bf16.msra.mxu0 %v3831
  %3903 = vmatprep.subr.bf16.mxu0 0
  %3904 = vmatpush1.bf16.msra.mxu0 %v3832
  %3905 = vmatprep.subr.bf16.mxu0 0
  %3906 = vmatpush1.bf16.msra.mxu0 %v3833
  %3907 = vmatprep.subr.bf16.mxu0 0
  %3908 = vmatpush1.bf16.msra.mxu0 0
  %3909 = vmatprep.subr.bf16.mxu0 0
  %3910 = vmatpush1.bf16.msra.mxu0 0
  %3911 = vmatprep.subr.bf16.mxu0 0
  %3912 = vmatpush1.bf16.msra.mxu0 0
  %3913 = vmatprep.subr.bf16.mxu0 0
  %3914 = vmatpush1.bf16.msra.mxu0 0
  %3915 = vmatprep.subr.bf16.mxu0 0
  %3916 = vmatpush1.bf16.msra.mxu0 0
  %3917 = vmatprep.subr.bf16.mxu0 0
  %3918 = vmatpush1.bf16.msra.mxu0 0
  %3919 = vmatprep.subr.bf16.mxu0 0
  %3920 = vmatpush1.bf16.msra.mxu0 0
  %3921 = vmatprep.subr.bf16.mxu0 0
  %3922 = vmatpush1.bf16.msra.mxu0 0
  %3923 = vmatprep.subr.bf16.mxu0 0
  %3924 = vmatpush1.bf16.msra.mxu0 0
  %3925 = vmatprep.subr.bf16.mxu0 0
  %3926 = vmatpush1.bf16.msra.mxu0 0
  %3927 = vmatprep.subr.bf16.mxu0 0
  %3928 = vmatpush1.bf16.msra.mxu0 0
  %3929 = vmatprep.subr.bf16.mxu0 0
  %3930 = vmatpush1.bf16.msra.mxu0 0
  %3931 = vmatprep.mubr.bf16.mxu0 0
  %3932 = vmatmul.mubr.bf16.gmra.mrb[0].mxu0 %v3876
  %v3933 = vpop.f32.mrb[0].mxu0
  %v3934 = vadd.f32 %v3859, %v3933
  %v3935 = vpop.f32.mrb[0].mxu0
  %v3936 = vpop.f32.mrb[0].mxu0
  %v3937 = vadd.f32 %v3860, %v3936
  %v3938 = vpop.f32.mrb[0].mxu0
  %3939 = vmatprep.mubr.bf16.mxu0 0
  %3940 = vmatmul.mubr.bf16.gmra.mrb[0].mxu0 %v3879
  %v3941 = vpop.f32.mrb[0].mxu0
  %v3942 = vadd.f32 %v3861, %v3941
  %v3943 = vpop.f32.mrb[0].mxu0
  %v3944 = vpop.f32.mrb[0].mxu0
  %v3945 = vadd.f32 %v3862, %v3944
  %v3946 = vpop.f32.mrb[0].mxu0
  %3947 = vmatprep.mubr.bf16.mxu0 0
  %3948 = vmatmul.mubr.bf16.gmra.mrb[0].mxu0 %v3882
  %v3949 = vpop.f32.mrb[0].mxu0
  %v3950 = vadd.f32 %v3863, %v3949
  %v3951 = vpop.f32.mrb[0].mxu0
  %v3952 = vpop.f32.mrb[0].mxu0
  %v3953 = vadd.f32 %v3864, %v3952
  %v3954 = vpop.f32.mrb[0].mxu0
  %3955 = vmatprep.mubr.bf16.mxu0 0
  %3956 = vmatmul.mubr.bf16.gmra.mrb[0].mxu0 %v3885
  %v3957 = vpop.f32.mrb[0].mxu0
  %v3958 = vadd.f32 %v3865, %v3957
  %v3959 = vpop.f32.mrb[0].mxu0
  %v3960 = vpop.f32.mrb[0].mxu0
  %v3961 = vadd.f32 %v3866, %v3960
  %v3962 = vpop.f32.mrb[0].mxu0
  %3963 = vmatprep.mubr.bf16.mxu0 0
  %3964 = vmatmul.mubr.bf16.gmra.mrb[0].mxu0 %v3888
  %v3965 = vpop.f32.mrb[0].mxu0
  %v3966 = vadd.f32 %v3867, %v3965
  %v3967 = vpop.f32.mrb[0].mxu0
  %v3968 = vpop.f32.mrb[0].mxu0
  %v3969 = vadd.f32 %v3868, %v3968
  %v3970 = vpop.f32.mrb[0].mxu0
  %3971 = vmatprep.mubr.bf16.mxu0 0
  %3972 = vmatmul.mubr.bf16.gmra.mrb[0].mxu0 %v3891
  %v3973 = vpop.f32.mrb[0].mxu0
  %v3974 = vadd.f32 %v3869, %v3973
  %v3975 = vpop.f32.mrb[0].mxu0
  %v3976 = vpop.f32.mrb[0].mxu0
  %v3977 = vadd.f32 %v3870, %v3976
  %v3978 = vpop.f32.mrb[0].mxu0
  %3979 = vmatprep.mubr.bf16.mxu0 0
  %3980 = vmatmul.mubr.bf16.gmra.mrb[0].mxu0 %v3894
  %v3981 = vpop.f32.mrb[0].mxu0
  %v3982 = vadd.f32 %v3871, %v3981
  %v3983 = vpop.f32.mrb[0].mxu0
  %v3984 = vpop.f32.mrb[0].mxu0
  %v3985 = vadd.f32 %v3872, %v3984
  %v3986 = vpop.f32.mrb[0].mxu0
  %3987 = vmatprep.mubr.bf16.mxu0 0
  %3988 = vmatmul.mubr.bf16.gmra.mrb[0].mxu0 %v3897
  %v3989 = vpop.f32.mrb[0].mxu0
  %v3990 = vadd.f32 %v3873, %v3989
  %v3991 = vpop.f32.mrb[0].mxu0
  %v3992 = vpop.f32.mrb[0].mxu0
  %v3993 = vadd.f32 %v3874, %v3992
  %v3994 = vpop.f32.mrb[0].mxu0
  %3995 = vdwg.mxu0
  %3996 = vmax.xlane.f32.xlu0 %v3934
  %v3997 = vpop.xlane.xlu0 %3996
  %3998 = vmax.xlane.f32.xlu0 %v3937
  %v3999 = vpop.xlane.xlu0 %3998
  %4000 = vmax.xlane.f32.xlu0 %v3942
  %v4001 = vpop.xlane.xlu0 %4000
  %4002 = vmax.xlane.f32.xlu0 %v3945
  %v4003 = vpop.xlane.xlu0 %4002
  %4004 = vmax.xlane.f32.xlu0 %v3950
  %v4005 = vpop.xlane.xlu0 %4004
  %4006 = vmax.xlane.f32.xlu0 %v3953
  %v4007 = vpop.xlane.xlu0 %4006
  %4008 = vmax.xlane.f32.xlu0 %v3958
  %v4009 = vpop.xlane.xlu0 %4008
  %4010 = vmax.xlane.f32.xlu0 %v3961
  %v4011 = vpop.xlane.xlu0 %4010
  %4012 = vmax.xlane.f32.xlu0 %v3966
  %v4013 = vpop.xlane.xlu0 %4012
  %4014 = vmax.xlane.f32.xlu0 %v3969
  %v4015 = vpop.xlane.xlu0 %4014
  %4016 = vmax.xlane.f32.xlu0 %v3974
  %v4017 = vpop.xlane.xlu0 %4016
  %4018 = vmax.xlane.f32.xlu0 %v3977
  %v4019 = vpop.xlane.xlu0 %4018
  %4020 = vmax.xlane.f32.xlu0 %v3982
  %v4021 = vpop.xlane.xlu0 %4020
  %4022 = vmax.xlane.f32.xlu0 %v3985
  %v4023 = vpop.xlane.xlu0 %4022
  %4024 = vmax.xlane.f32.xlu0 %v3990
  %v4025 = vpop.xlane.xlu0 %4024
  %4026 = vmax.xlane.f32.xlu0 %v3993
  %v4027 = vpop.xlane.xlu0 %4026
  %v4028 = vsub.f32 %v3934, %v3997
  %v4029 = vsub.f32 %v3937, %v3999
  %v4030 = vsub.f32 %v3942, %v4001
  %v4031 = vsub.f32 %v3945, %v4003
  %v4032 = vsub.f32 %v3950, %v4005
  %v4033 = vsub.f32 %v3953, %v4007
  %v4034 = vsub.f32 %v3958, %v4009
  %v4035 = vsub.f32 %v3961, %v4011
  %v4036 = vsub.f32 %v3966, %v4013
  %v4037 = vsub.f32 %v3969, %v4015
  %v4038 = vsub.f32 %v3974, %v4017
  %v4039 = vsub.f32 %v3977, %v4019
  %v4040 = vsub.f32 %v3982, %v4021
  %v4041 = vsub.f32 %v3985, %v4023
  %v4042 = vsub.f32 %v3990, %v4025
  %v4043 = vsub.f32 %v3993, %v4027
  %v4044 = vmul.f32 %v4028, 1.442695
  %v4045 = vpow.pop %v4044
  %v4046 = vmul.f32 %v4029, 1.442695
  %v4047 = vpow.pop %v4046
  %v4048 = vmul.f32 %v4030, 1.442695
  %v4049 = vpow.pop %v4048
  %v4050 = vmul.f32 %v4031, 1.442695
  %v4051 = vpow.pop %v4050
  %v4052 = vmul.f32 %v4032, 1.442695
  %v4053 = vpow.pop %v4052
  %v4054 = vmul.f32 %v4033, 1.442695
  %v4055 = vpow.pop %v4054
  %v4056 = vmul.f32 %v4034, 1.442695
  %v4057 = vpow.pop %v4056
  %v4058 = vmul.f32 %v4035, 1.442695
  %v4059 = vpow.pop %v4058
  %v4060 = vmul.f32 %v4036, 1.442695
  %v4061 = vpow.pop %v4060
  %v4062 = vmul.f32 %v4037, 1.442695
  %v4063 = vpow.pop %v4062
  %v4064 = vmul.f32 %v4038, 1.442695
  %v4065 = vpow.pop %v4064
  %v4066 = vmul.f32 %v4039, 1.442695
  %v4067 = vpow.pop %v4066
  %v4068 = vmul.f32 %v4040, 1.442695
  %v4069 = vpow.pop %v4068
  %v4070 = vmul.f32 %v4041, 1.442695
  %v4071 = vpow.pop %v4070
  %v4072 = vmul.f32 %v4042, 1.442695
  %v4073 = vpow.pop %v4072
  %v4074 = vmul.f32 %v4043, 1.442695
  %v4075 = vpow.pop %v4074
  %4076 = vadd.xlane.f32.xlu0 %v4045
  %v4077 = vpop.xlane.xlu0 %4076
  %4078 = vadd.xlane.f32.xlu0 %v4047
  %v4079 = vpop.xlane.xlu0 %4078
  %4080 = vadd.xlane.f32.xlu0 %v4049
  %v4081 = vpop.xlane.xlu0 %4080
  %4082 = vadd.xlane.f32.xlu0 %v4051
  %v4083 = vpop.xlane.xlu0 %4082
  %4084 = vadd.xlane.f32.xlu0 %v4053
  %v4085 = vpop.xlane.xlu0 %4084
  %4086 = vadd.xlane.f32.xlu0 %v4055
  %v4087 = vpop.xlane.xlu0 %4086
  %4088 = vadd.xlane.f32.xlu0 %v4057
  %v4089 = vpop.xlane.xlu0 %4088
  %4090 = vadd.xlane.f32.xlu0 %v4059
  %v4091 = vpop.xlane.xlu0 %4090
  %4092 = vadd.xlane.f32.xlu0 %v4061
  %v4093 = vpop.xlane.xlu0 %4092
  %4094 = vadd.xlane.f32.xlu0 %v4063
  %v4095 = vpop.xlane.xlu0 %4094
  %4096 = vadd.xlane.f32.xlu0 %v4065
  %v4097 = vpop.xlane.xlu0 %4096
  %4098 = vadd.xlane.f32.xlu0 %v4067
  %v4099 = vpop.xlane.xlu0 %4098
  %4100 = vadd.xlane.f32.xlu0 %v4069
  %v4101 = vpop.xlane.xlu0 %4100
  %4102 = vadd.xlane.f32.xlu0 %v4071
  %v4103 = vpop.xlane.xlu0 %4102
  %4104 = vadd.xlane.f32.xlu0 %v4073
  %v4105 = vpop.xlane.xlu0 %4104
  %4106 = vadd.xlane.f32.xlu0 %v4075
  %v4107 = vpop.xlane.xlu0 %4106
  %v4108 = vrcp.pop %v4077
  %v4109 = vrcp.pop %v4079
  %v4110 = vrcp.pop %v4081
  %v4111 = vrcp.pop %v4083
  %v4112 = vrcp.pop %v4085
  %v4113 = vrcp.pop %v4087
  %v4114 = vrcp.pop %v4089
  %v4115 = vrcp.pop %v4091
  %v4116 = vrcp.pop %v4093
  %v4117 = vrcp.pop %v4095
  %v4118 = vrcp.pop %v4097
  %v4119 = vrcp.pop %v4099
  %v4120 = vrcp.pop %v4101
  %v4121 = vrcp.pop %v4103
  %v4122 = vrcp.pop %v4105
  %v4123 = vrcp.pop %v4107
  %v4124 = vmul.f32 %v4045, %v4108
  %v4125 = vmul.f32 %v4047, %v4109
  %v4126 = vmul.f32 %v4049, %v4110
  %v4127 = vmul.f32 %v4051, %v4111
  %v4128 = vmul.f32 %v4053, %v4112
  %v4129 = vmul.f32 %v4055, %v4113
  %v4130 = vmul.f32 %v4057, %v4114
  %v4131 = vmul.f32 %v4059, %v4115
  %v4132 = vmul.f32 %v4061, %v4116
  %v4133 = vmul.f32 %v4063, %v4117
  %v4134 = vmul.f32 %v4065, %v4118
  %v4135 = vmul.f32 %v4067, %v4119
  %v4136 = vmul.f32 %v4069, %v4120
  %v4137 = vmul.f32 %v4071, %v4121
  %v4138 = vmul.f32 %v4073, %v4122
  %v4139 = vmul.f32 %v4075, %v4123
  %v4140 = vmul.f32 %v3658, %v326
  %v4141 = vmul.f32 %v3662, %v326
  %v4142 = vmul.f32 %v3668, %v326
  %v4143 = vmul.f32 %v3672, %v326
  %v4144 = vmul.f32 %v3678, %v326
  %v4145 = vmul.f32 %v3682, %v326
  %v4146 = vmul.f32 %v3688, %v326
  %v4147 = vmul.f32 %v3692, %v326
  %v4148 = vmul.f32 %v3698, %v326
  %v4149 = vmul.f32 %v3702, %v326
  %v4150 = vmul.f32 %v3708, %v326
  %v4151 = vmul.f32 %v3712, %v326
  %v4152 = vmul.f32 %v3718, %v326
  %v4153 = vmul.f32 %v3722, %v326
  %v4154 = vmul.f32 %v3728, %v326
  %v4155 = vmul.f32 %v3732, %v326
  %v4156 = vpack.c.bf16 %v4141, %v4140
  %v4157 = vpack.c.bf16 %v4143, %v4142
  %v4158 = vpack.c.bf16 %v4145, %v4144
  %v4159 = vpack.c.bf16 %v4147, %v4146
  %v4160 = vpack.c.bf16 %v4149, %v4148
  %v4161 = vpack.c.bf16 %v4151, %v4150
  %v4162 = vpack.c.bf16 %v4153, %v4152
  %v4163 = vpack.c.bf16 %v4155, %v4154
  %v4164 = vpack.c.bf16 %v4125, %v4124
  %v4165 = vpack.c.bf16 %v4127, %v4126
  %v4166 = vpack.c.bf16 %v4129, %v4128
  %v4167 = vpack.c.bf16 %v4131, %v4130
  %v4168 = vpack.c.bf16 %v4133, %v4132
  %v4169 = vpack.c.bf16 %v4135, %v4134
  %v4170 = vpack.c.bf16 %v4137, %v4136
  %v4171 = vpack.c.bf16 %v4139, %v4138
  %v4172 = vmul.f32 %v3656, %v331
  %v4173 = vmul.f32 %v3660, %v331
  %v4174 = vmul.f32 %v3666, %v331
  %v4175 = vmul.f32 %v3670, %v331
  %v4176 = vmul.f32 %v3676, %v331
  %v4177 = vmul.f32 %v3680, %v331
  %v4178 = vmul.f32 %v3686, %v331
  %v4179 = vmul.f32 %v3690, %v331
  %v4180 = vmul.f32 %v3696, %v331
  %v4181 = vmul.f32 %v3700, %v331
  %v4182 = vmul.f32 %v3706, %v331
  %v4183 = vmul.f32 %v3710, %v331
  %v4184 = vmul.f32 %v3716, %v331
  %v4185 = vmul.f32 %v3720, %v331
  %v4186 = vmul.f32 %v3726, %v331
  %v4187 = vmul.f32 %v3730, %v331
  %v4188 = vpack.c.bf16 %v4173, %v4172
  %v4189 = vpack.c.bf16 %v4175, %v4174
  %v4190 = vpack.c.bf16 %v4177, %v4176
  %v4191 = vpack.c.bf16 %v4179, %v4178
  %v4192 = vpack.c.bf16 %v4181, %v4180
  %v4193 = vpack.c.bf16 %v4183, %v4182
  %v4194 = vpack.c.bf16 %v4185, %v4184
  %v4195 = vpack.c.bf16 %v4187, %v4186
  %s4196 = scalar_lea.vmem %s8, 640
  %v4197 = vld [vmem:[%s4196] sm:$0xff]
  %v4198 = vld [vmem:[%s4196 + $0x8] sm:$0xff]
  %v4199 = vld [vmem:[%s4196 + $0x10] sm:$0xff]
  %v4200 = vld [vmem:[%s4196 + $0x18] sm:$0xff]
  %v4201 = vld [vmem:[%s4196 + $0x20] sm:$0xff]
  %v4202 = vld [vmem:[%s4196 + $0x28] sm:$0xff]
  %v4203 = vld [vmem:[%s4196 + $0x30] sm:$0xff]
  %v4204 = vld [vmem:[%s4196 + $0x38] sm:$0xff]
  %v4205 = vld [vmem:[%s4196 + $0x40] sm:$0xff]
  %v4206 = vld [vmem:[%s4196 + $0x48] sm:$0xff]
  %v4207 = vld [vmem:[%s4196 + $0x50] sm:$0xff]
  %v4208 = vld [vmem:[%s4196 + $0x58] sm:$0xff]
  %v4209 = vld [vmem:[%s4196 + $0x60] sm:$0xff]
  %v4210 = vld [vmem:[%s4196 + $0x68] sm:$0xff]
  %v4211 = vld [vmem:[%s4196 + $0x70] sm:$0xff]
  %v4212 = vld [vmem:[%s4196 + $0x78] sm:$0xff]
  %v4214 = vsel %vm408, %v4188, 0
  %v4217 = vsel %vm408, %v4189, 0
  %v4220 = vsel %vm408, %v4190, 0
  %v4223 = vsel %vm408, %v4191, 0
  %v4226 = vsel %vm408, %v4192, 0
  %v4229 = vsel %vm408, %v4193, 0
  %v4232 = vsel %vm408, %v4194, 0
  %v4235 = vsel %vm408, %v4195, 0
  %4237 = vmatprep.subr.bf16.mxu0 0
  %4238 = vmatpush1.bf16.msra.mxu0 %v3830
  %4239 = vmatprep.subr.bf16.mxu0 0
  %4240 = vmatpush1.bf16.msra.mxu0 %v3831
  %4241 = vmatprep.subr.bf16.mxu0 0
  %4242 = vmatpush1.bf16.msra.mxu0 %v3832
  %4243 = vmatprep.subr.bf16.mxu0 0
  %4244 = vmatpush1.bf16.msra.mxu0 %v3833
  %4245 = vmatprep.subr.bf16.mxu0 0
  %4246 = vmatpush1.bf16.msra.mxu0 0
  %4247 = vmatprep.subr.bf16.mxu0 0
  %4248 = vmatpush1.bf16.msra.mxu0 0
  %4249 = vmatprep.subr.bf16.mxu0 0
  %4250 = vmatpush1.bf16.msra.mxu0 0
  %4251 = vmatprep.subr.bf16.mxu0 0
  %4252 = vmatpush1.bf16.msra.mxu0 0
  %4253 = vmatprep.subr.bf16.mxu0 0
  %4254 = vmatpush1.bf16.msra.mxu0 0
  %4255 = vmatprep.subr.bf16.mxu0 0
  %4256 = vmatpush1.bf16.msra.mxu0 0
  %4257 = vmatprep.subr.bf16.mxu0 0
  %4258 = vmatpush1.bf16.msra.mxu0 0
  %4259 = vmatprep.subr.bf16.mxu0 0
  %4260 = vmatpush1.bf16.msra.mxu0 0
  %4261 = vmatprep.subr.bf16.mxu0 0
  %4262 = vmatpush1.bf16.msra.mxu0 0
  %4263 = vmatprep.subr.bf16.mxu0 0
  %4264 = vmatpush1.bf16.msra.mxu0 0
  %4265 = vmatprep.subr.bf16.mxu0 0
  %4266 = vmatpush1.bf16.msra.mxu0 0
  %4267 = vmatprep.subr.bf16.mxu0 0
  %4268 = vmatpush1.bf16.msra.mxu0 0
  %4269 = vmatprep.mubr.bf16.mxu0 0
  %4270 = vmatmul.mubr.bf16.gmra.mrb[0].mxu0 %v4214
  %v4271 = vpop.f32.mrb[0].mxu0
  %v4272 = vadd.f32 %v4197, %v4271
  %v4273 = vpop.f32.mrb[0].mxu0
  %v4274 = vpop.f32.mrb[0].mxu0
  %v4275 = vadd.f32 %v4198, %v4274
  %v4276 = vpop.f32.mrb[0].mxu0
  %4277 = vmatprep.mubr.bf16.mxu0 0
  %4278 = vmatmul.mubr.bf16.gmra.mrb[0].mxu0 %v4217
  %v4279 = vpop.f32.mrb[0].mxu0
  %v4280 = vadd.f32 %v4199, %v4279
  %v4281 = vpop.f32.mrb[0].mxu0
  %v4282 = vpop.f32.mrb[0].mxu0
  %v4283 = vadd.f32 %v4200, %v4282
  %v4284 = vpop.f32.mrb[0].mxu0
  %4285 = vmatprep.mubr.bf16.mxu0 0
  %4286 = vmatmul.mubr.bf16.gmra.mrb[0].mxu0 %v4220
  %v4287 = vpop.f32.mrb[0].mxu0
  %v4288 = vadd.f32 %v4201, %v4287
  %v4289 = vpop.f32.mrb[0].mxu0
  %v4290 = vpop.f32.mrb[0].mxu0
  %v4291 = vadd.f32 %v4202, %v4290
  %v4292 = vpop.f32.mrb[0].mxu0
  %4293 = vmatprep.mubr.bf16.mxu0 0
  %4294 = vmatmul.mubr.bf16.gmra.mrb[0].mxu0 %v4223
  %v4295 = vpop.f32.mrb[0].mxu0
  %v4296 = vadd.f32 %v4203, %v4295
  %v4297 = vpop.f32.mrb[0].mxu0
  %v4298 = vpop.f32.mrb[0].mxu0
  %v4299 = vadd.f32 %v4204, %v4298
  %v4300 = vpop.f32.mrb[0].mxu0
  %4301 = vmatprep.mubr.bf16.mxu0 0
  %4302 = vmatmul.mubr.bf16.gmra.mrb[0].mxu0 %v4226
  %v4303 = vpop.f32.mrb[0].mxu0
  %v4304 = vadd.f32 %v4205, %v4303
  %v4305 = vpop.f32.mrb[0].mxu0
  %v4306 = vpop.f32.mrb[0].mxu0
  %v4307 = vadd.f32 %v4206, %v4306
  %v4308 = vpop.f32.mrb[0].mxu0
  %4309 = vmatprep.mubr.bf16.mxu0 0
  %4310 = vmatmul.mubr.bf16.gmra.mrb[0].mxu0 %v4229
  %v4311 = vpop.f32.mrb[0].mxu0
  %v4312 = vadd.f32 %v4207, %v4311
  %v4313 = vpop.f32.mrb[0].mxu0
  %v4314 = vpop.f32.mrb[0].mxu0
  %v4315 = vadd.f32 %v4208, %v4314
  %v4316 = vpop.f32.mrb[0].mxu0
  %4317 = vmatprep.mubr.bf16.mxu0 0
  %4318 = vmatmul.mubr.bf16.gmra.mrb[0].mxu0 %v4232
  %v4319 = vpop.f32.mrb[0].mxu0
  %v4320 = vadd.f32 %v4209, %v4319
  %v4321 = vpop.f32.mrb[0].mxu0
  %v4322 = vpop.f32.mrb[0].mxu0
  %v4323 = vadd.f32 %v4210, %v4322
  %v4324 = vpop.f32.mrb[0].mxu0
  %4325 = vmatprep.mubr.bf16.mxu0 0
  %4326 = vmatmul.mubr.bf16.gmra.mrb[0].mxu0 %v4235
  %v4327 = vpop.f32.mrb[0].mxu0
  %v4328 = vadd.f32 %v4211, %v4327
  %v4329 = vpop.f32.mrb[0].mxu0
  %v4330 = vpop.f32.mrb[0].mxu0
  %v4331 = vadd.f32 %v4212, %v4330
  %v4332 = vpop.f32.mrb[0].mxu0
  %4333 = vdwg.mxu0
  %4334 = vmax.xlane.f32.xlu0 %v4272
  %v4335 = vpop.xlane.xlu0 %4334
  %4336 = vmax.xlane.f32.xlu0 %v4275
  %v4337 = vpop.xlane.xlu0 %4336
  %4338 = vmax.xlane.f32.xlu0 %v4280
  %v4339 = vpop.xlane.xlu0 %4338
  %4340 = vmax.xlane.f32.xlu0 %v4283
  %v4341 = vpop.xlane.xlu0 %4340
  %4342 = vmax.xlane.f32.xlu0 %v4288
  %v4343 = vpop.xlane.xlu0 %4342
  %4344 = vmax.xlane.f32.xlu0 %v4291
  %v4345 = vpop.xlane.xlu0 %4344
  %4346 = vmax.xlane.f32.xlu0 %v4296
  %v4347 = vpop.xlane.xlu0 %4346
  %4348 = vmax.xlane.f32.xlu0 %v4299
  %v4349 = vpop.xlane.xlu0 %4348
  %4350 = vmax.xlane.f32.xlu0 %v4304
  %v4351 = vpop.xlane.xlu0 %4350
  %4352 = vmax.xlane.f32.xlu0 %v4307
  %v4353 = vpop.xlane.xlu0 %4352
  %4354 = vmax.xlane.f32.xlu0 %v4312
  %v4355 = vpop.xlane.xlu0 %4354
  %4356 = vmax.xlane.f32.xlu0 %v4315
  %v4357 = vpop.xlane.xlu0 %4356
  %4358 = vmax.xlane.f32.xlu0 %v4320
  %v4359 = vpop.xlane.xlu0 %4358
  %4360 = vmax.xlane.f32.xlu0 %v4323
  %v4361 = vpop.xlane.xlu0 %4360
  %4362 = vmax.xlane.f32.xlu0 %v4328
  %v4363 = vpop.xlane.xlu0 %4362
  %4364 = vmax.xlane.f32.xlu0 %v4331
  %v4365 = vpop.xlane.xlu0 %4364
  %v4366 = vsub.f32 %v4272, %v4335
  %v4367 = vsub.f32 %v4275, %v4337
  %v4368 = vsub.f32 %v4280, %v4339
  %v4369 = vsub.f32 %v4283, %v4341
  %v4370 = vsub.f32 %v4288, %v4343
  %v4371 = vsub.f32 %v4291, %v4345
  %v4372 = vsub.f32 %v4296, %v4347
  %v4373 = vsub.f32 %v4299, %v4349
  %v4374 = vsub.f32 %v4304, %v4351
  %v4375 = vsub.f32 %v4307, %v4353
  %v4376 = vsub.f32 %v4312, %v4355
  %v4377 = vsub.f32 %v4315, %v4357
  %v4378 = vsub.f32 %v4320, %v4359
  %v4379 = vsub.f32 %v4323, %v4361
  %v4380 = vsub.f32 %v4328, %v4363
  %v4381 = vsub.f32 %v4331, %v4365
  %v4382 = vmul.f32 %v4366, 1.442695
  %v4383 = vpow.pop %v4382
  %v4384 = vmul.f32 %v4367, 1.442695
  %v4385 = vpow.pop %v4384
  %v4386 = vmul.f32 %v4368, 1.442695
  %v4387 = vpow.pop %v4386
  %v4388 = vmul.f32 %v4369, 1.442695
  %v4389 = vpow.pop %v4388
  %v4390 = vmul.f32 %v4370, 1.442695
  %v4391 = vpow.pop %v4390
  %v4392 = vmul.f32 %v4371, 1.442695
  %v4393 = vpow.pop %v4392
  %v4394 = vmul.f32 %v4372, 1.442695
  %v4395 = vpow.pop %v4394
  %v4396 = vmul.f32 %v4373, 1.442695
  %v4397 = vpow.pop %v4396
  %v4398 = vmul.f32 %v4374, 1.442695
  %v4399 = vpow.pop %v4398
  %v4400 = vmul.f32 %v4375, 1.442695
  %v4401 = vpow.pop %v4400
  %v4402 = vmul.f32 %v4376, 1.442695
  %v4403 = vpow.pop %v4402
  %v4404 = vmul.f32 %v4377, 1.442695
  %v4405 = vpow.pop %v4404
  %v4406 = vmul.f32 %v4378, 1.442695
  %v4407 = vpow.pop %v4406
  %v4408 = vmul.f32 %v4379, 1.442695
  %v4409 = vpow.pop %v4408
  %v4410 = vmul.f32 %v4380, 1.442695
  %v4411 = vpow.pop %v4410
  %v4412 = vmul.f32 %v4381, 1.442695
  %v4413 = vpow.pop %v4412
  %4414 = vadd.xlane.f32.xlu0 %v4383
  %v4415 = vpop.xlane.xlu0 %4414
  %4416 = vadd.xlane.f32.xlu0 %v4385
  %v4417 = vpop.xlane.xlu0 %4416
  %4418 = vadd.xlane.f32.xlu0 %v4387
  %v4419 = vpop.xlane.xlu0 %4418
  %4420 = vadd.xlane.f32.xlu0 %v4389
  %v4421 = vpop.xlane.xlu0 %4420
  %4422 = vadd.xlane.f32.xlu0 %v4391
  %v4423 = vpop.xlane.xlu0 %4422
  %4424 = vadd.xlane.f32.xlu0 %v4393
  %v4425 = vpop.xlane.xlu0 %4424
  %4426 = vadd.xlane.f32.xlu0 %v4395
  %v4427 = vpop.xlane.xlu0 %4426
  %4428 = vadd.xlane.f32.xlu0 %v4397
  %v4429 = vpop.xlane.xlu0 %4428
  %4430 = vadd.xlane.f32.xlu0 %v4399
  %v4431 = vpop.xlane.xlu0 %4430
  %4432 = vadd.xlane.f32.xlu0 %v4401
  %v4433 = vpop.xlane.xlu0 %4432
  %4434 = vadd.xlane.f32.xlu0 %v4403
  %v4435 = vpop.xlane.xlu0 %4434
  %4436 = vadd.xlane.f32.xlu0 %v4405
  %v4437 = vpop.xlane.xlu0 %4436
  %4438 = vadd.xlane.f32.xlu0 %v4407
  %v4439 = vpop.xlane.xlu0 %4438
  %4440 = vadd.xlane.f32.xlu0 %v4409
  %v4441 = vpop.xlane.xlu0 %4440
  %4442 = vadd.xlane.f32.xlu0 %v4411
  %v4443 = vpop.xlane.xlu0 %4442
  %4444 = vadd.xlane.f32.xlu0 %v4413
  %v4445 = vpop.xlane.xlu0 %4444
  %v4446 = vrcp.pop %v4415
  %v4447 = vrcp.pop %v4417
  %v4448 = vrcp.pop %v4419
  %v4449 = vrcp.pop %v4421
  %v4450 = vrcp.pop %v4423
  %v4451 = vrcp.pop %v4425
  %v4452 = vrcp.pop %v4427
  %v4453 = vrcp.pop %v4429
  %v4454 = vrcp.pop %v4431
  %v4455 = vrcp.pop %v4433
  %v4456 = vrcp.pop %v4435
  %v4457 = vrcp.pop %v4437
  %v4458 = vrcp.pop %v4439
  %v4459 = vrcp.pop %v4441
  %v4460 = vrcp.pop %v4443
  %v4461 = vrcp.pop %v4445
  %v4462 = vmul.f32 %v4383, %v4446
  %v4463 = vmul.f32 %v4385, %v4447
  %v4464 = vmul.f32 %v4387, %v4448
  %v4465 = vmul.f32 %v4389, %v4449
  %v4466 = vmul.f32 %v4391, %v4450
  %v4467 = vmul.f32 %v4393, %v4451
  %v4468 = vmul.f32 %v4395, %v4452
  %v4469 = vmul.f32 %v4397, %v4453
  %v4470 = vmul.f32 %v4399, %v4454
  %v4471 = vmul.f32 %v4401, %v4455
  %v4472 = vmul.f32 %v4403, %v4456
  %v4473 = vmul.f32 %v4405, %v4457
  %v4474 = vmul.f32 %v4407, %v4458
  %v4475 = vmul.f32 %v4409, %v4459
  %v4476 = vmul.f32 %v4411, %v4460
  %v4477 = vmul.f32 %v4413, %v4461
  %v4478 = vmul.f32 %v3658, %v331
  %v4479 = vmul.f32 %v3662, %v331
  %v4480 = vmul.f32 %v3668, %v331
  %v4481 = vmul.f32 %v3672, %v331
  %v4482 = vmul.f32 %v3678, %v331
  %v4483 = vmul.f32 %v3682, %v331
  %v4484 = vmul.f32 %v3688, %v331
  %v4485 = vmul.f32 %v3692, %v331
  %v4486 = vmul.f32 %v3698, %v331
  %v4487 = vmul.f32 %v3702, %v331
  %v4488 = vmul.f32 %v3708, %v331
  %v4489 = vmul.f32 %v3712, %v331
  %v4490 = vmul.f32 %v3718, %v331
  %v4491 = vmul.f32 %v3722, %v331
  %v4492 = vmul.f32 %v3728, %v331
  %v4493 = vmul.f32 %v3732, %v331
  %v4494 = vpack.c.bf16 %v4479, %v4478
  %v4495 = vpack.c.bf16 %v4481, %v4480
  %v4496 = vpack.c.bf16 %v4483, %v4482
  %v4497 = vpack.c.bf16 %v4485, %v4484
  %v4498 = vpack.c.bf16 %v4487, %v4486
  %v4499 = vpack.c.bf16 %v4489, %v4488
  %v4500 = vpack.c.bf16 %v4491, %v4490
  %v4501 = vpack.c.bf16 %v4493, %v4492
  %v4502 = vpack.c.bf16 %v4463, %v4462
  %v4503 = vpack.c.bf16 %v4465, %v4464
  %v4504 = vpack.c.bf16 %v4467, %v4466
  %v4505 = vpack.c.bf16 %v4469, %v4468
  %v4506 = vpack.c.bf16 %v4471, %v4470
  %v4507 = vpack.c.bf16 %v4473, %v4472
  %v4508 = vpack.c.bf16 %v4475, %v4474
  %v4509 = vpack.c.bf16 %v4477, %v4476
  %4510 = vmatprep.subr.bf16.mxu0 0
  %4511 = vmatpush1.bf16.msra.mxu0 %v4494
  %4512 = vmatprep.subr.bf16.mxu0 0
  %4513 = vmatpush1.bf16.msra.mxu0 %v4495
  %4514 = vmatprep.subr.bf16.mxu0 0
  %4515 = vmatpush1.bf16.msra.mxu0 %v4496
  %4516 = vmatprep.subr.bf16.mxu0 0
  %4517 = vmatpush1.bf16.msra.mxu0 %v4497
  %4518 = vmatprep.subr.bf16.mxu0 0
  %4519 = vmatpush1.bf16.msra.mxu0 %v4498
  %4520 = vmatprep.subr.bf16.mxu0 0
  %4521 = vmatpush1.bf16.msra.mxu0 %v4499
  %4522 = vmatprep.subr.bf16.mxu0 0
  %4523 = vmatpush1.bf16.msra.mxu0 %v4500
  %4524 = vmatprep.subr.bf16.mxu0 0
  %4525 = vmatpush1.bf16.msra.mxu0 %v4501
  %4526 = vmatprep.subr.bf16.mxu0 0
  %4527 = vmatpush1.bf16.msra.mxu0 0
  %4528 = vmatprep.subr.bf16.mxu0 0
  %4529 = vmatpush1.bf16.msra.mxu0 0
  %4530 = vmatprep.subr.bf16.mxu0 0
  %4531 = vmatpush1.bf16.msra.mxu0 0
  %4532 = vmatprep.subr.bf16.mxu0 0
  %4533 = vmatpush1.bf16.msra.mxu0 0
  %4534 = vmatprep.subr.bf16.mxu0 0
  %4535 = vmatpush1.bf16.msra.mxu0 0
  %4536 = vmatprep.subr.bf16.mxu0 0
  %4537 = vmatpush1.bf16.msra.mxu0 0
  %4538 = vmatprep.subr.bf16.mxu0 0
  %4539 = vmatpush1.bf16.msra.mxu0 0
  %4540 = vmatprep.subr.bf16.mxu0 0
  %4541 = vmatpush1.bf16.msra.mxu0 0
  %4542 = vmatprep.mubr.bf16.mxu0 0
  %4543 = vmatmul.mubr.bf16.gmra.mrb[0].mxu0 %v4502
  %v4544 = vpop.f32.mrb[0].mxu0
  %v4545 = vadd.f32 0.0, %v4544
  %v4546 = vpop.f32.mrb[0].mxu0
  %v4547 = vpop.f32.mrb[0].mxu0
  %v4548 = vadd.f32 0.0, %v4547
  %v4549 = vpop.f32.mrb[0].mxu0
  %4550 = vmatprep.mubr.bf16.mxu0 0
  %4551 = vmatmul.mubr.bf16.gmra.mrb[0].mxu0 %v4503
  %v4552 = vpop.f32.mrb[0].mxu0
  %v4553 = vadd.f32 0.0, %v4552
  %v4554 = vpop.f32.mrb[0].mxu0
  %v4555 = vpop.f32.mrb[0].mxu0
  %v4556 = vadd.f32 0.0, %v4555
  %v4557 = vpop.f32.mrb[0].mxu0
  %4558 = vmatprep.mubr.bf16.mxu0 0
  %4559 = vmatmul.mubr.bf16.gmra.mrb[0].mxu0 %v4504
  %v4560 = vpop.f32.mrb[0].mxu0
  %v4561 = vadd.f32 0.0, %v4560
  %v4562 = vpop.f32.mrb[0].mxu0
  %v4563 = vpop.f32.mrb[0].mxu0
  %v4564 = vadd.f32 0.0, %v4563
  %v4565 = vpop.f32.mrb[0].mxu0
  %4566 = vmatprep.mubr.bf16.mxu0 0
  %4567 = vmatmul.mubr.bf16.gmra.mrb[0].mxu0 %v4505
  %v4568 = vpop.f32.mrb[0].mxu0
  %v4569 = vadd.f32 0.0, %v4568
  %v4570 = vpop.f32.mrb[0].mxu0
  %v4571 = vpop.f32.mrb[0].mxu0
  %v4572 = vadd.f32 0.0, %v4571
  %v4573 = vpop.f32.mrb[0].mxu0
  %4574 = vmatprep.mubr.bf16.mxu0 0
  %4575 = vmatmul.mubr.bf16.gmra.mrb[0].mxu0 %v4506
  %v4576 = vpop.f32.mrb[0].mxu0
  %v4577 = vadd.f32 0.0, %v4576
  %v4578 = vpop.f32.mrb[0].mxu0
  %v4579 = vpop.f32.mrb[0].mxu0
  %v4580 = vadd.f32 0.0, %v4579
  %v4581 = vpop.f32.mrb[0].mxu0
  %4582 = vmatprep.mubr.bf16.mxu0 0
  %4583 = vmatmul.mubr.bf16.gmra.mrb[0].mxu0 %v4507
  %v4584 = vpop.f32.mrb[0].mxu0
  %v4585 = vadd.f32 0.0, %v4584
  %v4586 = vpop.f32.mrb[0].mxu0
  %v4587 = vpop.f32.mrb[0].mxu0
  %v4588 = vadd.f32 0.0, %v4587
  %v4589 = vpop.f32.mrb[0].mxu0
  %4590 = vmatprep.mubr.bf16.mxu0 0
  %4591 = vmatmul.mubr.bf16.gmra.mrb[0].mxu0 %v4508
  %v4592 = vpop.f32.mrb[0].mxu0
  %v4593 = vadd.f32 0.0, %v4592
  %v4594 = vpop.f32.mrb[0].mxu0
  %v4595 = vpop.f32.mrb[0].mxu0
  %v4596 = vadd.f32 0.0, %v4595
  %v4597 = vpop.f32.mrb[0].mxu0
  %4598 = vmatprep.mubr.bf16.mxu0 0
  %4599 = vmatmul.mubr.bf16.gmra.mrb[0].mxu0 %v4509
  %v4600 = vpop.f32.mrb[0].mxu0
  %v4601 = vadd.f32 0.0, %v4600
  %v4602 = vpop.f32.mrb[0].mxu0
  %v4603 = vpop.f32.mrb[0].mxu0
  %v4604 = vadd.f32 0.0, %v4603
  %v4605 = vpop.f32.mrb[0].mxu0
  %4606 = vdwg.mxu0
  %4607 = vmatprep.subr.bf16.mxu0 0
  %4608 = vmatpush1.bf16.msra.mxu0 %v4156
  %4609 = vmatprep.subr.bf16.mxu0 0
  %4610 = vmatpush1.bf16.msra.mxu0 %v4157
  %4611 = vmatprep.subr.bf16.mxu0 0
  %4612 = vmatpush1.bf16.msra.mxu0 %v4158
  %4613 = vmatprep.subr.bf16.mxu0 0
  %4614 = vmatpush1.bf16.msra.mxu0 %v4159
  %4615 = vmatprep.subr.bf16.mxu0 0
  %4616 = vmatpush1.bf16.msra.mxu0 %v4160
  %4617 = vmatprep.subr.bf16.mxu0 0
  %4618 = vmatpush1.bf16.msra.mxu0 %v4161
  %4619 = vmatprep.subr.bf16.mxu0 0
  %4620 = vmatpush1.bf16.msra.mxu0 %v4162
  %4621 = vmatprep.subr.bf16.mxu0 0
  %4622 = vmatpush1.bf16.msra.mxu0 %v4163
  %4623 = vmatprep.subr.bf16.mxu0 0
  %4624 = vmatpush1.bf16.msra.mxu0 0
  %4625 = vmatprep.subr.bf16.mxu0 0
  %4626 = vmatpush1.bf16.msra.mxu0 0
  %4627 = vmatprep.subr.bf16.mxu0 0
  %4628 = vmatpush1.bf16.msra.mxu0 0
  %4629 = vmatprep.subr.bf16.mxu0 0
  %4630 = vmatpush1.bf16.msra.mxu0 0
  %4631 = vmatprep.subr.bf16.mxu0 0
  %4632 = vmatpush1.bf16.msra.mxu0 0
  %4633 = vmatprep.subr.bf16.mxu0 0
  %4634 = vmatpush1.bf16.msra.mxu0 0
  %4635 = vmatprep.subr.bf16.mxu0 0
  %4636 = vmatpush1.bf16.msra.mxu0 0
  %4637 = vmatprep.subr.bf16.mxu0 0
  %4638 = vmatpush1.bf16.msra.mxu0 0
  %4639 = vmatprep.mubr.bf16.mxu0 0
  %4640 = vmatmul.mubr.bf16.gmra.mrb[0].mxu0 %v4164
  %v4641 = vpop.f32.mrb[0].mxu0
  %v4642 = vadd.f32 %v4545, %v4641
  %v4643 = vpop.f32.mrb[0].mxu0
  %v4644 = vpop.f32.mrb[0].mxu0
  %v4645 = vadd.f32 %v4548, %v4644
  %v4646 = vpop.f32.mrb[0].mxu0
  %4647 = vmatprep.mubr.bf16.mxu0 0
  %4648 = vmatmul.mubr.bf16.gmra.mrb[0].mxu0 %v4165
  %v4649 = vpop.f32.mrb[0].mxu0
  %v4650 = vadd.f32 %v4553, %v4649
  %v4651 = vpop.f32.mrb[0].mxu0
  %v4652 = vpop.f32.mrb[0].mxu0
  %v4653 = vadd.f32 %v4556, %v4652
  %v4654 = vpop.f32.mrb[0].mxu0
  %4655 = vmatprep.mubr.bf16.mxu0 0
  %4656 = vmatmul.mubr.bf16.gmra.mrb[0].mxu0 %v4166
  %v4657 = vpop.f32.mrb[0].mxu0
  %v4658 = vadd.f32 %v4561, %v4657
  %v4659 = vpop.f32.mrb[0].mxu0
  %v4660 = vpop.f32.mrb[0].mxu0
  %v4661 = vadd.f32 %v4564, %v4660
  %v4662 = vpop.f32.mrb[0].mxu0
  %4663 = vmatprep.mubr.bf16.mxu0 0
  %4664 = vmatmul.mubr.bf16.gmra.mrb[0].mxu0 %v4167
  %v4665 = vpop.f32.mrb[0].mxu0
  %v4666 = vadd.f32 %v4569, %v4665
  %v4667 = vpop.f32.mrb[0].mxu0
  %v4668 = vpop.f32.mrb[0].mxu0
  %v4669 = vadd.f32 %v4572, %v4668
  %v4670 = vpop.f32.mrb[0].mxu0
  %4671 = vmatprep.mubr.bf16.mxu0 0
  %4672 = vmatmul.mubr.bf16.gmra.mrb[0].mxu0 %v4168
  %v4673 = vpop.f32.mrb[0].mxu0
  %v4674 = vadd.f32 %v4577, %v4673
  %v4675 = vpop.f32.mrb[0].mxu0
  %v4676 = vpop.f32.mrb[0].mxu0
  %v4677 = vadd.f32 %v4580, %v4676
  %v4678 = vpop.f32.mrb[0].mxu0
  %4679 = vmatprep.mubr.bf16.mxu0 0
  %4680 = vmatmul.mubr.bf16.gmra.mrb[0].mxu0 %v4169
  %v4681 = vpop.f32.mrb[0].mxu0
  %v4682 = vadd.f32 %v4585, %v4681
  %v4683 = vpop.f32.mrb[0].mxu0
  %v4684 = vpop.f32.mrb[0].mxu0
  %v4685 = vadd.f32 %v4588, %v4684
  %v4686 = vpop.f32.mrb[0].mxu0
  %4687 = vmatprep.mubr.bf16.mxu0 0
  %4688 = vmatmul.mubr.bf16.gmra.mrb[0].mxu0 %v4170
  %v4689 = vpop.f32.mrb[0].mxu0
  %v4690 = vadd.f32 %v4593, %v4689
  %v4691 = vpop.f32.mrb[0].mxu0
  %v4692 = vpop.f32.mrb[0].mxu0
  %v4693 = vadd.f32 %v4596, %v4692
  %v4694 = vpop.f32.mrb[0].mxu0
  %4695 = vmatprep.mubr.bf16.mxu0 0
  %4696 = vmatmul.mubr.bf16.gmra.mrb[0].mxu0 %v4171
  %v4697 = vpop.f32.mrb[0].mxu0
  %v4698 = vadd.f32 %v4601, %v4697
  %v4699 = vpop.f32.mrb[0].mxu0
  %v4700 = vpop.f32.mrb[0].mxu0
  %v4701 = vadd.f32 %v4604, %v4700
  %v4702 = vpop.f32.mrb[0].mxu0
  %4703 = vdwg.mxu0
  %v4704 = vmul.f32 %v3656, %v336
  %v4705 = vmul.f32 %v3660, %v336
  %v4706 = vmul.f32 %v3666, %v336
  %v4707 = vmul.f32 %v3670, %v336
  %v4708 = vmul.f32 %v3676, %v336
  %v4709 = vmul.f32 %v3680, %v336
  %v4710 = vmul.f32 %v3686, %v336
  %v4711 = vmul.f32 %v3690, %v336
  %v4712 = vmul.f32 %v3696, %v336
  %v4713 = vmul.f32 %v3700, %v336
  %v4714 = vmul.f32 %v3706, %v336
  %v4715 = vmul.f32 %v3710, %v336
  %v4716 = vmul.f32 %v3716, %v336
  %v4717 = vmul.f32 %v3720, %v336
  %v4718 = vmul.f32 %v3726, %v336
  %v4719 = vmul.f32 %v3730, %v336
  %v4720 = vpack.c.bf16 %v4705, %v4704
  %v4721 = vpack.c.bf16 %v4707, %v4706
  %v4722 = vpack.c.bf16 %v4709, %v4708
  %v4723 = vpack.c.bf16 %v4711, %v4710
  %v4724 = vpack.c.bf16 %v4713, %v4712
  %v4725 = vpack.c.bf16 %v4715, %v4714
  %v4726 = vpack.c.bf16 %v4717, %v4716
  %v4727 = vpack.c.bf16 %v4719, %v4718
  %s4728 = scalar_lea.vmem %s8, 768
  %v4729 = vld [vmem:[%s4728] sm:$0xff]
  %v4730 = vld [vmem:[%s4728 + $0x8] sm:$0xff]
  %v4731 = vld [vmem:[%s4728 + $0x10] sm:$0xff]
  %v4732 = vld [vmem:[%s4728 + $0x18] sm:$0xff]
  %v4733 = vld [vmem:[%s4728 + $0x20] sm:$0xff]
  %v4734 = vld [vmem:[%s4728 + $0x28] sm:$0xff]
  %v4735 = vld [vmem:[%s4728 + $0x30] sm:$0xff]
  %v4736 = vld [vmem:[%s4728 + $0x38] sm:$0xff]
  %v4737 = vld [vmem:[%s4728 + $0x40] sm:$0xff]
  %v4738 = vld [vmem:[%s4728 + $0x48] sm:$0xff]
  %v4739 = vld [vmem:[%s4728 + $0x50] sm:$0xff]
  %v4740 = vld [vmem:[%s4728 + $0x58] sm:$0xff]
  %v4741 = vld [vmem:[%s4728 + $0x60] sm:$0xff]
  %v4742 = vld [vmem:[%s4728 + $0x68] sm:$0xff]
  %v4743 = vld [vmem:[%s4728 + $0x70] sm:$0xff]
  %v4744 = vld [vmem:[%s4728 + $0x78] sm:$0xff]
  %v4746 = vsel %vm408, %v4720, 0
  %v4749 = vsel %vm408, %v4721, 0
  %v4752 = vsel %vm408, %v4722, 0
  %v4755 = vsel %vm408, %v4723, 0
  %v4758 = vsel %vm408, %v4724, 0
  %v4761 = vsel %vm408, %v4725, 0
  %v4764 = vsel %vm408, %v4726, 0
  %v4767 = vsel %vm408, %v4727, 0
  %4769 = vmatprep.subr.bf16.mxu0 0
  %4770 = vmatpush1.bf16.msra.mxu0 %v3830
  %4771 = vmatprep.subr.bf16.mxu0 0
  %4772 = vmatpush1.bf16.msra.mxu0 %v3831
  %4773 = vmatprep.subr.bf16.mxu0 0
  %4774 = vmatpush1.bf16.msra.mxu0 %v3832
  %4775 = vmatprep.subr.bf16.mxu0 0
  %4776 = vmatpush1.bf16.msra.mxu0 %v3833
  %4777 = vmatprep.subr.bf16.mxu0 0
  %4778 = vmatpush1.bf16.msra.mxu0 0
  %4779 = vmatprep.subr.bf16.mxu0 0
  %4780 = vmatpush1.bf16.msra.mxu0 0
  %4781 = vmatprep.subr.bf16.mxu0 0
  %4782 = vmatpush1.bf16.msra.mxu0 0
  %4783 = vmatprep.subr.bf16.mxu0 0
  %4784 = vmatpush1.bf16.msra.mxu0 0
  %4785 = vmatprep.subr.bf16.mxu0 0
  %4786 = vmatpush1.bf16.msra.mxu0 0
  %4787 = vmatprep.subr.bf16.mxu0 0
  %4788 = vmatpush1.bf16.msra.mxu0 0
  %4789 = vmatprep.subr.bf16.mxu0 0
  %4790 = vmatpush1.bf16.msra.mxu0 0
  %4791 = vmatprep.subr.bf16.mxu0 0
  %4792 = vmatpush1.bf16.msra.mxu0 0
  %4793 = vmatprep.subr.bf16.mxu0 0
  %4794 = vmatpush1.bf16.msra.mxu0 0
  %4795 = vmatprep.subr.bf16.mxu0 0
  %4796 = vmatpush1.bf16.msra.mxu0 0
  %4797 = vmatprep.subr.bf16.mxu0 0
  %4798 = vmatpush1.bf16.msra.mxu0 0
  %4799 = vmatprep.subr.bf16.mxu0 0
  %4800 = vmatpush1.bf16.msra.mxu0 0
  %4801 = vmatprep.mubr.bf16.mxu0 0
  %4802 = vmatmul.mubr.bf16.gmra.mrb[0].mxu0 %v4746
  %v4803 = vpop.f32.mrb[0].mxu0
  %v4804 = vadd.f32 %v4729, %v4803
  %v4805 = vpop.f32.mrb[0].mxu0
  %v4806 = vpop.f32.mrb[0].mxu0
  %v4807 = vadd.f32 %v4730, %v4806
  %v4808 = vpop.f32.mrb[0].mxu0
  %4809 = vmatprep.mubr.bf16.mxu0 0
  %4810 = vmatmul.mubr.bf16.gmra.mrb[0].mxu0 %v4749
  %v4811 = vpop.f32.mrb[0].mxu0
  %v4812 = vadd.f32 %v4731, %v4811
  %v4813 = vpop.f32.mrb[0].mxu0
  %v4814 = vpop.f32.mrb[0].mxu0
  %v4815 = vadd.f32 %v4732, %v4814
  %v4816 = vpop.f32.mrb[0].mxu0
  %4817 = vmatprep.mubr.bf16.mxu0 0
  %4818 = vmatmul.mubr.bf16.gmra.mrb[0].mxu0 %v4752
  %v4819 = vpop.f32.mrb[0].mxu0
  %v4820 = vadd.f32 %v4733, %v4819
  %v4821 = vpop.f32.mrb[0].mxu0
  %v4822 = vpop.f32.mrb[0].mxu0
  %v4823 = vadd.f32 %v4734, %v4822
  %v4824 = vpop.f32.mrb[0].mxu0
  %4825 = vmatprep.mubr.bf16.mxu0 0
  %4826 = vmatmul.mubr.bf16.gmra.mrb[0].mxu0 %v4755
  %v4827 = vpop.f32.mrb[0].mxu0
  %v4828 = vadd.f32 %v4735, %v4827
  %v4829 = vpop.f32.mrb[0].mxu0
  %v4830 = vpop.f32.mrb[0].mxu0
  %v4831 = vadd.f32 %v4736, %v4830
  %v4832 = vpop.f32.mrb[0].mxu0
  %4833 = vmatprep.mubr.bf16.mxu0 0
  %4834 = vmatmul.mubr.bf16.gmra.mrb[0].mxu0 %v4758
  %v4835 = vpop.f32.mrb[0].mxu0
  %v4836 = vadd.f32 %v4737, %v4835
  %v4837 = vpop.f32.mrb[0].mxu0
  %v4838 = vpop.f32.mrb[0].mxu0
  %v4839 = vadd.f32 %v4738, %v4838
  %v4840 = vpop.f32.mrb[0].mxu0
  %4841 = vmatprep.mubr.bf16.mxu0 0
  %4842 = vmatmul.mubr.bf16.gmra.mrb[0].mxu0 %v4761
  %v4843 = vpop.f32.mrb[0].mxu0
  %v4844 = vadd.f32 %v4739, %v4843
  %v4845 = vpop.f32.mrb[0].mxu0
  %v4846 = vpop.f32.mrb[0].mxu0
  %v4847 = vadd.f32 %v4740, %v4846
  %v4848 = vpop.f32.mrb[0].mxu0
  %4849 = vmatprep.mubr.bf16.mxu0 0
  %4850 = vmatmul.mubr.bf16.gmra.mrb[0].mxu0 %v4764
  %v4851 = vpop.f32.mrb[0].mxu0
  %v4852 = vadd.f32 %v4741, %v4851
  %v4853 = vpop.f32.mrb[0].mxu0
  %v4854 = vpop.f32.mrb[0].mxu0
  %v4855 = vadd.f32 %v4742, %v4854
  %v4856 = vpop.f32.mrb[0].mxu0
  %4857 = vmatprep.mubr.bf16.mxu0 0
  %4858 = vmatmul.mubr.bf16.gmra.mrb[0].mxu0 %v4767
  %v4859 = vpop.f32.mrb[0].mxu0
  %v4860 = vadd.f32 %v4743, %v4859
  %v4861 = vpop.f32.mrb[0].mxu0
  %v4862 = vpop.f32.mrb[0].mxu0
  %v4863 = vadd.f32 %v4744, %v4862
  %v4864 = vpop.f32.mrb[0].mxu0
  %4865 = vdwg.mxu0
  %4866 = vmax.xlane.f32.xlu0 %v4804
  %v4867 = vpop.xlane.xlu0 %4866
  %4868 = vmax.xlane.f32.xlu0 %v4807
  %v4869 = vpop.xlane.xlu0 %4868
  %4870 = vmax.xlane.f32.xlu0 %v4812
  %v4871 = vpop.xlane.xlu0 %4870
  %4872 = vmax.xlane.f32.xlu0 %v4815
  %v4873 = vpop.xlane.xlu0 %4872
  %4874 = vmax.xlane.f32.xlu0 %v4820
  %v4875 = vpop.xlane.xlu0 %4874
  %4876 = vmax.xlane.f32.xlu0 %v4823
  %v4877 = vpop.xlane.xlu0 %4876
  %4878 = vmax.xlane.f32.xlu0 %v4828
  %v4879 = vpop.xlane.xlu0 %4878
  %4880 = vmax.xlane.f32.xlu0 %v4831
  %v4881 = vpop.xlane.xlu0 %4880
  %4882 = vmax.xlane.f32.xlu0 %v4836
  %v4883 = vpop.xlane.xlu0 %4882
  %4884 = vmax.xlane.f32.xlu0 %v4839
  %v4885 = vpop.xlane.xlu0 %4884
  %4886 = vmax.xlane.f32.xlu0 %v4844
  %v4887 = vpop.xlane.xlu0 %4886
  %4888 = vmax.xlane.f32.xlu0 %v4847
  %v4889 = vpop.xlane.xlu0 %4888
  %4890 = vmax.xlane.f32.xlu0 %v4852
  %v4891 = vpop.xlane.xlu0 %4890
  %4892 = vmax.xlane.f32.xlu0 %v4855
  %v4893 = vpop.xlane.xlu0 %4892
  %4894 = vmax.xlane.f32.xlu0 %v4860
  %v4895 = vpop.xlane.xlu0 %4894
  %4896 = vmax.xlane.f32.xlu0 %v4863
  %v4897 = vpop.xlane.xlu0 %4896
  %v4898 = vsub.f32 %v4804, %v4867
  %v4899 = vsub.f32 %v4807, %v4869
  %v4900 = vsub.f32 %v4812, %v4871
  %v4901 = vsub.f32 %v4815, %v4873
  %v4902 = vsub.f32 %v4820, %v4875
  %v4903 = vsub.f32 %v4823, %v4877
  %v4904 = vsub.f32 %v4828, %v4879
  %v4905 = vsub.f32 %v4831, %v4881
  %v4906 = vsub.f32 %v4836, %v4883
  %v4907 = vsub.f32 %v4839, %v4885
  %v4908 = vsub.f32 %v4844, %v4887
  %v4909 = vsub.f32 %v4847, %v4889
  %v4910 = vsub.f32 %v4852, %v4891
  %v4911 = vsub.f32 %v4855, %v4893
  %v4912 = vsub.f32 %v4860, %v4895
  %v4913 = vsub.f32 %v4863, %v4897
  %v4914 = vmul.f32 %v4898, 1.442695
  %v4915 = vpow.pop %v4914
  %v4916 = vmul.f32 %v4899, 1.442695
  %v4917 = vpow.pop %v4916
  %v4918 = vmul.f32 %v4900, 1.442695
  %v4919 = vpow.pop %v4918
  %v4920 = vmul.f32 %v4901, 1.442695
  %v4921 = vpow.pop %v4920
  %v4922 = vmul.f32 %v4902, 1.442695
  %v4923 = vpow.pop %v4922
  %v4924 = vmul.f32 %v4903, 1.442695
  %v4925 = vpow.pop %v4924
  %v4926 = vmul.f32 %v4904, 1.442695
  %v4927 = vpow.pop %v4926
  %v4928 = vmul.f32 %v4905, 1.442695
  %v4929 = vpow.pop %v4928
  %v4930 = vmul.f32 %v4906, 1.442695
  %v4931 = vpow.pop %v4930
  %v4932 = vmul.f32 %v4907, 1.442695
  %v4933 = vpow.pop %v4932
  %v4934 = vmul.f32 %v4908, 1.442695
  %v4935 = vpow.pop %v4934
  %v4936 = vmul.f32 %v4909, 1.442695
  %v4937 = vpow.pop %v4936
  %v4938 = vmul.f32 %v4910, 1.442695
  %v4939 = vpow.pop %v4938
  %v4940 = vmul.f32 %v4911, 1.442695
  %v4941 = vpow.pop %v4940
  %v4942 = vmul.f32 %v4912, 1.442695
  %v4943 = vpow.pop %v4942
  %v4944 = vmul.f32 %v4913, 1.442695
  %v4945 = vpow.pop %v4944
  %4946 = vadd.xlane.f32.xlu0 %v4915
  %v4947 = vpop.xlane.xlu0 %4946
  %4948 = vadd.xlane.f32.xlu0 %v4917
  %v4949 = vpop.xlane.xlu0 %4948
  %4950 = vadd.xlane.f32.xlu0 %v4919
  %v4951 = vpop.xlane.xlu0 %4950
  %4952 = vadd.xlane.f32.xlu0 %v4921
  %v4953 = vpop.xlane.xlu0 %4952
  %4954 = vadd.xlane.f32.xlu0 %v4923
  %v4955 = vpop.xlane.xlu0 %4954
  %4956 = vadd.xlane.f32.xlu0 %v4925
  %v4957 = vpop.xlane.xlu0 %4956
  %4958 = vadd.xlane.f32.xlu0 %v4927
  %v4959 = vpop.xlane.xlu0 %4958
  %4960 = vadd.xlane.f32.xlu0 %v4929
  %v4961 = vpop.xlane.xlu0 %4960
  %4962 = vadd.xlane.f32.xlu0 %v4931
  %v4963 = vpop.xlane.xlu0 %4962
  %4964 = vadd.xlane.f32.xlu0 %v4933
  %v4965 = vpop.xlane.xlu0 %4964
  %4966 = vadd.xlane.f32.xlu0 %v4935
  %v4967 = vpop.xlane.xlu0 %4966
  %4968 = vadd.xlane.f32.xlu0 %v4937
  %v4969 = vpop.xlane.xlu0 %4968
  %4970 = vadd.xlane.f32.xlu0 %v4939
  %v4971 = vpop.xlane.xlu0 %4970
  %4972 = vadd.xlane.f32.xlu0 %v4941
  %v4973 = vpop.xlane.xlu0 %4972
  %4974 = vadd.xlane.f32.xlu0 %v4943
  %v4975 = vpop.xlane.xlu0 %4974
  %4976 = vadd.xlane.f32.xlu0 %v4945
  %v4977 = vpop.xlane.xlu0 %4976
  %v4978 = vrcp.pop %v4947
  %v4979 = vrcp.pop %v4949
  %v4980 = vrcp.pop %v4951
  %v4981 = vrcp.pop %v4953
  %v4982 = vrcp.pop %v4955
  %v4983 = vrcp.pop %v4957
  %v4984 = vrcp.pop %v4959
  %v4985 = vrcp.pop %v4961
  %v4986 = vrcp.pop %v4963
  %v4987 = vrcp.pop %v4965
  %v4988 = vrcp.pop %v4967
  %v4989 = vrcp.pop %v4969
  %v4990 = vrcp.pop %v4971
  %v4991 = vrcp.pop %v4973
  %v4992 = vrcp.pop %v4975
  %v4993 = vrcp.pop %v4977
  %v4994 = vmul.f32 %v4915, %v4978
  %v4995 = vmul.f32 %v4917, %v4979
  %v4996 = vmul.f32 %v4919, %v4980
  %v4997 = vmul.f32 %v4921, %v4981
  %v4998 = vmul.f32 %v4923, %v4982
  %v4999 = vmul.f32 %v4925, %v4983
  %v5000 = vmul.f32 %v4927, %v4984
  %v5001 = vmul.f32 %v4929, %v4985
  %v5002 = vmul.f32 %v4931, %v4986
  %v5003 = vmul.f32 %v4933, %v4987
  %v5004 = vmul.f32 %v4935, %v4988
  %v5005 = vmul.f32 %v4937, %v4989
  %v5006 = vmul.f32 %v4939, %v4990
  %v5007 = vmul.f32 %v4941, %v4991
  %v5008 = vmul.f32 %v4943, %v4992
  %v5009 = vmul.f32 %v4945, %v4993
  %v5010 = vmul.f32 %v3658, %v336
  %v5011 = vmul.f32 %v3662, %v336
  %v5012 = vmul.f32 %v3668, %v336
  %v5013 = vmul.f32 %v3672, %v336
  %v5014 = vmul.f32 %v3678, %v336
  %v5015 = vmul.f32 %v3682, %v336
  %v5016 = vmul.f32 %v3688, %v336
  %v5017 = vmul.f32 %v3692, %v336
  %v5018 = vmul.f32 %v3698, %v336
  %v5019 = vmul.f32 %v3702, %v336
  %v5020 = vmul.f32 %v3708, %v336
  %v5021 = vmul.f32 %v3712, %v336
  %v5022 = vmul.f32 %v3718, %v336
  %v5023 = vmul.f32 %v3722, %v336
  %v5024 = vmul.f32 %v3728, %v336
  %v5025 = vmul.f32 %v3732, %v336
  %v5026 = vpack.c.bf16 %v5011, %v5010
  %v5027 = vpack.c.bf16 %v5013, %v5012
  %v5028 = vpack.c.bf16 %v5015, %v5014
  %v5029 = vpack.c.bf16 %v5017, %v5016
  %v5030 = vpack.c.bf16 %v5019, %v5018
  %v5031 = vpack.c.bf16 %v5021, %v5020
  %v5032 = vpack.c.bf16 %v5023, %v5022
  %v5033 = vpack.c.bf16 %v5025, %v5024
  %v5034 = vpack.c.bf16 %v4995, %v4994
  %v5035 = vpack.c.bf16 %v4997, %v4996
  %v5036 = vpack.c.bf16 %v4999, %v4998
  %v5037 = vpack.c.bf16 %v5001, %v5000
  %v5038 = vpack.c.bf16 %v5003, %v5002
  %v5039 = vpack.c.bf16 %v5005, %v5004
  %v5040 = vpack.c.bf16 %v5007, %v5006
  %v5041 = vpack.c.bf16 %v5009, %v5008
  %5042 = vmatprep.subr.bf16.mxu0 0
  %5043 = vmatpush1.bf16.msra.mxu0 %v5026
  %5044 = vmatprep.subr.bf16.mxu0 0
  %5045 = vmatpush1.bf16.msra.mxu0 %v5027
  %5046 = vmatprep.subr.bf16.mxu0 0
  %5047 = vmatpush1.bf16.msra.mxu0 %v5028
  %5048 = vmatprep.subr.bf16.mxu0 0
  %5049 = vmatpush1.bf16.msra.mxu0 %v5029
  %5050 = vmatprep.subr.bf16.mxu0 0
  %5051 = vmatpush1.bf16.msra.mxu0 %v5030
  %5052 = vmatprep.subr.bf16.mxu0 0
  %5053 = vmatpush1.bf16.msra.mxu0 %v5031
  %5054 = vmatprep.subr.bf16.mxu0 0
  %5055 = vmatpush1.bf16.msra.mxu0 %v5032
  %5056 = vmatprep.subr.bf16.mxu0 0
  %5057 = vmatpush1.bf16.msra.mxu0 %v5033
  %5058 = vmatprep.subr.bf16.mxu0 0
  %5059 = vmatpush1.bf16.msra.mxu0 0
  %5060 = vmatprep.subr.bf16.mxu0 0
  %5061 = vmatpush1.bf16.msra.mxu0 0
  %5062 = vmatprep.subr.bf16.mxu0 0
  %5063 = vmatpush1.bf16.msra.mxu0 0
  %5064 = vmatprep.subr.bf16.mxu0 0
  %5065 = vmatpush1.bf16.msra.mxu0 0
  %5066 = vmatprep.subr.bf16.mxu0 0
  %5067 = vmatpush1.bf16.msra.mxu0 0
  %5068 = vmatprep.subr.bf16.mxu0 0
  %5069 = vmatpush1.bf16.msra.mxu0 0
  %5070 = vmatprep.subr.bf16.mxu0 0
  %5071 = vmatpush1.bf16.msra.mxu0 0
  %5072 = vmatprep.subr.bf16.mxu0 0
  %5073 = vmatpush1.bf16.msra.mxu0 0
  %5074 = vmatprep.mubr.bf16.mxu0 0
  %5075 = vmatmul.mubr.bf16.gmra.mrb[0].mxu0 %v5034
  %v5076 = vpop.f32.mrb[0].mxu0
  %v5077 = vadd.f32 0.0, %v5076
  %v5078 = vpop.f32.mrb[0].mxu0
  %v5079 = vpop.f32.mrb[0].mxu0
  %v5080 = vadd.f32 0.0, %v5079
  %v5081 = vpop.f32.mrb[0].mxu0
  %5082 = vmatprep.mubr.bf16.mxu0 0
  %5083 = vmatmul.mubr.bf16.gmra.mrb[0].mxu0 %v5035
  %v5084 = vpop.f32.mrb[0].mxu0
  %v5085 = vadd.f32 0.0, %v5084
  %v5086 = vpop.f32.mrb[0].mxu0
  %v5087 = vpop.f32.mrb[0].mxu0
  %v5088 = vadd.f32 0.0, %v5087
  %v5089 = vpop.f32.mrb[0].mxu0
  %5090 = vmatprep.mubr.bf16.mxu0 0
  %5091 = vmatmul.mubr.bf16.gmra.mrb[0].mxu0 %v5036
  %v5092 = vpop.f32.mrb[0].mxu0
  %v5093 = vadd.f32 0.0, %v5092
  %v5094 = vpop.f32.mrb[0].mxu0
  %v5095 = vpop.f32.mrb[0].mxu0
  %v5096 = vadd.f32 0.0, %v5095
  %v5097 = vpop.f32.mrb[0].mxu0
  %5098 = vmatprep.mubr.bf16.mxu0 0
  %5099 = vmatmul.mubr.bf16.gmra.mrb[0].mxu0 %v5037
  %v5100 = vpop.f32.mrb[0].mxu0
  %v5101 = vadd.f32 0.0, %v5100
  %v5102 = vpop.f32.mrb[0].mxu0
  %v5103 = vpop.f32.mrb[0].mxu0
  %v5104 = vadd.f32 0.0, %v5103
  %v5105 = vpop.f32.mrb[0].mxu0
  %5106 = vmatprep.mubr.bf16.mxu0 0
  %5107 = vmatmul.mubr.bf16.gmra.mrb[0].mxu0 %v5038
  %v5108 = vpop.f32.mrb[0].mxu0
  %v5109 = vadd.f32 0.0, %v5108
  %v5110 = vpop.f32.mrb[0].mxu0
  %v5111 = vpop.f32.mrb[0].mxu0
  %v5112 = vadd.f32 0.0, %v5111
  %v5113 = vpop.f32.mrb[0].mxu0
  %5114 = vmatprep.mubr.bf16.mxu0 0
  %5115 = vmatmul.mubr.bf16.gmra.mrb[0].mxu0 %v5039
  %v5116 = vpop.f32.mrb[0].mxu0
  %v5117 = vadd.f32 0.0, %v5116
  %v5118 = vpop.f32.mrb[0].mxu0
  %v5119 = vpop.f32.mrb[0].mxu0
  %v5120 = vadd.f32 0.0, %v5119
  %v5121 = vpop.f32.mrb[0].mxu0
  %5122 = vmatprep.mubr.bf16.mxu0 0
  %5123 = vmatmul.mubr.bf16.gmra.mrb[0].mxu0 %v5040
  %v5124 = vpop.f32.mrb[0].mxu0
  %v5125 = vadd.f32 0.0, %v5124
  %v5126 = vpop.f32.mrb[0].mxu0
  %v5127 = vpop.f32.mrb[0].mxu0
  %v5128 = vadd.f32 0.0, %v5127
  %v5129 = vpop.f32.mrb[0].mxu0
  %5130 = vmatprep.mubr.bf16.mxu0 0
  %5131 = vmatmul.mubr.bf16.gmra.mrb[0].mxu0 %v5041
  %v5132 = vpop.f32.mrb[0].mxu0
  %v5133 = vadd.f32 0.0, %v5132
  %v5134 = vpop.f32.mrb[0].mxu0
  %v5135 = vpop.f32.mrb[0].mxu0
  %v5136 = vadd.f32 0.0, %v5135
  %v5137 = vpop.f32.mrb[0].mxu0
  %5138 = vdwg.mxu0
  %v5139 = vadd.f32 %v4642, %v5077
  %v5140 = vadd.f32 %v4645, %v5080
  %v5141 = vadd.f32 %v4650, %v5085
  %v5142 = vadd.f32 %v4653, %v5088
  %v5143 = vadd.f32 %v4658, %v5093
  %v5144 = vadd.f32 %v4661, %v5096
  %v5145 = vadd.f32 %v4666, %v5101
  %v5146 = vadd.f32 %v4669, %v5104
  %v5147 = vadd.f32 %v4674, %v5109
  %v5148 = vadd.f32 %v4677, %v5112
  %v5149 = vadd.f32 %v4682, %v5117
  %v5150 = vadd.f32 %v4685, %v5120
  %v5151 = vadd.f32 %v4690, %v5125
  %v5152 = vadd.f32 %v4693, %v5128
  %v5153 = vadd.f32 %v4698, %v5133
  %v5154 = vadd.f32 %v4701, %v5136
  %v5155 = vmul.f32 %v3656, %v341
  %v5156 = vmul.f32 %v3660, %v341
  %v5157 = vmul.f32 %v3666, %v341
  %v5158 = vmul.f32 %v3670, %v341
  %v5159 = vmul.f32 %v3676, %v341
  %v5160 = vmul.f32 %v3680, %v341
  %v5161 = vmul.f32 %v3686, %v341
  %v5162 = vmul.f32 %v3690, %v341
  %v5163 = vmul.f32 %v3696, %v341
  %v5164 = vmul.f32 %v3700, %v341
  %v5165 = vmul.f32 %v3706, %v341
  %v5166 = vmul.f32 %v3710, %v341
  %v5167 = vmul.f32 %v3716, %v341
  %v5168 = vmul.f32 %v3720, %v341
  %v5169 = vmul.f32 %v3726, %v341
  %v5170 = vmul.f32 %v3730, %v341
  %v5171 = vpack.c.bf16 %v5156, %v5155
  %v5172 = vpack.c.bf16 %v5158, %v5157
  %v5173 = vpack.c.bf16 %v5160, %v5159
  %v5174 = vpack.c.bf16 %v5162, %v5161
  %v5175 = vpack.c.bf16 %v5164, %v5163
  %v5176 = vpack.c.bf16 %v5166, %v5165
  %v5177 = vpack.c.bf16 %v5168, %v5167
  %v5178 = vpack.c.bf16 %v5170, %v5169
  %s5179 = scalar_lea.vmem %s8, 896
  %v5180 = vld [vmem:[%s5179] sm:$0xff]
  %v5181 = vld [vmem:[%s5179 + $0x8] sm:$0xff]
  %v5182 = vld [vmem:[%s5179 + $0x10] sm:$0xff]
  %v5183 = vld [vmem:[%s5179 + $0x18] sm:$0xff]
  %v5184 = vld [vmem:[%s5179 + $0x20] sm:$0xff]
  %v5185 = vld [vmem:[%s5179 + $0x28] sm:$0xff]
  %v5186 = vld [vmem:[%s5179 + $0x30] sm:$0xff]
  %v5187 = vld [vmem:[%s5179 + $0x38] sm:$0xff]
  %v5188 = vld [vmem:[%s5179 + $0x40] sm:$0xff]
  %v5189 = vld [vmem:[%s5179 + $0x48] sm:$0xff]
  %v5190 = vld [vmem:[%s5179 + $0x50] sm:$0xff]
  %v5191 = vld [vmem:[%s5179 + $0x58] sm:$0xff]
  %v5192 = vld [vmem:[%s5179 + $0x60] sm:$0xff]
  %v5193 = vld [vmem:[%s5179 + $0x68] sm:$0xff]
  %v5194 = vld [vmem:[%s5179 + $0x70] sm:$0xff]
  %v5195 = vld [vmem:[%s5179 + $0x78] sm:$0xff]
  %v5197 = vsel %vm408, %v5171, 0
  %v5200 = vsel %vm408, %v5172, 0
  %v5203 = vsel %vm408, %v5173, 0
  %v5206 = vsel %vm408, %v5174, 0
  %v5209 = vsel %vm408, %v5175, 0
  %v5212 = vsel %vm408, %v5176, 0
  %v5215 = vsel %vm408, %v5177, 0
  %v5218 = vsel %vm408, %v5178, 0
  %5220 = vmatprep.subr.bf16.mxu0 0
  %5221 = vmatpush1.bf16.msra.mxu0 %v3830
  %5222 = vmatprep.subr.bf16.mxu0 0
  %5223 = vmatpush1.bf16.msra.mxu0 %v3831
  %5224 = vmatprep.subr.bf16.mxu0 0
  %5225 = vmatpush1.bf16.msra.mxu0 %v3832
  %5226 = vmatprep.subr.bf16.mxu0 0
  %5227 = vmatpush1.bf16.msra.mxu0 %v3833
  %5228 = vmatprep.subr.bf16.mxu0 0
  %5229 = vmatpush1.bf16.msra.mxu0 0
  %5230 = vmatprep.subr.bf16.mxu0 0
  %5231 = vmatpush1.bf16.msra.mxu0 0
  %5232 = vmatprep.subr.bf16.mxu0 0
  %5233 = vmatpush1.bf16.msra.mxu0 0
  %5234 = vmatprep.subr.bf16.mxu0 0
  %5235 = vmatpush1.bf16.msra.mxu0 0
  %5236 = vmatprep.subr.bf16.mxu0 0
  %5237 = vmatpush1.bf16.msra.mxu0 0
  %5238 = vmatprep.subr.bf16.mxu0 0
  %5239 = vmatpush1.bf16.msra.mxu0 0
  %5240 = vmatprep.subr.bf16.mxu0 0
  %5241 = vmatpush1.bf16.msra.mxu0 0
  %5242 = vmatprep.subr.bf16.mxu0 0
  %5243 = vmatpush1.bf16.msra.mxu0 0
  %5244 = vmatprep.subr.bf16.mxu0 0
  %5245 = vmatpush1.bf16.msra.mxu0 0
  %5246 = vmatprep.subr.bf16.mxu0 0
  %5247 = vmatpush1.bf16.msra.mxu0 0
  %5248 = vmatprep.subr.bf16.mxu0 0
  %5249 = vmatpush1.bf16.msra.mxu0 0
  %5250 = vmatprep.subr.bf16.mxu0 0
  %5251 = vmatpush1.bf16.msra.mxu0 0
  %5252 = vmatprep.mubr.bf16.mxu0 0
  %5253 = vmatmul.mubr.bf16.gmra.mrb[0].mxu0 %v5197
  %v5254 = vpop.f32.mrb[0].mxu0
  %v5255 = vadd.f32 %v5180, %v5254
  %v5256 = vpop.f32.mrb[0].mxu0
  %v5257 = vpop.f32.mrb[0].mxu0
  %v5258 = vadd.f32 %v5181, %v5257
  %v5259 = vpop.f32.mrb[0].mxu0
  %5260 = vmatprep.mubr.bf16.mxu0 0
  %5261 = vmatmul.mubr.bf16.gmra.mrb[0].mxu0 %v5200
  %v5262 = vpop.f32.mrb[0].mxu0
  %v5263 = vadd.f32 %v5182, %v5262
  %v5264 = vpop.f32.mrb[0].mxu0
  %v5265 = vpop.f32.mrb[0].mxu0
  %v5266 = vadd.f32 %v5183, %v5265
  %v5267 = vpop.f32.mrb[0].mxu0
  %5268 = vmatprep.mubr.bf16.mxu0 0
  %5269 = vmatmul.mubr.bf16.gmra.mrb[0].mxu0 %v5203
  %v5270 = vpop.f32.mrb[0].mxu0
  %v5271 = vadd.f32 %v5184, %v5270
  %v5272 = vpop.f32.mrb[0].mxu0
  %v5273 = vpop.f32.mrb[0].mxu0
  %v5274 = vadd.f32 %v5185, %v5273
  %v5275 = vpop.f32.mrb[0].mxu0
  %5276 = vmatprep.mubr.bf16.mxu0 0
  %5277 = vmatmul.mubr.bf16.gmra.mrb[0].mxu0 %v5206
  %v5278 = vpop.f32.mrb[0].mxu0
  %v5279 = vadd.f32 %v5186, %v5278
  %v5280 = vpop.f32.mrb[0].mxu0
  %v5281 = vpop.f32.mrb[0].mxu0
  %v5282 = vadd.f32 %v5187, %v5281
  %v5283 = vpop.f32.mrb[0].mxu0
  %5284 = vmatprep.mubr.bf16.mxu0 0
  %5285 = vmatmul.mubr.bf16.gmra.mrb[0].mxu0 %v5209
  %v5286 = vpop.f32.mrb[0].mxu0
  %v5287 = vadd.f32 %v5188, %v5286
  %v5288 = vpop.f32.mrb[0].mxu0
  %v5289 = vpop.f32.mrb[0].mxu0
  %v5290 = vadd.f32 %v5189, %v5289
  %v5291 = vpop.f32.mrb[0].mxu0
  %5292 = vmatprep.mubr.bf16.mxu0 0
  %5293 = vmatmul.mubr.bf16.gmra.mrb[0].mxu0 %v5212
  %v5294 = vpop.f32.mrb[0].mxu0
  %v5295 = vadd.f32 %v5190, %v5294
  %v5296 = vpop.f32.mrb[0].mxu0
  %v5297 = vpop.f32.mrb[0].mxu0
  %v5298 = vadd.f32 %v5191, %v5297
  %v5299 = vpop.f32.mrb[0].mxu0
  %5300 = vmatprep.mubr.bf16.mxu0 0
  %5301 = vmatmul.mubr.bf16.gmra.mrb[0].mxu0 %v5215
  %v5302 = vpop.f32.mrb[0].mxu0
  %v5303 = vadd.f32 %v5192, %v5302
  %v5304 = vpop.f32.mrb[0].mxu0
  %v5305 = vpop.f32.mrb[0].mxu0
  %v5306 = vadd.f32 %v5193, %v5305
  %v5307 = vpop.f32.mrb[0].mxu0
  %5308 = vmatprep.mubr.bf16.mxu0 0
  %5309 = vmatmul.mubr.bf16.gmra.mrb[0].mxu0 %v5218
  %v5310 = vpop.f32.mrb[0].mxu0
  %v5311 = vadd.f32 %v5194, %v5310
  %v5312 = vpop.f32.mrb[0].mxu0
  %v5313 = vpop.f32.mrb[0].mxu0
  %v5314 = vadd.f32 %v5195, %v5313
  %v5315 = vpop.f32.mrb[0].mxu0
  %5316 = vdwg.mxu0
  %5317 = vmax.xlane.f32.xlu0 %v5255
  %v5318 = vpop.xlane.xlu0 %5317
  %5319 = vmax.xlane.f32.xlu0 %v5258
  %v5320 = vpop.xlane.xlu0 %5319
  %5321 = vmax.xlane.f32.xlu0 %v5263
  %v5322 = vpop.xlane.xlu0 %5321
  %5323 = vmax.xlane.f32.xlu0 %v5266
  %v5324 = vpop.xlane.xlu0 %5323
  %5325 = vmax.xlane.f32.xlu0 %v5271
  %v5326 = vpop.xlane.xlu0 %5325
  %5327 = vmax.xlane.f32.xlu0 %v5274
  %v5328 = vpop.xlane.xlu0 %5327
  %5329 = vmax.xlane.f32.xlu0 %v5279
  %v5330 = vpop.xlane.xlu0 %5329
  %5331 = vmax.xlane.f32.xlu0 %v5282
  %v5332 = vpop.xlane.xlu0 %5331
  %5333 = vmax.xlane.f32.xlu0 %v5287
  %v5334 = vpop.xlane.xlu0 %5333
  %5335 = vmax.xlane.f32.xlu0 %v5290
  %v5336 = vpop.xlane.xlu0 %5335
  %5337 = vmax.xlane.f32.xlu0 %v5295
  %v5338 = vpop.xlane.xlu0 %5337
  %5339 = vmax.xlane.f32.xlu0 %v5298
  %v5340 = vpop.xlane.xlu0 %5339
  %5341 = vmax.xlane.f32.xlu0 %v5303
  %v5342 = vpop.xlane.xlu0 %5341
  %5343 = vmax.xlane.f32.xlu0 %v5306
  %v5344 = vpop.xlane.xlu0 %5343
  %5345 = vmax.xlane.f32.xlu0 %v5311
  %v5346 = vpop.xlane.xlu0 %5345
  %5347 = vmax.xlane.f32.xlu0 %v5314
  %v5348 = vpop.xlane.xlu0 %5347
  %v5349 = vsub.f32 %v5255, %v5318
  %v5350 = vsub.f32 %v5258, %v5320
  %v5351 = vsub.f32 %v5263, %v5322
  %v5352 = vsub.f32 %v5266, %v5324
  %v5353 = vsub.f32 %v5271, %v5326
  %v5354 = vsub.f32 %v5274, %v5328
  %v5355 = vsub.f32 %v5279, %v5330
  %v5356 = vsub.f32 %v5282, %v5332
  %v5357 = vsub.f32 %v5287, %v5334
  %v5358 = vsub.f32 %v5290, %v5336
  %v5359 = vsub.f32 %v5295, %v5338
  %v5360 = vsub.f32 %v5298, %v5340
  %v5361 = vsub.f32 %v5303, %v5342
  %v5362 = vsub.f32 %v5306, %v5344
  %v5363 = vsub.f32 %v5311, %v5346
  %v5364 = vsub.f32 %v5314, %v5348
  %v5365 = vmul.f32 %v5349, 1.442695
  %v5366 = vpow.pop %v5365
  %v5367 = vmul.f32 %v5350, 1.442695
  %v5368 = vpow.pop %v5367
  %v5369 = vmul.f32 %v5351, 1.442695
  %v5370 = vpow.pop %v5369
  %v5371 = vmul.f32 %v5352, 1.442695
  %v5372 = vpow.pop %v5371
  %v5373 = vmul.f32 %v5353, 1.442695
  %v5374 = vpow.pop %v5373
  %v5375 = vmul.f32 %v5354, 1.442695
  %v5376 = vpow.pop %v5375
  %v5377 = vmul.f32 %v5355, 1.442695
  %v5378 = vpow.pop %v5377
  %v5379 = vmul.f32 %v5356, 1.442695
  %v5380 = vpow.pop %v5379
  %v5381 = vmul.f32 %v5357, 1.442695
  %v5382 = vpow.pop %v5381
  %v5383 = vmul.f32 %v5358, 1.442695
  %v5384 = vpow.pop %v5383
  %v5385 = vmul.f32 %v5359, 1.442695
  %v5386 = vpow.pop %v5385
  %v5387 = vmul.f32 %v5360, 1.442695
  %v5388 = vpow.pop %v5387
  %v5389 = vmul.f32 %v5361, 1.442695
  %v5390 = vpow.pop %v5389
  %v5391 = vmul.f32 %v5362, 1.442695
  %v5392 = vpow.pop %v5391
  %v5393 = vmul.f32 %v5363, 1.442695
  %v5394 = vpow.pop %v5393
  %v5395 = vmul.f32 %v5364, 1.442695
  %v5396 = vpow.pop %v5395
  %5397 = vadd.xlane.f32.xlu0 %v5366
  %v5398 = vpop.xlane.xlu0 %5397
  %5399 = vadd.xlane.f32.xlu0 %v5368
  %v5400 = vpop.xlane.xlu0 %5399
  %5401 = vadd.xlane.f32.xlu0 %v5370
  %v5402 = vpop.xlane.xlu0 %5401
  %5403 = vadd.xlane.f32.xlu0 %v5372
  %v5404 = vpop.xlane.xlu0 %5403
  %5405 = vadd.xlane.f32.xlu0 %v5374
  %v5406 = vpop.xlane.xlu0 %5405
  %5407 = vadd.xlane.f32.xlu0 %v5376
  %v5408 = vpop.xlane.xlu0 %5407
  %5409 = vadd.xlane.f32.xlu0 %v5378
  %v5410 = vpop.xlane.xlu0 %5409
  %5411 = vadd.xlane.f32.xlu0 %v5380
  %v5412 = vpop.xlane.xlu0 %5411
  %5413 = vadd.xlane.f32.xlu0 %v5382
  %v5414 = vpop.xlane.xlu0 %5413
  %5415 = vadd.xlane.f32.xlu0 %v5384
  %v5416 = vpop.xlane.xlu0 %5415
  %5417 = vadd.xlane.f32.xlu0 %v5386
  %v5418 = vpop.xlane.xlu0 %5417
  %5419 = vadd.xlane.f32.xlu0 %v5388
  %v5420 = vpop.xlane.xlu0 %5419
  %5421 = vadd.xlane.f32.xlu0 %v5390
  %v5422 = vpop.xlane.xlu0 %5421
  %5423 = vadd.xlane.f32.xlu0 %v5392
  %v5424 = vpop.xlane.xlu0 %5423
  %5425 = vadd.xlane.f32.xlu0 %v5394
  %v5426 = vpop.xlane.xlu0 %5425
  %5427 = vadd.xlane.f32.xlu0 %v5396
  %v5428 = vpop.xlane.xlu0 %5427
  %v5429 = vrcp.pop %v5398
  %v5430 = vrcp.pop %v5400
  %v5431 = vrcp.pop %v5402
  %v5432 = vrcp.pop %v5404
  %v5433 = vrcp.pop %v5406
  %v5434 = vrcp.pop %v5408
  %v5435 = vrcp.pop %v5410
  %v5436 = vrcp.pop %v5412
  %v5437 = vrcp.pop %v5414
  %v5438 = vrcp.pop %v5416
  %v5439 = vrcp.pop %v5418
  %v5440 = vrcp.pop %v5420
  %v5441 = vrcp.pop %v5422
  %v5442 = vrcp.pop %v5424
  %v5443 = vrcp.pop %v5426
  %v5444 = vrcp.pop %v5428
  %v5445 = vmul.f32 %v5366, %v5429
  %v5446 = vmul.f32 %v5368, %v5430
  %v5447 = vmul.f32 %v5370, %v5431
  %v5448 = vmul.f32 %v5372, %v5432
  %v5449 = vmul.f32 %v5374, %v5433
  %v5450 = vmul.f32 %v5376, %v5434
  %v5451 = vmul.f32 %v5378, %v5435
  %v5452 = vmul.f32 %v5380, %v5436
  %v5453 = vmul.f32 %v5382, %v5437
  %v5454 = vmul.f32 %v5384, %v5438
  %v5455 = vmul.f32 %v5386, %v5439
  %v5456 = vmul.f32 %v5388, %v5440
  %v5457 = vmul.f32 %v5390, %v5441
  %v5458 = vmul.f32 %v5392, %v5442
  %v5459 = vmul.f32 %v5394, %v5443
  %v5460 = vmul.f32 %v5396, %v5444
  %v5461 = vmul.f32 %v3658, %v341
  %v5462 = vmul.f32 %v3662, %v341
  %v5463 = vmul.f32 %v3668, %v341
  %v5464 = vmul.f32 %v3672, %v341
  %v5465 = vmul.f32 %v3678, %v341
  %v5466 = vmul.f32 %v3682, %v341
  %v5467 = vmul.f32 %v3688, %v341
  %v5468 = vmul.f32 %v3692, %v341
  %v5469 = vmul.f32 %v3698, %v341
  %v5470 = vmul.f32 %v3702, %v341
  %v5471 = vmul.f32 %v3708, %v341
  %v5472 = vmul.f32 %v3712, %v341
  %v5473 = vmul.f32 %v3718, %v341
  %v5474 = vmul.f32 %v3722, %v341
  %v5475 = vmul.f32 %v3728, %v341
  %v5476 = vmul.f32 %v3732, %v341
  %v5477 = vpack.c.bf16 %v5462, %v5461
  %v5478 = vpack.c.bf16 %v5464, %v5463
  %v5479 = vpack.c.bf16 %v5466, %v5465
  %v5480 = vpack.c.bf16 %v5468, %v5467
  %v5481 = vpack.c.bf16 %v5470, %v5469
  %v5482 = vpack.c.bf16 %v5472, %v5471
  %v5483 = vpack.c.bf16 %v5474, %v5473
  %v5484 = vpack.c.bf16 %v5476, %v5475
  %v5485 = vpack.c.bf16 %v5446, %v5445
  %v5486 = vpack.c.bf16 %v5448, %v5447
  %v5487 = vpack.c.bf16 %v5450, %v5449
  %v5488 = vpack.c.bf16 %v5452, %v5451
  %v5489 = vpack.c.bf16 %v5454, %v5453
  %v5490 = vpack.c.bf16 %v5456, %v5455
  %v5491 = vpack.c.bf16 %v5458, %v5457
  %v5492 = vpack.c.bf16 %v5460, %v5459
  %5493 = vmatprep.subr.bf16.mxu0 0
  %5494 = vmatpush1.bf16.msra.mxu0 %v5477
  %5495 = vmatprep.subr.bf16.mxu0 0
  %5496 = vmatpush1.bf16.msra.mxu0 %v5478
  %5497 = vmatprep.subr.bf16.mxu0 0
  %5498 = vmatpush1.bf16.msra.mxu0 %v5479
  %5499 = vmatprep.subr.bf16.mxu0 0
  %5500 = vmatpush1.bf16.msra.mxu0 %v5480
  %5501 = vmatprep.subr.bf16.mxu0 0
  %5502 = vmatpush1.bf16.msra.mxu0 %v5481
  %5503 = vmatprep.subr.bf16.mxu0 0
  %5504 = vmatpush1.bf16.msra.mxu0 %v5482
  %5505 = vmatprep.subr.bf16.mxu0 0
  %5506 = vmatpush1.bf16.msra.mxu0 %v5483
  %5507 = vmatprep.subr.bf16.mxu0 0
  %5508 = vmatpush1.bf16.msra.mxu0 %v5484
  %5509 = vmatprep.subr.bf16.mxu0 0
  %5510 = vmatpush1.bf16.msra.mxu0 0
  %5511 = vmatprep.subr.bf16.mxu0 0
  %5512 = vmatpush1.bf16.msra.mxu0 0
  %5513 = vmatprep.subr.bf16.mxu0 0
  %5514 = vmatpush1.bf16.msra.mxu0 0
  %5515 = vmatprep.subr.bf16.mxu0 0
  %5516 = vmatpush1.bf16.msra.mxu0 0
  %5517 = vmatprep.subr.bf16.mxu0 0
  %5518 = vmatpush1.bf16.msra.mxu0 0
  %5519 = vmatprep.subr.bf16.mxu0 0
  %5520 = vmatpush1.bf16.msra.mxu0 0
  %5521 = vmatprep.subr.bf16.mxu0 0
  %5522 = vmatpush1.bf16.msra.mxu0 0
  %5523 = vmatprep.subr.bf16.mxu0 0
  %5524 = vmatpush1.bf16.msra.mxu0 0
  %5525 = vmatprep.mubr.bf16.mxu0 0
  %5526 = vmatmul.mubr.bf16.gmra.mrb[0].mxu0 %v5485
  %v5527 = vpop.f32.mrb[0].mxu0
  %v5528 = vadd.f32 0.0, %v5527
  %v5529 = vpop.f32.mrb[0].mxu0
  %v5530 = vpop.f32.mrb[0].mxu0
  %v5531 = vadd.f32 0.0, %v5530
  %v5532 = vpop.f32.mrb[0].mxu0
  %5533 = vmatprep.mubr.bf16.mxu0 0
  %5534 = vmatmul.mubr.bf16.gmra.mrb[0].mxu0 %v5486
  %v5535 = vpop.f32.mrb[0].mxu0
  %v5536 = vadd.f32 0.0, %v5535
  %v5537 = vpop.f32.mrb[0].mxu0
  %v5538 = vpop.f32.mrb[0].mxu0
  %v5539 = vadd.f32 0.0, %v5538
  %v5540 = vpop.f32.mrb[0].mxu0
  %5541 = vmatprep.mubr.bf16.mxu0 0
  %5542 = vmatmul.mubr.bf16.gmra.mrb[0].mxu0 %v5487
  %v5543 = vpop.f32.mrb[0].mxu0
  %v5544 = vadd.f32 0.0, %v5543
  %v5545 = vpop.f32.mrb[0].mxu0
  %v5546 = vpop.f32.mrb[0].mxu0
  %v5547 = vadd.f32 0.0, %v5546
  %v5548 = vpop.f32.mrb[0].mxu0
  %5549 = vmatprep.mubr.bf16.mxu0 0
  %5550 = vmatmul.mubr.bf16.gmra.mrb[0].mxu0 %v5488
  %v5551 = vpop.f32.mrb[0].mxu0
  %v5552 = vadd.f32 0.0, %v5551
  %v5553 = vpop.f32.mrb[0].mxu0
  %v5554 = vpop.f32.mrb[0].mxu0
  %v5555 = vadd.f32 0.0, %v5554
  %v5556 = vpop.f32.mrb[0].mxu0
  %5557 = vmatprep.mubr.bf16.mxu0 0
  %5558 = vmatmul.mubr.bf16.gmra.mrb[0].mxu0 %v5489
  %v5559 = vpop.f32.mrb[0].mxu0
  %v5560 = vadd.f32 0.0, %v5559
  %v5561 = vpop.f32.mrb[0].mxu0
  %v5562 = vpop.f32.mrb[0].mxu0
  %v5563 = vadd.f32 0.0, %v5562
  %v5564 = vpop.f32.mrb[0].mxu0
  %5565 = vmatprep.mubr.bf16.mxu0 0
  %5566 = vmatmul.mubr.bf16.gmra.mrb[0].mxu0 %v5490
  %v5567 = vpop.f32.mrb[0].mxu0
  %v5568 = vadd.f32 0.0, %v5567
  %v5569 = vpop.f32.mrb[0].mxu0
  %v5570 = vpop.f32.mrb[0].mxu0
  %v5571 = vadd.f32 0.0, %v5570
  %v5572 = vpop.f32.mrb[0].mxu0
  %5573 = vmatprep.mubr.bf16.mxu0 0
  %5574 = vmatmul.mubr.bf16.gmra.mrb[0].mxu0 %v5491
  %v5575 = vpop.f32.mrb[0].mxu0
  %v5576 = vadd.f32 0.0, %v5575
  %v5577 = vpop.f32.mrb[0].mxu0
  %v5578 = vpop.f32.mrb[0].mxu0
  %v5579 = vadd.f32 0.0, %v5578
  %v5580 = vpop.f32.mrb[0].mxu0
  %5581 = vmatprep.mubr.bf16.mxu0 0
  %5582 = vmatmul.mubr.bf16.gmra.mrb[0].mxu0 %v5492
  %v5583 = vpop.f32.mrb[0].mxu0
  %v5584 = vadd.f32 0.0, %v5583
  %v5585 = vpop.f32.mrb[0].mxu0
  %v5586 = vpop.f32.mrb[0].mxu0
  %v5587 = vadd.f32 0.0, %v5586
  %v5588 = vpop.f32.mrb[0].mxu0
  %5589 = vdwg.mxu0
  %v5590 = vadd.f32 %v5139, %v5528
  %v5591 = vadd.f32 %v5140, %v5531
  %v5592 = vadd.f32 %v5141, %v5536
  %v5593 = vadd.f32 %v5142, %v5539
  %v5594 = vadd.f32 %v5143, %v5544
  %v5595 = vadd.f32 %v5144, %v5547
  %v5596 = vadd.f32 %v5145, %v5552
  %v5597 = vadd.f32 %v5146, %v5555
  %v5598 = vadd.f32 %v5147, %v5560
  %v5599 = vadd.f32 %v5148, %v5563
  %v5600 = vadd.f32 %v5149, %v5568
  %v5601 = vadd.f32 %v5150, %v5571
  %v5602 = vadd.f32 %v5151, %v5576
  %v5603 = vadd.f32 %v5152, %v5579
  %v5604 = vadd.f32 %v5153, %v5584
  %v5605 = vadd.f32 %v5154, %v5587
  %v5606 = vpack.c.bf16 %v5591, %v5590
  %v5607 = vpack.c.bf16 %v5593, %v5592
  %v5608 = vpack.c.bf16 %v5595, %v5594
  %v5609 = vpack.c.bf16 %v5597, %v5596
  %v5610 = vpack.c.bf16 %v5599, %v5598
  %v5611 = vpack.c.bf16 %v5601, %v5600
  %v5612 = vpack.c.bf16 %v5603, %v5602
  %v5613 = vpack.c.bf16 %v5605, %v5604
  %s5614 = scalar_lea.vmem %s4, 32
  %v5615 = vld [vmem:[%s5614] sm:$0xf]
  %v5616 = vld [vmem:[%s5614 + $0x4] sm:$0xf]
  %v5617 = vld [vmem:[%s5614 + $0x8] sm:$0xf]
  %v5618 = vld [vmem:[%s5614 + $0xc] sm:$0xf]
  %v5619 = vld [vmem:[%s5614 + $0x10] sm:$0xf]
  %v5620 = vld [vmem:[%s5614 + $0x14] sm:$0xf]
  %v5621 = vld [vmem:[%s5614 + $0x18] sm:$0xf]
  %v5622 = vld [vmem:[%s5614 + $0x1c] sm:$0xf]
  %v5623 = vlaneseq
  %v5624 = vshrl.u32 %v5623, 7
  %v5625 = vsub.s32 1, %v5624
  %v5626 = vrot.slane %v3530, %v5625
  %v5635 = vunpack.c.l.b16 %v5615
  %v5636 = vunpack.c.l.b16 %v5616
  %v5637 = vunpack.c.l.b16 %v5617
  %v5638 = vunpack.c.l.b16 %v5618
  %v5639 = vunpack.c.l.b16 %v5619
  %v5640 = vunpack.c.l.b16 %v5620
  %v5641 = vunpack.c.l.b16 %v5621
  %v5642 = vunpack.c.l.b16 %v5622
  %v5643 = vpack.c.b16 %v5636, %v5635
  %v5644 = vpack.c.b16 %v5638, %v5637
  %v5645 = vpack.c.b16 %v5640, %v5639
  %v5646 = vpack.c.b16 %v5642, %v5641
  %v5652 = vsel %vm408, %v5606, 0
  %v5655 = vsel %vm408, %v5607, 0
  %v5658 = vsel %vm408, %v5608, 0
  %v5661 = vsel %vm408, %v5609, 0
  %v5664 = vsel %vm408, %v5610, 0
  %v5667 = vsel %vm408, %v5611, 0
  %v5670 = vsel %vm408, %v5612, 0
  %v5673 = vsel %vm408, %v5613, 0
  %5675 = vmatprep.subr.bf16.mxu0 0
  %5676 = vmatpush1.bf16.msra.mxu0 %v5643
  %5677 = vmatprep.subr.bf16.mxu0 0
  %5678 = vmatpush1.bf16.msra.mxu0 %v5644
  %5679 = vmatprep.subr.bf16.mxu0 0
  %5680 = vmatpush1.bf16.msra.mxu0 %v5645
  %5681 = vmatprep.subr.bf16.mxu0 0
  %5682 = vmatpush1.bf16.msra.mxu0 %v5646
  %5683 = vmatprep.subr.bf16.mxu0 0
  %5684 = vmatpush1.bf16.msra.mxu0 0
  %5685 = vmatprep.subr.bf16.mxu0 0
  %5686 = vmatpush1.bf16.msra.mxu0 0
  %5687 = vmatprep.subr.bf16.mxu0 0
  %5688 = vmatpush1.bf16.msra.mxu0 0
  %5689 = vmatprep.subr.bf16.mxu0 0
  %5690 = vmatpush1.bf16.msra.mxu0 0
  %5691 = vmatprep.subr.bf16.mxu0 0
  %5692 = vmatpush1.bf16.msra.mxu0 0
  %5693 = vmatprep.subr.bf16.mxu0 0
  %5694 = vmatpush1.bf16.msra.mxu0 0
  %5695 = vmatprep.subr.bf16.mxu0 0
  %5696 = vmatpush1.bf16.msra.mxu0 0
  %5697 = vmatprep.subr.bf16.mxu0 0
  %5698 = vmatpush1.bf16.msra.mxu0 0
  %5699 = vmatprep.subr.bf16.mxu0 0
  %5700 = vmatpush1.bf16.msra.mxu0 0
  %5701 = vmatprep.subr.bf16.mxu0 0
  %5702 = vmatpush1.bf16.msra.mxu0 0
  %5703 = vmatprep.subr.bf16.mxu0 0
  %5704 = vmatpush1.bf16.msra.mxu0 0
  %5705 = vmatprep.subr.bf16.mxu0 0
  %5706 = vmatpush1.bf16.msra.mxu0 0
  %5707 = vmatprep.mubr.bf16.mxu0 0
  %5708 = vmatmul.mubr.bf16.gmra.mrb[0].mxu0 %v5652
  %v5709 = vpop.f32.mrb[0].mxu0
  %v5710 = vadd.f32 %v5626, %v5709
  %v5711 = vpop.f32.mrb[0].mxu0
  %v5712 = vpop.f32.mrb[0].mxu0
  %v5713 = vadd.f32 %v5626, %v5712
  %v5714 = vpop.f32.mrb[0].mxu0
  %5715 = vmatprep.mubr.bf16.mxu0 0
  %5716 = vmatmul.mubr.bf16.gmra.mrb[0].mxu0 %v5655
  %v5717 = vpop.f32.mrb[0].mxu0
  %v5718 = vadd.f32 %v5626, %v5717
  %v5719 = vpop.f32.mrb[0].mxu0
  %v5720 = vpop.f32.mrb[0].mxu0
  %v5721 = vadd.f32 %v5626, %v5720
  %v5722 = vpop.f32.mrb[0].mxu0
  %5723 = vmatprep.mubr.bf16.mxu0 0
  %5724 = vmatmul.mubr.bf16.gmra.mrb[0].mxu0 %v5658
  %v5725 = vpop.f32.mrb[0].mxu0
  %v5726 = vadd.f32 %v5626, %v5725
  %v5727 = vpop.f32.mrb[0].mxu0
  %v5728 = vpop.f32.mrb[0].mxu0
  %v5729 = vadd.f32 %v5626, %v5728
  %v5730 = vpop.f32.mrb[0].mxu0
  %5731 = vmatprep.mubr.bf16.mxu0 0
  %5732 = vmatmul.mubr.bf16.gmra.mrb[0].mxu0 %v5661
  %v5733 = vpop.f32.mrb[0].mxu0
  %v5734 = vadd.f32 %v5626, %v5733
  %v5735 = vpop.f32.mrb[0].mxu0
  %v5736 = vpop.f32.mrb[0].mxu0
  %v5737 = vadd.f32 %v5626, %v5736
  %v5738 = vpop.f32.mrb[0].mxu0
  %5739 = vmatprep.mubr.bf16.mxu0 0
  %5740 = vmatmul.mubr.bf16.gmra.mrb[0].mxu0 %v5664
  %v5741 = vpop.f32.mrb[0].mxu0
  %v5742 = vadd.f32 %v5626, %v5741
  %v5743 = vpop.f32.mrb[0].mxu0
  %v5744 = vpop.f32.mrb[0].mxu0
  %v5745 = vadd.f32 %v5626, %v5744
  %v5746 = vpop.f32.mrb[0].mxu0
  %5747 = vmatprep.mubr.bf16.mxu0 0
  %5748 = vmatmul.mubr.bf16.gmra.mrb[0].mxu0 %v5667
  %v5749 = vpop.f32.mrb[0].mxu0
  %v5750 = vadd.f32 %v5626, %v5749
  %v5751 = vpop.f32.mrb[0].mxu0
  %v5752 = vpop.f32.mrb[0].mxu0
  %v5753 = vadd.f32 %v5626, %v5752
  %v5754 = vpop.f32.mrb[0].mxu0
  %5755 = vmatprep.mubr.bf16.mxu0 0
  %5756 = vmatmul.mubr.bf16.gmra.mrb[0].mxu0 %v5670
  %v5757 = vpop.f32.mrb[0].mxu0
  %v5758 = vadd.f32 %v5626, %v5757
  %v5759 = vpop.f32.mrb[0].mxu0
  %v5760 = vpop.f32.mrb[0].mxu0
  %v5761 = vadd.f32 %v5626, %v5760
  %v5762 = vpop.f32.mrb[0].mxu0
  %5763 = vmatprep.mubr.bf16.mxu0 0
  %5764 = vmatmul.mubr.bf16.gmra.mrb[0].mxu0 %v5673
  %v5765 = vpop.f32.mrb[0].mxu0
  %v5766 = vadd.f32 %v5626, %v5765
  %v5767 = vpop.f32.mrb[0].mxu0
  %v5768 = vpop.f32.mrb[0].mxu0
  %v5769 = vadd.f32 %v5626, %v5768
  %v5770 = vpop.f32.mrb[0].mxu0
  %5771 = vdwg.mxu0
  %v5772 = vadd.f32 %v3513, %v5710
  %v5773 = vadd.f32 %v3514, %v5713
  %v5774 = vadd.f32 %v3515, %v5718
  %v5775 = vadd.f32 %v3516, %v5721
  %v5776 = vadd.f32 %v3517, %v5726
  %v5777 = vadd.f32 %v3518, %v5729
  %v5778 = vadd.f32 %v3519, %v5734
  %v5779 = vadd.f32 %v3520, %v5737
  %v5780 = vadd.f32 %v3521, %v5742
  %v5781 = vadd.f32 %v3522, %v5745
  %v5782 = vadd.f32 %v3523, %v5750
  %v5783 = vadd.f32 %v3524, %v5753
  %v5784 = vadd.f32 %v3525, %v5758
  %v5785 = vadd.f32 %v3526, %v5761
  %v5786 = vadd.f32 %v3527, %v5766
  %v5787 = vadd.f32 %v3528, %v5769
  %v5788 = vsel %vm408, %v5772, 0.0
  %5789 = vadd.xlane.f32.xlu0 %v5788
  %v5790 = vpop.xlane.xlu0 %5789
  %v5791 = vsel %vm408, %v5773, 0.0
  %5792 = vadd.xlane.f32.xlu0 %v5791
  %v5793 = vpop.xlane.xlu0 %5792
  %v5794 = vsel %vm408, %v5774, 0.0
  %5795 = vadd.xlane.f32.xlu0 %v5794
  %v5796 = vpop.xlane.xlu0 %5795
  %v5797 = vsel %vm408, %v5775, 0.0
  %5798 = vadd.xlane.f32.xlu0 %v5797
  %v5799 = vpop.xlane.xlu0 %5798
  %v5800 = vsel %vm408, %v5776, 0.0
  %5801 = vadd.xlane.f32.xlu0 %v5800
  %v5802 = vpop.xlane.xlu0 %5801
  %v5803 = vsel %vm408, %v5777, 0.0
  %5804 = vadd.xlane.f32.xlu0 %v5803
  %v5805 = vpop.xlane.xlu0 %5804
  %v5806 = vsel %vm408, %v5778, 0.0
  %5807 = vadd.xlane.f32.xlu0 %v5806
  %v5808 = vpop.xlane.xlu0 %5807
  %v5809 = vsel %vm408, %v5779, 0.0
  %5810 = vadd.xlane.f32.xlu0 %v5809
  %v5811 = vpop.xlane.xlu0 %5810
  %v5812 = vsel %vm408, %v5780, 0.0
  %5813 = vadd.xlane.f32.xlu0 %v5812
  %v5814 = vpop.xlane.xlu0 %5813
  %v5815 = vsel %vm408, %v5781, 0.0
  %5816 = vadd.xlane.f32.xlu0 %v5815
  %v5817 = vpop.xlane.xlu0 %5816
  %v5818 = vsel %vm408, %v5782, 0.0
  %5819 = vadd.xlane.f32.xlu0 %v5818
  %v5820 = vpop.xlane.xlu0 %5819
  %v5821 = vsel %vm408, %v5783, 0.0
  %5822 = vadd.xlane.f32.xlu0 %v5821
  %v5823 = vpop.xlane.xlu0 %5822
  %v5824 = vsel %vm408, %v5784, 0.0
  %5825 = vadd.xlane.f32.xlu0 %v5824
  %v5826 = vpop.xlane.xlu0 %5825
  %v5827 = vsel %vm408, %v5785, 0.0
  %5828 = vadd.xlane.f32.xlu0 %v5827
  %v5829 = vpop.xlane.xlu0 %5828
  %v5830 = vsel %vm408, %v5786, 0.0
  %5831 = vadd.xlane.f32.xlu0 %v5830
  %v5832 = vpop.xlane.xlu0 %5831
  %v5833 = vsel %vm408, %v5787, 0.0
  %5834 = vadd.xlane.f32.xlu0 %v5833
  %v5835 = vpop.xlane.xlu0 %5834
  %v5836 = vmul.f32 %v5790, %v2646
  %v5837 = vmul.f32 %v5793, %v2646
  %v5838 = vmul.f32 %v5796, %v2646
  %v5839 = vmul.f32 %v5799, %v2646
  %v5840 = vmul.f32 %v5802, %v2646
  %v5841 = vmul.f32 %v5805, %v2646
  %v5842 = vmul.f32 %v5808, %v2646
  %v5843 = vmul.f32 %v5811, %v2646
  %v5844 = vmul.f32 %v5814, %v2646
  %v5845 = vmul.f32 %v5817, %v2646
  %v5846 = vmul.f32 %v5820, %v2646
  %v5847 = vmul.f32 %v5823, %v2646
  %v5848 = vmul.f32 %v5826, %v2646
  %v5849 = vmul.f32 %v5829, %v2646
  %v5850 = vmul.f32 %v5832, %v2646
  %v5851 = vmul.f32 %v5835, %v2646
  %v5852 = vmul.f32 %v5772, %v5772
  %v5853 = vmul.f32 %v5773, %v5773
  %v5854 = vmul.f32 %v5774, %v5774
  %v5855 = vmul.f32 %v5775, %v5775
  %v5856 = vmul.f32 %v5776, %v5776
  %v5857 = vmul.f32 %v5777, %v5777
  %v5858 = vmul.f32 %v5778, %v5778
  %v5859 = vmul.f32 %v5779, %v5779
  %v5860 = vmul.f32 %v5780, %v5780
  %v5861 = vmul.f32 %v5781, %v5781
  %v5862 = vmul.f32 %v5782, %v5782
  %v5863 = vmul.f32 %v5783, %v5783
  %v5864 = vmul.f32 %v5784, %v5784
  %v5865 = vmul.f32 %v5785, %v5785
  %v5866 = vmul.f32 %v5786, %v5786
  %v5867 = vmul.f32 %v5787, %v5787
  %v5868 = vsel %vm408, %v5852, 0.0
  %5869 = vadd.xlane.f32.xlu0 %v5868
  %v5870 = vpop.xlane.xlu0 %5869
  %v5871 = vsel %vm408, %v5853, 0.0
  %5872 = vadd.xlane.f32.xlu0 %v5871
  %v5873 = vpop.xlane.xlu0 %5872
  %v5874 = vsel %vm408, %v5854, 0.0
  %5875 = vadd.xlane.f32.xlu0 %v5874
  %v5876 = vpop.xlane.xlu0 %5875
  %v5877 = vsel %vm408, %v5855, 0.0
  %5878 = vadd.xlane.f32.xlu0 %v5877
  %v5879 = vpop.xlane.xlu0 %5878
  %v5880 = vsel %vm408, %v5856, 0.0
  %5881 = vadd.xlane.f32.xlu0 %v5880
  %v5882 = vpop.xlane.xlu0 %5881
  %v5883 = vsel %vm408, %v5857, 0.0
  %5884 = vadd.xlane.f32.xlu0 %v5883
  %v5885 = vpop.xlane.xlu0 %5884
  %v5886 = vsel %vm408, %v5858, 0.0
  %5887 = vadd.xlane.f32.xlu0 %v5886
  %v5888 = vpop.xlane.xlu0 %5887
  %v5889 = vsel %vm408, %v5859, 0.0
  %5890 = vadd.xlane.f32.xlu0 %v5889
  %v5891 = vpop.xlane.xlu0 %5890
  %v5892 = vsel %vm408, %v5860, 0.0
  %5893 = vadd.xlane.f32.xlu0 %v5892
  %v5894 = vpop.xlane.xlu0 %5893
  %v5895 = vsel %vm408, %v5861, 0.0
  %5896 = vadd.xlane.f32.xlu0 %v5895
  %v5897 = vpop.xlane.xlu0 %5896
  %v5898 = vsel %vm408, %v5862, 0.0
  %5899 = vadd.xlane.f32.xlu0 %v5898
  %v5900 = vpop.xlane.xlu0 %5899
  %v5901 = vsel %vm408, %v5863, 0.0
  %5902 = vadd.xlane.f32.xlu0 %v5901
  %v5903 = vpop.xlane.xlu0 %5902
  %v5904 = vsel %vm408, %v5864, 0.0
  %5905 = vadd.xlane.f32.xlu0 %v5904
  %v5906 = vpop.xlane.xlu0 %5905
  %v5907 = vsel %vm408, %v5865, 0.0
  %5908 = vadd.xlane.f32.xlu0 %v5907
  %v5909 = vpop.xlane.xlu0 %5908
  %v5910 = vsel %vm408, %v5866, 0.0
  %5911 = vadd.xlane.f32.xlu0 %v5910
  %v5912 = vpop.xlane.xlu0 %5911
  %v5913 = vsel %vm408, %v5867, 0.0
  %5914 = vadd.xlane.f32.xlu0 %v5913
  %v5915 = vpop.xlane.xlu0 %5914
  %v5916 = vmul.f32 %v5870, %v2646
  %v5917 = vmul.f32 %v5873, %v2646
  %v5918 = vmul.f32 %v5876, %v2646
  %v5919 = vmul.f32 %v5879, %v2646
  %v5920 = vmul.f32 %v5882, %v2646
  %v5921 = vmul.f32 %v5885, %v2646
  %v5922 = vmul.f32 %v5888, %v2646
  %v5923 = vmul.f32 %v5891, %v2646
  %v5924 = vmul.f32 %v5894, %v2646
  %v5925 = vmul.f32 %v5897, %v2646
  %v5926 = vmul.f32 %v5900, %v2646
  %v5927 = vmul.f32 %v5903, %v2646
  %v5928 = vmul.f32 %v5906, %v2646
  %v5929 = vmul.f32 %v5909, %v2646
  %v5930 = vmul.f32 %v5912, %v2646
  %v5931 = vmul.f32 %v5915, %v2646
  %v5932 = vmul.f32 %v5836, %v5836
  %v5933 = vmul.f32 %v5837, %v5837
  %v5934 = vmul.f32 %v5838, %v5838
  %v5935 = vmul.f32 %v5839, %v5839
  %v5936 = vmul.f32 %v5840, %v5840
  %v5937 = vmul.f32 %v5841, %v5841
  %v5938 = vmul.f32 %v5842, %v5842
  %v5939 = vmul.f32 %v5843, %v5843
  %v5940 = vmul.f32 %v5844, %v5844
  %v5941 = vmul.f32 %v5845, %v5845
  %v5942 = vmul.f32 %v5846, %v5846
  %v5943 = vmul.f32 %v5847, %v5847
  %v5944 = vmul.f32 %v5848, %v5848
  %v5945 = vmul.f32 %v5849, %v5849
  %v5946 = vmul.f32 %v5850, %v5850
  %v5947 = vmul.f32 %v5851, %v5851
  %v5948 = vsub.f32 %v5916, %v5932
  %v5949 = vsub.f32 %v5917, %v5933
  %v5950 = vsub.f32 %v5918, %v5934
  %v5951 = vsub.f32 %v5919, %v5935
  %v5952 = vsub.f32 %v5920, %v5936
  %v5953 = vsub.f32 %v5921, %v5937
  %v5954 = vsub.f32 %v5922, %v5938
  %v5955 = vsub.f32 %v5923, %v5939
  %v5956 = vsub.f32 %v5924, %v5940
  %v5957 = vsub.f32 %v5925, %v5941
  %v5958 = vsub.f32 %v5926, %v5942
  %v5959 = vsub.f32 %v5927, %v5943
  %v5960 = vsub.f32 %v5928, %v5944
  %v5961 = vsub.f32 %v5929, %v5945
  %v5962 = vsub.f32 %v5930, %v5946
  %v5963 = vsub.f32 %v5931, %v5947
  %v5964 = vsub.f32 %v5772, %v5836
  %v5965 = vsub.f32 %v5773, %v5837
  %v5966 = vsub.f32 %v5774, %v5838
  %v5967 = vsub.f32 %v5775, %v5839
  %v5968 = vsub.f32 %v5776, %v5840
  %v5969 = vsub.f32 %v5777, %v5841
  %v5970 = vsub.f32 %v5778, %v5842
  %v5971 = vsub.f32 %v5779, %v5843
  %v5972 = vsub.f32 %v5780, %v5844
  %v5973 = vsub.f32 %v5781, %v5845
  %v5974 = vsub.f32 %v5782, %v5846
  %v5975 = vsub.f32 %v5783, %v5847
  %v5976 = vsub.f32 %v5784, %v5848
  %v5977 = vsub.f32 %v5785, %v5849
  %v5978 = vsub.f32 %v5786, %v5850
  %v5979 = vsub.f32 %v5787, %v5851
  %v5980 = vadd.f32 %v5948, 1e-05
  %v5981 = vadd.f32 %v5949, 1e-05
  %v5982 = vadd.f32 %v5950, 1e-05
  %v5983 = vadd.f32 %v5951, 1e-05
  %v5984 = vadd.f32 %v5952, 1e-05
  %v5985 = vadd.f32 %v5953, 1e-05
  %v5986 = vadd.f32 %v5954, 1e-05
  %v5987 = vadd.f32 %v5955, 1e-05
  %v5988 = vadd.f32 %v5956, 1e-05
  %v5989 = vadd.f32 %v5957, 1e-05
  %v5990 = vadd.f32 %v5958, 1e-05
  %v5991 = vadd.f32 %v5959, 1e-05
  %v5992 = vadd.f32 %v5960, 1e-05
  %v5993 = vadd.f32 %v5961, 1e-05
  %v5994 = vadd.f32 %v5962, 1e-05
  %v5995 = vadd.f32 %v5963, 1e-05
  %v5996 = vrsqrt.pop %v5980
  %v5997 = vrsqrt.pop %v5981
  %v5998 = vrsqrt.pop %v5982
  %v5999 = vrsqrt.pop %v5983
  %v6000 = vrsqrt.pop %v5984
  %v6001 = vrsqrt.pop %v5985
  %v6002 = vrsqrt.pop %v5986
  %v6003 = vrsqrt.pop %v5987
  %v6004 = vrsqrt.pop %v5988
  %v6005 = vrsqrt.pop %v5989
  %v6006 = vrsqrt.pop %v5990
  %v6007 = vrsqrt.pop %v5991
  %v6008 = vrsqrt.pop %v5992
  %v6009 = vrsqrt.pop %v5993
  %v6010 = vrsqrt.pop %v5994
  %v6011 = vrsqrt.pop %v5995
  %v6012 = vmul.f32 %v5964, %v5996
  %v6013 = vmul.f32 %v5965, %v5997
  %v6014 = vmul.f32 %v5966, %v5998
  %v6015 = vmul.f32 %v5967, %v5999
  %v6016 = vmul.f32 %v5968, %v6000
  %v6017 = vmul.f32 %v5969, %v6001
  %v6018 = vmul.f32 %v5970, %v6002
  %v6019 = vmul.f32 %v5971, %v6003
  %v6020 = vmul.f32 %v5972, %v6004
  %v6021 = vmul.f32 %v5973, %v6005
  %v6022 = vmul.f32 %v5974, %v6006
  %v6023 = vmul.f32 %v5975, %v6007
  %v6024 = vmul.f32 %v5976, %v6008
  %v6025 = vmul.f32 %v5977, %v6009
  %v6026 = vmul.f32 %v5978, %v6010
  %v6027 = vmul.f32 %v5979, %v6011
  %v6028 = vlaneseq
  %v6029 = vshrl.u32 %v6028, 7
  %v6030 = vsub.s32 2, %v6029
  %v6031 = vrot.slane %v3530, %v6030
  %v6032 = vmul.f32 %v6012, %v6031
  %v6033 = vmul.f32 %v6013, %v6031
  %v6034 = vmul.f32 %v6014, %v6031
  %v6035 = vmul.f32 %v6015, %v6031
  %v6036 = vmul.f32 %v6016, %v6031
  %v6037 = vmul.f32 %v6017, %v6031
  %v6038 = vmul.f32 %v6018, %v6031
  %v6039 = vmul.f32 %v6019, %v6031
  %v6040 = vmul.f32 %v6020, %v6031
  %v6041 = vmul.f32 %v6021, %v6031
  %v6042 = vmul.f32 %v6022, %v6031
  %v6043 = vmul.f32 %v6023, %v6031
  %v6044 = vmul.f32 %v6024, %v6031
  %v6045 = vmul.f32 %v6025, %v6031
  %v6046 = vmul.f32 %v6026, %v6031
  %v6047 = vmul.f32 %v6027, %v6031
  %v6048 = vlaneseq
  %v6049 = vshrl.u32 %v6048, 7
  %v6050 = vsub.s32 3, %v6049
  %v6051 = vrot.slane %v3530, %v6050
  %v6052 = vadd.f32 %v6032, %v6051
  %v6053 = vadd.f32 %v6033, %v6051
  %v6054 = vadd.f32 %v6034, %v6051
  %v6055 = vadd.f32 %v6035, %v6051
  %v6056 = vadd.f32 %v6036, %v6051
  %v6057 = vadd.f32 %v6037, %v6051
  %v6058 = vadd.f32 %v6038, %v6051
  %v6059 = vadd.f32 %v6039, %v6051
  %v6060 = vadd.f32 %v6040, %v6051
  %v6061 = vadd.f32 %v6041, %v6051
  %v6062 = vadd.f32 %v6042, %v6051
  %v6063 = vadd.f32 %v6043, %v6051
  %v6064 = vadd.f32 %v6044, %v6051
  %v6065 = vadd.f32 %v6045, %v6051
  %v6066 = vadd.f32 %v6046, %v6051
  %v6067 = vadd.f32 %v6047, %v6051
  %v6068 = vpack.c.bf16 %v6053, %v6052
  %v6069 = vpack.c.bf16 %v6055, %v6054
  %v6070 = vpack.c.bf16 %v6057, %v6056
  %v6071 = vpack.c.bf16 %v6059, %v6058
  %v6072 = vpack.c.bf16 %v6061, %v6060
  %v6073 = vpack.c.bf16 %v6063, %v6062
  %v6074 = vpack.c.bf16 %v6065, %v6064
  %v6075 = vpack.c.bf16 %v6067, %v6066
  %s6076 = scalar_lea.vmem %s5, 32
  %v6077 = vld [vmem:[%s6076] sm:$0xf]
  %v6078 = vld [vmem:[%s6076 + $0x4] sm:$0xf]
  %v6079 = vld [vmem:[%s6076 + $0x8] sm:$0xf]
  %v6080 = vld [vmem:[%s6076 + $0xc] sm:$0xf]
  %v6081 = vld [vmem:[%s6076 + $0x10] sm:$0xf]
  %v6082 = vld [vmem:[%s6076 + $0x14] sm:$0xf]
  %v6083 = vld [vmem:[%s6076 + $0x18] sm:$0xf]
  %v6084 = vld [vmem:[%s6076 + $0x1c] sm:$0xf]
  %v6085 = vlaneseq
  %v6086 = vshrl.u32 %v6085, 7
  %v6087 = vsub.s32 4, %v6086
  %v6088 = vrot.slane %v3530, %v6087
  %v6097 = vunpack.c.l.b16 %v6077
  %v6098 = vunpack.c.l.b16 %v6078
  %v6099 = vunpack.c.l.b16 %v6079
  %v6100 = vunpack.c.l.b16 %v6080
  %v6101 = vunpack.c.l.b16 %v6081
  %v6102 = vunpack.c.l.b16 %v6082
  %v6103 = vunpack.c.l.b16 %v6083
  %v6104 = vunpack.c.l.b16 %v6084
  %v6105 = vpack.c.b16 %v6098, %v6097
  %v6106 = vpack.c.b16 %v6100, %v6099
  %v6107 = vpack.c.b16 %v6102, %v6101
  %v6108 = vpack.c.b16 %v6104, %v6103
  %v6114 = vsel %vm408, %v6068, 0
  %v6117 = vsel %vm408, %v6069, 0
  %v6120 = vsel %vm408, %v6070, 0
  %v6123 = vsel %vm408, %v6071, 0
  %v6126 = vsel %vm408, %v6072, 0
  %v6129 = vsel %vm408, %v6073, 0
  %v6132 = vsel %vm408, %v6074, 0
  %v6135 = vsel %vm408, %v6075, 0
  %6137 = vmatprep.subr.bf16.mxu0 0
  %6138 = vmatpush1.bf16.msra.mxu0 %v6105
  %6139 = vmatprep.subr.bf16.mxu0 0
  %6140 = vmatpush1.bf16.msra.mxu0 %v6106
  %6141 = vmatprep.subr.bf16.mxu0 0
  %6142 = vmatpush1.bf16.msra.mxu0 %v6107
  %6143 = vmatprep.subr.bf16.mxu0 0
  %6144 = vmatpush1.bf16.msra.mxu0 %v6108
  %6145 = vmatprep.subr.bf16.mxu0 0
  %6146 = vmatpush1.bf16.msra.mxu0 0
  %6147 = vmatprep.subr.bf16.mxu0 0
  %6148 = vmatpush1.bf16.msra.mxu0 0
  %6149 = vmatprep.subr.bf16.mxu0 0
  %6150 = vmatpush1.bf16.msra.mxu0 0
  %6151 = vmatprep.subr.bf16.mxu0 0
  %6152 = vmatpush1.bf16.msra.mxu0 0
  %6153 = vmatprep.subr.bf16.mxu0 0
  %6154 = vmatpush1.bf16.msra.mxu0 0
  %6155 = vmatprep.subr.bf16.mxu0 0
  %6156 = vmatpush1.bf16.msra.mxu0 0
  %6157 = vmatprep.subr.bf16.mxu0 0
  %6158 = vmatpush1.bf16.msra.mxu0 0
  %6159 = vmatprep.subr.bf16.mxu0 0
  %6160 = vmatpush1.bf16.msra.mxu0 0
  %6161 = vmatprep.subr.bf16.mxu0 0
  %6162 = vmatpush1.bf16.msra.mxu0 0
  %6163 = vmatprep.subr.bf16.mxu0 0
  %6164 = vmatpush1.bf16.msra.mxu0 0
  %6165 = vmatprep.subr.bf16.mxu0 0
  %6166 = vmatpush1.bf16.msra.mxu0 0
  %6167 = vmatprep.subr.bf16.mxu0 0
  %6168 = vmatpush1.bf16.msra.mxu0 0
  %6169 = vmatprep.mubr.bf16.mxu0 0
  %6170 = vmatmul.mubr.bf16.gmra.mrb[0].mxu0 %v6114
  %v6171 = vpop.f32.mrb[0].mxu0
  %v6172 = vadd.f32 %v6088, %v6171
  %v6173 = vpop.f32.mrb[0].mxu0
  %v6174 = vpop.f32.mrb[0].mxu0
  %v6175 = vadd.f32 %v6088, %v6174
  %v6176 = vpop.f32.mrb[0].mxu0
  %6177 = vmatprep.mubr.bf16.mxu0 0
  %6178 = vmatmul.mubr.bf16.gmra.mrb[0].mxu0 %v6117
  %v6179 = vpop.f32.mrb[0].mxu0
  %v6180 = vadd.f32 %v6088, %v6179
  %v6181 = vpop.f32.mrb[0].mxu0
  %v6182 = vpop.f32.mrb[0].mxu0
  %v6183 = vadd.f32 %v6088, %v6182
  %v6184 = vpop.f32.mrb[0].mxu0
  %6185 = vmatprep.mubr.bf16.mxu0 0
  %6186 = vmatmul.mubr.bf16.gmra.mrb[0].mxu0 %v6120
  %v6187 = vpop.f32.mrb[0].mxu0
  %v6188 = vadd.f32 %v6088, %v6187
  %v6189 = vpop.f32.mrb[0].mxu0
  %v6190 = vpop.f32.mrb[0].mxu0
  %v6191 = vadd.f32 %v6088, %v6190
  %v6192 = vpop.f32.mrb[0].mxu0
  %6193 = vmatprep.mubr.bf16.mxu0 0
  %6194 = vmatmul.mubr.bf16.gmra.mrb[0].mxu0 %v6123
  %v6195 = vpop.f32.mrb[0].mxu0
  %v6196 = vadd.f32 %v6088, %v6195
  %v6197 = vpop.f32.mrb[0].mxu0
  %v6198 = vpop.f32.mrb[0].mxu0
  %v6199 = vadd.f32 %v6088, %v6198
  %v6200 = vpop.f32.mrb[0].mxu0
  %6201 = vmatprep.mubr.bf16.mxu0 0
  %6202 = vmatmul.mubr.bf16.gmra.mrb[0].mxu0 %v6126
  %v6203 = vpop.f32.mrb[0].mxu0
  %v6204 = vadd.f32 %v6088, %v6203
  %v6205 = vpop.f32.mrb[0].mxu0
  %v6206 = vpop.f32.mrb[0].mxu0
  %v6207 = vadd.f32 %v6088, %v6206
  %v6208 = vpop.f32.mrb[0].mxu0
  %6209 = vmatprep.mubr.bf16.mxu0 0
  %6210 = vmatmul.mubr.bf16.gmra.mrb[0].mxu0 %v6129
  %v6211 = vpop.f32.mrb[0].mxu0
  %v6212 = vadd.f32 %v6088, %v6211
  %v6213 = vpop.f32.mrb[0].mxu0
  %v6214 = vpop.f32.mrb[0].mxu0
  %v6215 = vadd.f32 %v6088, %v6214
  %v6216 = vpop.f32.mrb[0].mxu0
  %6217 = vmatprep.mubr.bf16.mxu0 0
  %6218 = vmatmul.mubr.bf16.gmra.mrb[0].mxu0 %v6132
  %v6219 = vpop.f32.mrb[0].mxu0
  %v6220 = vadd.f32 %v6088, %v6219
  %v6221 = vpop.f32.mrb[0].mxu0
  %v6222 = vpop.f32.mrb[0].mxu0
  %v6223 = vadd.f32 %v6088, %v6222
  %v6224 = vpop.f32.mrb[0].mxu0
  %6225 = vmatprep.mubr.bf16.mxu0 0
  %6226 = vmatmul.mubr.bf16.gmra.mrb[0].mxu0 %v6135
  %v6227 = vpop.f32.mrb[0].mxu0
  %v6228 = vadd.f32 %v6088, %v6227
  %v6229 = vpop.f32.mrb[0].mxu0
  %v6230 = vpop.f32.mrb[0].mxu0
  %v6231 = vadd.f32 %v6088, %v6230
  %v6232 = vpop.f32.mrb[0].mxu0
  %6233 = vdwg.mxu0
  %v6234 = vmax.f32 %v6172, 0.0
  %v6235 = vmax.f32 %v6175, 0.0
  %v6236 = vmax.f32 %v6180, 0.0
  %v6237 = vmax.f32 %v6183, 0.0
  %v6238 = vmax.f32 %v6188, 0.0
  %v6239 = vmax.f32 %v6191, 0.0
  %v6240 = vmax.f32 %v6196, 0.0
  %v6241 = vmax.f32 %v6199, 0.0
  %v6242 = vmax.f32 %v6204, 0.0
  %v6243 = vmax.f32 %v6207, 0.0
  %v6244 = vmax.f32 %v6212, 0.0
  %v6245 = vmax.f32 %v6215, 0.0
  %v6246 = vmax.f32 %v6220, 0.0
  %v6247 = vmax.f32 %v6223, 0.0
  %v6248 = vmax.f32 %v6228, 0.0
  %v6249 = vmax.f32 %v6231, 0.0
  %v6250 = vpack.c.bf16 %v6235, %v6234
  %v6251 = vpack.c.bf16 %v6237, %v6236
  %v6252 = vpack.c.bf16 %v6239, %v6238
  %v6253 = vpack.c.bf16 %v6241, %v6240
  %v6254 = vpack.c.bf16 %v6243, %v6242
  %v6255 = vpack.c.bf16 %v6245, %v6244
  %v6256 = vpack.c.bf16 %v6247, %v6246
  %v6257 = vpack.c.bf16 %v6249, %v6248
  %s6258 = scalar_lea.vmem %s6, 64
  %v6259 = vld [vmem:[%s6258] sm:$0xf]
  %v6260 = vld [vmem:[%s6258 + $0x4] sm:$0xf]
  %v6261 = vld [vmem:[%s6258 + $0x8] sm:$0xf]
  %v6262 = vld [vmem:[%s6258 + $0xc] sm:$0xf]
  %v6263 = vld [vmem:[%s6258 + $0x10] sm:$0xf]
  %v6264 = vld [vmem:[%s6258 + $0x14] sm:$0xf]
  %v6265 = vld [vmem:[%s6258 + $0x18] sm:$0xf]
  %v6266 = vld [vmem:[%s6258 + $0x1c] sm:$0xf]
  %v6267 = vld [vmem:[%s6258 + $0x20] sm:$0xf]
  %v6268 = vld [vmem:[%s6258 + $0x24] sm:$0xf]
  %v6269 = vld [vmem:[%s6258 + $0x28] sm:$0xf]
  %v6270 = vld [vmem:[%s6258 + $0x2c] sm:$0xf]
  %v6271 = vld [vmem:[%s6258 + $0x30] sm:$0xf]
  %v6272 = vld [vmem:[%s6258 + $0x34] sm:$0xf]
  %v6273 = vld [vmem:[%s6258 + $0x38] sm:$0xf]
  %v6274 = vld [vmem:[%s6258 + $0x3c] sm:$0xf]
  %v6275 = vlaneseq
  %v6276 = vshrl.u32 %v6275, 7
  %v6277 = vsub.s32 5, %v6276
  %v6278 = vrot.slane %v3530, %v6277
  %v6295 = vunpack.c.l.b16 %v6259
  %v6296 = vunpack.c.l.b16 %v6260
  %v6297 = vunpack.c.l.b16 %v6261
  %v6298 = vunpack.c.l.b16 %v6262
  %v6299 = vunpack.c.l.b16 %v6263
  %v6300 = vunpack.c.l.b16 %v6264
  %v6301 = vunpack.c.l.b16 %v6265
  %v6302 = vunpack.c.l.b16 %v6266
  %v6303 = vunpack.c.l.b16 %v6267
  %v6304 = vunpack.c.l.b16 %v6268
  %v6305 = vunpack.c.l.b16 %v6269
  %v6306 = vunpack.c.l.b16 %v6270
  %v6307 = vunpack.c.l.b16 %v6271
  %v6308 = vunpack.c.l.b16 %v6272
  %v6309 = vunpack.c.l.b16 %v6273
  %v6310 = vunpack.c.l.b16 %v6274
  %v6311 = vpack.c.b16 %v6296, %v6295
  %v6312 = vpack.c.b16 %v6298, %v6297
  %v6313 = vpack.c.b16 %v6300, %v6299
  %v6314 = vpack.c.b16 %v6302, %v6301
  %v6315 = vpack.c.b16 %v6304, %v6303
  %v6316 = vpack.c.b16 %v6306, %v6305
  %v6317 = vpack.c.b16 %v6308, %v6307
  %v6318 = vpack.c.b16 %v6310, %v6309
  %6327 = vmatprep.subr.bf16.mxu0 0
  %6328 = vmatpush1.bf16.msra.mxu0 %v6311
  %6329 = vmatprep.subr.bf16.mxu0 0
  %6330 = vmatpush1.bf16.msra.mxu0 %v6312
  %6331 = vmatprep.subr.bf16.mxu0 0
  %6332 = vmatpush1.bf16.msra.mxu0 %v6313
  %6333 = vmatprep.subr.bf16.mxu0 0
  %6334 = vmatpush1.bf16.msra.mxu0 %v6314
  %6335 = vmatprep.subr.bf16.mxu0 0
  %6336 = vmatpush1.bf16.msra.mxu0 %v6315
  %6337 = vmatprep.subr.bf16.mxu0 0
  %6338 = vmatpush1.bf16.msra.mxu0 %v6316
  %6339 = vmatprep.subr.bf16.mxu0 0
  %6340 = vmatpush1.bf16.msra.mxu0 %v6317
  %6341 = vmatprep.subr.bf16.mxu0 0
  %6342 = vmatpush1.bf16.msra.mxu0 %v6318
  %6343 = vmatprep.subr.bf16.mxu0 0
  %6344 = vmatpush1.bf16.msra.mxu0 0
  %6345 = vmatprep.subr.bf16.mxu0 0
  %6346 = vmatpush1.bf16.msra.mxu0 0
  %6347 = vmatprep.subr.bf16.mxu0 0
  %6348 = vmatpush1.bf16.msra.mxu0 0
  %6349 = vmatprep.subr.bf16.mxu0 0
  %6350 = vmatpush1.bf16.msra.mxu0 0
  %6351 = vmatprep.subr.bf16.mxu0 0
  %6352 = vmatpush1.bf16.msra.mxu0 0
  %6353 = vmatprep.subr.bf16.mxu0 0
  %6354 = vmatpush1.bf16.msra.mxu0 0
  %6355 = vmatprep.subr.bf16.mxu0 0
  %6356 = vmatpush1.bf16.msra.mxu0 0
  %6357 = vmatprep.subr.bf16.mxu0 0
  %6358 = vmatpush1.bf16.msra.mxu0 0
  %6359 = vmatprep.mubr.bf16.mxu0 0
  %6360 = vmatmul.mubr.bf16.gmra.mrb[0].mxu0 %v6250
  %v6361 = vpop.f32.mrb[0].mxu0
  %v6362 = vadd.f32 %v6278, %v6361
  %v6363 = vpop.f32.mrb[0].mxu0
  %v6364 = vpop.f32.mrb[0].mxu0
  %v6365 = vadd.f32 %v6278, %v6364
  %v6366 = vpop.f32.mrb[0].mxu0
  %6367 = vmatprep.mubr.bf16.mxu0 0
  %6368 = vmatmul.mubr.bf16.gmra.mrb[0].mxu0 %v6251
  %v6369 = vpop.f32.mrb[0].mxu0
  %v6370 = vadd.f32 %v6278, %v6369
  %v6371 = vpop.f32.mrb[0].mxu0
  %v6372 = vpop.f32.mrb[0].mxu0
  %v6373 = vadd.f32 %v6278, %v6372
  %v6374 = vpop.f32.mrb[0].mxu0
  %6375 = vmatprep.mubr.bf16.mxu0 0
  %6376 = vmatmul.mubr.bf16.gmra.mrb[0].mxu0 %v6252
  %v6377 = vpop.f32.mrb[0].mxu0
  %v6378 = vadd.f32 %v6278, %v6377
  %v6379 = vpop.f32.mrb[0].mxu0
  %v6380 = vpop.f32.mrb[0].mxu0
  %v6381 = vadd.f32 %v6278, %v6380
  %v6382 = vpop.f32.mrb[0].mxu0
  %6383 = vmatprep.mubr.bf16.mxu0 0
  %6384 = vmatmul.mubr.bf16.gmra.mrb[0].mxu0 %v6253
  %v6385 = vpop.f32.mrb[0].mxu0
  %v6386 = vadd.f32 %v6278, %v6385
  %v6387 = vpop.f32.mrb[0].mxu0
  %v6388 = vpop.f32.mrb[0].mxu0
  %v6389 = vadd.f32 %v6278, %v6388
  %v6390 = vpop.f32.mrb[0].mxu0
  %6391 = vmatprep.mubr.bf16.mxu0 0
  %6392 = vmatmul.mubr.bf16.gmra.mrb[0].mxu0 %v6254
  %v6393 = vpop.f32.mrb[0].mxu0
  %v6394 = vadd.f32 %v6278, %v6393
  %v6395 = vpop.f32.mrb[0].mxu0
  %v6396 = vpop.f32.mrb[0].mxu0
  %v6397 = vadd.f32 %v6278, %v6396
  %v6398 = vpop.f32.mrb[0].mxu0
  %6399 = vmatprep.mubr.bf16.mxu0 0
  %6400 = vmatmul.mubr.bf16.gmra.mrb[0].mxu0 %v6255
  %v6401 = vpop.f32.mrb[0].mxu0
  %v6402 = vadd.f32 %v6278, %v6401
  %v6403 = vpop.f32.mrb[0].mxu0
  %v6404 = vpop.f32.mrb[0].mxu0
  %v6405 = vadd.f32 %v6278, %v6404
  %v6406 = vpop.f32.mrb[0].mxu0
  %6407 = vmatprep.mubr.bf16.mxu0 0
  %6408 = vmatmul.mubr.bf16.gmra.mrb[0].mxu0 %v6256
  %v6409 = vpop.f32.mrb[0].mxu0
  %v6410 = vadd.f32 %v6278, %v6409
  %v6411 = vpop.f32.mrb[0].mxu0
  %v6412 = vpop.f32.mrb[0].mxu0
  %v6413 = vadd.f32 %v6278, %v6412
  %v6414 = vpop.f32.mrb[0].mxu0
  %6415 = vmatprep.mubr.bf16.mxu0 0
  %6416 = vmatmul.mubr.bf16.gmra.mrb[0].mxu0 %v6257
  %v6417 = vpop.f32.mrb[0].mxu0
  %v6418 = vadd.f32 %v6278, %v6417
  %v6419 = vpop.f32.mrb[0].mxu0
  %v6420 = vpop.f32.mrb[0].mxu0
  %v6421 = vadd.f32 %v6278, %v6420
  %v6422 = vpop.f32.mrb[0].mxu0
  %6423 = vdwg.mxu0
  %v6424 = vadd.f32 %v6052, %v6362
  %v6425 = vadd.f32 %v6053, %v6365
  %v6426 = vadd.f32 %v6054, %v6370
  %v6427 = vadd.f32 %v6055, %v6373
  %v6428 = vadd.f32 %v6056, %v6378
  %v6429 = vadd.f32 %v6057, %v6381
  %v6430 = vadd.f32 %v6058, %v6386
  %v6431 = vadd.f32 %v6059, %v6389
  %v6432 = vadd.f32 %v6060, %v6394
  %v6433 = vadd.f32 %v6061, %v6397
  %v6434 = vadd.f32 %v6062, %v6402
  %v6435 = vadd.f32 %v6063, %v6405
  %v6436 = vadd.f32 %v6064, %v6410
  %v6437 = vadd.f32 %v6065, %v6413
  %v6438 = vadd.f32 %v6066, %v6418
  %v6439 = vadd.f32 %v6067, %v6421
  %v6440 = vsel %vm408, %v6424, 0.0
  %6441 = vadd.xlane.f32.xlu0 %v6440
  %v6442 = vpop.xlane.xlu0 %6441
  %v6443 = vsel %vm408, %v6425, 0.0
  %6444 = vadd.xlane.f32.xlu0 %v6443
  %v6445 = vpop.xlane.xlu0 %6444
  %v6446 = vsel %vm408, %v6426, 0.0
  %6447 = vadd.xlane.f32.xlu0 %v6446
  %v6448 = vpop.xlane.xlu0 %6447
  %v6449 = vsel %vm408, %v6427, 0.0
  %6450 = vadd.xlane.f32.xlu0 %v6449
  %v6451 = vpop.xlane.xlu0 %6450
  %v6452 = vsel %vm408, %v6428, 0.0
  %6453 = vadd.xlane.f32.xlu0 %v6452
  %v6454 = vpop.xlane.xlu0 %6453
  %v6455 = vsel %vm408, %v6429, 0.0
  %6456 = vadd.xlane.f32.xlu0 %v6455
  %v6457 = vpop.xlane.xlu0 %6456
  %v6458 = vsel %vm408, %v6430, 0.0
  %6459 = vadd.xlane.f32.xlu0 %v6458
  %v6460 = vpop.xlane.xlu0 %6459
  %v6461 = vsel %vm408, %v6431, 0.0
  %6462 = vadd.xlane.f32.xlu0 %v6461
  %v6463 = vpop.xlane.xlu0 %6462
  %v6464 = vsel %vm408, %v6432, 0.0
  %6465 = vadd.xlane.f32.xlu0 %v6464
  %v6466 = vpop.xlane.xlu0 %6465
  %v6467 = vsel %vm408, %v6433, 0.0
  %6468 = vadd.xlane.f32.xlu0 %v6467
  %v6469 = vpop.xlane.xlu0 %6468
  %v6470 = vsel %vm408, %v6434, 0.0
  %6471 = vadd.xlane.f32.xlu0 %v6470
  %v6472 = vpop.xlane.xlu0 %6471
  %v6473 = vsel %vm408, %v6435, 0.0
  %6474 = vadd.xlane.f32.xlu0 %v6473
  %v6475 = vpop.xlane.xlu0 %6474
  %v6476 = vsel %vm408, %v6436, 0.0
  %6477 = vadd.xlane.f32.xlu0 %v6476
  %v6478 = vpop.xlane.xlu0 %6477
  %v6479 = vsel %vm408, %v6437, 0.0
  %6480 = vadd.xlane.f32.xlu0 %v6479
  %v6481 = vpop.xlane.xlu0 %6480
  %v6482 = vsel %vm408, %v6438, 0.0
  %6483 = vadd.xlane.f32.xlu0 %v6482
  %v6484 = vpop.xlane.xlu0 %6483
  %v6485 = vsel %vm408, %v6439, 0.0
  %6486 = vadd.xlane.f32.xlu0 %v6485
  %v6487 = vpop.xlane.xlu0 %6486
  %v6488 = vmul.f32 %v6442, %v2646
  %v6489 = vmul.f32 %v6445, %v2646
  %v6490 = vmul.f32 %v6448, %v2646
  %v6491 = vmul.f32 %v6451, %v2646
  %v6492 = vmul.f32 %v6454, %v2646
  %v6493 = vmul.f32 %v6457, %v2646
  %v6494 = vmul.f32 %v6460, %v2646
  %v6495 = vmul.f32 %v6463, %v2646
  %v6496 = vmul.f32 %v6466, %v2646
  %v6497 = vmul.f32 %v6469, %v2646
  %v6498 = vmul.f32 %v6472, %v2646
  %v6499 = vmul.f32 %v6475, %v2646
  %v6500 = vmul.f32 %v6478, %v2646
  %v6501 = vmul.f32 %v6481, %v2646
  %v6502 = vmul.f32 %v6484, %v2646
  %v6503 = vmul.f32 %v6487, %v2646
  %v6504 = vmul.f32 %v6424, %v6424
  %v6505 = vmul.f32 %v6425, %v6425
  %v6506 = vmul.f32 %v6426, %v6426
  %v6507 = vmul.f32 %v6427, %v6427
  %v6508 = vmul.f32 %v6428, %v6428
  %v6509 = vmul.f32 %v6429, %v6429
  %v6510 = vmul.f32 %v6430, %v6430
  %v6511 = vmul.f32 %v6431, %v6431
  %v6512 = vmul.f32 %v6432, %v6432
  %v6513 = vmul.f32 %v6433, %v6433
  %v6514 = vmul.f32 %v6434, %v6434
  %v6515 = vmul.f32 %v6435, %v6435
  %v6516 = vmul.f32 %v6436, %v6436
  %v6517 = vmul.f32 %v6437, %v6437
  %v6518 = vmul.f32 %v6438, %v6438
  %v6519 = vmul.f32 %v6439, %v6439
  %v6520 = vsel %vm408, %v6504, 0.0
  %6521 = vadd.xlane.f32.xlu0 %v6520
  %v6522 = vpop.xlane.xlu0 %6521
  %v6523 = vsel %vm408, %v6505, 0.0
  %6524 = vadd.xlane.f32.xlu0 %v6523
  %v6525 = vpop.xlane.xlu0 %6524
  %v6526 = vsel %vm408, %v6506, 0.0
  %6527 = vadd.xlane.f32.xlu0 %v6526
  %v6528 = vpop.xlane.xlu0 %6527
  %v6529 = vsel %vm408, %v6507, 0.0
  %6530 = vadd.xlane.f32.xlu0 %v6529
  %v6531 = vpop.xlane.xlu0 %6530
  %v6532 = vsel %vm408, %v6508, 0.0
  %6533 = vadd.xlane.f32.xlu0 %v6532
  %v6534 = vpop.xlane.xlu0 %6533
  %v6535 = vsel %vm408, %v6509, 0.0
  %6536 = vadd.xlane.f32.xlu0 %v6535
  %v6537 = vpop.xlane.xlu0 %6536
  %v6538 = vsel %vm408, %v6510, 0.0
  %6539 = vadd.xlane.f32.xlu0 %v6538
  %v6540 = vpop.xlane.xlu0 %6539
  %v6541 = vsel %vm408, %v6511, 0.0
  %6542 = vadd.xlane.f32.xlu0 %v6541
  %v6543 = vpop.xlane.xlu0 %6542
  %v6544 = vsel %vm408, %v6512, 0.0
  %6545 = vadd.xlane.f32.xlu0 %v6544
  %v6546 = vpop.xlane.xlu0 %6545
  %v6547 = vsel %vm408, %v6513, 0.0
  %6548 = vadd.xlane.f32.xlu0 %v6547
  %v6549 = vpop.xlane.xlu0 %6548
  %v6550 = vsel %vm408, %v6514, 0.0
  %6551 = vadd.xlane.f32.xlu0 %v6550
  %v6552 = vpop.xlane.xlu0 %6551
  %v6553 = vsel %vm408, %v6515, 0.0
  %6554 = vadd.xlane.f32.xlu0 %v6553
  %v6555 = vpop.xlane.xlu0 %6554
  %v6556 = vsel %vm408, %v6516, 0.0
  %6557 = vadd.xlane.f32.xlu0 %v6556
  %v6558 = vpop.xlane.xlu0 %6557
  %v6559 = vsel %vm408, %v6517, 0.0
  %6560 = vadd.xlane.f32.xlu0 %v6559
  %v6561 = vpop.xlane.xlu0 %6560
  %v6562 = vsel %vm408, %v6518, 0.0
  %6563 = vadd.xlane.f32.xlu0 %v6562
  %v6564 = vpop.xlane.xlu0 %6563
  %v6565 = vsel %vm408, %v6519, 0.0
  %6566 = vadd.xlane.f32.xlu0 %v6565
  %v6567 = vpop.xlane.xlu0 %6566
  %v6568 = vmul.f32 %v6522, %v2646
  %v6569 = vmul.f32 %v6525, %v2646
  %v6570 = vmul.f32 %v6528, %v2646
  %v6571 = vmul.f32 %v6531, %v2646
  %v6572 = vmul.f32 %v6534, %v2646
  %v6573 = vmul.f32 %v6537, %v2646
  %v6574 = vmul.f32 %v6540, %v2646
  %v6575 = vmul.f32 %v6543, %v2646
  %v6576 = vmul.f32 %v6546, %v2646
  %v6577 = vmul.f32 %v6549, %v2646
  %v6578 = vmul.f32 %v6552, %v2646
  %v6579 = vmul.f32 %v6555, %v2646
  %v6580 = vmul.f32 %v6558, %v2646
  %v6581 = vmul.f32 %v6561, %v2646
  %v6582 = vmul.f32 %v6564, %v2646
  %v6583 = vmul.f32 %v6567, %v2646
  %v6584 = vmul.f32 %v6488, %v6488
  %v6585 = vmul.f32 %v6489, %v6489
  %v6586 = vmul.f32 %v6490, %v6490
  %v6587 = vmul.f32 %v6491, %v6491
  %v6588 = vmul.f32 %v6492, %v6492
  %v6589 = vmul.f32 %v6493, %v6493
  %v6590 = vmul.f32 %v6494, %v6494
  %v6591 = vmul.f32 %v6495, %v6495
  %v6592 = vmul.f32 %v6496, %v6496
  %v6593 = vmul.f32 %v6497, %v6497
  %v6594 = vmul.f32 %v6498, %v6498
  %v6595 = vmul.f32 %v6499, %v6499
  %v6596 = vmul.f32 %v6500, %v6500
  %v6597 = vmul.f32 %v6501, %v6501
  %v6598 = vmul.f32 %v6502, %v6502
  %v6599 = vmul.f32 %v6503, %v6503
  %v6600 = vsub.f32 %v6568, %v6584
  %v6601 = vsub.f32 %v6569, %v6585
  %v6602 = vsub.f32 %v6570, %v6586
  %v6603 = vsub.f32 %v6571, %v6587
  %v6604 = vsub.f32 %v6572, %v6588
  %v6605 = vsub.f32 %v6573, %v6589
  %v6606 = vsub.f32 %v6574, %v6590
  %v6607 = vsub.f32 %v6575, %v6591
  %v6608 = vsub.f32 %v6576, %v6592
  %v6609 = vsub.f32 %v6577, %v6593
  %v6610 = vsub.f32 %v6578, %v6594
  %v6611 = vsub.f32 %v6579, %v6595
  %v6612 = vsub.f32 %v6580, %v6596
  %v6613 = vsub.f32 %v6581, %v6597
  %v6614 = vsub.f32 %v6582, %v6598
  %v6615 = vsub.f32 %v6583, %v6599
  %v6616 = vsub.f32 %v6424, %v6488
  %v6617 = vsub.f32 %v6425, %v6489
  %v6618 = vsub.f32 %v6426, %v6490
  %v6619 = vsub.f32 %v6427, %v6491
  %v6620 = vsub.f32 %v6428, %v6492
  %v6621 = vsub.f32 %v6429, %v6493
  %v6622 = vsub.f32 %v6430, %v6494
  %v6623 = vsub.f32 %v6431, %v6495
  %v6624 = vsub.f32 %v6432, %v6496
  %v6625 = vsub.f32 %v6433, %v6497
  %v6626 = vsub.f32 %v6434, %v6498
  %v6627 = vsub.f32 %v6435, %v6499
  %v6628 = vsub.f32 %v6436, %v6500
  %v6629 = vsub.f32 %v6437, %v6501
  %v6630 = vsub.f32 %v6438, %v6502
  %v6631 = vsub.f32 %v6439, %v6503
  %v6632 = vadd.f32 %v6600, 1e-05
  %v6633 = vadd.f32 %v6601, 1e-05
  %v6634 = vadd.f32 %v6602, 1e-05
  %v6635 = vadd.f32 %v6603, 1e-05
  %v6636 = vadd.f32 %v6604, 1e-05
  %v6637 = vadd.f32 %v6605, 1e-05
  %v6638 = vadd.f32 %v6606, 1e-05
  %v6639 = vadd.f32 %v6607, 1e-05
  %v6640 = vadd.f32 %v6608, 1e-05
  %v6641 = vadd.f32 %v6609, 1e-05
  %v6642 = vadd.f32 %v6610, 1e-05
  %v6643 = vadd.f32 %v6611, 1e-05
  %v6644 = vadd.f32 %v6612, 1e-05
  %v6645 = vadd.f32 %v6613, 1e-05
  %v6646 = vadd.f32 %v6614, 1e-05
  %v6647 = vadd.f32 %v6615, 1e-05
  %v6648 = vrsqrt.pop %v6632
  %v6649 = vrsqrt.pop %v6633
  %v6650 = vrsqrt.pop %v6634
  %v6651 = vrsqrt.pop %v6635
  %v6652 = vrsqrt.pop %v6636
  %v6653 = vrsqrt.pop %v6637
  %v6654 = vrsqrt.pop %v6638
  %v6655 = vrsqrt.pop %v6639
  %v6656 = vrsqrt.pop %v6640
  %v6657 = vrsqrt.pop %v6641
  %v6658 = vrsqrt.pop %v6642
  %v6659 = vrsqrt.pop %v6643
  %v6660 = vrsqrt.pop %v6644
  %v6661 = vrsqrt.pop %v6645
  %v6662 = vrsqrt.pop %v6646
  %v6663 = vrsqrt.pop %v6647
  %v6664 = vmul.f32 %v6616, %v6648
  %v6665 = vmul.f32 %v6617, %v6649
  %v6666 = vmul.f32 %v6618, %v6650
  %v6667 = vmul.f32 %v6619, %v6651
  %v6668 = vmul.f32 %v6620, %v6652
  %v6669 = vmul.f32 %v6621, %v6653
  %v6670 = vmul.f32 %v6622, %v6654
  %v6671 = vmul.f32 %v6623, %v6655
  %v6672 = vmul.f32 %v6624, %v6656
  %v6673 = vmul.f32 %v6625, %v6657
  %v6674 = vmul.f32 %v6626, %v6658
  %v6675 = vmul.f32 %v6627, %v6659
  %v6676 = vmul.f32 %v6628, %v6660
  %v6677 = vmul.f32 %v6629, %v6661
  %v6678 = vmul.f32 %v6630, %v6662
  %v6679 = vmul.f32 %v6631, %v6663
  %v6680 = vlaneseq
  %v6681 = vshrl.u32 %v6680, 7
  %v6682 = vsub.s32 6, %v6681
  %v6683 = vrot.slane %v3530, %v6682
  %v6684 = vmul.f32 %v6664, %v6683
  %v6685 = vmul.f32 %v6665, %v6683
  %v6686 = vmul.f32 %v6666, %v6683
  %v6687 = vmul.f32 %v6667, %v6683
  %v6688 = vmul.f32 %v6668, %v6683
  %v6689 = vmul.f32 %v6669, %v6683
  %v6690 = vmul.f32 %v6670, %v6683
  %v6691 = vmul.f32 %v6671, %v6683
  %v6692 = vmul.f32 %v6672, %v6683
  %v6693 = vmul.f32 %v6673, %v6683
  %v6694 = vmul.f32 %v6674, %v6683
  %v6695 = vmul.f32 %v6675, %v6683
  %v6696 = vmul.f32 %v6676, %v6683
  %v6697 = vmul.f32 %v6677, %v6683
  %v6698 = vmul.f32 %v6678, %v6683
  %v6699 = vmul.f32 %v6679, %v6683
  %v6700 = vlaneseq
  %v6701 = vshrl.u32 %v6700, 7
  %v6702 = vsub.s32 7, %v6701
  %v6703 = vrot.slane %v3530, %v6702
  %v6704 = vadd.f32 %v6684, %v6703
  %v6705 = vadd.f32 %v6685, %v6703
  %v6706 = vadd.f32 %v6686, %v6703
  %v6707 = vadd.f32 %v6687, %v6703
  %v6708 = vadd.f32 %v6688, %v6703
  %v6709 = vadd.f32 %v6689, %v6703
  %v6710 = vadd.f32 %v6690, %v6703
  %v6711 = vadd.f32 %v6691, %v6703
  %v6712 = vadd.f32 %v6692, %v6703
  %v6713 = vadd.f32 %v6693, %v6703
  %v6714 = vadd.f32 %v6694, %v6703
  %v6715 = vadd.f32 %v6695, %v6703
  %v6716 = vadd.f32 %v6696, %v6703
  %v6717 = vadd.f32 %v6697, %v6703
  %v6718 = vadd.f32 %v6698, %v6703
  %v6719 = vadd.f32 %v6699, %v6703
  %v6736 = vrot.slane %v6705, 7
  %vm6737 = vcmask 1041409
  %v6738 = vsel %vm6737, %v6736, %v6704
  %v6739 = vrot.slane %v6706, 6
  %vm6740 = vcmask 1042434
  %v6741 = vsel %vm6740, %v6739, %v6738
  %v6742 = vrot.slane %v6707, 5
  %vm6743 = vcmask 1043459
  %v6744 = vsel %vm6743, %v6742, %v6741
  %v6745 = vrot.slane %v6708, 4
  %vm6746 = vcmask 1044484
  %v6747 = vsel %vm6746, %v6745, %v6744
  %v6748 = vrot.slane %v6709, 3
  %vm6749 = vcmask 1045509
  %v6750 = vsel %vm6749, %v6748, %v6747
  %v6751 = vrot.slane %v6710, 2
  %vm6752 = vcmask 1046534
  %v6753 = vsel %vm6752, %v6751, %v6750
  %v6754 = vrot.slane %v6711, 1
  %vm6755 = vcmask 1047559
  %v6756 = vsel %vm6755, %v6754, %v6753
  %v6757 = vrot.slane %v6713, 7
  %v6758 = vsel %vm6737, %v6757, %v6712
  %v6759 = vrot.slane %v6714, 6
  %v6760 = vsel %vm6740, %v6759, %v6758
  %v6761 = vrot.slane %v6715, 5
  %v6762 = vsel %vm6743, %v6761, %v6760
  %v6763 = vrot.slane %v6716, 4
  %v6764 = vsel %vm6746, %v6763, %v6762
  %v6765 = vrot.slane %v6717, 3
  %v6766 = vsel %vm6749, %v6765, %v6764
  %v6767 = vrot.slane %v6718, 2
  %v6768 = vsel %vm6752, %v6767, %v6766
  %v6769 = vrot.slane %v6719, 1
  %v6770 = vsel %vm6755, %v6769, %v6768
  %v6773 = vrot.slane %v6704, 1
  %v6774 = vsel %vm6737, %v6705, %v6773
  %v6775 = vrot.slane %v6706, 7
  %v6776 = vsel %vm6740, %v6775, %v6774
  %v6777 = vrot.slane %v6707, 6
  %v6778 = vsel %vm6743, %v6777, %v6776
  %v6779 = vrot.slane %v6708, 5
  %v6780 = vsel %vm6746, %v6779, %v6778
  %v6781 = vrot.slane %v6709, 4
  %v6782 = vsel %vm6749, %v6781, %v6780
  %v6783 = vrot.slane %v6710, 3
  %v6784 = vsel %vm6752, %v6783, %v6782
  %v6785 = vrot.slane %v6711, 2
  %v6786 = vsel %vm6755, %v6785, %v6784
  %v6787 = vrot.slane %v6712, 1
  %v6788 = vsel %vm6737, %v6713, %v6787
  %v6789 = vrot.slane %v6714, 7
  %v6790 = vsel %vm6740, %v6789, %v6788
  %v6791 = vrot.slane %v6715, 6
  %v6792 = vsel %vm6743, %v6791, %v6790
  %v6793 = vrot.slane %v6716, 5
  %v6794 = vsel %vm6746, %v6793, %v6792
  %v6795 = vrot.slane %v6717, 4
  %v6796 = vsel %vm6749, %v6795, %v6794
  %v6797 = vrot.slane %v6718, 3
  %v6798 = vsel %vm6752, %v6797, %v6796
  %v6799 = vrot.slane %v6719, 2
  %v6800 = vsel %vm6755, %v6799, %v6798
  %6801 = vrot.lane.b32.xlu0 %v6786, 64
  %v6802 = vpop.permute.xlu0 %6801
  %6803 = vrot.lane.b32.xlu0 %v6800, 64
  %v6804 = vpop.permute.xlu0 %6803
  %v6807 = vrot.slane %v6704, 2
  %v6808 = vrot.slane %v6705, 1
  %v6809 = vsel %vm6737, %v6808, %v6807
  %v6810 = vsel %vm6740, %v6706, %v6809
  %v6811 = vrot.slane %v6707, 7
  %v6812 = vsel %vm6743, %v6811, %v6810
  %v6813 = vrot.slane %v6708, 6
  %v6814 = vsel %vm6746, %v6813, %v6812
  %v6815 = vrot.slane %v6709, 5
  %v6816 = vsel %vm6749, %v6815, %v6814
  %v6817 = vrot.slane %v6710, 4
  %v6818 = vsel %vm6752, %v6817, %v6816
  %v6819 = vrot.slane %v6711, 3
  %v6820 = vsel %vm6755, %v6819, %v6818
  %v6821 = vrot.slane %v6712, 2
  %v6822 = vrot.slane %v6713, 1
  %v6823 = vsel %vm6737, %v6822, %v6821
  %v6824 = vsel %vm6740, %v6714, %v6823
  %v6825 = vrot.slane %v6715, 7
  %v6826 = vsel %vm6743, %v6825, %v6824
  %v6827 = vrot.slane %v6716, 6
  %v6828 = vsel %vm6746, %v6827, %v6826
  %v6829 = vrot.slane %v6717, 5
  %v6830 = vsel %vm6749, %v6829, %v6828
  %v6831 = vrot.slane %v6718, 4
  %v6832 = vsel %vm6752, %v6831, %v6830
  %v6833 = vrot.slane %v6719, 3
  %v6834 = vsel %vm6755, %v6833, %v6832
  %v6837 = vrot.slane %v6704, 3
  %v6838 = vrot.slane %v6705, 2
  %v6839 = vsel %vm6737, %v6838, %v6837
  %v6840 = vrot.slane %v6706, 1
  %v6841 = vsel %vm6740, %v6840, %v6839
  %v6842 = vsel %vm6743, %v6707, %v6841
  %v6843 = vrot.slane %v6708, 7
  %v6844 = vsel %vm6746, %v6843, %v6842
  %v6845 = vrot.slane %v6709, 6
  %v6846 = vsel %vm6749, %v6845, %v6844
  %v6847 = vrot.slane %v6710, 5
  %v6848 = vsel %vm6752, %v6847, %v6846
  %v6849 = vrot.slane %v6711, 4
  %v6850 = vsel %vm6755, %v6849, %v6848
  %v6851 = vrot.slane %v6712, 3
  %v6852 = vrot.slane %v6713, 2
  %v6853 = vsel %vm6737, %v6852, %v6851
  %v6854 = vrot.slane %v6714, 1
  %v6855 = vsel %vm6740, %v6854, %v6853
  %v6856 = vsel %vm6743, %v6715, %v6855
  %v6857 = vrot.slane %v6716, 7
  %v6858 = vsel %vm6746, %v6857, %v6856
  %v6859 = vrot.slane %v6717, 6
  %v6860 = vsel %vm6749, %v6859, %v6858
  %v6861 = vrot.slane %v6718, 5
  %v6862 = vsel %vm6752, %v6861, %v6860
  %v6863 = vrot.slane %v6719, 4
  %v6864 = vsel %vm6755, %v6863, %v6862
  %6865 = vrot.lane.b32.xlu0 %v6850, 64
  %v6866 = vpop.permute.xlu0 %6865
  %6867 = vrot.lane.b32.xlu0 %v6864, 64
  %v6868 = vpop.permute.xlu0 %6867
  %v6871 = vrot.slane %v6704, 4
  %v6872 = vrot.slane %v6705, 3
  %v6873 = vsel %vm6737, %v6872, %v6871
  %v6874 = vrot.slane %v6706, 2
  %v6875 = vsel %vm6740, %v6874, %v6873
  %v6876 = vrot.slane %v6707, 1
  %v6877 = vsel %vm6743, %v6876, %v6875
  %v6878 = vsel %vm6746, %v6708, %v6877
  %v6879 = vrot.slane %v6709, 7
  %v6880 = vsel %vm6749, %v6879, %v6878
  %v6881 = vrot.slane %v6710, 6
  %v6882 = vsel %vm6752, %v6881, %v6880
  %v6883 = vrot.slane %v6711, 5
  %v6884 = vsel %vm6755, %v6883, %v6882
  %v6885 = vrot.slane %v6712, 4
  %v6886 = vrot.slane %v6713, 3
  %v6887 = vsel %vm6737, %v6886, %v6885
  %v6888 = vrot.slane %v6714, 2
  %v6889 = vsel %vm6740, %v6888, %v6887
  %v6890 = vrot.slane %v6715, 1
  %v6891 = vsel %vm6743, %v6890, %v6889
  %v6892 = vsel %vm6746, %v6716, %v6891
  %v6893 = vrot.slane %v6717, 7
  %v6894 = vsel %vm6749, %v6893, %v6892
  %v6895 = vrot.slane %v6718, 6
  %v6896 = vsel %vm6752, %v6895, %v6894
  %v6897 = vrot.slane %v6719, 5
  %v6898 = vsel %vm6755, %v6897, %v6896
  %v6901 = vrot.slane %v6704, 5
  %v6902 = vrot.slane %v6705, 4
  %v6903 = vsel %vm6737, %v6902, %v6901
  %v6904 = vrot.slane %v6706, 3
  %v6905 = vsel %vm6740, %v6904, %v6903
  %v6906 = vrot.slane %v6707, 2
  %v6907 = vsel %vm6743, %v6906, %v6905
  %v6908 = vrot.slane %v6708, 1
  %v6909 = vsel %vm6746, %v6908, %v6907
  %v6910 = vsel %vm6749, %v6709, %v6909
  %v6911 = vrot.slane %v6710, 7
  %v6912 = vsel %vm6752, %v6911, %v6910
  %v6913 = vrot.slane %v6711, 6
  %v6914 = vsel %vm6755, %v6913, %v6912
  %v6915 = vrot.slane %v6712, 5
  %v6916 = vrot.slane %v6713, 4
  %v6917 = vsel %vm6737, %v6916, %v6915
  %v6918 = vrot.slane %v6714, 3
  %v6919 = vsel %vm6740, %v6918, %v6917
  %v6920 = vrot.slane %v6715, 2
  %v6921 = vsel %vm6743, %v6920, %v6919
  %v6922 = vrot.slane %v6716, 1
  %v6923 = vsel %vm6746, %v6922, %v6921
  %v6924 = vsel %vm6749, %v6717, %v6923
  %v6925 = vrot.slane %v6718, 7
  %v6926 = vsel %vm6752, %v6925, %v6924
  %v6927 = vrot.slane %v6719, 6
  %v6928 = vsel %vm6755, %v6927, %v6926
  %6929 = vrot.lane.b32.xlu0 %v6914, 64
  %v6930 = vpop.permute.xlu0 %6929
  %6931 = vrot.lane.b32.xlu0 %v6928, 64
  %v6932 = vpop.permute.xlu0 %6931
  %v6935 = vrot.slane %v6704, 6
  %v6936 = vrot.slane %v6705, 5
  %v6937 = vsel %vm6737, %v6936, %v6935
  %v6938 = vrot.slane %v6706, 4
  %v6939 = vsel %vm6740, %v6938, %v6937
  %v6940 = vrot.slane %v6707, 3
  %v6941 = vsel %vm6743, %v6940, %v6939
  %v6942 = vrot.slane %v6708, 2
  %v6943 = vsel %vm6746, %v6942, %v6941
  %v6944 = vrot.slane %v6709, 1
  %v6945 = vsel %vm6749, %v6944, %v6943
  %v6946 = vsel %vm6752, %v6710, %v6945
  %v6947 = vrot.slane %v6711, 7
  %v6948 = vsel %vm6755, %v6947, %v6946
  %v6949 = vrot.slane %v6712, 6
  %v6950 = vrot.slane %v6713, 5
  %v6951 = vsel %vm6737, %v6950, %v6949
  %v6952 = vrot.slane %v6714, 4
  %v6953 = vsel %vm6740, %v6952, %v6951
  %v6954 = vrot.slane %v6715, 3
  %v6955 = vsel %vm6743, %v6954, %v6953
  %v6956 = vrot.slane %v6716, 2
  %v6957 = vsel %vm6746, %v6956, %v6955
  %v6958 = vrot.slane %v6717, 1
  %v6959 = vsel %vm6749, %v6958, %v6957
  %v6960 = vsel %vm6752, %v6718, %v6959
  %v6961 = vrot.slane %v6719, 7
  %v6962 = vsel %vm6755, %v6961, %v6960
  %v6965 = vrot.slane %v6704, 7
  %v6966 = vrot.slane %v6705, 6
  %v6967 = vsel %vm6737, %v6966, %v6965
  %v6968 = vrot.slane %v6706, 5
  %v6969 = vsel %vm6740, %v6968, %v6967
  %v6970 = vrot.slane %v6707, 4
  %v6971 = vsel %vm6743, %v6970, %v6969
  %v6972 = vrot.slane %v6708, 3
  %v6973 = vsel %vm6746, %v6972, %v6971
  %v6974 = vrot.slane %v6709, 2
  %v6975 = vsel %vm6749, %v6974, %v6973
  %v6976 = vrot.slane %v6710, 1
  %v6977 = vsel %vm6752, %v6976, %v6975
  %v6978 = vsel %vm6755, %v6711, %v6977
  %v6979 = vrot.slane %v6712, 7
  %v6980 = vrot.slane %v6713, 6
  %v6981 = vsel %vm6737, %v6980, %v6979
  %v6982 = vrot.slane %v6714, 5
  %v6983 = vsel %vm6740, %v6982, %v6981
  %v6984 = vrot.slane %v6715, 4
  %v6985 = vsel %vm6743, %v6984, %v6983
  %v6986 = vrot.slane %v6716, 3
  %v6987 = vsel %vm6746, %v6986, %v6985
  %v6988 = vrot.slane %v6717, 2
  %v6989 = vsel %vm6749, %v6988, %v6987
  %v6990 = vrot.slane %v6718, 1
  %v6991 = vsel %vm6752, %v6990, %v6989
  %v6992 = vsel %vm6755, %v6719, %v6991
  %6993 = vrot.lane.b32.xlu0 %v6978, 64
  %v6994 = vpop.permute.xlu0 %6993
  %6995 = vrot.lane.b32.xlu0 %v6992, 64
  %v6996 = vpop.permute.xlu0 %6995
  %v6999 = vsel %vm408, %v6756, %v6802
  %v7000 = vsel %vm408, %v6770, %v6804
  %v7001 = vsel %vm408, %v6820, %v6866
  %v7002 = vsel %vm408, %v6834, %v6868
  %v7003 = vsel %vm408, %v6884, %v6930
  %v7004 = vsel %vm408, %v6898, %v6932
  %v7005 = vsel %vm408, %v6948, %v6994
  %v7006 = vsel %vm408, %v6962, %v6996
  %v7007 = vpack.c.bf16 %v7000, %v6999
  %v7008 = vpack.c.bf16 %v7002, %v7001
  %v7009 = vpack.c.bf16 %v7004, %v7003
  %v7010 = vpack.c.bf16 %v7006, %v7005
  %v7011 = vld [vmem:[%s9] sm:$0xf]
  %v7012 = vld [vmem:[%s9 + $0x4] sm:$0xf]
  %v7013 = vld [vmem:[%s9 + $0x8] sm:$0xf]
  %v7014 = vld [vmem:[%s9 + $0xc] sm:$0xf]
  %v7015 = vld [vmem:[%s9 + $0x10] sm:$0xf]
  %v7016 = vld [vmem:[%s9 + $0x14] sm:$0xf]
  %v7017 = vld [vmem:[%s9 + $0x18] sm:$0xf]
  %v7018 = vld [vmem:[%s9 + $0x1c] sm:$0xf]
  %v7019 = vld [vmem:[%s9 + $0x20] sm:$0xf]
  %v7020 = vld [vmem:[%s9 + $0x24] sm:$0xf]
  %v7021 = vld [vmem:[%s9 + $0x28] sm:$0xf]
  %v7022 = vld [vmem:[%s9 + $0x2c] sm:$0xf]
  %v7023 = vld [vmem:[%s9 + $0x30] sm:$0xf]
  %v7024 = vld [vmem:[%s9 + $0x34] sm:$0xf]
  %v7025 = vld [vmem:[%s9 + $0x38] sm:$0xf]
  %v7026 = vld [vmem:[%s9 + $0x3c] sm:$0xf]
  %v7027 = vld [vmem:[%s9 + $0x40] sm:$0xf]
  %v7028 = vld [vmem:[%s9 + $0x44] sm:$0xf]
  %v7029 = vld [vmem:[%s9 + $0x48] sm:$0xf]
  %v7030 = vld [vmem:[%s9 + $0x4c] sm:$0xf]
  %v7031 = vld [vmem:[%s9 + $0x50] sm:$0xf]
  %v7032 = vld [vmem:[%s9 + $0x54] sm:$0xf]
  %v7033 = vld [vmem:[%s9 + $0x58] sm:$0xf]
  %v7034 = vld [vmem:[%s9 + $0x5c] sm:$0xf]
  %v7035 = vld [vmem:[%s9 + $0x60] sm:$0xf]
  %v7036 = vld [vmem:[%s9 + $0x64] sm:$0xf]
  %v7037 = vld [vmem:[%s9 + $0x68] sm:$0xf]
  %v7038 = vld [vmem:[%s9 + $0x6c] sm:$0xf]
  %v7039 = vld [vmem:[%s9 + $0x70] sm:$0xf]
  %v7040 = vld [vmem:[%s9 + $0x74] sm:$0xf]
  %v7041 = vld [vmem:[%s9 + $0x78] sm:$0xf]
  %v7042 = vld [vmem:[%s9 + $0x7c] sm:$0xf]
  %v7043 = vld [vmem:[%s9 + $0x80] sm:$0xf]
  %v7044 = vld [vmem:[%s9 + $0x84] sm:$0xf]
  %v7045 = vld [vmem:[%s9 + $0x88] sm:$0xf]
  %v7046 = vld [vmem:[%s9 + $0x8c] sm:$0xf]
  %v7047 = vld [vmem:[%s9 + $0x90] sm:$0xf]
  %v7048 = vld [vmem:[%s9 + $0x94] sm:$0xf]
  %v7049 = vld [vmem:[%s9 + $0x98] sm:$0xf]
  %v7050 = vld [vmem:[%s9 + $0x9c] sm:$0xf]
  %v7051 = vld [vmem:[%s9 + $0xa0] sm:$0xf]
  %v7052 = vld [vmem:[%s9 + $0xa4] sm:$0xf]
  %v7053 = vld [vmem:[%s9 + $0xa8] sm:$0xf]
  %v7054 = vld [vmem:[%s9 + $0xac] sm:$0xf]
  %v7055 = vld [vmem:[%s9 + $0xb0] sm:$0xf]
  %v7056 = vld [vmem:[%s9 + $0xb4] sm:$0xf]
  %v7057 = vld [vmem:[%s9 + $0xb8] sm:$0xf]
  %v7058 = vld [vmem:[%s9 + $0xbc] sm:$0xf]
  %v7059 = vld [vmem:[%s9 + $0xc0] sm:$0xf]
  %v7060 = vld [vmem:[%s9 + $0xc4] sm:$0xf]
  %v7061 = vld [vmem:[%s9 + $0xc8] sm:$0xf]
  %v7062 = vld [vmem:[%s9 + $0xcc] sm:$0xf]
  %v7063 = vld [vmem:[%s9 + $0xd0] sm:$0xf]
  %v7064 = vld [vmem:[%s9 + $0xd4] sm:$0xf]
  %v7065 = vld [vmem:[%s9 + $0xd8] sm:$0xf]
  %v7066 = vld [vmem:[%s9 + $0xdc] sm:$0xf]
  %v7067 = vld [vmem:[%s9 + $0xe0] sm:$0xf]
  %v7068 = vld [vmem:[%s9 + $0xe4] sm:$0xf]
  %v7069 = vld [vmem:[%s9 + $0xe8] sm:$0xf]
  %v7070 = vld [vmem:[%s9 + $0xec] sm:$0xf]
  %v7071 = vld [vmem:[%s9 + $0xf0] sm:$0xf]
  %v7072 = vld [vmem:[%s9 + $0xf4] sm:$0xf]
  %v7073 = vld [vmem:[%s9 + $0xf8] sm:$0xf]
  %v7074 = vld [vmem:[%s9 + $0xfc] sm:$0xf]
  %v7075 = vld [vmem:[%s10] sm:$0x1]
  %v7077 = vlaneseq
  %v7078 = vshrl.u32 %v7077, 7
  %v7079 = vsub.s32 0, %v7078
  %v7080 = vrot.slane %v7075, %v7079
  %v7146 = vunpack.c.l.b16 %v7011
  %v7147 = vunpack.c.l.b16 %v7012
  %v7148 = vunpack.c.l.b16 %v7013
  %v7149 = vunpack.c.l.b16 %v7014
  %v7150 = vunpack.c.l.b16 %v7015
  %v7151 = vunpack.c.l.b16 %v7016
  %v7152 = vunpack.c.l.b16 %v7017
  %v7153 = vunpack.c.l.b16 %v7018
  %v7154 = vunpack.c.l.b16 %v7019
  %v7155 = vunpack.c.l.b16 %v7020
  %v7156 = vunpack.c.l.b16 %v7021
  %v7157 = vunpack.c.l.b16 %v7022
  %v7158 = vunpack.c.l.b16 %v7023
  %v7159 = vunpack.c.l.b16 %v7024
  %v7160 = vunpack.c.l.b16 %v7025
  %v7161 = vunpack.c.l.b16 %v7026
  %v7162 = vunpack.c.l.b16 %v7027
  %v7163 = vunpack.c.l.b16 %v7028
  %v7164 = vunpack.c.l.b16 %v7029
  %v7165 = vunpack.c.l.b16 %v7030
  %v7166 = vunpack.c.l.b16 %v7031
  %v7167 = vunpack.c.l.b16 %v7032
  %v7168 = vunpack.c.l.b16 %v7033
  %v7169 = vunpack.c.l.b16 %v7034
  %v7170 = vunpack.c.l.b16 %v7035
  %v7171 = vunpack.c.l.b16 %v7036
  %v7172 = vunpack.c.l.b16 %v7037
  %v7173 = vunpack.c.l.b16 %v7038
  %v7174 = vunpack.c.l.b16 %v7039
  %v7175 = vunpack.c.l.b16 %v7040
  %v7176 = vunpack.c.l.b16 %v7041
  %v7177 = vunpack.c.l.b16 %v7042
  %v7178 = vunpack.c.l.b16 %v7043
  %v7179 = vunpack.c.l.b16 %v7044
  %v7180 = vunpack.c.l.b16 %v7045
  %v7181 = vunpack.c.l.b16 %v7046
  %v7182 = vunpack.c.l.b16 %v7047
  %v7183 = vunpack.c.l.b16 %v7048
  %v7184 = vunpack.c.l.b16 %v7049
  %v7185 = vunpack.c.l.b16 %v7050
  %v7186 = vunpack.c.l.b16 %v7051
  %v7187 = vunpack.c.l.b16 %v7052
  %v7188 = vunpack.c.l.b16 %v7053
  %v7189 = vunpack.c.l.b16 %v7054
  %v7190 = vunpack.c.l.b16 %v7055
  %v7191 = vunpack.c.l.b16 %v7056
  %v7192 = vunpack.c.l.b16 %v7057
  %v7193 = vunpack.c.l.b16 %v7058
  %v7194 = vunpack.c.l.b16 %v7059
  %v7195 = vunpack.c.l.b16 %v7060
  %v7196 = vunpack.c.l.b16 %v7061
  %v7197 = vunpack.c.l.b16 %v7062
  %v7198 = vunpack.c.l.b16 %v7063
  %v7199 = vunpack.c.l.b16 %v7064
  %v7200 = vunpack.c.l.b16 %v7065
  %v7201 = vunpack.c.l.b16 %v7066
  %v7202 = vunpack.c.l.b16 %v7067
  %v7203 = vunpack.c.l.b16 %v7068
  %v7204 = vunpack.c.l.b16 %v7069
  %v7205 = vunpack.c.l.b16 %v7070
  %v7206 = vunpack.c.l.b16 %v7071
  %v7207 = vunpack.c.l.b16 %v7072
  %v7208 = vunpack.c.l.b16 %v7073
  %v7209 = vunpack.c.l.b16 %v7074
  %v7210 = vpack.c.b16 %v7147, %v7146
  %v7211 = vpack.c.b16 %v7149, %v7148
  %v7212 = vpack.c.b16 %v7151, %v7150
  %v7213 = vpack.c.b16 %v7153, %v7152
  %v7214 = vpack.c.b16 %v7155, %v7154
  %v7215 = vpack.c.b16 %v7157, %v7156
  %v7216 = vpack.c.b16 %v7159, %v7158
  %v7217 = vpack.c.b16 %v7161, %v7160
  %v7218 = vpack.c.b16 %v7163, %v7162
  %v7219 = vpack.c.b16 %v7165, %v7164
  %v7220 = vpack.c.b16 %v7167, %v7166
  %v7221 = vpack.c.b16 %v7169, %v7168
  %v7222 = vpack.c.b16 %v7171, %v7170
  %v7223 = vpack.c.b16 %v7173, %v7172
  %v7224 = vpack.c.b16 %v7175, %v7174
  %v7225 = vpack.c.b16 %v7177, %v7176
  %v7226 = vpack.c.b16 %v7179, %v7178
  %v7227 = vpack.c.b16 %v7181, %v7180
  %v7228 = vpack.c.b16 %v7183, %v7182
  %v7229 = vpack.c.b16 %v7185, %v7184
  %v7230 = vpack.c.b16 %v7187, %v7186
  %v7231 = vpack.c.b16 %v7189, %v7188
  %v7232 = vpack.c.b16 %v7191, %v7190
  %v7233 = vpack.c.b16 %v7193, %v7192
  %v7234 = vpack.c.b16 %v7195, %v7194
  %v7235 = vpack.c.b16 %v7197, %v7196
  %v7236 = vpack.c.b16 %v7199, %v7198
  %v7237 = vpack.c.b16 %v7201, %v7200
  %v7238 = vpack.c.b16 %v7203, %v7202
  %v7239 = vpack.c.b16 %v7205, %v7204
  %v7240 = vpack.c.b16 %v7207, %v7206
  %v7241 = vpack.c.b16 %v7209, %v7208
  %7274 = vmatprep.subr.bf16.mxu0 0
  %7275 = vmatpush1.bf16.msra.mxu0 %v7210
  %7276 = vmatprep.subr.bf16.mxu0 0
  %7277 = vmatpush1.bf16.msra.mxu0 %v7211
  %7278 = vmatprep.subr.bf16.mxu0 0
  %7279 = vmatpush1.bf16.msra.mxu0 %v7212
  %7280 = vmatprep.subr.bf16.mxu0 0
  %7281 = vmatpush1.bf16.msra.mxu0 %v7213
  %7282 = vmatprep.subr.bf16.mxu0 0
  %7283 = vmatpush1.bf16.msra.mxu0 %v7214
  %7284 = vmatprep.subr.bf16.mxu0 0
  %7285 = vmatpush1.bf16.msra.mxu0 %v7215
  %7286 = vmatprep.subr.bf16.mxu0 0
  %7287 = vmatpush1.bf16.msra.mxu0 %v7216
  %7288 = vmatprep.subr.bf16.mxu0 0
  %7289 = vmatpush1.bf16.msra.mxu0 %v7217
  %7290 = vmatprep.subr.bf16.mxu0 0
  %7291 = vmatpush1.bf16.msra.mxu0 %v7218
  %7292 = vmatprep.subr.bf16.mxu0 0
  %7293 = vmatpush1.bf16.msra.mxu0 %v7219
  %7294 = vmatprep.subr.bf16.mxu0 0
  %7295 = vmatpush1.bf16.msra.mxu0 %v7220
  %7296 = vmatprep.subr.bf16.mxu0 0
  %7297 = vmatpush1.bf16.msra.mxu0 %v7221
  %7298 = vmatprep.subr.bf16.mxu0 0
  %7299 = vmatpush1.bf16.msra.mxu0 %v7222
  %7300 = vmatprep.subr.bf16.mxu0 0
  %7301 = vmatpush1.bf16.msra.mxu0 %v7223
  %7302 = vmatprep.subr.bf16.mxu0 0
  %7303 = vmatpush1.bf16.msra.mxu0 %v7224
  %7304 = vmatprep.subr.bf16.mxu0 0
  %7305 = vmatpush1.bf16.msra.mxu0 %v7225
  %7306 = vmatprep.mubr.bf16.mxu0 %v7008
  %7307 = vmatmul.mubr.bf16.gmra.mrb[0].mxu0 %v7007
  %v7308 = vpop.f32.mrb[0].mxu0
  %v7309 = vadd.f32 %v7080, %v7308
  %v7310 = vpop.f32.mrb[0].mxu0
  %v7311 = vpop.f32.mrb[0].mxu0
  %v7312 = vadd.f32 %v7080, %v7311
  %v7313 = vpop.f32.mrb[0].mxu0
  %7314 = vdwg.mxu0
  %7315 = vmatprep.subr.bf16.mxu0 0
  %7316 = vmatpush1.bf16.msra.mxu0 %v7226
  %7317 = vmatprep.subr.bf16.mxu0 0
  %7318 = vmatpush1.bf16.msra.mxu0 %v7227
  %7319 = vmatprep.subr.bf16.mxu0 0
  %7320 = vmatpush1.bf16.msra.mxu0 %v7228
  %7321 = vmatprep.subr.bf16.mxu0 0
  %7322 = vmatpush1.bf16.msra.mxu0 %v7229
  %7323 = vmatprep.subr.bf16.mxu0 0
  %7324 = vmatpush1.bf16.msra.mxu0 %v7230
  %7325 = vmatprep.subr.bf16.mxu0 0
  %7326 = vmatpush1.bf16.msra.mxu0 %v7231
  %7327 = vmatprep.subr.bf16.mxu0 0
  %7328 = vmatpush1.bf16.msra.mxu0 %v7232
  %7329 = vmatprep.subr.bf16.mxu0 0
  %7330 = vmatpush1.bf16.msra.mxu0 %v7233
  %7331 = vmatprep.subr.bf16.mxu0 0
  %7332 = vmatpush1.bf16.msra.mxu0 %v7234
  %7333 = vmatprep.subr.bf16.mxu0 0
  %7334 = vmatpush1.bf16.msra.mxu0 %v7235
  %7335 = vmatprep.subr.bf16.mxu0 0
  %7336 = vmatpush1.bf16.msra.mxu0 %v7236
  %7337 = vmatprep.subr.bf16.mxu0 0
  %7338 = vmatpush1.bf16.msra.mxu0 %v7237
  %7339 = vmatprep.subr.bf16.mxu0 0
  %7340 = vmatpush1.bf16.msra.mxu0 %v7238
  %7341 = vmatprep.subr.bf16.mxu0 0
  %7342 = vmatpush1.bf16.msra.mxu0 %v7239
  %7343 = vmatprep.subr.bf16.mxu0 0
  %7344 = vmatpush1.bf16.msra.mxu0 %v7240
  %7345 = vmatprep.subr.bf16.mxu0 0
  %7346 = vmatpush1.bf16.msra.mxu0 %v7241
  %7347 = vmatprep.mubr.bf16.mxu0 %v7010
  %7348 = vmatmul.mubr.bf16.gmra.mrb[0].mxu0 %v7009
  %v7349 = vpop.f32.mrb[0].mxu0
  %v7350 = vadd.f32 %v7309, %v7349
  %v7351 = vpop.f32.mrb[0].mxu0
  %v7352 = vpop.f32.mrb[0].mxu0
  %v7353 = vadd.f32 %v7312, %v7352
  %v7354 = vpop.f32.mrb[0].mxu0
  %7355 = vdwg.mxu0
  %7356 = vst [vmem:[%s11] sm:$0xff] %v7350
  %7357 = vst [vmem:[%s11 + $0x8] sm:$0xff] %v7353
  // Predicated region
  $region46: #{stlinear_hopbiased_forward.1} parent=0 // pred_check
    _
  $region47: #{stlinear_hopbiased_forward.1} parent=0 // pred_check_branch
    %7359 = sbr.rel (0) target = $region49
  $region48: #{stlinear_hopbiased_forward.1} parent=0 // pred_region
    _
  $region49: #{stlinear_hopbiased_forward.1} parent=0 // pred_fallthru
    _
  // Predicated region
  $region50: #{stlinear_hopbiased_forward.1} parent=0 // pred_check
    _
  $region51: #{stlinear_hopbiased_forward.1} parent=0 // pred_check_branch
    %7361 = sbr.rel (0) target = $region53
  $region52: #{stlinear_hopbiased_forward.1} parent=0 // pred_region
    _
  $region53: #{stlinear_hopbiased_forward.1} parent=0 // pred_fallthru
    _

</llo_original>
